<compile_context>
chip_gen: v6e
topology: v6e:2x2x1
jax: 0.10.0
libtpu: 0.0.40
codegen_flags: <defaults>
</compile_context>

<pallas_src>
import functools
import math

import jax
import jax.numpy as jnp
from jax import lax
from jax.experimental import pallas as pl
from jax.experimental.pallas import tpu as pltpu

MASK_VALUE = float(-2.0 ** 32 + 1)   # reference mask value
PAD_NEG = -1.0e38                    # padded rows: exp underflows to exactly 0


# --------------------------------------------------------------------------
# Fused kernel: attention1 -> masked BiLSTM -> attention2 -> sim_linear/norm
# One grid step per batch element b.
# --------------------------------------------------------------------------
def _matchnet_kernel(S, I, Jr, H, Hp,                    # static dims
                     csl_ref, rlen_ref, clen_ref,        # scalar prefetch (SMEM)
                     cs_ref, rs_ref, rh_ref,             # per-batch tensors
                     wih_f_ref, whh_f_ref, b_f_ref,      # fwd LSTM (gate-merged)
                     wih_b_ref, whh_b_ref, b_b_ref,      # bwd LSTM (gate-merged)
                     wsim_ref,                           # sim_linear, split halves
                     check_ref, att2_ref, dist_ref,      # outputs
                     xpf_ref, xpb_ref):                  # VMEM scratch
    b = pl.program_id(0)
    T = S
    f32 = jnp.float32
    SR = S * 8

    q_len = rlen_ref[b]                  # valid responses (J axis)
    c_len = clen_ref[b]                  # valid steps (S axis)

    cs = cs_ref[0]                       # [S*8, K]  (token rows padded to 8/step)
    rs = rs_ref[0]                       # [8, K]    (responses padded to 8)

    # ---------------- Stage 1: batched attention + segmented masked softmax ----
    att = lax.dot_general(cs, rs, (((1,), (1,)), ((), ())),
                          preferred_element_type=f32)                   # [S*8, 8]

    row_i = lax.broadcasted_iota(jnp.int32, (SR, 8), 0)
    col_j = lax.broadcasted_iota(jnp.int32, (SR, 8), 1)
    col_ok = col_j < q_len
    row_ok = row_i < csl_ref[b, 0]                      # block s = 0
    real_row = row_i < I
    for s in range(1, S):
        in_blk = row_i >= s * 8
        row_ok = row_ok | (in_blk & (row_i < s * 8 + csl_ref[b, s]))
        real_row = real_row | (in_blk & (row_i < s * 8 + I))

    logits = jnp.where(row_ok & col_ok, att, MASK_VALUE)
    logits = jnp.where(real_row, logits, PAD_NEG)       # padded token rows drop out

    logits3 = logits.reshape(S, 8, 8)                   # sublane-aligned split
    m1 = jnp.max(logits3, axis=1, keepdims=True)        # softmax over tokens
    e1 = jnp.exp(logits3 - m1)
    q_att3 = e1 * pl.reciprocal(jnp.sum(e1, axis=1, keepdims=True), approx=True)
    check_ref[0] = q_att3                               # ONE store, sliced on host
    q_att = q_att3.reshape(SR, 8)                       # [S*8, 8]

    # -------- block-diag(q_att) @ C_s : masked time-major LSTM input, ONE dot --
    q_tiled = jnp.concatenate([q_att] * T, axis=1)      # [S*8, T*8]
    ci = lax.broadcasted_iota(jnp.int32, (SR, T * 8), 0)
    ri = lax.broadcasted_iota(jnp.int32, (SR, T * 8), 1)

    def blk_of(x):                                      # x // 8 without vector div
        blk = jnp.zeros_like(x)
        for s in range(1, S):
            blk = blk + (x >= s * 8).astype(jnp.int32)
        return blk

    t_c = blk_of(ci)
    t_r = blk_of(ri)
    keep = (t_c == t_r) & ((ri - t_r * 8) < Jr) & (t_r < c_len)
    Wq = jnp.where(keep, q_tiled, 0.0)
    xm = lax.dot_general(Wq, cs, (((0,), (0,)), ((), ())),
                         preferred_element_type=f32)    # [T*8, K], row = t*8 + j

    # ---------------- Stage 2: masked BiLSTM, merged gates, interleaved dirs ----
    # TODO(synk): Dropout(0.3) inside MaskLSTM implemented as eval-mode identity.
    xpf_ref[...] = (jnp.dot(xm, wih_f_ref[...], preferred_element_type=f32)
                    + b_f_ref[...])                     # [T*8, 4*Hp]
    xpb_ref[...] = (jnp.dot(xm, wih_b_ref[...], preferred_element_type=f32)
                    + b_b_ref[...])

    whh_f = whh_f_ref[...]                              # [Hp, 4*Hp]
    whh_b = whh_b_ref[...]

    def cell(x_g, h, c, whh):
        g = x_g + jnp.dot(h, whh, preferred_element_type=f32)          # [8, 4*Hp]
        gi = g[:, 0 * Hp:1 * Hp]
        gf = g[:, 1 * Hp:2 * Hp]
        gg = g[:, 2 * Hp:3 * Hp]
        go = g[:, 3 * Hp:4 * Hp]
        c_new = jax.nn.sigmoid(gf) * c + jax.nn.sigmoid(gi) * jnp.tanh(gg)
        h_new = jax.nn.sigmoid(go) * jnp.tanh(c_new)
        return h_new, c_new

    h_f = jnp.zeros((8, Hp), f32)
    c_f = jnp.zeros((8, Hp), f32)
    h_b = jnp.zeros((8, Hp), f32)
    c_b = jnp.zeros((8, Hp), f32)
    hf = [None] * T
    hb = [None] * T
    for t in range(T):                                  # static unroll (T=4)
        tb = T - 1 - t
        h_f, c_f = cell(xpf_ref[pl.ds(t * 8, 8), :], h_f, c_f, whh_f)
        h_b, c_b = cell(xpb_ref[pl.ds(tb * 8, 8), :], h_b, c_b, whh_b)
        hf[t] = h_f * (c_len > t).astype(f32)           # output masking
        hb[tb] = h_b * (c_len > tb).astype(f32)

    # ---------------- Stage 3: step attention, softmax over steps, C_h, sim ----
    rh_f = rh_ref[0, 0]                                 # [8, Hp] forward half of R_h
    rh_b = rh_ref[0, 1]                                 # [8, Hp] backward half
    att2_cols = [jnp.sum(hf[t] * rh_f + hb[t] * rh_b, axis=-1, keepdims=True)
                 for t in range(T)]                     # T x [8, 1]
    att2 = jnp.concatenate(att2_cols, axis=1)           # [8, S]
    att2_ref[0] = att2                                  # ONE store, sliced on host

    jj = lax.broadcasted_iota(jnp.int32, (8, S), 0)
    ss = lax.broadcasted_iota(jnp.int32, (8, S), 1)
    logits2 = jnp.where((jj < q_len) & (ss < c_len), att2, MASK_VALUE)
    m2 = jnp.max(logits2, axis=-1, keepdims=True)
    e2 = jnp.exp(logits2 - m2)
    p_att = e2 * pl.reciprocal(jnp.sum(e2, axis=-1, keepdims=True), approx=True)

    ch_f = jnp.zeros((8, Hp), f32)
    ch_b = jnp.zeros((8, Hp), f32)
    for t in range(T):
        w_t = p_att[:, t:t + 1]                         # [8, 1]
        ch_f = ch_f + w_t * hf[t]
        ch_b = ch_b + w_t * hb[t]

    y = (jnp.dot(ch_f - rh_f, wsim_ref[0], preferred_element_type=f32)
         + jnp.dot(ch_b - rh_b, wsim_ref[1], preferred_element_type=f32))  # [8, D]
    norms = jnp.sqrt(jnp.sum(y * y, axis=-1, keepdims=True))               # [8, 1]
    jmask = (lax.broadcasted_iota(jnp.int32, (8, 1), 0) < Jr).astype(f32)
    dist_ref[0] = -jnp.sum(norms * jmask, axis=0, keepdims=True)           # [1, 1]


def matchnet_fused(packed, C_s_pad, R_s_pad, R_h_pad, C_s_len, R_len, C_len,
                   S, I, Jr, H, Hp):
    B = C_s_pad.shape[0]
    K = C_s_pad.shape[-1]
    D = 2 * H
    G4 = 4 * Hp

    kernel = functools.partial(_matchnet_kernel, S, I, Jr, H, Hp)

    grid_spec = pltpu.PrefetchScalarGridSpec(
        num_scalar_prefetch=3,
        grid=(B,),
        in_specs=[
            pl.BlockSpec((1, S * 8, K), lambda b, csl, rl, cl: (b, 0, 0)),
            pl.BlockSpec((1, 8, K),     lambda b, csl, rl, cl: (b, 0, 0)),
            pl.BlockSpec((1, 2, 8, Hp), lambda b, csl, rl, cl: (b, 0, 0, 0)),
            pl.BlockSpec((K, G4),       lambda b, csl, rl, cl: (0, 0)),
            pl.BlockSpec((Hp, G4),      lambda b, csl, rl, cl: (0, 0)),
            pl.BlockSpec((1, G4),       lambda b, csl, rl, cl: (0, 0)),
            pl.BlockSpec((K, G4),       lambda b, csl, rl, cl: (0, 0)),
            pl.BlockSpec((Hp, G4),      lambda b, csl, rl, cl: (0, 0)),
            pl.BlockSpec((1, G4),       lambda b, csl, rl, cl: (0, 0)),
            pl.BlockSpec((2, Hp, D),    lambda b, csl, rl, cl: (0, 0, 0)),
        ],
        out_specs=[
            pl.BlockSpec((1, S, 8, 8),  lambda b, csl, rl, cl: (b, 0, 0, 0)),
            pl.BlockSpec((1, 8, S),     lambda b, csl, rl, cl: (b, 0, 0)),
            pl.BlockSpec((1, 1, 1),     lambda b, csl, rl, cl: (b, 0, 0)),
        ],
        scratch_shapes=[
            pltpu.VMEM((S * 8, G4), jnp.float32),       # hoisted fwd input proj
            pltpu.VMEM((S * 8, G4), jnp.float32),       # hoisted bwd input proj
        ],
    )
    check, att2, dist = pl.pallas_call(
        kernel,
        grid_spec=grid_spec,
        out_shape=(
            jax.ShapeDtypeStruct((B, S, 8, 8), jnp.float32),
            jax.ShapeDtypeStruct((B, 8, S), jnp.float32),
            jax.ShapeDtypeStruct((B, 1, 1), jnp.float32),
        ),
        compiler_params=pltpu.CompilerParams(
            dimension_semantics=("parallel",)),
    )(C_s_len.astype(jnp.int32), R_len.astype(jnp.int32), C_len.astype(jnp.int32),
      C_s_pad, R_s_pad, R_h_pad,
      packed["wih_f"], packed["whh_f"], packed["b_f"],
      packed["wih_b"], packed["whh_b"], packed["b_b"],
      packed["w_sim"])
    return check, att2, dist


# --------------------------------------------------------------------------
# Host-side layout plumbing: gate merging + zero padding (one-time, XLA).
# Merged gate layout: gate g lives in lanes [g*Hp, g*Hp + H) of a 4*Hp block;
# all other lanes / rows are zero so padded hidden lanes stay exactly 0.
# --------------------------------------------------------------------------
def pack_params(params, Hp):
    K = params["wih_f"].shape[1]
    H = params["wih_f"].shape[2]
    D = 2 * H

    def merge_w(w, rows):                               # w: [4, rows, H]
        out = jnp.zeros((rows, 4 * Hp), jnp.float32)
        for g in range(4):
            out = out.at[:w.shape[1], g * Hp:g * Hp + H].set(w[g])
        return out

    def merge_b(bias):                                  # bias: [4, 1, H]
        out = jnp.zeros((1, 4 * Hp), jnp.float32)
        for g in range(4):
            out = out.at[:, g * Hp:g * Hp + H].set(bias[g])
        return out

    w_sim = jnp.zeros((2, Hp, D), jnp.float32).at[:, :H, :].set(params["w_sim"])
    return {
        "wih_f": merge_w(params["wih_f"], K),
        "whh_f": merge_w(params["whh_f"], Hp),
        "b_f":   merge_b(params["b_f"]),
        "wih_b": merge_w(params["wih_b"], K),
        "whh_b": merge_w(params["whh_b"], Hp),
        "b_b":   merge_b(params["b_b"]),
        "w_sim": w_sim,
    }


# --------------------------------------------------------------------------
# Full MatchNet forward
# --------------------------------------------------------------------------
def matchnet_forward(params, inputs):
    C_s, C_len, C_s_len, R_s, R_h, R_len = inputs
    B, S, I, K = C_s.shape
    Jr = R_s.shape[1]
    H = params["whh_f"].shape[-1]
    Hp = 256                                            # H padded to 2 lane tiles

    # Host-side padding (layout plumbing only): tokens I->8, responses J->8,
    # hidden H->Hp; R_h split into (forward | backward) halves.
    C_s_pad = jnp.zeros((B, S, 8, K), jnp.float32).at[:, :, :I, :].set(C_s)
    C_s_pad = C_s_pad.reshape(B, S * 8, K)
    R_s_pad = jnp.zeros((B, 8, K), jnp.float32).at[:, :Jr, :].set(R_s)
    R_h_pad = jnp.zeros((B, 2, 8, Hp), jnp.float32)
    R_h_pad = R_h_pad.at[:, 0, :Jr, :H].set(R_h[..., :H])
    R_h_pad = R_h_pad.at[:, 1, :Jr, :H].set(R_h[..., H:])

    packed = pack_params(params, Hp)

    check_p, att2_p, dist = matchnet_fused(packed, C_s_pad, R_s_pad, R_h_pad,
                                           C_s_len, R_len, C_len,
                                           S, I, Jr, H, Hp)
    dist = dist.reshape(B)
    check = check_p[:, :, :I, :Jr]                      # [B, S, I, J]
    att2 = att2_p[:, :Jr, :]                            # [B, J, S]

    # glue: step-attention max / diff bookkeeping on a tiny [B, S, J] tensor
    step_att = jnp.transpose(att2, (0, 2, 1))           # [B, S, J]
    max_index = jnp.argmax(step_att, axis=1)            # [B, J]
    step_max = jnp.max(step_att, axis=1)                # [B, J]
    s_iota = jnp.arange(S)[None, :, None]
    diffs = []
    for i in range(Jr - 1):
        d = step_max[:, i][:, None, None] - step_att[:, :, i + 1:]
        m = (s_iota < max_index[:, i][:, None, None]).astype(jnp.float32)
        d = d * m
        diffs.append(jnp.min(jnp.min(d, axis=1), axis=1, keepdims=True))
    all_diff = jnp.min(jnp.concatenate(diffs, axis=1), axis=1)

    return dist, all_diff, check


# --------------------------------------------------------------------------
# Deterministic parameter init (synthetic, PyTorch-like uniform ranges).
# Natural gate-major layout (i, f, g, o), pre-transposed for x @ W form;
# sim_linear weight stored split by input half: y = d_f @ W0 + d_b @ W1.
# --------------------------------------------------------------------------
def init_params(key, K=300, H=150):
    bound = 1.0 / math.sqrt(H)
    ks = jax.random.split(key, 7)

    def u(k, shape):
        return jax.random.uniform(k, shape, jnp.float32, -bound, bound)

    return {
        "wih_f": u(ks[0], (4, K, H)),
        "whh_f": u(ks[1], (4, H, H)),
        "b_f":   u(ks[2], (4, 1, H)),      # b_ih + b_hh folded together
        "wih_b": u(ks[3], (4, K, H)),
        "whh_b": u(ks[4], (4, H, H)),
        "b_b":   u(ks[5], (4, 1, H)),
        "w_sim": u(ks[6], (2, H, 2 * H)),
    }


if __name__ == "__main__":
    key = jax.random.PRNGKey(0)
    B, S, I, J, K, H = 2, 4, 6, 4, 300, 150   # J=4 is hardcoded by repeat(1,4)
    k1, k2, k3, k4, k5, k6, kp = jax.random.split(key, 7)

    C_s = jax.random.normal(k1, (B, S, I, K), jnp.float32)
    R_s = jax.random.normal(k2, (B, J, K), jnp.float32)
    R_h = jax.random.normal(k3, (B, J, 2 * H), jnp.float32)
    C_len = jax.random.randint(k4, (B,), 1, S + 1)
    C_s_len = jax.random.randint(k5, (B, S), 1, I + 1)
    R_len = jax.random.randint(k6, (B,), 1, J + 1)

    params = init_params(kp, K, H)

    dist, all_diff, check = matchnet_forward(
        params, (C_s, C_len, C_s_len, R_s, R_h, R_len))
    jax.block_until_ready((dist, all_diff, check))
    assert dist.shape == (B,)
    assert all_diff.shape == (B,)
    assert check.shape == (B, S, I, J)
    print("KERNEL_OK")
</pallas_src>

<mosaic_0001>
module attributes {stable_mosaic.version = 11 : i64} {
  func.func @_matchnet_kernel(%arg0: i32, %arg1: memref<2x4xi32, #tpu.memory_space<smem>>, %arg2: memref<2xi32, #tpu.memory_space<smem>>, %arg3: memref<2xi32, #tpu.memory_space<smem>>, %arg4: memref<1x32x300xf32, #tpu.memory_space<vmem>>, %arg5: memref<1x8x300xf32, #tpu.memory_space<vmem>>, %arg6: memref<1x2x8x256xf32, #tpu.memory_space<vmem>>, %arg7: memref<300x1024xf32, #tpu.memory_space<vmem>>, %arg8: memref<256x1024xf32, #tpu.memory_space<vmem>>, %arg9: memref<1x1024xf32, #tpu.memory_space<vmem>>, %arg10: memref<300x1024xf32, #tpu.memory_space<vmem>>, %arg11: memref<256x1024xf32, #tpu.memory_space<vmem>>, %arg12: memref<1x1024xf32, #tpu.memory_space<vmem>>, %arg13: memref<2x256x300xf32, #tpu.memory_space<vmem>>, %arg14: memref<1x4x8x8xf32, #tpu.memory_space<vmem>>, %arg15: memref<1x8x4xf32, #tpu.memory_space<vmem>>, %arg16: memref<1x1x1xf32, #tpu.memory_space<vmem>>, %arg17: memref<32x1024xf32, #tpu.memory_space<vmem>>, %arg18: memref<32x1024xf32, #tpu.memory_space<vmem>>) attributes {dimension_semantics = [#tpu.dimension_semantics<parallel>], iteration_bounds = array<i64: 2>, scalar_prefetch = 3 : i64, scratch_operands = 2 : i64, tpu.core_type = #tpu.core_type<tc>, window_params = [{transform_indices = @transform_0, window_bounds = array<i64: 1, 32, 300>}, {transform_indices = @transform_1, window_bounds = array<i64: 1, 8, 300>}, {transform_indices = @transform_2, window_bounds = array<i64: 1, 2, 8, 256>}, {pipeline_mode = #tpu.pipeline_mode<synchronous>, transform_indices = @transform_3, window_bounds = array<i64: 300, 1024>}, {pipeline_mode = #tpu.pipeline_mode<synchronous>, transform_indices = @transform_4, window_bounds = array<i64: 256, 1024>}, {pipeline_mode = #tpu.pipeline_mode<synchronous>, transform_indices = @transform_5, window_bounds = array<i64: 1, 1024>}, {pipeline_mode = #tpu.pipeline_mode<synchronous>, transform_indices = @transform_6, window_bounds = array<i64: 300, 1024>}, {pipeline_mode = #tpu.pipeline_mode<synchronous>, transform_indices = @transform_7, window_bounds = array<i64: 256, 1024>}, {pipeline_mode = #tpu.pipeline_mode<synchronous>, transform_indices = @transform_8, window_bounds = array<i64: 1, 1024>}, {pipeline_mode = #tpu.pipeline_mode<synchronous>, transform_indices = @transform_9, window_bounds = array<i64: 2, 256, 300>}, {transform_indices = @transform_10, window_bounds = array<i64: 1, 4, 8, 8>}, {transform_indices = @transform_11, window_bounds = array<i64: 1, 8, 4>}, {transform_indices = @transform_12, window_bounds = array<i64: 1, 1, 1>}]} {
    %0 = arith.index_cast %arg0 : i32 to index
    %1 = memref.load %arg2[%0] : memref<2xi32, #tpu.memory_space<smem>>
    %2 = arith.index_cast %arg0 : i32 to index
    %3 = memref.load %arg3[%2] : memref<2xi32, #tpu.memory_space<smem>>
    %c0 = arith.constant 0 : index
    %c0_0 = arith.constant 0 : index
    %c0_1 = arith.constant 0 : index
    %4 = vector.load %arg4[%c0, %c0_0, %c0_1] : memref<1x32x300xf32, #tpu.memory_space<vmem>>, vector<1x32x300xf32>
    %5 = vector.shape_cast %4 : vector<1x32x300xf32> to vector<32x300xf32>
    %c0_2 = arith.constant 0 : index
    %c0_3 = arith.constant 0 : index
    %c0_4 = arith.constant 0 : index
    %6 = vector.load %arg5[%c0_2, %c0_3, %c0_4] : memref<1x8x300xf32, #tpu.memory_space<vmem>>, vector<1x8x300xf32>
    %7 = vector.shape_cast %6 : vector<1x8x300xf32> to vector<8x300xf32>
    %cst = arith.constant dense<0.000000e+00> : vector<32x8xf32>
    %8 = tpu.matmul %5, %7, %cst {dimension_numbers = #tpu.dot_dimension_numbers<[1], [1], [0], [0], [0, 0, 1, 0], [], []>} : vector<32x300xf32>, vector<8x300xf32>, vector<32x8xf32> -> vector<32x8xf32>
    %9 = tpu.iota {dimensions = array<i32: 0>} : vector<32x8xi32>
    %10 = tpu.iota {dimensions = array<i32: 1>} : vector<32x8xi32>
    %11 = vector.broadcast %1 : i32 to vector<32x8xi32>
    %12 = arith.cmpi slt, %10, %11 : vector<32x8xi32>
    %13 = arith.index_cast %arg0 : i32 to index
    %c0_5 = arith.constant 0 : index
    %14 = memref.load %arg1[%13, %c0_5] : memref<2x4xi32, #tpu.memory_space<smem>>
    %15 = vector.broadcast %14 : i32 to vector<32x8xi32>
    %16 = arith.cmpi slt, %9, %15 : vector<32x8xi32>
    %c6_i32 = arith.constant 6 : i32
    %17 = vector.broadcast %c6_i32 : i32 to vector<32x8xi32>
    %18 = arith.cmpi slt, %9, %17 : vector<32x8xi32>
    %c8_i32 = arith.constant 8 : i32
    %19 = vector.broadcast %c8_i32 : i32 to vector<32x8xi32>
    %20 = arith.cmpi sge, %9, %19 : vector<32x8xi32>
    %21 = arith.index_cast %arg0 : i32 to index
    %c1 = arith.constant 1 : index
    %22 = memref.load %arg1[%21, %c1] : memref<2x4xi32, #tpu.memory_space<smem>>
    %c8_i32_6 = arith.constant 8 : i32
    %23 = arith.addi %c8_i32_6, %22 : i32
    %24 = vector.broadcast %23 : i32 to vector<32x8xi32>
    %25 = arith.cmpi slt, %9, %24 : vector<32x8xi32>
    %26 = arith.andi %20, %25 : vector<32x8xi1>
    %27 = arith.ori %16, %26 : vector<32x8xi1>
    %c14_i32 = arith.constant 14 : i32
    %28 = vector.broadcast %c14_i32 : i32 to vector<32x8xi32>
    %29 = arith.cmpi slt, %9, %28 : vector<32x8xi32>
    %30 = arith.andi %20, %29 : vector<32x8xi1>
    %31 = arith.ori %18, %30 : vector<32x8xi1>
    %c16_i32 = arith.constant 16 : i32
    %32 = vector.broadcast %c16_i32 : i32 to vector<32x8xi32>
    %33 = arith.cmpi sge, %9, %32 : vector<32x8xi32>
    %34 = arith.index_cast %arg0 : i32 to index
    %c2 = arith.constant 2 : index
    %35 = memref.load %arg1[%34, %c2] : memref<2x4xi32, #tpu.memory_space<smem>>
    %c16_i32_7 = arith.constant 16 : i32
    %36 = arith.addi %c16_i32_7, %35 : i32
    %37 = vector.broadcast %36 : i32 to vector<32x8xi32>
    %38 = arith.cmpi slt, %9, %37 : vector<32x8xi32>
    %39 = arith.andi %33, %38 : vector<32x8xi1>
    %40 = arith.ori %27, %39 : vector<32x8xi1>
    %c22_i32 = arith.constant 22 : i32
    %41 = vector.broadcast %c22_i32 : i32 to vector<32x8xi32>
    %42 = arith.cmpi slt, %9, %41 : vector<32x8xi32>
    %43 = arith.andi %33, %42 : vector<32x8xi1>
    %44 = arith.ori %31, %43 : vector<32x8xi1>
    %c24_i32 = arith.constant 24 : i32
    %45 = vector.broadcast %c24_i32 : i32 to vector<32x8xi32>
    %46 = arith.cmpi sge, %9, %45 : vector<32x8xi32>
    %47 = arith.index_cast %arg0 : i32 to index
    %c3 = arith.constant 3 : index
    %48 = memref.load %arg1[%47, %c3] : memref<2x4xi32, #tpu.memory_space<smem>>
    %c24_i32_8 = arith.constant 24 : i32
    %49 = arith.addi %c24_i32_8, %48 : i32
    %50 = vector.broadcast %49 : i32 to vector<32x8xi32>
    %51 = arith.cmpi slt, %9, %50 : vector<32x8xi32>
    %52 = arith.andi %46, %51 : vector<32x8xi1>
    %53 = arith.ori %40, %52 : vector<32x8xi1>
    %c30_i32 = arith.constant 30 : i32
    %54 = vector.broadcast %c30_i32 : i32 to vector<32x8xi32>
    %55 = arith.cmpi slt, %9, %54 : vector<32x8xi32>
    %56 = arith.andi %46, %55 : vector<32x8xi1>
    %57 = arith.ori %44, %56 : vector<32x8xi1>
    %58 = arith.andi %53, %12 : vector<32x8xi1>
    %cst_9 = arith.constant -4.2949673E+9 : f32
    %59 = vector.broadcast %cst_9 : f32 to vector<32x8xf32>
    %60 = arith.select %58, %8, %59 : vector<32x8xi1>, vector<32x8xf32>
    %cst_10 = arith.constant -9.99999968E+37 : f32
    %61 = vector.broadcast %cst_10 : f32 to vector<32x8xf32>
    %62 = arith.select %57, %60, %61 : vector<32x8xi1>, vector<32x8xf32>
    %63 = vector.shape_cast %62 : vector<32x8xf32> to vector<4x8x8xf32>
    %cst_11 = arith.constant dense<0xFF800000> : vector<4x8xf32>
    %64 = vector.multi_reduction <maximumf>, %63, %cst_11 [1] : vector<4x8x8xf32> to vector<4x8xf32>
    %65 = vector.shape_cast %64 : vector<4x8xf32> to vector<4x1x8xf32>
    %66 = vector.broadcast %65 : vector<4x1x8xf32> to vector<4x8x8xf32>
    %67 = arith.subf %63, %66 : vector<4x8x8xf32>
    %68 = math.exp %67 : vector<4x8x8xf32>
    %cst_12 = arith.constant dense<0.000000e+00> : vector<4x8xf32>
    %69 = vector.multi_reduction <add>, %68, %cst_12 [1] : vector<4x8x8xf32> to vector<4x8xf32>
    %70 = vector.shape_cast %69 : vector<4x8xf32> to vector<4x1x8xf32>
    %71 = tpu.reciprocal %70 {approx = true} : vector<4x1x8xf32> -> vector<4x1x8xf32>
    %72 = vector.broadcast %71 : vector<4x1x8xf32> to vector<4x8x8xf32>
    %73 = arith.mulf %68, %72 : vector<4x8x8xf32>
    %c0_13 = arith.constant 0 : index
    %c0_14 = arith.constant 0 : index
    %c0_15 = arith.constant 0 : index
    %c0_16 = arith.constant 0 : index
    %74 = vector.load %arg14[%c0_13, %c0_14, %c0_15, %c0_16] : memref<1x4x8x8xf32, #tpu.memory_space<vmem>>, vector<1x4x8x8xf32>
    %75 = vector.shape_cast %74 : vector<1x4x8x8xf32> to vector<4x8x8xf32>
    %76 = vector.shape_cast %73 : vector<4x8x8xf32> to vector<1x4x8x8xf32>
    tpu.vector_store %arg14[%c0_13, %c0_14, %c0_15, %c0_16], %76 {strides = array<i32>} : memref<1x4x8x8xf32, #tpu.memory_space<vmem>>, vector<1x4x8x8xf32>,
    %77 = vector.shape_cast %73 : vector<4x8x8xf32> to vector<32x8xf32>
    %78 = tpu.concatenate %77, %77, %77, %77 in 1 : vector<32x8xf32>, vector<32x8xf32>, vector<32x8xf32>, vector<32x8xf32> -> vector<32x32xf32>
    %79 = tpu.iota {dimensions = array<i32: 0>} : vector<32x32xi32>
    %80 = tpu.iota {dimensions = array<i32: 1>} : vector<32x32xi32>
    %c0_i32 = arith.constant 0 : i32
    %81 = vector.broadcast %c0_i32 : i32 to vector<32x32xi32>
    %c8_i32_17 = arith.constant 8 : i32
    %82 = vector.broadcast %c8_i32_17 : i32 to vector<32x32xi32>
    %83 = arith.cmpi sge, %79, %82 : vector<32x32xi32>
    %84 = arith.extui %83 : vector<32x32xi1> to vector<32x32xi32>
    %85 = arith.addi %81, %84 : vector<32x32xi32>
    %c16_i32_18 = arith.constant 16 : i32
    %86 = vector.broadcast %c16_i32_18 : i32 to vector<32x32xi32>
    %87 = arith.cmpi sge, %79, %86 : vector<32x32xi32>
    %88 = arith.extui %87 : vector<32x32xi1> to vector<32x32xi32>
    %89 = arith.addi %85, %88 : vector<32x32xi32>
    %c24_i32_19 = arith.constant 24 : i32
    %90 = vector.broadcast %c24_i32_19 : i32 to vector<32x32xi32>
    %91 = arith.cmpi sge, %79, %90 : vector<32x32xi32>
    %92 = arith.extui %91 : vector<32x32xi1> to vector<32x32xi32>
    %93 = arith.addi %89, %92 : vector<32x32xi32>
    %c0_i32_20 = arith.constant 0 : i32
    %94 = vector.broadcast %c0_i32_20 : i32 to vector<32x32xi32>
    %c8_i32_21 = arith.constant 8 : i32
    %95 = vector.broadcast %c8_i32_21 : i32 to vector<32x32xi32>
    %96 = arith.cmpi sge, %80, %95 : vector<32x32xi32>
    %97 = arith.extui %96 : vector<32x32xi1> to vector<32x32xi32>
    %98 = arith.addi %94, %97 : vector<32x32xi32>
    %c16_i32_22 = arith.constant 16 : i32
    %99 = vector.broadcast %c16_i32_22 : i32 to vector<32x32xi32>
    %100 = arith.cmpi sge, %80, %99 : vector<32x32xi32>
    %101 = arith.extui %100 : vector<32x32xi1> to vector<32x32xi32>
    %102 = arith.addi %98, %101 : vector<32x32xi32>
    %c24_i32_23 = arith.constant 24 : i32
    %103 = vector.broadcast %c24_i32_23 : i32 to vector<32x32xi32>
    %104 = arith.cmpi sge, %80, %103 : vector<32x32xi32>
    %105 = arith.extui %104 : vector<32x32xi1> to vector<32x32xi32>
    %106 = arith.addi %102, %105 : vector<32x32xi32>
    %107 = arith.cmpi eq, %93, %106 : vector<32x32xi32>
    %c8_i32_24 = arith.constant 8 : i32
    %108 = vector.broadcast %c8_i32_24 : i32 to vector<32x32xi32>
    %109 = arith.muli %106, %108 : vector<32x32xi32>
    %110 = arith.subi %80, %109 : vector<32x32xi32>
    %c4_i32 = arith.constant 4 : i32
    %111 = vector.broadcast %c4_i32 : i32 to vector<32x32xi32>
    %112 = arith.cmpi slt, %110, %111 : vector<32x32xi32>
    %113 = arith.andi %107, %112 : vector<32x32xi1>
    %114 = vector.broadcast %3 : i32 to vector<32x32xi32>
    %115 = arith.cmpi slt, %106, %114 : vector<32x32xi32>
    %116 = arith.andi %113, %115 : vector<32x32xi1>
    %cst_25 = arith.constant 0.000000e+00 : f32
    %117 = vector.broadcast %cst_25 : f32 to vector<32x32xf32>
    %118 = arith.select %116, %78, %117 : vector<32x32xi1>, vector<32x32xf32>
    %cst_26 = arith.constant dense<0.000000e+00> : vector<32x300xf32>
    %119 = tpu.matmul %118, %5, %cst_26 {dimension_numbers = #tpu.dot_dimension_numbers<[0], [0], [1], [1], [0, 1, 1, 1], [], []>} : vector<32x32xf32>, vector<32x300xf32>, vector<32x300xf32> -> vector<32x300xf32>
    %c0_27 = arith.constant 0 : index
    %c0_28 = arith.constant 0 : index
    %120 = vector.load %arg7[%c0_27, %c0_28] : memref<300x1024xf32, #tpu.memory_space<vmem>>, vector<300x1024xf32>
    %cst_29 = arith.constant dense<0.000000e+00> : vector<32x1024xf32>
    %121 = tpu.matmul %119, %120, %cst_29 {dimension_numbers = #tpu.dot_dimension_numbers<[1], [0], [0], [1], [0, 0, 1, 1], [], []>} : vector<32x300xf32>, vector<300x1024xf32>, vector<32x1024xf32> -> vector<32x1024xf32>
    %c0_30 = arith.constant 0 : index
    %c0_31 = arith.constant 0 : index
    %122 = vector.load %arg9[%c0_30, %c0_31] : memref<1x1024xf32, #tpu.memory_space<vmem>>, vector<1x1024xf32>
    %123 = vector.broadcast %122 : vector<1x1024xf32> to vector<32x1024xf32>
    %124 = arith.addf %121, %123 : vector<32x1024xf32>
    %c0_32 = arith.constant 0 : index
    %c0_33 = arith.constant 0 : index
    %125 = vector.load %arg17[%c0_32, %c0_33] : memref<32x1024xf32, #tpu.memory_space<vmem>>, vector<32x1024xf32>
    tpu.vector_store %arg17[%c0_32, %c0_33], %124 {strides = array<i32>} : memref<32x1024xf32, #tpu.memory_space<vmem>>, vector<32x1024xf32>,
    %c0_34 = arith.constant 0 : index
    %c0_35 = arith.constant 0 : index
    %126 = vector.load %arg10[%c0_34, %c0_35] : memref<300x1024xf32, #tpu.memory_space<vmem>>, vector<300x1024xf32>
    %cst_36 = arith.constant dense<0.000000e+00> : vector<32x1024xf32>
    %127 = tpu.matmul %119, %126, %cst_36 {dimension_numbers = #tpu.dot_dimension_numbers<[1], [0], [0], [1], [0, 0, 1, 1], [], []>} : vector<32x300xf32>, vector<300x1024xf32>, vector<32x1024xf32> -> vector<32x1024xf32>
    %c0_37 = arith.constant 0 : index
    %c0_38 = arith.constant 0 : index
    %128 = vector.load %arg12[%c0_37, %c0_38] : memref<1x1024xf32, #tpu.memory_space<vmem>>, vector<1x1024xf32>
    %129 = vector.broadcast %128 : vector<1x1024xf32> to vector<32x1024xf32>
    %130 = arith.addf %127, %129 : vector<32x1024xf32>
    %c0_39 = arith.constant 0 : index
    %c0_40 = arith.constant 0 : index
    %131 = vector.load %arg18[%c0_39, %c0_40] : memref<32x1024xf32, #tpu.memory_space<vmem>>, vector<32x1024xf32>
    tpu.vector_store %arg18[%c0_39, %c0_40], %130 {strides = array<i32>} : memref<32x1024xf32, #tpu.memory_space<vmem>>, vector<32x1024xf32>,
    %c0_41 = arith.constant 0 : index
    %c0_42 = arith.constant 0 : index
    %132 = vector.load %arg8[%c0_41, %c0_42] : memref<256x1024xf32, #tpu.memory_space<vmem>>, vector<256x1024xf32>
    %c0_43 = arith.constant 0 : index
    %c0_44 = arith.constant 0 : index
    %133 = vector.load %arg11[%c0_43, %c0_44] : memref<256x1024xf32, #tpu.memory_space<vmem>>, vector<256x1024xf32>
    %cst_45 = arith.constant 0.000000e+00 : f32
    %134 = vector.broadcast %cst_45 : f32 to vector<8x256xf32>
    %cst_46 = arith.constant 0.000000e+00 : f32
    %135 = vector.broadcast %cst_46 : f32 to vector<8x256xf32>
    %cst_47 = arith.constant 0.000000e+00 : f32
    %136 = vector.broadcast %cst_47 : f32 to vector<8x256xf32>
    %cst_48 = arith.constant 0.000000e+00 : f32
    %137 = vector.broadcast %cst_48 : f32 to vector<8x256xf32>
    %c0_49 = arith.constant 0 : index
    %c0_50 = arith.constant 0 : index
    %138 = vector.load %arg17[%c0_49, %c0_50] : memref<32x1024xf32, #tpu.memory_space<vmem>>, vector<8x1024xf32>
    %cst_51 = arith.constant dense<0.000000e+00> : vector<8x1024xf32>
    %139 = tpu.matmul %134, %132, %cst_51 {dimension_numbers = #tpu.dot_dimension_numbers<[1], [0], [0], [1], [0, 0, 1, 1], [], []>} : vector<8x256xf32>, vector<256x1024xf32>, vector<8x1024xf32> -> vector<8x1024xf32>
    %140 = arith.addf %138, %139 : vector<8x1024xf32>
    %141 = vector.extract_strided_slice %140 {offsets = [0, 0], sizes = [8, 256], strides = [1, 1]} : vector<8x1024xf32> to vector<8x256xf32>
    %142 = vector.extract_strided_slice %140 {offsets = [0, 256], sizes = [8, 256], strides = [1, 1]} : vector<8x1024xf32> to vector<8x256xf32>
    %143 = vector.extract_strided_slice %140 {offsets = [0, 512], sizes = [8, 256], strides = [1, 1]} : vector<8x1024xf32> to vector<8x256xf32>
    %144 = vector.extract_strided_slice %140 {offsets = [0, 768], sizes = [8, 256], strides = [1, 1]} : vector<8x1024xf32> to vector<8x256xf32>
    %145 = arith.negf %142 : vector<8x256xf32>
    %146 = math.exp %145 : vector<8x256xf32>
    %cst_52 = arith.constant 1.000000e+00 : f32
    %147 = vector.broadcast %cst_52 : f32 to vector<8x256xf32>
    %148 = arith.addf %147, %146 : vector<8x256xf32>
    %149 = arith.divf %147, %148 : vector<8x256xf32>
    %150 = arith.mulf %149, %135 : vector<8x256xf32>
    %151 = arith.negf %141 : vector<8x256xf32>
    %152 = math.exp %151 : vector<8x256xf32>
    %cst_53 = arith.constant 1.000000e+00 : f32
    %153 = vector.broadcast %cst_53 : f32 to vector<8x256xf32>
    %154 = arith.addf %153, %152 : vector<8x256xf32>
    %155 = arith.divf %153, %154 : vector<8x256xf32>
    %156 = math.tanh %143 : vector<8x256xf32>
    %157 = arith.mulf %155, %156 : vector<8x256xf32>
    %158 = arith.addf %150, %157 : vector<8x256xf32>
    %159 = arith.negf %144 : vector<8x256xf32>
    %160 = math.exp %159 : vector<8x256xf32>
    %cst_54 = arith.constant 1.000000e+00 : f32
    %161 = vector.broadcast %cst_54 : f32 to vector<8x256xf32>
    %162 = arith.addf %161, %160 : vector<8x256xf32>
    %163 = arith.divf %161, %162 : vector<8x256xf32>
    %164 = math.tanh %158 : vector<8x256xf32>
    %165 = arith.mulf %163, %164 : vector<8x256xf32>
    %c24 = arith.constant 24 : index
    %c0_55 = arith.constant 0 : index
    %166 = vector.load %arg18[%c24, %c0_55] : memref<32x1024xf32, #tpu.memory_space<vmem>>, vector<8x1024xf32>
    %cst_56 = arith.constant dense<0.000000e+00> : vector<8x1024xf32>
    %167 = tpu.matmul %136, %133, %cst_56 {dimension_numbers = #tpu.dot_dimension_numbers<[1], [0], [0], [1], [0, 0, 1, 1], [], []>} : vector<8x256xf32>, vector<256x1024xf32>, vector<8x1024xf32> -> vector<8x1024xf32>
    %168 = arith.addf %166, %167 : vector<8x1024xf32>
    %169 = vector.extract_strided_slice %168 {offsets = [0, 0], sizes = [8, 256], strides = [1, 1]} : vector<8x1024xf32> to vector<8x256xf32>
    %170 = vector.extract_strided_slice %168 {offsets = [0, 256], sizes = [8, 256], strides = [1, 1]} : vector<8x1024xf32> to vector<8x256xf32>
    %171 = vector.extract_strided_slice %168 {offsets = [0, 512], sizes = [8, 256], strides = [1, 1]} : vector<8x1024xf32> to vector<8x256xf32>
    %172 = vector.extract_strided_slice %168 {offsets = [0, 768], sizes = [8, 256], strides = [1, 1]} : vector<8x1024xf32> to vector<8x256xf32>
    %173 = arith.negf %170 : vector<8x256xf32>
    %174 = math.exp %173 : vector<8x256xf32>
    %cst_57 = arith.constant 1.000000e+00 : f32
    %175 = vector.broadcast %cst_57 : f32 to vector<8x256xf32>
    %176 = arith.addf %175, %174 : vector<8x256xf32>
    %177 = arith.divf %175, %176 : vector<8x256xf32>
    %178 = arith.mulf %177, %137 : vector<8x256xf32>
    %179 = arith.negf %169 : vector<8x256xf32>
    %180 = math.exp %179 : vector<8x256xf32>
    %cst_58 = arith.constant 1.000000e+00 : f32
    %181 = vector.broadcast %cst_58 : f32 to vector<8x256xf32>
    %182 = arith.addf %181, %180 : vector<8x256xf32>
    %183 = arith.divf %181, %182 : vector<8x256xf32>
    %184 = math.tanh %171 : vector<8x256xf32>
    %185 = arith.mulf %183, %184 : vector<8x256xf32>
    %186 = arith.addf %178, %185 : vector<8x256xf32>
    %187 = arith.negf %172 : vector<8x256xf32>
    %188 = math.exp %187 : vector<8x256xf32>
    %cst_59 = arith.constant 1.000000e+00 : f32
    %189 = vector.broadcast %cst_59 : f32 to vector<8x256xf32>
    %190 = arith.addf %189, %188 : vector<8x256xf32>
    %191 = arith.divf %189, %190 : vector<8x256xf32>
    %192 = math.tanh %186 : vector<8x256xf32>
    %193 = arith.mulf %191, %192 : vector<8x256xf32>
    %c0_i32_60 = arith.constant 0 : i32
    %194 = arith.cmpi sgt, %3, %c0_i32_60 : i32
    %195 = arith.extui %194 : i1 to i32
    %196 = arith.sitofp %195 : i32 to f32
    %197 = vector.broadcast %196 : f32 to vector<8x256xf32>
    %198 = arith.mulf %165, %197 : vector<8x256xf32>
    %c3_i32 = arith.constant 3 : i32
    %199 = arith.cmpi sgt, %3, %c3_i32 : i32
    %200 = arith.extui %199 : i1 to i32
    %201 = arith.sitofp %200 : i32 to f32
    %202 = vector.broadcast %201 : f32 to vector<8x256xf32>
    %203 = arith.mulf %193, %202 : vector<8x256xf32>
    %c8 = arith.constant 8 : index
    %c0_61 = arith.constant 0 : index
    %204 = vector.load %arg17[%c8, %c0_61] : memref<32x1024xf32, #tpu.memory_space<vmem>>, vector<8x1024xf32>
    %cst_62 = arith.constant dense<0.000000e+00> : vector<8x1024xf32>
    %205 = tpu.matmul %165, %132, %cst_62 {dimension_numbers = #tpu.dot_dimension_numbers<[1], [0], [0], [1], [0, 0, 1, 1], [], []>} : vector<8x256xf32>, vector<256x1024xf32>, vector<8x1024xf32> -> vector<8x1024xf32>
    %206 = arith.addf %204, %205 : vector<8x1024xf32>
    %207 = vector.extract_strided_slice %206 {offsets = [0, 0], sizes = [8, 256], strides = [1, 1]} : vector<8x1024xf32> to vector<8x256xf32>
    %208 = vector.extract_strided_slice %206 {offsets = [0, 256], sizes = [8, 256], strides = [1, 1]} : vector<8x1024xf32> to vector<8x256xf32>
    %209 = vector.extract_strided_slice %206 {offsets = [0, 512], sizes = [8, 256], strides = [1, 1]} : vector<8x1024xf32> to vector<8x256xf32>
    %210 = vector.extract_strided_slice %206 {offsets = [0, 768], sizes = [8, 256], strides = [1, 1]} : vector<8x1024xf32> to vector<8x256xf32>
    %211 = arith.negf %208 : vector<8x256xf32>
    %212 = math.exp %211 : vector<8x256xf32>
    %cst_63 = arith.constant 1.000000e+00 : f32
    %213 = vector.broadcast %cst_63 : f32 to vector<8x256xf32>
    %214 = arith.addf %213, %212 : vector<8x256xf32>
    %215 = arith.divf %213, %214 : vector<8x256xf32>
    %216 = arith.mulf %215, %158 : vector<8x256xf32>
    %217 = arith.negf %207 : vector<8x256xf32>
    %218 = math.exp %217 : vector<8x256xf32>
    %cst_64 = arith.constant 1.000000e+00 : f32
    %219 = vector.broadcast %cst_64 : f32 to vector<8x256xf32>
    %220 = arith.addf %219, %218 : vector<8x256xf32>
    %221 = arith.divf %219, %220 : vector<8x256xf32>
    %222 = math.tanh %209 : vector<8x256xf32>
    %223 = arith.mulf %221, %222 : vector<8x256xf32>
    %224 = arith.addf %216, %223 : vector<8x256xf32>
    %225 = arith.negf %210 : vector<8x256xf32>
    %226 = math.exp %225 : vector<8x256xf32>
    %cst_65 = arith.constant 1.000000e+00 : f32
    %227 = vector.broadcast %cst_65 : f32 to vector<8x256xf32>
    %228 = arith.addf %227, %226 : vector<8x256xf32>
    %229 = arith.divf %227, %228 : vector<8x256xf32>
    %230 = math.tanh %224 : vector<8x256xf32>
    %231 = arith.mulf %229, %230 : vector<8x256xf32>
    %c16 = arith.constant 16 : index
    %c0_66 = arith.constant 0 : index
    %232 = vector.load %arg18[%c16, %c0_66] : memref<32x1024xf32, #tpu.memory_space<vmem>>, vector<8x1024xf32>
    %cst_67 = arith.constant dense<0.000000e+00> : vector<8x1024xf32>
    %233 = tpu.matmul %193, %133, %cst_67 {dimension_numbers = #tpu.dot_dimension_numbers<[1], [0], [0], [1], [0, 0, 1, 1], [], []>} : vector<8x256xf32>, vector<256x1024xf32>, vector<8x1024xf32> -> vector<8x1024xf32>
    %234 = arith.addf %232, %233 : vector<8x1024xf32>
    %235 = vector.extract_strided_slice %234 {offsets = [0, 0], sizes = [8, 256], strides = [1, 1]} : vector<8x1024xf32> to vector<8x256xf32>
    %236 = vector.extract_strided_slice %234 {offsets = [0, 256], sizes = [8, 256], strides = [1, 1]} : vector<8x1024xf32> to vector<8x256xf32>
    %237 = vector.extract_strided_slice %234 {offsets = [0, 512], sizes = [8, 256], strides = [1, 1]} : vector<8x1024xf32> to vector<8x256xf32>
    %238 = vector.extract_strided_slice %234 {offsets = [0, 768], sizes = [8, 256], strides = [1, 1]} : vector<8x1024xf32> to vector<8x256xf32>
    %239 = arith.negf %236 : vector<8x256xf32>
    %240 = math.exp %239 : vector<8x256xf32>
    %cst_68 = arith.constant 1.000000e+00 : f32
    %241 = vector.broadcast %cst_68 : f32 to vector<8x256xf32>
    %242 = arith.addf %241, %240 : vector<8x256xf32>
    %243 = arith.divf %241, %242 : vector<8x256xf32>
    %244 = arith.mulf %243, %186 : vector<8x256xf32>
    %245 = arith.negf %235 : vector<8x256xf32>
    %246 = math.exp %245 : vector<8x256xf32>
    %cst_69 = arith.constant 1.000000e+00 : f32
    %247 = vector.broadcast %cst_69 : f32 to vector<8x256xf32>
    %248 = arith.addf %247, %246 : vector<8x256xf32>
    %249 = arith.divf %247, %248 : vector<8x256xf32>
    %250 = math.tanh %237 : vector<8x256xf32>
    %251 = arith.mulf %249, %250 : vector<8x256xf32>
    %252 = arith.addf %244, %251 : vector<8x256xf32>
    %253 = arith.negf %238 : vector<8x256xf32>
    %254 = math.exp %253 : vector<8x256xf32>
    %cst_70 = arith.constant 1.000000e+00 : f32
    %255 = vector.broadcast %cst_70 : f32 to vector<8x256xf32>
    %256 = arith.addf %255, %254 : vector<8x256xf32>
    %257 = arith.divf %255, %256 : vector<8x256xf32>
    %258 = math.tanh %252 : vector<8x256xf32>
    %259 = arith.mulf %257, %258 : vector<8x256xf32>
    %c1_i32 = arith.constant 1 : i32
    %260 = arith.cmpi sgt, %3, %c1_i32 : i32
    %261 = arith.extui %260 : i1 to i32
    %262 = arith.sitofp %261 : i32 to f32
    %263 = vector.broadcast %262 : f32 to vector<8x256xf32>
    %264 = arith.mulf %231, %263 : vector<8x256xf32>
    %c2_i32 = arith.constant 2 : i32
    %265 = arith.cmpi sgt, %3, %c2_i32 : i32
    %266 = arith.extui %265 : i1 to i32
    %267 = arith.sitofp %266 : i32 to f32
    %268 = vector.broadcast %267 : f32 to vector<8x256xf32>
    %269 = arith.mulf %259, %268 : vector<8x256xf32>
    %c16_71 = arith.constant 16 : index
    %c0_72 = arith.constant 0 : index
    %270 = vector.load %arg17[%c16_71, %c0_72] : memref<32x1024xf32, #tpu.memory_space<vmem>>, vector<8x1024xf32>
    %cst_73 = arith.constant dense<0.000000e+00> : vector<8x1024xf32>
    %271 = tpu.matmul %231, %132, %cst_73 {dimension_numbers = #tpu.dot_dimension_numbers<[1], [0], [0], [1], [0, 0, 1, 1], [], []>} : vector<8x256xf32>, vector<256x1024xf32>, vector<8x1024xf32> -> vector<8x1024xf32>
    %272 = arith.addf %270, %271 : vector<8x1024xf32>
    %273 = vector.extract_strided_slice %272 {offsets = [0, 0], sizes = [8, 256], strides = [1, 1]} : vector<8x1024xf32> to vector<8x256xf32>
    %274 = vector.extract_strided_slice %272 {offsets = [0, 256], sizes = [8, 256], strides = [1, 1]} : vector<8x1024xf32> to vector<8x256xf32>
    %275 = vector.extract_strided_slice %272 {offsets = [0, 512], sizes = [8, 256], strides = [1, 1]} : vector<8x1024xf32> to vector<8x256xf32>
    %276 = vector.extract_strided_slice %272 {offsets = [0, 768], sizes = [8, 256], strides = [1, 1]} : vector<8x1024xf32> to vector<8x256xf32>
    %277 = arith.negf %274 : vector<8x256xf32>
    %278 = math.exp %277 : vector<8x256xf32>
    %cst_74 = arith.constant 1.000000e+00 : f32
    %279 = vector.broadcast %cst_74 : f32 to vector<8x256xf32>
    %280 = arith.addf %279, %278 : vector<8x256xf32>
    %281 = arith.divf %279, %280 : vector<8x256xf32>
    %282 = arith.mulf %281, %224 : vector<8x256xf32>
    %283 = arith.negf %273 : vector<8x256xf32>
    %284 = math.exp %283 : vector<8x256xf32>
    %cst_75 = arith.constant 1.000000e+00 : f32
    %285 = vector.broadcast %cst_75 : f32 to vector<8x256xf32>
    %286 = arith.addf %285, %284 : vector<8x256xf32>
    %287 = arith.divf %285, %286 : vector<8x256xf32>
    %288 = math.tanh %275 : vector<8x256xf32>
    %289 = arith.mulf %287, %288 : vector<8x256xf32>
    %290 = arith.addf %282, %289 : vector<8x256xf32>
    %291 = arith.negf %276 : vector<8x256xf32>
    %292 = math.exp %291 : vector<8x256xf32>
    %cst_76 = arith.constant 1.000000e+00 : f32
    %293 = vector.broadcast %cst_76 : f32 to vector<8x256xf32>
    %294 = arith.addf %293, %292 : vector<8x256xf32>
    %295 = arith.divf %293, %294 : vector<8x256xf32>
    %296 = math.tanh %290 : vector<8x256xf32>
    %297 = arith.mulf %295, %296 : vector<8x256xf32>
    %c8_77 = arith.constant 8 : index
    %c0_78 = arith.constant 0 : index
    %298 = vector.load %arg18[%c8_77, %c0_78] : memref<32x1024xf32, #tpu.memory_space<vmem>>, vector<8x1024xf32>
    %cst_79 = arith.constant dense<0.000000e+00> : vector<8x1024xf32>
    %299 = tpu.matmul %259, %133, %cst_79 {dimension_numbers = #tpu.dot_dimension_numbers<[1], [0], [0], [1], [0, 0, 1, 1], [], []>} : vector<8x256xf32>, vector<256x1024xf32>, vector<8x1024xf32> -> vector<8x1024xf32>
    %300 = arith.addf %298, %299 : vector<8x1024xf32>
    %301 = vector.extract_strided_slice %300 {offsets = [0, 0], sizes = [8, 256], strides = [1, 1]} : vector<8x1024xf32> to vector<8x256xf32>
    %302 = vector.extract_strided_slice %300 {offsets = [0, 256], sizes = [8, 256], strides = [1, 1]} : vector<8x1024xf32> to vector<8x256xf32>
    %303 = vector.extract_strided_slice %300 {offsets = [0, 512], sizes = [8, 256], strides = [1, 1]} : vector<8x1024xf32> to vector<8x256xf32>
    %304 = vector.extract_strided_slice %300 {offsets = [0, 768], sizes = [8, 256], strides = [1, 1]} : vector<8x1024xf32> to vector<8x256xf32>
    %305 = arith.negf %302 : vector<8x256xf32>
    %306 = math.exp %305 : vector<8x256xf32>
    %cst_80 = arith.constant 1.000000e+00 : f32
    %307 = vector.broadcast %cst_80 : f32 to vector<8x256xf32>
    %308 = arith.addf %307, %306 : vector<8x256xf32>
    %309 = arith.divf %307, %308 : vector<8x256xf32>
    %310 = arith.mulf %309, %252 : vector<8x256xf32>
    %311 = arith.negf %301 : vector<8x256xf32>
    %312 = math.exp %311 : vector<8x256xf32>
    %cst_81 = arith.constant 1.000000e+00 : f32
    %313 = vector.broadcast %cst_81 : f32 to vector<8x256xf32>
    %314 = arith.addf %313, %312 : vector<8x256xf32>
    %315 = arith.divf %313, %314 : vector<8x256xf32>
    %316 = math.tanh %303 : vector<8x256xf32>
    %317 = arith.mulf %315, %316 : vector<8x256xf32>
    %318 = arith.addf %310, %317 : vector<8x256xf32>
    %319 = arith.negf %304 : vector<8x256xf32>
    %320 = math.exp %319 : vector<8x256xf32>
    %cst_82 = arith.constant 1.000000e+00 : f32
    %321 = vector.broadcast %cst_82 : f32 to vector<8x256xf32>
    %322 = arith.addf %321, %320 : vector<8x256xf32>
    %323 = arith.divf %321, %322 : vector<8x256xf32>
    %324 = math.tanh %318 : vector<8x256xf32>
    %325 = arith.mulf %323, %324 : vector<8x256xf32>
    %c2_i32_83 = arith.constant 2 : i32
    %326 = arith.cmpi sgt, %3, %c2_i32_83 : i32
    %327 = arith.extui %326 : i1 to i32
    %328 = arith.sitofp %327 : i32 to f32
    %329 = vector.broadcast %328 : f32 to vector<8x256xf32>
    %330 = arith.mulf %297, %329 : vector<8x256xf32>
    %c1_i32_84 = arith.constant 1 : i32
    %331 = arith.cmpi sgt, %3, %c1_i32_84 : i32
    %332 = arith.extui %331 : i1 to i32
    %333 = arith.sitofp %332 : i32 to f32
    %334 = vector.broadcast %333 : f32 to vector<8x256xf32>
    %335 = arith.mulf %325, %334 : vector<8x256xf32>
    %c24_85 = arith.constant 24 : index
    %c0_86 = arith.constant 0 : index
    %336 = vector.load %arg17[%c24_85, %c0_86] : memref<32x1024xf32, #tpu.memory_space<vmem>>, vector<8x1024xf32>
    %cst_87 = arith.constant dense<0.000000e+00> : vector<8x1024xf32>
    %337 = tpu.matmul %297, %132, %cst_87 {dimension_numbers = #tpu.dot_dimension_numbers<[1], [0], [0], [1], [0, 0, 1, 1], [], []>} : vector<8x256xf32>, vector<256x1024xf32>, vector<8x1024xf32> -> vector<8x1024xf32>
    %338 = arith.addf %336, %337 : vector<8x1024xf32>
    %339 = vector.extract_strided_slice %338 {offsets = [0, 0], sizes = [8, 256], strides = [1, 1]} : vector<8x1024xf32> to vector<8x256xf32>
    %340 = vector.extract_strided_slice %338 {offsets = [0, 256], sizes = [8, 256], strides = [1, 1]} : vector<8x1024xf32> to vector<8x256xf32>
    %341 = vector.extract_strided_slice %338 {offsets = [0, 512], sizes = [8, 256], strides = [1, 1]} : vector<8x1024xf32> to vector<8x256xf32>
    %342 = vector.extract_strided_slice %338 {offsets = [0, 768], sizes = [8, 256], strides = [1, 1]} : vector<8x1024xf32> to vector<8x256xf32>
    %343 = arith.negf %340 : vector<8x256xf32>
    %344 = math.exp %343 : vector<8x256xf32>
    %cst_88 = arith.constant 1.000000e+00 : f32
    %345 = vector.broadcast %cst_88 : f32 to vector<8x256xf32>
    %346 = arith.addf %345, %344 : vector<8x256xf32>
    %347 = arith.divf %345, %346 : vector<8x256xf32>
    %348 = arith.mulf %347, %290 : vector<8x256xf32>
    %349 = arith.negf %339 : vector<8x256xf32>
    %350 = math.exp %349 : vector<8x256xf32>
    %cst_89 = arith.constant 1.000000e+00 : f32
    %351 = vector.broadcast %cst_89 : f32 to vector<8x256xf32>
    %352 = arith.addf %351, %350 : vector<8x256xf32>
    %353 = arith.divf %351, %352 : vector<8x256xf32>
    %354 = math.tanh %341 : vector<8x256xf32>
    %355 = arith.mulf %353, %354 : vector<8x256xf32>
    %356 = arith.addf %348, %355 : vector<8x256xf32>
    %357 = arith.negf %342 : vector<8x256xf32>
    %358 = math.exp %357 : vector<8x256xf32>
    %cst_90 = arith.constant 1.000000e+00 : f32
    %359 = vector.broadcast %cst_90 : f32 to vector<8x256xf32>
    %360 = arith.addf %359, %358 : vector<8x256xf32>
    %361 = arith.divf %359, %360 : vector<8x256xf32>
    %362 = math.tanh %356 : vector<8x256xf32>
    %363 = arith.mulf %361, %362 : vector<8x256xf32>
    %c0_91 = arith.constant 0 : index
    %c0_92 = arith.constant 0 : index
    %364 = vector.load %arg18[%c0_91, %c0_92] : memref<32x1024xf32, #tpu.memory_space<vmem>>, vector<8x1024xf32>
    %cst_93 = arith.constant dense<0.000000e+00> : vector<8x1024xf32>
    %365 = tpu.matmul %325, %133, %cst_93 {dimension_numbers = #tpu.dot_dimension_numbers<[1], [0], [0], [1], [0, 0, 1, 1], [], []>} : vector<8x256xf32>, vector<256x1024xf32>, vector<8x1024xf32> -> vector<8x1024xf32>
    %366 = arith.addf %364, %365 : vector<8x1024xf32>
    %367 = vector.extract_strided_slice %366 {offsets = [0, 0], sizes = [8, 256], strides = [1, 1]} : vector<8x1024xf32> to vector<8x256xf32>
    %368 = vector.extract_strided_slice %366 {offsets = [0, 256], sizes = [8, 256], strides = [1, 1]} : vector<8x1024xf32> to vector<8x256xf32>
    %369 = vector.extract_strided_slice %366 {offsets = [0, 512], sizes = [8, 256], strides = [1, 1]} : vector<8x1024xf32> to vector<8x256xf32>
    %370 = vector.extract_strided_slice %366 {offsets = [0, 768], sizes = [8, 256], strides = [1, 1]} : vector<8x1024xf32> to vector<8x256xf32>
    %371 = arith.negf %368 : vector<8x256xf32>
    %372 = math.exp %371 : vector<8x256xf32>
    %cst_94 = arith.constant 1.000000e+00 : f32
    %373 = vector.broadcast %cst_94 : f32 to vector<8x256xf32>
    %374 = arith.addf %373, %372 : vector<8x256xf32>
    %375 = arith.divf %373, %374 : vector<8x256xf32>
    %376 = arith.mulf %375, %318 : vector<8x256xf32>
    %377 = arith.negf %367 : vector<8x256xf32>
    %378 = math.exp %377 : vector<8x256xf32>
    %cst_95 = arith.constant 1.000000e+00 : f32
    %379 = vector.broadcast %cst_95 : f32 to vector<8x256xf32>
    %380 = arith.addf %379, %378 : vector<8x256xf32>
    %381 = arith.divf %379, %380 : vector<8x256xf32>
    %382 = math.tanh %369 : vector<8x256xf32>
    %383 = arith.mulf %381, %382 : vector<8x256xf32>
    %384 = arith.addf %376, %383 : vector<8x256xf32>
    %385 = arith.negf %370 : vector<8x256xf32>
    %386 = math.exp %385 : vector<8x256xf32>
    %cst_96 = arith.constant 1.000000e+00 : f32
    %387 = vector.broadcast %cst_96 : f32 to vector<8x256xf32>
    %388 = arith.addf %387, %386 : vector<8x256xf32>
    %389 = arith.divf %387, %388 : vector<8x256xf32>
    %390 = math.tanh %384 : vector<8x256xf32>
    %391 = arith.mulf %389, %390 : vector<8x256xf32>
    %c3_i32_97 = arith.constant 3 : i32
    %392 = arith.cmpi sgt, %3, %c3_i32_97 : i32
    %393 = arith.extui %392 : i1 to i32
    %394 = arith.sitofp %393 : i32 to f32
    %395 = vector.broadcast %394 : f32 to vector<8x256xf32>
    %396 = arith.mulf %363, %395 : vector<8x256xf32>
    %c0_i32_98 = arith.constant 0 : i32
    %397 = arith.cmpi sgt, %3, %c0_i32_98 : i32
    %398 = arith.extui %397 : i1 to i32
    %399 = arith.sitofp %398 : i32 to f32
    %400 = vector.broadcast %399 : f32 to vector<8x256xf32>
    %401 = arith.mulf %391, %400 : vector<8x256xf32>
    %c0_99 = arith.constant 0 : index
    %c0_100 = arith.constant 0 : index
    %c0_101 = arith.constant 0 : index
    %c0_102 = arith.constant 0 : index
    %402 = vector.load %arg6[%c0_99, %c0_100, %c0_101, %c0_102] : memref<1x2x8x256xf32, #tpu.memory_space<vmem>>, vector<1x1x8x256xf32>
    %403 = vector.shape_cast %402 : vector<1x1x8x256xf32> to vector<8x256xf32>
    %c0_103 = arith.constant 0 : index
    %c1_104 = arith.constant 1 : index
    %c0_105 = arith.constant 0 : index
    %c0_106 = arith.constant 0 : index
    %404 = vector.load %arg6[%c0_103, %c1_104, %c0_105, %c0_106] : memref<1x2x8x256xf32, #tpu.memory_space<vmem>>, vector<1x1x8x256xf32>
    %405 = vector.shape_cast %404 : vector<1x1x8x256xf32> to vector<8x256xf32>
    %406 = arith.mulf %198, %403 : vector<8x256xf32>
    %407 = arith.mulf %401, %405 : vector<8x256xf32>
    %408 = arith.addf %406, %407 : vector<8x256xf32>
    %cst_107 = arith.constant dense<0.000000e+00> : vector<8xf32>
    %409 = vector.multi_reduction <add>, %408, %cst_107 [1] : vector<8x256xf32> to vector<8xf32>
    %410 = vector.shape_cast %409 : vector<8xf32> to vector<8x1xf32>
    %411 = arith.mulf %264, %403 : vector<8x256xf32>
    %412 = arith.mulf %335, %405 : vector<8x256xf32>
    %413 = arith.addf %411, %412 : vector<8x256xf32>
    %cst_108 = arith.constant dense<0.000000e+00> : vector<8xf32>
    %414 = vector.multi_reduction <add>, %413, %cst_108 [1] : vector<8x256xf32> to vector<8xf32>
    %415 = vector.shape_cast %414 : vector<8xf32> to vector<8x1xf32>
    %416 = arith.mulf %330, %403 : vector<8x256xf32>
    %417 = arith.mulf %269, %405 : vector<8x256xf32>
    %418 = arith.addf %416, %417 : vector<8x256xf32>
    %cst_109 = arith.constant dense<0.000000e+00> : vector<8xf32>
    %419 = vector.multi_reduction <add>, %418, %cst_109 [1] : vector<8x256xf32> to vector<8xf32>
    %420 = vector.shape_cast %419 : vector<8xf32> to vector<8x1xf32>
    %421 = arith.mulf %396, %403 : vector<8x256xf32>
    %422 = arith.mulf %203, %405 : vector<8x256xf32>
    %423 = arith.addf %421, %422 : vector<8x256xf32>
    %cst_110 = arith.constant dense<0.000000e+00> : vector<8xf32>
    %424 = vector.multi_reduction <add>, %423, %cst_110 [1] : vector<8x256xf32> to vector<8xf32>
    %425 = vector.shape_cast %424 : vector<8xf32> to vector<8x1xf32>
    %426 = tpu.concatenate %410, %415, %420, %425 in 1 : vector<8x1xf32>, vector<8x1xf32>, vector<8x1xf32>, vector<8x1xf32> -> vector<8x4xf32>
    %c0_111 = arith.constant 0 : index
    %c0_112 = arith.constant 0 : index
    %c0_113 = arith.constant 0 : index
    %427 = vector.load %arg15[%c0_111, %c0_112, %c0_113] : memref<1x8x4xf32, #tpu.memory_space<vmem>>, vector<1x8x4xf32>
    %428 = vector.shape_cast %427 : vector<1x8x4xf32> to vector<8x4xf32>
    %429 = vector.shape_cast %426 : vector<8x4xf32> to vector<1x8x4xf32>
    tpu.vector_store %arg15[%c0_111, %c0_112, %c0_113], %429 {strides = array<i32>} : memref<1x8x4xf32, #tpu.memory_space<vmem>>, vector<1x8x4xf32>,
    %430 = tpu.iota {dimensions = array<i32: 0>} : vector<8x4xi32>
    %431 = tpu.iota {dimensions = array<i32: 1>} : vector<8x4xi32>
    %432 = vector.broadcast %1 : i32 to vector<8x4xi32>
    %433 = arith.cmpi slt, %430, %432 : vector<8x4xi32>
    %434 = vector.broadcast %3 : i32 to vector<8x4xi32>
    %435 = arith.cmpi slt, %431, %434 : vector<8x4xi32>
    %436 = arith.andi %433, %435 : vector<8x4xi1>
    %cst_114 = arith.constant -4.2949673E+9 : f32
    %437 = vector.broadcast %cst_114 : f32 to vector<8x4xf32>
    %438 = arith.select %436, %426, %437 : vector<8x4xi1>, vector<8x4xf32>
    %cst_115 = arith.constant dense<0xFF800000> : vector<8xf32>
    %439 = vector.multi_reduction <maximumf>, %438, %cst_115 [1] : vector<8x4xf32> to vector<8xf32>
    %440 = vector.shape_cast %439 : vector<8xf32> to vector<8x1xf32>
    %441 = vector.broadcast %440 : vector<8x1xf32> to vector<8x4xf32>
    %442 = arith.subf %438, %441 : vector<8x4xf32>
    %443 = math.exp %442 : vector<8x4xf32>
    %cst_116 = arith.constant dense<0.000000e+00> : vector<8xf32>
    %444 = vector.multi_reduction <add>, %443, %cst_116 [1] : vector<8x4xf32> to vector<8xf32>
    %445 = vector.shape_cast %444 : vector<8xf32> to vector<8x1xf32>
    %446 = tpu.reciprocal %445 {approx = true} : vector<8x1xf32> -> vector<8x1xf32>
    %447 = vector.broadcast %446 : vector<8x1xf32> to vector<8x4xf32>
    %448 = arith.mulf %443, %447 : vector<8x4xf32>
    %cst_117 = arith.constant 0.000000e+00 : f32
    %449 = vector.broadcast %cst_117 : f32 to vector<8x256xf32>
    %cst_118 = arith.constant 0.000000e+00 : f32
    %450 = vector.broadcast %cst_118 : f32 to vector<8x256xf32>
    %451 = vector.extract_strided_slice %448 {offsets = [0, 0], sizes = [8, 1], strides = [1, 1]} : vector<8x4xf32> to vector<8x1xf32>
    %452 = vector.broadcast %451 : vector<8x1xf32> to vector<8x256xf32>
    %453 = arith.mulf %452, %198 : vector<8x256xf32>
    %454 = arith.addf %449, %453 : vector<8x256xf32>
    %455 = vector.broadcast %451 : vector<8x1xf32> to vector<8x256xf32>
    %456 = arith.mulf %455, %401 : vector<8x256xf32>
    %457 = arith.addf %450, %456 : vector<8x256xf32>
    %458 = vector.extract_strided_slice %448 {offsets = [0, 1], sizes = [8, 1], strides = [1, 1]} : vector<8x4xf32> to vector<8x1xf32>
    %459 = vector.broadcast %458 : vector<8x1xf32> to vector<8x256xf32>
    %460 = arith.mulf %459, %264 : vector<8x256xf32>
    %461 = arith.addf %454, %460 : vector<8x256xf32>
    %462 = vector.broadcast %458 : vector<8x1xf32> to vector<8x256xf32>
    %463 = arith.mulf %462, %335 : vector<8x256xf32>
    %464 = arith.addf %457, %463 : vector<8x256xf32>
    %465 = vector.extract_strided_slice %448 {offsets = [0, 2], sizes = [8, 1], strides = [1, 1]} : vector<8x4xf32> to vector<8x1xf32>
    %466 = vector.broadcast %465 : vector<8x1xf32> to vector<8x256xf32>
    %467 = arith.mulf %466, %330 : vector<8x256xf32>
    %468 = arith.addf %461, %467 : vector<8x256xf32>
    %469 = vector.broadcast %465 : vector<8x1xf32> to vector<8x256xf32>
    %470 = arith.mulf %469, %269 : vector<8x256xf32>
    %471 = arith.addf %464, %470 : vector<8x256xf32>
    %472 = vector.extract_strided_slice %448 {offsets = [0, 3], sizes = [8, 1], strides = [1, 1]} : vector<8x4xf32> to vector<8x1xf32>
    %473 = vector.broadcast %472 : vector<8x1xf32> to vector<8x256xf32>
    %474 = arith.mulf %473, %396 : vector<8x256xf32>
    %475 = arith.addf %468, %474 : vector<8x256xf32>
    %476 = vector.broadcast %472 : vector<8x1xf32> to vector<8x256xf32>
    %477 = arith.mulf %476, %203 : vector<8x256xf32>
    %478 = arith.addf %471, %477 : vector<8x256xf32>
    %479 = arith.subf %475, %403 : vector<8x256xf32>
    %c0_119 = arith.constant 0 : index
    %c0_120 = arith.constant 0 : index
    %c0_121 = arith.constant 0 : index
    %480 = vector.load %arg13[%c0_119, %c0_120, %c0_121] : memref<2x256x300xf32, #tpu.memory_space<vmem>>, vector<1x256x300xf32>
    %481 = vector.shape_cast %480 : vector<1x256x300xf32> to vector<256x300xf32>
    %cst_122 = arith.constant dense<0.000000e+00> : vector<8x300xf32>
    %482 = tpu.matmul %479, %481, %cst_122 {dimension_numbers = #tpu.dot_dimension_numbers<[1], [0], [0], [1], [0, 0, 1, 1], [], []>} : vector<8x256xf32>, vector<256x300xf32>, vector<8x300xf32> -> vector<8x300xf32>
    %483 = arith.subf %478, %405 : vector<8x256xf32>
    %c1_123 = arith.constant 1 : index
    %c0_124 = arith.constant 0 : index
    %c0_125 = arith.constant 0 : index
    %484 = vector.load %arg13[%c1_123, %c0_124, %c0_125] : memref<2x256x300xf32, #tpu.memory_space<vmem>>, vector<1x256x300xf32>
    %485 = vector.shape_cast %484 : vector<1x256x300xf32> to vector<256x300xf32>
    %cst_126 = arith.constant dense<0.000000e+00> : vector<8x300xf32>
    %486 = tpu.matmul %483, %485, %cst_126 {dimension_numbers = #tpu.dot_dimension_numbers<[1], [0], [0], [1], [0, 0, 1, 1], [], []>} : vector<8x256xf32>, vector<256x300xf32>, vector<8x300xf32> -> vector<8x300xf32>
    %487 = arith.addf %482, %486 : vector<8x300xf32>
    %488 = arith.mulf %487, %487 : vector<8x300xf32>
    %cst_127 = arith.constant dense<0.000000e+00> : vector<8xf32>
    %489 = vector.multi_reduction <add>, %488, %cst_127 [1] : vector<8x300xf32> to vector<8xf32>
    %490 = vector.shape_cast %489 : vector<8xf32> to vector<8x1xf32>
    %491 = math.sqrt %490 : vector<8x1xf32>
    %492 = tpu.iota {dimensions = array<i32: 0>} : vector<8x1xi32>
    %c4_i32_128 = arith.constant 4 : i32
    %493 = vector.broadcast %c4_i32_128 : i32 to vector<8x1xi32>
    %494 = arith.cmpi slt, %492, %493 : vector<8x1xi32>
    %495 = arith.extui %494 : vector<8x1xi1> to vector<8x1xi32>
    %496 = arith.sitofp %495 : vector<8x1xi32> to vector<8x1xf32>
    %497 = arith.mulf %491, %496 : vector<8x1xf32>
    %cst_129 = arith.constant dense<0.000000e+00> : vector<1xf32>
    %498 = vector.multi_reduction <add>, %497, %cst_129 [0] : vector<8x1xf32> to vector<1xf32>
    %499 = vector.shape_cast %498 : vector<1xf32> to vector<1x1xf32>
    %cst_130 = arith.constant 0.000000e+00 : f32
    %500 = vector.broadcast %cst_130 : f32 to vector<1x1xf32>
    %501 = arith.subf %500, %499 : vector<1x1xf32>
    %c0_131 = arith.constant 0 : index
    %c0_132 = arith.constant 0 : index
    %c0_133 = arith.constant 0 : index
    %502 = vector.load %arg16[%c0_131, %c0_132, %c0_133] : memref<1x1x1xf32, #tpu.memory_space<vmem>>, vector<1x1x1xf32>
    %503 = vector.shape_cast %502 : vector<1x1x1xf32> to vector<1x1xf32>
    %504 = vector.shape_cast %501 : vector<1x1xf32> to vector<1x1x1xf32>
    tpu.vector_store %arg16[%c0_131, %c0_132, %c0_133], %504 {strides = array<i32>} : memref<1x1x1xf32, #tpu.memory_space<vmem>>, vector<1x1x1xf32>,
    return
  }
  func.func @transform_0(%arg0: i32, %arg1: memref<2x4xi32, #tpu.memory_space<smem>>, %arg2: memref<2xi32, #tpu.memory_space<smem>>, %arg3: memref<2xi32, #tpu.memory_space<smem>>) -> (i32, i32, i32) {
    %c0_i32 = arith.constant 0 : i32
    %c0_i32_0 = arith.constant 0 : i32
    %c0_i32_1 = arith.constant 0 : i32
    return %arg0, %c0_i32, %c0_i32_0 : i32, i32, i32
  }
  func.func @transform_1(%arg0: i32, %arg1: memref<2x4xi32, #tpu.memory_space<smem>>, %arg2: memref<2xi32, #tpu.memory_space<smem>>, %arg3: memref<2xi32, #tpu.memory_space<smem>>) -> (i32, i32, i32) {
    %c0_i32 = arith.constant 0 : i32
    %c0_i32_0 = arith.constant 0 : i32
    %c0_i32_1 = arith.constant 0 : i32
    return %arg0, %c0_i32, %c0_i32_0 : i32, i32, i32
  }
  func.func @transform_2(%arg0: i32, %arg1: memref<2x4xi32, #tpu.memory_space<smem>>, %arg2: memref<2xi32, #tpu.memory_space<smem>>, %arg3: memref<2xi32, #tpu.memory_space<smem>>) -> (i32, i32, i32, i32) {
    %c0_i32 = arith.constant 0 : i32
    %c0_i32_0 = arith.constant 0 : i32
    %c0_i32_1 = arith.constant 0 : i32
    %c0_i32_2 = arith.constant 0 : i32
    return %arg0, %c0_i32, %c0_i32_0, %c0_i32_1 : i32, i32, i32, i32
  }
  func.func @transform_3(%arg0: i32, %arg1: memref<2x4xi32, #tpu.memory_space<smem>>, %arg2: memref<2xi32, #tpu.memory_space<smem>>, %arg3: memref<2xi32, #tpu.memory_space<smem>>) -> (i32, i32) {
    %c0_i32 = arith.constant 0 : i32
    %c0_i32_0 = arith.constant 0 : i32
    %c0_i32_1 = arith.constant 0 : i32
    return %c0_i32, %c0_i32_0 : i32, i32
  }
  func.func @transform_4(%arg0: i32, %arg1: memref<2x4xi32, #tpu.memory_space<smem>>, %arg2: memref<2xi32, #tpu.memory_space<smem>>, %arg3: memref<2xi32, #tpu.memory_space<smem>>) -> (i32, i32) {
    %c0_i32 = arith.constant 0 : i32
    %c0_i32_0 = arith.constant 0 : i32
    %c0_i32_1 = arith.constant 0 : i32
    return %c0_i32, %c0_i32_0 : i32, i32
  }
  func.func @transform_5(%arg0: i32, %arg1: memref<2x4xi32, #tpu.memory_space<smem>>, %arg2: memref<2xi32, #tpu.memory_space<smem>>, %arg3: memref<2xi32, #tpu.memory_space<smem>>) -> (i32, i32) {
    %c0_i32 = arith.constant 0 : i32
    %c0_i32_0 = arith.constant 0 : i32
    %c0_i32_1 = arith.constant 0 : i32
    return %c0_i32, %c0_i32_0 : i32, i32
  }
  func.func @transform_6(%arg0: i32, %arg1: memref<2x4xi32, #tpu.memory_space<smem>>, %arg2: memref<2xi32, #tpu.memory_space<smem>>, %arg3: memref<2xi32, #tpu.memory_space<smem>>) -> (i32, i32) {
    %c0_i32 = arith.constant 0 : i32
    %c0_i32_0 = arith.constant 0 : i32
    %c0_i32_1 = arith.constant 0 : i32
    return %c0_i32, %c0_i32_0 : i32, i32
  }
  func.func @transform_7(%arg0: i32, %arg1: memref<2x4xi32, #tpu.memory_space<smem>>, %arg2: memref<2xi32, #tpu.memory_space<smem>>, %arg3: memref<2xi32, #tpu.memory_space<smem>>) -> (i32, i32) {
    %c0_i32 = arith.constant 0 : i32
    %c0_i32_0 = arith.constant 0 : i32
    %c0_i32_1 = arith.constant 0 : i32
    return %c0_i32, %c0_i32_0 : i32, i32
  }
  func.func @transform_8(%arg0: i32, %arg1: memref<2x4xi32, #tpu.memory_space<smem>>, %arg2: memref<2xi32, #tpu.memory_space<smem>>, %arg3: memref<2xi32, #tpu.memory_space<smem>>) -> (i32, i32) {
    %c0_i32 = arith.constant 0 : i32
    %c0_i32_0 = arith.constant 0 : i32
    %c0_i32_1 = arith.constant 0 : i32
    return %c0_i32, %c0_i32_0 : i32, i32
  }
  func.func @transform_9(%arg0: i32, %arg1: memref<2x4xi32, #tpu.memory_space<smem>>, %arg2: memref<2xi32, #tpu.memory_space<smem>>, %arg3: memref<2xi32, #tpu.memory_space<smem>>) -> (i32, i32, i32) {
    %c0_i32 = arith.constant 0 : i32
    %c0_i32_0 = arith.constant 0 : i32
    %c0_i32_1 = arith.constant 0 : i32
    %c0_i32_2 = arith.constant 0 : i32
    return %c0_i32, %c0_i32_0, %c0_i32_1 : i32, i32, i32
  }
  func.func @transform_10(%arg0: i32, %arg1: memref<2x4xi32, #tpu.memory_space<smem>>, %arg2: memref<2xi32, #tpu.memory_space<smem>>, %arg3: memref<2xi32, #tpu.memory_space<smem>>) -> (i32, i32, i32, i32) {
    %c0_i32 = arith.constant 0 : i32
    %c0_i32_0 = arith.constant 0 : i32
    %c0_i32_1 = arith.constant 0 : i32
    %c0_i32_2 = arith.constant 0 : i32
    return %arg0, %c0_i32, %c0_i32_0, %c0_i32_1 : i32, i32, i32, i32
  }
  func.func @transform_11(%arg0: i32, %arg1: memref<2x4xi32, #tpu.memory_space<smem>>, %arg2: memref<2xi32, #tpu.memory_space<smem>>, %arg3: memref<2xi32, #tpu.memory_space<smem>>) -> (i32, i32, i32) {
    %c0_i32 = arith.constant 0 : i32
    %c0_i32_0 = arith.constant 0 : i32
    %c0_i32_1 = arith.constant 0 : i32
    return %arg0, %c0_i32, %c0_i32_0 : i32, i32, i32
  }
  func.func @transform_12(%arg0: i32, %arg1: memref<2x4xi32, #tpu.memory_space<smem>>, %arg2: memref<2xi32, #tpu.memory_space<smem>>, %arg3: memref<2xi32, #tpu.memory_space<smem>>) -> (i32, i32, i32) {
    %c0_i32 = arith.constant 0 : i32
    %c0_i32_0 = arith.constant 0 : i32
    %c0_i32_1 = arith.constant 0 : i32
    return %arg0, %c0_i32, %c0_i32_0 : i32, i32, i32
  }
}

</mosaic_0001>

<llo_original>
// kernel: tpu_custom_call.1
$region0: #{tpu_custom_call.1}
  #allocation0 [shape = 'u32[]', space=smem, size = 0x4, offset = 0x4, fixed_abs, tag = 'smem constant byte address 0x4 - core index']
  #allocation1 [shape = 'u32[144,128]{1,0:T(1,128)}', space=vmem, size = 0x12000, scoped, tag = 'internal scratch']
  #allocation2 [shape = 'f32[32,1024]{1,0:T(8,128)}', space=vmem, size = 0x20000, scoped, tag = 'scratch operand']
  #allocation3 [shape = 'f32[32,1024]{1,0:T(8,128)}', space=vmem, size = 0x20000, scoped, tag = 'scratch operand']
  #allocation4 [shape = 's32[1]{0}', space=sflag, size = 0x4, scoped, tag = 'scoped memory for tpu_custom_call.1']
  #allocation5 [shape = 'u8[1024]{0}', space=smem, size = 0x400, scoped, tag = 'prefetched SMEM operand 0']
  #allocation6 [shape = 'u8[512]{0}', space=smem, size = 0x200, scoped, tag = 'prefetched SMEM operand 1']
  #allocation7 [shape = 'u8[512]{0}', space=smem, size = 0x200, scoped, tag = 'prefetched SMEM operand 2']
  %s0 = inlined_call_operand.vmem [shape: s32[2,4], index: 0, kind: input, shape index: {}]
  %s1 = inlined_call_operand.vmem [shape: s32[2], index: 1, kind: input, shape index: {}]
  %s2 = inlined_call_operand.vmem [shape: s32[2], index: 2, kind: input, shape index: {}]
  %s3 = inlined_call_operand.vmem [shape: f32[2,32,300], index: 3, kind: input, shape index: {}]
  %s4 = inlined_call_operand.vmem [shape: f32[2,8,300], index: 4, kind: input, shape index: {}]
  %s5 = inlined_call_operand.vmem [shape: f32[2,2,8,256], index: 5, kind: input, shape index: {}]
  %s6 = inlined_call_operand.vmem [shape: f32[300,1024], index: 6, kind: input, shape index: {}]
  %s7 = inlined_call_operand.hbm [shape: f32[256,1024], index: 7, kind: input, shape index: {}]
  %s8 = inlined_call_operand.vmem [shape: f32[1,1024], index: 8, kind: input, shape index: {}]
  %s9 = inlined_call_operand.hbm [shape: f32[300,1024], index: 9, kind: input, shape index: {}]
  %s10 = inlined_call_operand.hbm [shape: f32[256,1024], index: 10, kind: input, shape index: {}]
  %s11 = inlined_call_operand.vmem [shape: f32[1,1024], index: 11, kind: input, shape index: {}]
  %s12 = inlined_call_operand.vmem [shape: f32[2,256,300], index: 12, kind: input, shape index: {}]
  %s13 = inlined_call_operand.hbm [shape: f32[2,4,8,8], index: 13, kind: output, shape index: {0}]
  %s14 = inlined_call_operand.vmem [shape: f32[2,8,4], index: 14, kind: output, shape index: {1}]
  %s15 = inlined_call_operand.vmem [shape: f32[2,1,1], index: 15, kind: output, shape index: {2}]
  %16 = xla_tuple %s13, %s14, %s15
  %s17 = sld [smem:[#allocation0]]
  $region101: #{tpu_custom_call.1} parent=0
    _
  %s19 = ssub.s32 1, %s17
  %s20 = scalar_select 0, %s19, %s17
  %s21 = sshll.u32 %s0, 4
  %s22 = int_to_ptr.vmem [resolvable:$true] %s21
  %24 = dma.vmem_to_smem %s22, 32, [#allocation5], [#allocation4]
  %s25 = sshll.u32 %s1, 4
  %s26 = int_to_ptr.vmem [resolvable:$true] %s25
  %28 = dma.vmem_to_smem %s26, 16, [#allocation6], [#allocation4]
  %s29 = sshll.u32 %s2, 4
  %s30 = int_to_ptr.vmem [resolvable:$true] %s29
  %32 = dma.vmem_to_smem %s30, 16, [#allocation7], [#allocation4]
  %33 = dma.done [#allocation4], 64
  %34 = sfence
  $region1: #{tpu_custom_call.1} parent=0
    #allocation8 [shape = 'u8[1048576]{0}', space=vmem, size = 0x100000, scoped, tag = 'input window, operand 7, single buffered']
    #allocation9 [shape = 's32[2]{0}', space=sflag, size = 0x8, scoped, tag = 'scoped memory for tpu_custom_call.1']
    #allocation10 [shape = 's32[2]{0}', space=sflag, size = 0x8, scoped, tag = 'scoped memory for tpu_custom_call.1']
    #allocation11 [shape = 'u8[1245184]{0}', space=vmem, size = 0x130000, scoped, tag = 'input window, operand 9, single buffered']
    #allocation12 [shape = 's32[1]{0}', space=sflag, size = 0x4, scoped, tag = 'scoped memory for tpu_custom_call.1']
    #allocation13 [shape = 'u8[1048576]{0}', space=vmem, size = 0x100000, scoped, tag = 'input window, operand 10, single buffered']
    #allocation14 [shape = 'u8[32768]{0}', space=vmem, size = 0x8000, scoped, tag = 'output window, operand 0']
    %35 = vsyncpa [#allocation9], 0
    %36 = vsyncpa [#allocation12], 0
    %37 = vsyncpa [#allocation10], 0
    %s38 = scalar_lea.sflag [#allocation10], 1
    %39 = vsyncpa %s38, 0
    loop: start=0, step=1, limit=4
    $region2: #{tpu_custom_call.1} parent=1 // loop_pre_header
      _
    $region3: #{tpu_custom_call.1} parent=1 // loop_header
      %s41 = sphi 0, %s45
      %p42 = scmp.ge.s32.totalorder %s41, 4
      %s51 = sphi 0, %s53
      %s54 = sphi 0, %s51
      %s55 = sphi 0, %s54
      %s71 = sphi 0, %s55
      %s77 = sphi 0, %s79
      %s80 = sphi 0, %s77
      %s81 = sphi 0, %s80
      %s97 = sphi 0, %s81
      %s103 = sphi 0, %s105
      %s106 = sphi 0, %s103
      %s107 = sphi 0, %s106
      %s123 = sphi 0, %s107
      %s127 = sphi 0, %s127
      %s129 = sphi 0, %s127
      %s130 = sphi 0, %s129
      %s144 = sphi 0, %s130
      %s148 = sphi 0, %s148
      %s150 = sphi 0, %s148
      %s151 = sphi 0, %s150
      %s165 = sphi 0, %s151
      %s169 = sphi 0, %s169
      %s171 = sphi 0, %s169
      %s172 = sphi 0, %s171
      %s186 = sphi 0, %s172
      %s190 = sphi 0, %s190
      %s192 = sphi 0, %s190
      %s193 = sphi 0, %s192
      %s207 = sphi 0, %s193
      %s211 = sphi 0, %s211
      %s213 = sphi 0, %s211
      %s214 = sphi 0, %s213
      %s228 = sphi 0, %s214
      %s232 = sphi 0, %s232
      %s234 = sphi 0, %s232
      %s235 = sphi 0, %s234
      %s249 = sphi 0, %s235
      %s253 = sphi 0, %s253
      %s255 = sphi 0, %s253
      %s256 = sphi 0, %s255
      %s270 = sphi 0, %s256
      %s276 = sphi 0, %s278
      %s279 = sphi 0, %s276
      %s280 = sphi 0, %s279
      %s296 = sphi 0, %s280
      %s302 = sphi 0, %s304
      %s305 = sphi 0, %s302
      %s306 = sphi 0, %s305
      %s322 = sphi 0, %s306
      %s328 = sphi 0, %s330
      %s331 = sphi 0, %s328
      %s332 = sphi 0, %s331
      %s348 = sphi 0, %s332
    $region4: #{tpu_custom_call.1} parent=1 // loop_header_branch
      %44 = sbr.rel (%p42) target = $region8
    $region5: #{tpu_custom_call.1} parent=1 // loop_body
      %s46 = ssub.s32 %s41, 1
      %s47 = ssub.s32 %s41, 2
      %s48 = sadd.s32 %s41, 1
      %s49 = ssub.s32 %s41, %s48
      %p50 = scmp.eq.s32.totalorder %s49, 0
      %s52 = sadd.s32 %s51, 1
      %s53 = scalar_select %p50, %s51, %s52
      %p56 = pneg %p50
      %p57 = scmp.eq.s32.totalorder %s41, 1
      %p58 = por %p56, %p57
      %p59 = scmp.ne.s32.totalorder %s51, %s54
      %p60 = scmp.eq.s32.totalorder %s41, 0
      %p61 = por %p59, %p60
      %p62 = scmp.ne.s32.totalorder %s51, %s54
      %p63 = scmp.eq.s32.totalorder %s46, 1
      %p64 = por %p62, %p63
      %p65 = scmp.ne.s32.totalorder %s54, %s55
      %p66 = scmp.eq.s32.totalorder %s46, 0
      %p67 = por %p65, %p66
      %p68 = scmp.ne.s32.totalorder %s54, %s55
      %p69 = scmp.eq.s32.totalorder %s47, 1
      %p70 = por %p68, %p69
      %p72 = scmp.ne.s32.totalorder %s55, %s71
      %p73 = scmp.eq.s32.totalorder %s47, 0
      %p74 = por %p72, %p73
      %s75 = ssub.s32 %s41, %s48
      %p76 = scmp.eq.s32.totalorder %s75, 0
      %s78 = sadd.s32 %s77, 1
      %s79 = scalar_select %p76, %s77, %s78
      %p82 = pneg %p76
      %p83 = scmp.eq.s32.totalorder %s41, 1
      %p84 = por %p82, %p83
      %p85 = scmp.ne.s32.totalorder %s77, %s80
      %p86 = scmp.eq.s32.totalorder %s41, 0
      %p87 = por %p85, %p86
      %p88 = scmp.ne.s32.totalorder %s77, %s80
      %p89 = scmp.eq.s32.totalorder %s46, 1
      %p90 = por %p88, %p89
      %p91 = scmp.ne.s32.totalorder %s80, %s81
      %p92 = scmp.eq.s32.totalorder %s46, 0
      %p93 = por %p91, %p92
      %p94 = scmp.ne.s32.totalorder %s80, %s81
      %p95 = scmp.eq.s32.totalorder %s47, 1
      %p96 = por %p94, %p95
      %p98 = scmp.ne.s32.totalorder %s81, %s97
      %p99 = scmp.eq.s32.totalorder %s47, 0
      %p100 = por %p98, %p99
      %s101 = ssub.s32 %s41, %s48
      %p102 = scmp.eq.s32.totalorder %s101, 0
      %s104 = sadd.s32 %s103, 1
      %s105 = scalar_select %p102, %s103, %s104
      %p108 = pneg %p102
      %p109 = scmp.eq.s32.totalorder %s41, 1
      %p110 = por %p108, %p109
      %p111 = scmp.ne.s32.totalorder %s103, %s106
      %p112 = scmp.eq.s32.totalorder %s41, 0
      %p113 = por %p111, %p112
      %p114 = scmp.ne.s32.totalorder %s103, %s106
      %p115 = scmp.eq.s32.totalorder %s46, 1
      %p116 = por %p114, %p115
      %p117 = scmp.ne.s32.totalorder %s106, %s107
      %p118 = scmp.eq.s32.totalorder %s46, 0
      %p119 = por %p117, %p118
      %p120 = scmp.ne.s32.totalorder %s106, %s107
      %p121 = scmp.eq.s32.totalorder %s47, 1
      %p122 = por %p120, %p121
      %p124 = scmp.ne.s32.totalorder %s107, %s123
      %p125 = scmp.eq.s32.totalorder %s47, 0
      %p126 = por %p124, %p125
      %s128 = sadd.s32 %s127, 1
      %p131 = scmp.eq.s32.totalorder %s41, 1
      %p132 = scmp.ne.s32.totalorder %s127, %s129
      %p133 = scmp.eq.s32.totalorder %s41, 0
      %p134 = por %p132, %p133
      %p135 = scmp.ne.s32.totalorder %s127, %s129
      %p136 = scmp.eq.s32.totalorder %s46, 1
      %p137 = por %p135, %p136
      %p138 = scmp.ne.s32.totalorder %s129, %s130
      %p139 = scmp.eq.s32.totalorder %s46, 0
      %p140 = por %p138, %p139
      %p141 = scmp.ne.s32.totalorder %s129, %s130
      %p142 = scmp.eq.s32.totalorder %s47, 1
      %p143 = por %p141, %p142
      %p145 = scmp.ne.s32.totalorder %s130, %s144
      %p146 = scmp.eq.s32.totalorder %s47, 0
      %p147 = por %p145, %p146
      %s149 = sadd.s32 %s148, 1
      %p152 = scmp.eq.s32.totalorder %s41, 1
      %p153 = scmp.ne.s32.totalorder %s148, %s150
      %p154 = scmp.eq.s32.totalorder %s41, 0
      %p155 = por %p153, %p154
      %p156 = scmp.ne.s32.totalorder %s148, %s150
      %p157 = scmp.eq.s32.totalorder %s46, 1
      %p158 = por %p156, %p157
      %p159 = scmp.ne.s32.totalorder %s150, %s151
      %p160 = scmp.eq.s32.totalorder %s46, 0
      %p161 = por %p159, %p160
      %p162 = scmp.ne.s32.totalorder %s150, %s151
      %p163 = scmp.eq.s32.totalorder %s47, 1
      %p164 = por %p162, %p163
      %p166 = scmp.ne.s32.totalorder %s151, %s165
      %p167 = scmp.eq.s32.totalorder %s47, 0
      %p168 = por %p166, %p167
      %s170 = sadd.s32 %s169, 1
      %p173 = scmp.eq.s32.totalorder %s41, 1
      %p174 = scmp.ne.s32.totalorder %s169, %s171
      %p175 = scmp.eq.s32.totalorder %s41, 0
      %p176 = por %p174, %p175
      %p177 = scmp.ne.s32.totalorder %s169, %s171
      %p178 = scmp.eq.s32.totalorder %s46, 1
      %p179 = por %p177, %p178
      %p180 = scmp.ne.s32.totalorder %s171, %s172
      %p181 = scmp.eq.s32.totalorder %s46, 0
      %p182 = por %p180, %p181
      %p183 = scmp.ne.s32.totalorder %s171, %s172
      %p184 = scmp.eq.s32.totalorder %s47, 1
      %p185 = por %p183, %p184
      %p187 = scmp.ne.s32.totalorder %s172, %s186
      %p188 = scmp.eq.s32.totalorder %s47, 0
      %p189 = por %p187, %p188
      %s191 = sadd.s32 %s190, 1
      %p194 = scmp.eq.s32.totalorder %s41, 1
      %p195 = scmp.ne.s32.totalorder %s190, %s192
      %p196 = scmp.eq.s32.totalorder %s41, 0
      %p197 = por %p195, %p196
      %p198 = scmp.ne.s32.totalorder %s190, %s192
      %p199 = scmp.eq.s32.totalorder %s46, 1
      %p200 = por %p198, %p199
      %p201 = scmp.ne.s32.totalorder %s192, %s193
      %p202 = scmp.eq.s32.totalorder %s46, 0
      %p203 = por %p201, %p202
      %p204 = scmp.ne.s32.totalorder %s192, %s193
      %p205 = scmp.eq.s32.totalorder %s47, 1
      %p206 = por %p204, %p205
      %p208 = scmp.ne.s32.totalorder %s193, %s207
      %p209 = scmp.eq.s32.totalorder %s47, 0
      %p210 = por %p208, %p209
      %s212 = sadd.s32 %s211, 1
      %p215 = scmp.eq.s32.totalorder %s41, 1
      %p216 = scmp.ne.s32.totalorder %s211, %s213
      %p217 = scmp.eq.s32.totalorder %s41, 0
      %p218 = por %p216, %p217
      %p219 = scmp.ne.s32.totalorder %s211, %s213
      %p220 = scmp.eq.s32.totalorder %s46, 1
      %p221 = por %p219, %p220
      %p222 = scmp.ne.s32.totalorder %s213, %s214
      %p223 = scmp.eq.s32.totalorder %s46, 0
      %p224 = por %p222, %p223
      %p225 = scmp.ne.s32.totalorder %s213, %s214
      %p226 = scmp.eq.s32.totalorder %s47, 1
      %p227 = por %p225, %p226
      %p229 = scmp.ne.s32.totalorder %s214, %s228
      %p230 = scmp.eq.s32.totalorder %s47, 0
      %p231 = por %p229, %p230
      %s233 = sadd.s32 %s232, 1
      %p236 = scmp.eq.s32.totalorder %s41, 1
      %p237 = scmp.ne.s32.totalorder %s232, %s234
      %p238 = scmp.eq.s32.totalorder %s41, 0
      %p239 = por %p237, %p238
      %p240 = scmp.ne.s32.totalorder %s232, %s234
      %p241 = scmp.eq.s32.totalorder %s46, 1
      %p242 = por %p240, %p241
      %p243 = scmp.ne.s32.totalorder %s234, %s235
      %p244 = scmp.eq.s32.totalorder %s46, 0
      %p245 = por %p243, %p244
      %p246 = scmp.ne.s32.totalorder %s234, %s235
      %p247 = scmp.eq.s32.totalorder %s47, 1
      %p248 = por %p246, %p247
      %p250 = scmp.ne.s32.totalorder %s235, %s249
      %p251 = scmp.eq.s32.totalorder %s47, 0
      %p252 = por %p250, %p251
      %s254 = sadd.s32 %s253, 1
      %p257 = scmp.eq.s32.totalorder %s41, 1
      %p258 = scmp.ne.s32.totalorder %s253, %s255
      %p259 = scmp.eq.s32.totalorder %s41, 0
      %p260 = por %p258, %p259
      %p261 = scmp.ne.s32.totalorder %s253, %s255
      %p262 = scmp.eq.s32.totalorder %s46, 1
      %p263 = por %p261, %p262
      %p264 = scmp.ne.s32.totalorder %s255, %s256
      %p265 = scmp.eq.s32.totalorder %s46, 0
      %p266 = por %p264, %p265
      %p267 = scmp.ne.s32.totalorder %s255, %s256
      %p268 = scmp.eq.s32.totalorder %s47, 1
      %p269 = por %p267, %p268
      %p271 = scmp.ne.s32.totalorder %s256, %s270
      %p272 = scmp.eq.s32.totalorder %s47, 0
      %p273 = por %p271, %p272
      %s274 = ssub.s32 %s41, %s48
      %p275 = scmp.eq.s32.totalorder %s274, 0
      %s277 = sadd.s32 %s276, 1
      %s278 = scalar_select %p275, %s276, %s277
      %p281 = pneg %p275
      %p282 = scmp.eq.s32.totalorder %s41, 1
      %p283 = por %p281, %p282
      %p284 = scmp.ne.s32.totalorder %s276, %s279
      %p285 = scmp.eq.s32.totalorder %s41, 0
      %p286 = por %p284, %p285
      %p287 = scmp.ne.s32.totalorder %s276, %s279
      %p288 = scmp.eq.s32.totalorder %s46, 1
      %p289 = por %p287, %p288
      %p290 = scmp.ne.s32.totalorder %s279, %s280
      %p291 = scmp.eq.s32.totalorder %s46, 0
      %p292 = por %p290, %p291
      %p293 = scmp.ne.s32.totalorder %s279, %s280
      %p294 = scmp.eq.s32.totalorder %s47, 1
      %p295 = por %p293, %p294
      %p297 = scmp.ne.s32.totalorder %s280, %s296
      %p298 = scmp.eq.s32.totalorder %s47, 0
      %p299 = por %p297, %p298
      %s300 = ssub.s32 %s41, %s48
      %p301 = scmp.eq.s32.totalorder %s300, 0
      %s303 = sadd.s32 %s302, 1
      %s304 = scalar_select %p301, %s302, %s303
      %p307 = pneg %p301
      %p308 = scmp.eq.s32.totalorder %s41, 1
      %p309 = por %p307, %p308
      %p310 = scmp.ne.s32.totalorder %s302, %s305
      %p311 = scmp.eq.s32.totalorder %s41, 0
      %p312 = por %p310, %p311
      %p313 = scmp.ne.s32.totalorder %s302, %s305
      %p314 = scmp.eq.s32.totalorder %s46, 1
      %p315 = por %p313, %p314
      %p316 = scmp.ne.s32.totalorder %s305, %s306
      %p317 = scmp.eq.s32.totalorder %s46, 0
      %p318 = por %p316, %p317
      %p319 = scmp.ne.s32.totalorder %s305, %s306
      %p320 = scmp.eq.s32.totalorder %s47, 1
      %p321 = por %p319, %p320
      %p323 = scmp.ne.s32.totalorder %s306, %s322
      %p324 = scmp.eq.s32.totalorder %s47, 0
      %p325 = por %p323, %p324
      %s326 = ssub.s32 %s41, %s48
      %p327 = scmp.eq.s32.totalorder %s326, 0
      %s329 = sadd.s32 %s328, 1
      %s330 = scalar_select %p327, %s328, %s329
      %p333 = pneg %p327
      %p334 = scmp.eq.s32.totalorder %s41, 1
      %p335 = por %p333, %p334
      %p336 = scmp.ne.s32.totalorder %s328, %s331
      %p337 = scmp.eq.s32.totalorder %s41, 0
      %p338 = por %p336, %p337
      %p339 = scmp.ne.s32.totalorder %s328, %s331
      %p340 = scmp.eq.s32.totalorder %s46, 1
      %p341 = por %p339, %p340
      %p342 = scmp.ne.s32.totalorder %s331, %s332
      %p343 = scmp.eq.s32.totalorder %s46, 0
      %p344 = por %p342, %p343
      %p345 = scmp.ne.s32.totalorder %s331, %s332
      %p346 = scmp.eq.s32.totalorder %s47, 1
      %p347 = por %p345, %p346
      %p349 = scmp.ne.s32.totalorder %s332, %s348
      %p350 = scmp.eq.s32.totalorder %s47, 0
      %p351 = por %p349, %p350
      %p352 = scmp.le.s32.totalorder 1, %s41
      %p353 = scmp.lt.s32.totalorder %s41, 3
      %p354 = pnand %p352, %p353
      %p355 = pneg %p354
      // Predicated region
      $region9: #{tpu_custom_call.1} parent=5 // pred_check
        _
      $region10: #{tpu_custom_call.1} parent=5 // pred_check_branch
        %357 = sbr.rel (%p354) target = $region12
      $region11: #{tpu_custom_call.1} parent=5 // pred_region
        %s358 = ssub.s32 %s41, 1
        // Predicated region
        $region13: #{tpu_custom_call.1} parent=11 // pred_check
          %p359 = pneg %p140
        $region14: #{tpu_custom_call.1} parent=11 // pred_check_branch
          %361 = sbr.rel (%p359) target = $region16
        $region15: #{tpu_custom_call.1} parent=11 // pred_region
          _
        $region16: #{tpu_custom_call.1} parent=11 // pred_fallthru
          _
        // Predicated region
        $region17: #{tpu_custom_call.1} parent=11 // pred_check
          %p362 = pneg %p161
        $region18: #{tpu_custom_call.1} parent=11 // pred_check_branch
          %364 = sbr.rel (%p362) target = $region20
        $region19: #{tpu_custom_call.1} parent=11 // pred_region
          %s366 = ssub.s32 32768, 32768
          %367 = vsyncadd [#allocation9], %s366
          %s368 = sshll.u32 [#allocation8], 4
          %s369 = int_to_ptr.vmem [resolvable:$true] %s368
          %374 = dma.hbm_to_vmem [thread:$0]  %s7, 32768, %s369, [#allocation9], 1024, 1024, 64
        $region20: #{tpu_custom_call.1} parent=11 // pred_fallthru
          _
        // Predicated region
        $region21: #{tpu_custom_call.1} parent=11 // pred_check
          %p375 = pneg %p182
        $region22: #{tpu_custom_call.1} parent=11 // pred_check_branch
          %377 = sbr.rel (%p375) target = $region24
        $region23: #{tpu_custom_call.1} parent=11 // pred_region
          _
        $region24: #{tpu_custom_call.1} parent=11 // pred_fallthru
          _
        // Predicated region
        $region25: #{tpu_custom_call.1} parent=11 // pred_check
          %p378 = pneg %p203
        $region26: #{tpu_custom_call.1} parent=11 // pred_check_branch
          %380 = sbr.rel (%p378) target = $region28
        $region27: #{tpu_custom_call.1} parent=11 // pred_region
          %s382 = ssub.s32 38912, 38912
          %383 = vsyncadd [#allocation12], %s382
          %s384 = sshll.u32 [#allocation11], 4
          %s385 = int_to_ptr.vmem [resolvable:$true] %s384
          %390 = dma.hbm_to_vmem [thread:$0]  %s9, 38912, %s385, [#allocation12], 1024, 1024, 64
        $region28: #{tpu_custom_call.1} parent=11 // pred_fallthru
          _
        // Predicated region
        $region29: #{tpu_custom_call.1} parent=11 // pred_check
          %p391 = pneg %p224
        $region30: #{tpu_custom_call.1} parent=11 // pred_check_branch
          %393 = sbr.rel (%p391) target = $region32
        $region31: #{tpu_custom_call.1} parent=11 // pred_region
          %s395 = ssub.s32 32768, 32768
          %396 = vsyncadd [#allocation12], %s395
          %s397 = sshll.u32 [#allocation13], 4
          %s398 = int_to_ptr.vmem [resolvable:$true] %s397
          %403 = dma.hbm_to_vmem [thread:$0]  %s10, 32768, %s398, [#allocation12], 1024, 1024, 64
        $region32: #{tpu_custom_call.1} parent=11 // pred_fallthru
          _
        // Predicated region
        $region33: #{tpu_custom_call.1} parent=11 // pred_check
          %p404 = pneg %p245
        $region34: #{tpu_custom_call.1} parent=11 // pred_check_branch
          %406 = sbr.rel (%p404) target = $region36
        $region35: #{tpu_custom_call.1} parent=11 // pred_region
          _
        $region36: #{tpu_custom_call.1} parent=11 // pred_fallthru
          _
        // Predicated region
        $region37: #{tpu_custom_call.1} parent=11 // pred_check
          %p407 = pneg %p266
        $region38: #{tpu_custom_call.1} parent=11 // pred_check_branch
          %409 = sbr.rel (%p407) target = $region40
        $region39: #{tpu_custom_call.1} parent=11 // pred_region
          _
        $region40: #{tpu_custom_call.1} parent=11 // pred_fallthru
          _
      $region12: #{tpu_custom_call.1} parent=5 // pred_fallthru
        _
      %p410 = scmp.lt.s32.totalorder %s41, 2
      // Predicated region
      $region41: #{tpu_custom_call.1} parent=5 // pred_check
        %p411 = pneg %p410
      $region42: #{tpu_custom_call.1} parent=5 // pred_check_branch
        %413 = sbr.rel (%p411) target = $region44
      $region43: #{tpu_custom_call.1} parent=5 // pred_region
        // Predicated region
        $region45: #{tpu_custom_call.1} parent=43 // pred_check
          %p414 = pneg %p61
        $region46: #{tpu_custom_call.1} parent=43 // pred_check_branch
          %416 = sbr.rel (%p414) target = $region48
        $region47: #{tpu_custom_call.1} parent=43 // pred_region
          %p417 = scmp.lt.s32.totalorder %s41, 1
          %s418 = scalar_select %p417, %s41, 1
          %s419 = smul.addr %s418, 12
          %s420 = smul.addr %s419, 8
          %s421 = scalar_lea.vmem %s3, %s420
        $region48: #{tpu_custom_call.1} parent=43 // pred_fallthru
          _
        // Predicated region
        $region49: #{tpu_custom_call.1} parent=43 // pred_check
          %p422 = pneg %p87
        $region50: #{tpu_custom_call.1} parent=43 // pred_check_branch
          %424 = sbr.rel (%p422) target = $region52
        $region51: #{tpu_custom_call.1} parent=43 // pred_region
          %p425 = scmp.lt.s32.totalorder %s41, 1
          %s426 = scalar_select %p425, %s41, 1
          %s427 = smul.addr %s426, 3
          %s428 = smul.addr %s427, 8
          %s429 = scalar_lea.vmem %s4, %s428
        $region52: #{tpu_custom_call.1} parent=43 // pred_fallthru
          _
        // Predicated region
        $region53: #{tpu_custom_call.1} parent=43 // pred_check
          %p430 = pneg %p113
        $region54: #{tpu_custom_call.1} parent=43 // pred_check_branch
          %432 = sbr.rel (%p430) target = $region56
        $region55: #{tpu_custom_call.1} parent=43 // pred_region
          %p433 = scmp.lt.s32.totalorder %s41, 1
          %s434 = scalar_select %p433, %s41, 1
          %s435 = smul.addr %s434, 4
          %s436 = smul.addr %s435, 8
          %s437 = scalar_lea.vmem %s5, %s436
        $region56: #{tpu_custom_call.1} parent=43 // pred_fallthru
          _
      $region44: #{tpu_custom_call.1} parent=5 // pred_fallthru
        _
      %p438 = scmp.le.s32.totalorder 1, %s41
      %p439 = scmp.lt.s32.totalorder %s41, 3
      %p440 = pnand %p438, %p439
      %p441 = pneg %p440
      // Predicated region
      $region57: #{tpu_custom_call.1} parent=5 // pred_check
        _
      $region58: #{tpu_custom_call.1} parent=5 // pred_check_branch
        %443 = sbr.rel (%p440) target = $region60
      $region59: #{tpu_custom_call.1} parent=5 // pred_region
        %s444 = ssub.s32 %s41, 1
        // Predicated region
        $region61: #{tpu_custom_call.1} parent=59 // pred_check
          %p445 = pneg %p161
        $region62: #{tpu_custom_call.1} parent=59 // pred_check_branch
          %447 = sbr.rel (%p445) target = $region64
        $region63: #{tpu_custom_call.1} parent=59 // pred_region
          %448 = dma.done [#allocation9], 32768
        $region64: #{tpu_custom_call.1} parent=59 // pred_fallthru
          _
        // Predicated region
        $region65: #{tpu_custom_call.1} parent=59 // pred_check
          %p449 = pneg %p203
        $region66: #{tpu_custom_call.1} parent=59 // pred_check_branch
          %451 = sbr.rel (%p449) target = $region68
        $region67: #{tpu_custom_call.1} parent=59 // pred_region
          %452 = dma.done [#allocation12], 38912
        $region68: #{tpu_custom_call.1} parent=59 // pred_fallthru
          _
        // Predicated region
        $region69: #{tpu_custom_call.1} parent=59 // pred_check
          %p453 = pneg %p224
        $region70: #{tpu_custom_call.1} parent=59 // pred_check_branch
          %455 = sbr.rel (%p453) target = $region72
        $region71: #{tpu_custom_call.1} parent=59 // pred_region
          %456 = dma.done [#allocation12], 32768
        $region72: #{tpu_custom_call.1} parent=59 // pred_fallthru
          _
        %p457 = scmp.lt.s32.totalorder %s46, 1
        %s458 = scalar_select %p457, %s46, 1
        %s459 = smul.addr %s458, 12
        %s460 = smul.addr %s459, 8
        %s461 = scalar_lea.vmem %s3, %s460
        %p462 = pneg %p67
        %p463 = pneg %p64
        %p464 = scmp.lt.s32.totalorder %s46, 1
        %s465 = scalar_select %p464, %s46, 1
        %s466 = smul.addr %s465, 3
        %s467 = smul.addr %s466, 8
        %s468 = scalar_lea.vmem %s4, %s467
        %p469 = pneg %p93
        %p470 = pneg %p90
        %p471 = scmp.lt.s32.totalorder %s46, 1
        %s472 = scalar_select %p471, %s46, 1
        %s473 = smul.addr %s472, 4
        %s474 = smul.addr %s473, 8
        %s475 = scalar_lea.vmem %s5, %s474
        %p476 = pneg %p119
        %p477 = pneg %p116
        %p478 = pneg %p140
        %p479 = pneg %p137
        %p480 = pneg %p161
        %p481 = pneg %p158
        %p482 = pneg %p182
        %p483 = pneg %p179
        %p484 = pneg %p203
        %p485 = pneg %p200
        %p486 = pneg %p224
        %p487 = pneg %p221
        %p488 = pneg %p245
        %p489 = pneg %p242
        %p490 = pneg %p266
        %p491 = pneg %p263
        %p492 = pneg %p292
        %p493 = pneg %p289
        %s494 = sand.u32 %s279, 1
        %s495 = scalar_lea.sflag [#allocation10], %s494
        %s496 = sand.u32 %s279, 1
        %s497 = smul.addr %s496, 32
        %s498 = scalar_lea.vmem [#allocation14], %s497
        %p499 = pneg %p318
        %p500 = pneg %p315
        %p501 = scmp.lt.s32.totalorder %s46, 1
        %s502 = scalar_select %p501, %s46, 1
        %s503 = smul.addr %s502, 8
        %s504 = scalar_lea.vmem %s14, %s503
        %p505 = pneg %p344
        %p506 = pneg %p341
        %p507 = scmp.lt.s32.totalorder %s46, 1
        %s508 = scalar_select %p507, %s46, 1
        %s509 = scalar_lea.vmem %s15, %s508
        %p510 = scmp.lt.s32.totalorder %s46, 1
        %s511 = scalar_select %p510, %s46, 1
        %s512 = smul.addr %s511, 12
        %s513 = smul.addr %s512, 8
        %s514 = scalar_lea.vmem %s3, %s513
        %p515 = scmp.lt.s32.totalorder %s46, 1
        %s516 = scalar_select %p515, %s46, 1
        %s517 = smul.addr %s516, 3
        %s518 = smul.addr %s517, 8
        %s519 = scalar_lea.vmem %s4, %s518
        %p520 = scmp.lt.s32.totalorder %s46, 1
        %s521 = scalar_select %p520, %s46, 1
        %s522 = smul.addr %s521, 4
        %s523 = smul.addr %s522, 8
        %s524 = scalar_lea.vmem %s5, %s523
        %p525 = scmp.lt.s32.totalorder %s46, 1
        %s526 = scalar_select %p525, %s46, 1
        %s527 = smul.addr %s526, 8
        %s528 = scalar_lea.vmem %s14, %s527
        %p529 = scmp.lt.s32.totalorder %s46, 1
        %s530 = scalar_select %p529, %s46, 1
        %s531 = scalar_lea.vmem %s15, %s530
        %s532 = sld [smem:[#allocation6 + %s46]]
        %s533 = sld [smem:[#allocation7 + %s46]]
        %v534 = vld [vmem:[%s514] sm:$0xff]
        %v535 = vld [vmem:[%s514 + $0x8] sm:$0xff]
        %v536 = vld [vmem:[%s514 + $0x10] sm:$0xff]
        %v537 = vld [vmem:[%s514 + $0x18] sm:$0xff]
        %v538 = vld [vmem:[%s514 + $0x20] sm:$0xff]
        %v539 = vld [vmem:[%s514 + $0x28] sm:$0xff]
        %v540 = vld [vmem:[%s514 + $0x30] sm:$0xff]
        %v541 = vld [vmem:[%s514 + $0x38] sm:$0xff]
        %v542 = vld [vmem:[%s514 + $0x40] sm:$0xff]
        %v543 = vld [vmem:[%s514 + $0x48] sm:$0xff]
        %v544 = vld [vmem:[%s514 + $0x50] sm:$0xff]
        %v545 = vld [vmem:[%s514 + $0x58] sm:$0xff]
        %v546 = vld [vmem:[%s519] sm:$0xff]
        %v547 = vld [vmem:[%s519 + $0x8] sm:$0xff]
        %v548 = vld [vmem:[%s519 + $0x10] sm:$0xff]
        %vm549 = vcmask 359424
        %v551 = vsel %vm549, %v536, 0
        %v554 = vsel %vm549, %v539, 0
        %v557 = vsel %vm549, %v542, 0
        %v560 = vsel %vm549, %v545, 0
        %v563 = vsel %vm549, %v548, 0
        %565 = vmatprep.subr.mxu0 0.0
        %566 = vmatpush1.xpose.msra.mxu0 0.0
        %567 = vmatprep.subr.mxu0 0.0
        %568 = vmatpush1.xpose.msra.mxu0 0.0
        %569 = vmatprep.subr.mxu0 0.0
        %570 = vmatpush1.xpose.msra.mxu0 0.0
        %571 = vmatprep.subr.mxu0 0.0
        %572 = vmatpush1.xpose.msra.mxu0 0.0
        %573 = vmatprep.subr.mxu0 0.0
        %574 = vmatpush1.xpose.msra.mxu0 0.0
        %575 = vmatprep.subr.mxu0 0.0
        %576 = vmatpush1.xpose.msra.mxu0 0.0
        %577 = vmatprep.subr.mxu0 0.0
        %578 = vmatpush1.xpose.msra.mxu0 0.0
        %579 = vmatprep.subr.mxu0 0.0
        %580 = vmatpush1.xpose.msra.mxu0 0.0
        %581 = vmatprep.subr.mxu0 0.0
        %582 = vmatpush1.xpose.msra.mxu0 0.0
        %583 = vmatprep.subr.mxu0 0.0
        %584 = vmatpush1.xpose.msra.mxu0 0.0
        %585 = vmatprep.subr.mxu0 0.0
        %586 = vmatpush1.xpose.msra.mxu0 0.0
        %587 = vmatprep.subr.mxu0 0.0
        %588 = vmatpush1.xpose.msra.mxu0 0.0
        %589 = vmatprep.subr.mxu0 0.0
        %590 = vmatpush1.xpose.msra.mxu0 0.0
        %591 = vmatprep.subr.mxu0 0.0
        %592 = vmatpush1.xpose.msra.mxu0 0.0
        %593 = vmatprep.subr.mxu0 0.0
        %594 = vmatpush1.xpose.msra.mxu0 0.0
        %595 = vmatprep.subr.mxu0 %v547
        %596 = vmatpush1.xpose.msra.mxu0 %v546
        %597 = vmatprep.subr.mxu0 0.0
        %598 = vmatpush2.xpose.msra.mxu0 0.0
        %599 = vmatprep.subr.mxu0 0.0
        %600 = vmatpush2.xpose.msra.mxu0 0.0
        %601 = vmatprep.subr.mxu0 0.0
        %602 = vmatpush2.xpose.msra.mxu0 0.0
        %603 = vmatprep.subr.mxu0 0.0
        %604 = vmatpush2.xpose.msra.mxu0 0.0
        %605 = vmatprep.subr.mxu0 0.0
        %606 = vmatpush2.xpose.msra.mxu0 0.0
        %607 = vmatprep.subr.mxu0 0.0
        %608 = vmatpush2.xpose.msra.mxu0 0.0
        %609 = vmatprep.subr.mxu0 0.0
        %610 = vmatpush2.xpose.msra.mxu0 0.0
        %611 = vmatprep.subr.mxu0 0.0
        %612 = vmatpush2.xpose.msra.mxu0 0.0
        %613 = vmatprep.subr.mxu0 0.0
        %614 = vmatpush2.xpose.msra.mxu0 0.0
        %615 = vmatprep.subr.mxu0 0.0
        %616 = vmatpush2.xpose.msra.mxu0 0.0
        %617 = vmatprep.subr.mxu0 0.0
        %618 = vmatpush2.xpose.msra.mxu0 0.0
        %619 = vmatprep.subr.mxu0 0.0
        %620 = vmatpush2.xpose.msra.mxu0 0.0
        %621 = vmatprep.subr.mxu0 0.0
        %622 = vmatpush2.xpose.msra.mxu0 0.0
        %623 = vmatprep.subr.mxu0 0.0
        %624 = vmatpush2.xpose.msra.mxu0 0.0
        %625 = vmatprep.subr.mxu0 0.0
        %626 = vmatpush2.xpose.msra.mxu0 0.0
        %627 = vmatprep.subr.mxu0 0.0
        %628 = vmatpush2.xpose.msra.mxu0 0.0
        %629 = vmatprep.mubr.f32.mxu0 %v535
        %630 = vmatmul.mubr.f32.gmra.mxu0 %v534
        %v631 = vpop.f32.mrf.mxu0
        %v632 = vadd.f32 0.0, %v631
        %v633 = vpop.f32.mrf.mxu0
        %634 = vmatprep.mubr.f32.mxu0 %v538
        %635 = vmatmul.mubr.f32.gmra.mxu0 %v537
        %v636 = vpop.f32.mrf.mxu0
        %v637 = vadd.f32 0.0, %v636
        %v638 = vpop.f32.mrf.mxu0
        %639 = vmatprep.mubr.f32.mxu0 %v541
        %640 = vmatmul.mubr.f32.gmra.mxu0 %v540
        %v641 = vpop.f32.mrf.mxu0
        %v642 = vadd.f32 0.0, %v641
        %v643 = vpop.f32.mrf.mxu0
        %644 = vmatprep.mubr.f32.mxu0 %v544
        %645 = vmatmul.mubr.f32.gmra.mxu0 %v543
        %v646 = vpop.f32.mrf.mxu0
        %v647 = vadd.f32 0.0, %v646
        %v648 = vpop.f32.mrf.mxu0
        %649 = vdwg.mxu0
        %650 = vmatprep.subr.mxu0 0.0
        %651 = vmatpush1.xpose.msra.mxu0 0.0
        %652 = vmatprep.subr.mxu0 0.0
        %653 = vmatpush1.xpose.msra.mxu0 0.0
        %654 = vmatprep.subr.mxu0 0.0
        %655 = vmatpush1.xpose.msra.mxu0 0.0
        %656 = vmatprep.subr.mxu0 0.0
        %657 = vmatpush1.xpose.msra.mxu0 0.0
        %658 = vmatprep.subr.mxu0 0.0
        %659 = vmatpush1.xpose.msra.mxu0 0.0
        %660 = vmatprep.subr.mxu0 0.0
        %661 = vmatpush1.xpose.msra.mxu0 0.0
        %662 = vmatprep.subr.mxu0 0.0
        %663 = vmatpush1.xpose.msra.mxu0 0.0
        %664 = vmatprep.subr.mxu0 0.0
        %665 = vmatpush1.xpose.msra.mxu0 0.0
        %666 = vmatprep.subr.mxu0 0.0
        %667 = vmatpush1.xpose.msra.mxu0 0.0
        %668 = vmatprep.subr.mxu0 0.0
        %669 = vmatpush1.xpose.msra.mxu0 0.0
        %670 = vmatprep.subr.mxu0 0.0
        %671 = vmatpush1.xpose.msra.mxu0 0.0
        %672 = vmatprep.subr.mxu0 0.0
        %673 = vmatpush1.xpose.msra.mxu0 0.0
        %674 = vmatprep.subr.mxu0 0.0
        %675 = vmatpush1.xpose.msra.mxu0 0.0
        %676 = vmatprep.subr.mxu0 0.0
        %677 = vmatpush1.xpose.msra.mxu0 0.0
        %678 = vmatprep.subr.mxu0 0.0
        %679 = vmatpush1.xpose.msra.mxu0 0.0
        %680 = vmatprep.subr.mxu0 0.0
        %681 = vmatpush1.xpose.msra.mxu0 %v563
        %682 = vmatprep.subr.mxu0 0.0
        %683 = vmatpush2.xpose.msra.mxu0 0.0
        %684 = vmatprep.subr.mxu0 0.0
        %685 = vmatpush2.xpose.msra.mxu0 0.0
        %686 = vmatprep.subr.mxu0 0.0
        %687 = vmatpush2.xpose.msra.mxu0 0.0
        %688 = vmatprep.subr.mxu0 0.0
        %689 = vmatpush2.xpose.msra.mxu0 0.0
        %690 = vmatprep.subr.mxu0 0.0
        %691 = vmatpush2.xpose.msra.mxu0 0.0
        %692 = vmatprep.subr.mxu0 0.0
        %693 = vmatpush2.xpose.msra.mxu0 0.0
        %694 = vmatprep.subr.mxu0 0.0
        %695 = vmatpush2.xpose.msra.mxu0 0.0
        %696 = vmatprep.subr.mxu0 0.0
        %697 = vmatpush2.xpose.msra.mxu0 0.0
        %698 = vmatprep.subr.mxu0 0.0
        %699 = vmatpush2.xpose.msra.mxu0 0.0
        %700 = vmatprep.subr.mxu0 0.0
        %701 = vmatpush2.xpose.msra.mxu0 0.0
        %702 = vmatprep.subr.mxu0 0.0
        %703 = vmatpush2.xpose.msra.mxu0 0.0
        %704 = vmatprep.subr.mxu0 0.0
        %705 = vmatpush2.xpose.msra.mxu0 0.0
        %706 = vmatprep.subr.mxu0 0.0
        %707 = vmatpush2.xpose.msra.mxu0 0.0
        %708 = vmatprep.subr.mxu0 0.0
        %709 = vmatpush2.xpose.msra.mxu0 0.0
        %710 = vmatprep.subr.mxu0 0.0
        %711 = vmatpush2.xpose.msra.mxu0 0.0
        %712 = vmatprep.subr.mxu0 0.0
        %713 = vmatpush2.xpose.msra.mxu0 0.0
        %714 = vmatprep.mubr.f32.mxu0 0.0
        %715 = vmatmul.mubr.f32.gmra.mxu0 %v551
        %v716 = vpop.f32.mrf.mxu0
        %v717 = vadd.f32 %v632, %v716
        %v718 = vpop.f32.mrf.mxu0
        %719 = vmatprep.mubr.f32.mxu0 0.0
        %720 = vmatmul.mubr.f32.gmra.mxu0 %v554
        %v721 = vpop.f32.mrf.mxu0
        %v722 = vadd.f32 %v637, %v721
        %v723 = vpop.f32.mrf.mxu0
        %724 = vmatprep.mubr.f32.mxu0 0.0
        %725 = vmatmul.mubr.f32.gmra.mxu0 %v557
        %v726 = vpop.f32.mrf.mxu0
        %v727 = vadd.f32 %v642, %v726
        %v728 = vpop.f32.mrf.mxu0
        %729 = vmatprep.mubr.f32.mxu0 0.0
        %730 = vmatmul.mubr.f32.gmra.mxu0 %v560
        %v731 = vpop.f32.mrf.mxu0
        %v732 = vadd.f32 %v647, %v731
        %v733 = vpop.f32.mrf.mxu0
        %734 = vdwg.mxu0
        %v735 = vlaneseq
        %v736 = vshrl.u32 %v735, 7
        %v737 = vadd.s32 %v736, 8
        %v738 = vadd.s32 %v736, 16
        %v739 = vadd.s32 %v736, 24
        %v740 = vlaneseq
        %v741 = vand.u32 %v740, 127
        %v742 = vstv %s532
        %vm743 = vcmp.lt.s32.totalorder %v741, %v742
        %s744 = smul.u32 %s46, 128
        %s745 = sld [smem:[#allocation5 + %s744]]
        %v746 = vstv %s745
        %vm747 = vcmp.lt.s32.totalorder %v736, %v746
        %vm748 = vcmp.lt.s32.totalorder %v737, %v746
        %vm749 = vcmp.lt.s32.totalorder %v738, %v746
        %vm750 = vcmp.lt.s32.totalorder %v739, %v746
        %vm751 = vcmp.lt.s32.totalorder %v736, 6
        %vm752 = vcmp.lt.s32.totalorder %v737, 6
        %vm753 = vcmp.lt.s32.totalorder %v738, 6
        %vm754 = vcmp.lt.s32.totalorder %v739, 6
        %vm755 = vcmp.ge.s32.totalorder %v736, 8
        %vm756 = vcmp.ge.s32.totalorder %v737, 8
        %vm757 = vcmp.ge.s32.totalorder %v738, 8
        %vm758 = vcmp.ge.s32.totalorder %v739, 8
        %s759 = sadd.s32 %s744, 1
        %s760 = sld [smem:[#allocation5 + %s759]]
        %s761 = sadd.s32 %s760, 8
        %v762 = vstv %s761
        %vm763 = vcmp.lt.s32.totalorder %v736, %v762
        %vm764 = vcmp.lt.s32.totalorder %v737, %v762
        %vm765 = vcmp.lt.s32.totalorder %v738, %v762
        %vm766 = vcmp.lt.s32.totalorder %v739, %v762
        %vm767 = vmand %vm755, %vm763
        %vm768 = vmand %vm756, %vm764
        %vm769 = vmand %vm757, %vm765
        %vm770 = vmand %vm758, %vm766
        %vm771 = vmor %vm747, %vm767
        %vm772 = vmor %vm748, %vm768
        %vm773 = vmor %vm749, %vm769
        %vm774 = vmor %vm750, %vm770
        %vm775 = vcmp.lt.s32.totalorder %v736, 14
        %vm776 = vcmp.lt.s32.totalorder %v737, 14
        %vm777 = vcmp.lt.s32.totalorder %v738, 14
        %vm778 = vcmp.lt.s32.totalorder %v739, 14
        %vm779 = vmand %vm755, %vm775
        %vm780 = vmand %vm756, %vm776
        %vm781 = vmand %vm757, %vm777
        %vm782 = vmand %vm758, %vm778
        %vm783 = vmor %vm751, %vm779
        %vm784 = vmor %vm752, %vm780
        %vm785 = vmor %vm753, %vm781
        %vm786 = vmor %vm754, %vm782
        %vm787 = vcmp.ge.s32.totalorder %v736, 16
        %vm788 = vcmp.ge.s32.totalorder %v737, 16
        %vm789 = vcmp.ge.s32.totalorder %v738, 16
        %vm790 = vcmp.ge.s32.totalorder %v739, 16
        %s791 = sadd.s32 %s744, 2
        %s792 = sld [smem:[#allocation5 + %s791]]
        %s793 = sadd.s32 %s792, 16
        %v794 = vstv %s793
        %vm795 = vcmp.lt.s32.totalorder %v736, %v794
        %vm796 = vcmp.lt.s32.totalorder %v737, %v794
        %vm797 = vcmp.lt.s32.totalorder %v738, %v794
        %vm798 = vcmp.lt.s32.totalorder %v739, %v794
        %vm799 = vmand %vm787, %vm795
        %vm800 = vmand %vm788, %vm796
        %vm801 = vmand %vm789, %vm797
        %vm802 = vmand %vm790, %vm798
        %vm803 = vmor %vm771, %vm799
        %vm804 = vmor %vm772, %vm800
        %vm805 = vmor %vm773, %vm801
        %vm806 = vmor %vm774, %vm802
        %vm807 = vcmp.lt.s32.totalorder %v736, 22
        %vm808 = vcmp.lt.s32.totalorder %v737, 22
        %vm809 = vcmp.lt.s32.totalorder %v738, 22
        %vm810 = vcmp.lt.s32.totalorder %v739, 22
        %vm811 = vmand %vm787, %vm807
        %vm812 = vmand %vm788, %vm808
        %vm813 = vmand %vm789, %vm809
        %vm814 = vmand %vm790, %vm810
        %vm815 = vmor %vm783, %vm811
        %vm816 = vmor %vm784, %vm812
        %vm817 = vmor %vm785, %vm813
        %vm818 = vmor %vm786, %vm814
        %vm819 = vcmp.ge.s32.totalorder %v736, 24
        %vm820 = vcmp.ge.s32.totalorder %v737, 24
        %vm821 = vcmp.ge.s32.totalorder %v738, 24
        %vm822 = vcmp.ge.s32.totalorder %v739, 24
        %s823 = sadd.s32 %s744, 3
        %s824 = sld [smem:[#allocation5 + %s823]]
        %s825 = sadd.s32 %s824, 24
        %v826 = vstv %s825
        %vm827 = vcmp.lt.s32.totalorder %v736, %v826
        %vm828 = vcmp.lt.s32.totalorder %v737, %v826
        %vm829 = vcmp.lt.s32.totalorder %v738, %v826
        %vm830 = vcmp.lt.s32.totalorder %v739, %v826
        %vm831 = vmand %vm819, %vm827
        %vm832 = vmand %vm820, %vm828
        %vm833 = vmand %vm821, %vm829
        %vm834 = vmand %vm822, %vm830
        %vm835 = vmor %vm803, %vm831
        %vm836 = vmor %vm804, %vm832
        %vm837 = vmor %vm805, %vm833
        %vm838 = vmor %vm806, %vm834
        %vm839 = vcmp.lt.s32.totalorder %v736, 30
        %vm840 = vcmp.lt.s32.totalorder %v737, 30
        %vm841 = vcmp.lt.s32.totalorder %v738, 30
        %vm842 = vcmp.lt.s32.totalorder %v739, 30
        %vm843 = vmand %vm819, %vm839
        %vm844 = vmand %vm820, %vm840
        %vm845 = vmand %vm821, %vm841
        %vm846 = vmand %vm822, %vm842
        %vm847 = vmor %vm815, %vm843
        %vm848 = vmor %vm816, %vm844
        %vm849 = vmor %vm817, %vm845
        %vm850 = vmor %vm818, %vm846
        %vm851 = vmand %vm835, %vm743
        %vm852 = vmand %vm836, %vm743
        %vm853 = vmand %vm837, %vm743
        %vm854 = vmand %vm838, %vm743
        %v855 = vsel %vm851, %v717, -4.2949673e+09
        %v856 = vsel %vm852, %v722, -4.2949673e+09
        %v857 = vsel %vm853, %v727, -4.2949673e+09
        %v858 = vsel %vm854, %v732, -4.2949673e+09
        %v859 = vsel %vm847, %v855, -1e+38
        %v860 = vsel %vm848, %v856, -1e+38
        %v861 = vsel %vm849, %v857, -1e+38
        %v862 = vsel %vm850, %v858, -1e+38
        %vm863 = vcmask 64512
        %v864 = vsel %vm863, %v859, -inf
        %v865 = vrot.slane %v864, 4
        %v866 = vmax.f32 %v864, %v865
        %v867 = vrot.slane %v866, 2
        %v868 = vmax.f32 %v866, %v867
        %v869 = vrot.slane %v868, 1
        %v870 = vmax.f32 %v868, %v869
        %v871 = vsel %vm863, %v860, -inf
        %v872 = vrot.slane %v871, 4
        %v873 = vmax.f32 %v871, %v872
        %v874 = vrot.slane %v873, 2
        %v875 = vmax.f32 %v873, %v874
        %v876 = vrot.slane %v875, 1
        %v877 = vmax.f32 %v875, %v876
        %v878 = vsel %vm863, %v861, -inf
        %v879 = vrot.slane %v878, 4
        %v880 = vmax.f32 %v878, %v879
        %v881 = vrot.slane %v880, 2
        %v882 = vmax.f32 %v880, %v881
        %v883 = vrot.slane %v882, 1
        %v884 = vmax.f32 %v882, %v883
        %v885 = vsel %vm863, %v862, -inf
        %v886 = vrot.slane %v885, 4
        %v887 = vmax.f32 %v885, %v886
        %v888 = vrot.slane %v887, 2
        %v889 = vmax.f32 %v887, %v888
        %v890 = vrot.slane %v889, 1
        %v891 = vmax.f32 %v889, %v890
        %v892 = vsub.f32 %v859, %v870
        %v893 = vsub.f32 %v860, %v877
        %v894 = vsub.f32 %v861, %v884
        %v895 = vsub.f32 %v862, %v891
        %v896 = vmul.f32 %v892, 1.442695
        %v897 = vpow.pop %v896
        %v898 = vmul.f32 %v893, 1.442695
        %v899 = vpow.pop %v898
        %v900 = vmul.f32 %v894, 1.442695
        %v901 = vpow.pop %v900
        %v902 = vmul.f32 %v895, 1.442695
        %v903 = vpow.pop %v902
        %v904 = vsel %vm863, %v897, 0.0
        %v905 = vrot.slane %v904, 4
        %v906 = vadd.f32 %v904, %v905
        %v907 = vrot.slane %v906, 2
        %v908 = vadd.f32 %v906, %v907
        %v909 = vrot.slane %v908, 1
        %v910 = vadd.f32 %v908, %v909
        %v911 = vsel %vm863, %v899, 0.0
        %v912 = vrot.slane %v911, 4
        %v913 = vadd.f32 %v911, %v912
        %v914 = vrot.slane %v913, 2
        %v915 = vadd.f32 %v913, %v914
        %v916 = vrot.slane %v915, 1
        %v917 = vadd.f32 %v915, %v916
        %v918 = vsel %vm863, %v901, 0.0
        %v919 = vrot.slane %v918, 4
        %v920 = vadd.f32 %v918, %v919
        %v921 = vrot.slane %v920, 2
        %v922 = vadd.f32 %v920, %v921
        %v923 = vrot.slane %v922, 1
        %v924 = vadd.f32 %v922, %v923
        %v925 = vsel %vm863, %v903, 0.0
        %v926 = vrot.slane %v925, 4
        %v927 = vadd.f32 %v925, %v926
        %v928 = vrot.slane %v927, 2
        %v929 = vadd.f32 %v927, %v928
        %v930 = vrot.slane %v929, 1
        %v931 = vadd.f32 %v929, %v930
        %v932 = vrcp.pop %v910
        %v933 = vrcp.pop %v917
        %v934 = vrcp.pop %v924
        %v935 = vrcp.pop %v931
        %v936 = vmul.f32 %v897, %v932
        %v937 = vmul.f32 %v899, %v933
        %v938 = vmul.f32 %v901, %v934
        %v939 = vmul.f32 %v903, %v935
        %940 = vst.msk [vmem:[%s498] sm:$0xff] %vm863, %v936
        %941 = vst.msk [vmem:[%s498 + $0x8] sm:$0xff] %vm863, %v937
        %942 = vst.msk [vmem:[%s498 + $0x10] sm:$0xff] %vm863, %v938
        %943 = vst.msk [vmem:[%s498 + $0x18] sm:$0xff] %vm863, %v939
        %948 = vrot.lane.b32.xlu0 %v936, 8
        %v949 = vpop.permute.xlu0 %948
        %950 = vrot.lane.b32.xlu0 %v937, 8
        %v951 = vpop.permute.xlu0 %950
        %952 = vrot.lane.b32.xlu0 %v938, 8
        %v953 = vpop.permute.xlu0 %952
        %954 = vrot.lane.b32.xlu0 %v939, 8
        %v955 = vpop.permute.xlu0 %954
        %960 = vrot.lane.b32.xlu0 %v936, 16
        %v961 = vpop.permute.xlu0 %960
        %962 = vrot.lane.b32.xlu0 %v937, 16
        %v963 = vpop.permute.xlu0 %962
        %964 = vrot.lane.b32.xlu0 %v938, 16
        %v965 = vpop.permute.xlu0 %964
        %966 = vrot.lane.b32.xlu0 %v939, 16
        %v967 = vpop.permute.xlu0 %966
        %972 = vrot.lane.b32.xlu0 %v936, 24
        %v973 = vpop.permute.xlu0 %972
        %974 = vrot.lane.b32.xlu0 %v937, 24
        %v975 = vpop.permute.xlu0 %974
        %976 = vrot.lane.b32.xlu0 %v938, 24
        %v977 = vpop.permute.xlu0 %976
        %978 = vrot.lane.b32.xlu0 %v939, 24
        %v979 = vpop.permute.xlu0 %978
        %v984 = vsel %vm863, %v936, %v949
        %v985 = vsel %vm863, %v937, %v951
        %v986 = vsel %vm863, %v938, %v953
        %v987 = vsel %vm863, %v939, %v955
        %vm988 = vcmask 130048
        %v989 = vsel %vm988, %v984, %v961
        %v990 = vsel %vm988, %v985, %v963
        %v991 = vsel %vm988, %v986, %v965
        %v992 = vsel %vm988, %v987, %v967
        %vm993 = vcmask 195584
        %v994 = vsel %vm993, %v989, %v973
        %v995 = vsel %vm993, %v990, %v975
        %v996 = vsel %vm993, %v991, %v977
        %v997 = vsel %vm993, %v992, %v979
        %v998 = vsel %vm755, 1, 0
        %v999 = vsel %vm756, 1, 0
        %v1000 = vsel %vm757, 1, 0
        %v1001 = vsel %vm758, 1, 0
        %v1002 = vsel %vm787, 1, 0
        %v1003 = vsel %vm788, 1, 0
        %v1004 = vsel %vm789, 1, 0
        %v1005 = vsel %vm790, 1, 0
        %v1006 = vadd.s32 %v998, %v1002
        %v1007 = vadd.s32 %v999, %v1003
        %v1008 = vadd.s32 %v1000, %v1004
        %v1009 = vadd.s32 %v1001, %v1005
        %v1010 = vsel %vm819, 1, 0
        %v1011 = vsel %vm820, 1, 0
        %v1012 = vsel %vm821, 1, 0
        %v1013 = vsel %vm822, 1, 0
        %v1014 = vadd.s32 %v1006, %v1010
        %v1015 = vadd.s32 %v1007, %v1011
        %v1016 = vadd.s32 %v1008, %v1012
        %v1017 = vadd.s32 %v1009, %v1013
        %vm1018 = vcmp.ge.s32.totalorder %v741, 8
        %v1019 = vsel %vm1018, 1, 0
        %vm1020 = vcmp.ge.s32.totalorder %v741, 16
        %v1021 = vsel %vm1020, 1, 0
        %v1022 = vadd.s32 %v1019, %v1021
        %vm1023 = vcmp.ge.s32.totalorder %v741, 24
        %v1024 = vsel %vm1023, 1, 0
        %v1025 = vadd.s32 %v1022, %v1024
        %vm1026 = vcmp.eq.s32.totalorder %v1014, %v1025
        %vm1027 = vcmp.eq.s32.totalorder %v1015, %v1025
        %vm1028 = vcmp.eq.s32.totalorder %v1016, %v1025
        %vm1029 = vcmp.eq.s32.totalorder %v1017, %v1025
        %v1030 = vmul.u32 %v1025, 8
        %v1031 = vsub.s32 %v741, %v1030
        %vm1032 = vcmp.lt.s32.totalorder %v1031, 4
        %vm1033 = vmand %vm1026, %vm1032
        %vm1034 = vmand %vm1027, %vm1032
        %vm1035 = vmand %vm1028, %vm1032
        %vm1036 = vmand %vm1029, %vm1032
        %v1037 = vstv %s533
        %vm1038 = vcmp.lt.s32.totalorder %v1025, %v1037
        %vm1039 = vmand %vm1033, %vm1038
        %vm1040 = vmand %vm1034, %vm1038
        %vm1041 = vmand %vm1035, %vm1038
        %vm1042 = vmand %vm1036, %vm1038
        %v1043 = vsel %vm1039, %v994, 0.0
        %v1044 = vsel %vm1040, %v995, 0.0
        %v1045 = vsel %vm1041, %v996, 0.0
        %v1046 = vsel %vm1042, %v997, 0.0
        %1047 = vxpose.xlu0.b32.start [1/16] %v1043, 128
        %1048 = vxpose.xlu0.b32.cont [2/16] %v1044, 128
        %1049 = vxpose.xlu0.b32.cont [3/16] %v1045, 128
        %1050 = vxpose.xlu0.b32.cont [4/16] %v1046, 128
        %1051 = vxpose.xlu0.b32.cont [5/16] 0.0, 128
        %1052 = vxpose.xlu0.b32.cont [6/16] 0.0, 128
        %1053 = vxpose.xlu0.b32.cont [7/16] 0.0, 128
        %1054 = vxpose.xlu0.b32.cont [8/16] 0.0, 128
        %1055 = vxpose.xlu0.b32.cont [9/16] 0.0, 128
        %1056 = vxpose.xlu0.b32.cont [10/16] 0.0, 128
        %1057 = vxpose.xlu0.b32.cont [11/16] 0.0, 128
        %1058 = vxpose.xlu0.b32.cont [12/16] 0.0, 128
        %1059 = vxpose.xlu0.b32.cont [13/16] 0.0, 128
        %1060 = vxpose.xlu0.b32.cont [14/16] 0.0, 128
        %1061 = vxpose.xlu0.b32.cont [15/16] 0.0, 128
        %1062 = vxpose.xlu0.b32.end [16/16] 0.0, 128
        %v1063 = vpop.trf.xlu0
        %v1064 = vpop.trf.xlu0
        %v1065 = vpop.trf.xlu0
        %v1066 = vpop.trf.xlu0
        %v1067 = vpop.trf.xlu0
        %v1068 = vpop.trf.xlu0
        %v1069 = vpop.trf.xlu0
        %v1070 = vpop.trf.xlu0
        %v1071 = vpop.trf.xlu0
        %v1072 = vpop.trf.xlu0
        %v1073 = vpop.trf.xlu0
        %v1074 = vpop.trf.xlu0
        %v1075 = vpop.trf.xlu0
        %v1076 = vpop.trf.xlu0
        %v1077 = vpop.trf.xlu0
        %v1078 = vpop.trf.xlu0
        %vm1079 = vcmask 261120
        %v1081 = vsel %vm1079, %v1063, 0
        %v1084 = vsel %vm1079, %v1064, 0
        %v1087 = vsel %vm1079, %v1065, 0
        %v1090 = vsel %vm1079, %v1066, 0
        %1092 = vmatprep.subr.mxu0 0.0
        %1093 = vmatpush1.msra.mxu0 0.0
        %1094 = vmatprep.subr.mxu0 0.0
        %1095 = vmatpush1.msra.mxu0 0.0
        %1096 = vmatprep.subr.mxu0 0.0
        %1097 = vmatpush1.msra.mxu0 0.0
        %1098 = vmatprep.subr.mxu0 0.0
        %1099 = vmatpush1.msra.mxu0 0.0
        %1100 = vmatprep.subr.mxu0 0.0
        %1101 = vmatpush1.msra.mxu0 0.0
        %1102 = vmatprep.subr.mxu0 0.0
        %1103 = vmatpush1.msra.mxu0 0.0
        %1104 = vmatprep.subr.mxu0 0.0
        %1105 = vmatpush1.msra.mxu0 0.0
        %1106 = vmatprep.subr.mxu0 0.0
        %1107 = vmatpush1.msra.mxu0 0.0
        %1108 = vmatprep.subr.mxu0 0.0
        %1109 = vmatpush1.msra.mxu0 0.0
        %1110 = vmatprep.subr.mxu0 0.0
        %1111 = vmatpush1.msra.mxu0 0.0
        %1112 = vmatprep.subr.mxu0 0.0
        %1113 = vmatpush1.msra.mxu0 0.0
        %1114 = vmatprep.subr.mxu0 0.0
        %1115 = vmatpush1.msra.mxu0 0.0
        %1116 = vmatprep.subr.mxu0 %v544
        %1117 = vmatpush1.msra.mxu0 %v543
        %1118 = vmatprep.subr.mxu0 %v541
        %1119 = vmatpush1.msra.mxu0 %v540
        %1120 = vmatprep.subr.mxu0 %v538
        %1121 = vmatpush1.msra.mxu0 %v537
        %1122 = vmatprep.subr.mxu0 %v535
        %1123 = vmatpush1.msra.mxu0 %v534
        %1124 = vmatprep.subr.mxu0 0.0
        %1125 = vmatpush2.msra.mxu0 0.0
        %1126 = vmatprep.subr.mxu0 0.0
        %1127 = vmatpush2.msra.mxu0 0.0
        %1128 = vmatprep.subr.mxu0 0.0
        %1129 = vmatpush2.msra.mxu0 0.0
        %1130 = vmatprep.subr.mxu0 0.0
        %1131 = vmatpush2.msra.mxu0 0.0
        %1132 = vmatprep.subr.mxu0 0.0
        %1133 = vmatpush2.msra.mxu0 0.0
        %1134 = vmatprep.subr.mxu0 0.0
        %1135 = vmatpush2.msra.mxu0 0.0
        %1136 = vmatprep.subr.mxu0 0.0
        %1137 = vmatpush2.msra.mxu0 0.0
        %1138 = vmatprep.subr.mxu0 0.0
        %1139 = vmatpush2.msra.mxu0 0.0
        %1140 = vmatprep.subr.mxu0 0.0
        %1141 = vmatpush2.msra.mxu0 0.0
        %1142 = vmatprep.subr.mxu0 0.0
        %1143 = vmatpush2.msra.mxu0 0.0
        %1144 = vmatprep.subr.mxu0 0.0
        %1145 = vmatpush2.msra.mxu0 0.0
        %1146 = vmatprep.subr.mxu0 0.0
        %1147 = vmatpush2.msra.mxu0 0.0
        %1148 = vmatprep.subr.mxu0 0.0
        %1149 = vmatpush2.msra.mxu0 0.0
        %1150 = vmatprep.subr.mxu0 0.0
        %1151 = vmatpush2.msra.mxu0 0.0
        %1152 = vmatprep.subr.mxu0 0.0
        %1153 = vmatpush2.msra.mxu0 0.0
        %1154 = vmatprep.subr.mxu0 0.0
        %1155 = vmatpush2.msra.mxu0 0.0
        %1156 = vmatprep.mubr.f32.mxu0 0.0
        %1157 = vmatmul.mubr.f32.gmra.mxu0 %v1081
        %v1158 = vpop.f32.mrf.mxu0
        %v1159 = vadd.f32 0.0, %v1158
        %v1160 = vpop.f32.mrf.mxu0
        %v1161 = vadd.f32 0.0, %v1160
        %1162 = vmatprep.mubr.f32.mxu0 0.0
        %1163 = vmatmul.mubr.f32.gmra.mxu0 %v1084
        %v1164 = vpop.f32.mrf.mxu0
        %v1165 = vadd.f32 0.0, %v1164
        %v1166 = vpop.f32.mrf.mxu0
        %v1167 = vadd.f32 0.0, %v1166
        %1168 = vmatprep.mubr.f32.mxu0 0.0
        %1169 = vmatmul.mubr.f32.gmra.mxu0 %v1087
        %v1170 = vpop.f32.mrf.mxu0
        %v1171 = vadd.f32 0.0, %v1170
        %v1172 = vpop.f32.mrf.mxu0
        %v1173 = vadd.f32 0.0, %v1172
        %1174 = vmatprep.mubr.f32.mxu0 0.0
        %1175 = vmatmul.mubr.f32.gmra.mxu0 %v1090
        %v1176 = vpop.f32.mrf.mxu0
        %v1177 = vadd.f32 0.0, %v1176
        %v1178 = vpop.f32.mrf.mxu0
        %v1179 = vadd.f32 0.0, %v1178
        %1180 = vdwg.mxu0
        %1181 = vmatprep.subr.mxu0 0.0
        %1182 = vmatpush1.msra.mxu0 0.0
        %1183 = vmatprep.subr.mxu0 0.0
        %1184 = vmatpush1.msra.mxu0 0.0
        %1185 = vmatprep.subr.mxu0 0.0
        %1186 = vmatpush1.msra.mxu0 0.0
        %1187 = vmatprep.subr.mxu0 0.0
        %1188 = vmatpush1.msra.mxu0 0.0
        %1189 = vmatprep.subr.mxu0 0.0
        %1190 = vmatpush1.msra.mxu0 0.0
        %1191 = vmatprep.subr.mxu0 0.0
        %1192 = vmatpush1.msra.mxu0 0.0
        %1193 = vmatprep.subr.mxu0 0.0
        %1194 = vmatpush1.msra.mxu0 0.0
        %1195 = vmatprep.subr.mxu0 0.0
        %1196 = vmatpush1.msra.mxu0 0.0
        %1197 = vmatprep.subr.mxu0 0.0
        %1198 = vmatpush1.msra.mxu0 0.0
        %1199 = vmatprep.subr.mxu0 0.0
        %1200 = vmatpush1.msra.mxu0 0.0
        %1201 = vmatprep.subr.mxu0 0.0
        %1202 = vmatpush1.msra.mxu0 0.0
        %1203 = vmatprep.subr.mxu0 0.0
        %1204 = vmatpush1.msra.mxu0 0.0
        %1205 = vmatprep.subr.mxu0 0.0
        %1206 = vmatpush1.msra.mxu0 %v545
        %1207 = vmatprep.subr.mxu0 0.0
        %1208 = vmatpush1.msra.mxu0 %v542
        %1209 = vmatprep.subr.mxu0 0.0
        %1210 = vmatpush1.msra.mxu0 %v539
        %1211 = vmatprep.subr.mxu0 0.0
        %1212 = vmatpush1.msra.mxu0 %v536
        %1213 = vmatprep.subr.mxu0 0.0
        %1214 = vmatpush2.msra.mxu0 0.0
        %1215 = vmatprep.subr.mxu0 0.0
        %1216 = vmatpush2.msra.mxu0 0.0
        %1217 = vmatprep.subr.mxu0 0.0
        %1218 = vmatpush2.msra.mxu0 0.0
        %1219 = vmatprep.subr.mxu0 0.0
        %1220 = vmatpush2.msra.mxu0 0.0
        %1221 = vmatprep.subr.mxu0 0.0
        %1222 = vmatpush2.msra.mxu0 0.0
        %1223 = vmatprep.subr.mxu0 0.0
        %1224 = vmatpush2.msra.mxu0 0.0
        %1225 = vmatprep.subr.mxu0 0.0
        %1226 = vmatpush2.msra.mxu0 0.0
        %1227 = vmatprep.subr.mxu0 0.0
        %1228 = vmatpush2.msra.mxu0 0.0
        %1229 = vmatprep.subr.mxu0 0.0
        %1230 = vmatpush2.msra.mxu0 0.0
        %1231 = vmatprep.subr.mxu0 0.0
        %1232 = vmatpush2.msra.mxu0 0.0
        %1233 = vmatprep.subr.mxu0 0.0
        %1234 = vmatpush2.msra.mxu0 0.0
        %1235 = vmatprep.subr.mxu0 0.0
        %1236 = vmatpush2.msra.mxu0 0.0
        %1237 = vmatprep.subr.mxu0 0.0
        %1238 = vmatpush2.msra.mxu0 0.0
        %1239 = vmatprep.subr.mxu0 0.0
        %1240 = vmatpush2.msra.mxu0 0.0
        %1241 = vmatprep.subr.mxu0 0.0
        %1242 = vmatpush2.msra.mxu0 0.0
        %1243 = vmatprep.subr.mxu0 0.0
        %1244 = vmatpush2.msra.mxu0 0.0
        %1245 = vmatprep.mubr.f32.mxu0 0.0
        %1246 = vmatmul.mubr.f32.gmra.mxu0 %v1081
        %v1247 = vpop.f32.mrf.mxu0
        %v1248 = vadd.f32 0.0, %v1247
        %v1249 = vpop.f32.mrf.mxu0
        %1250 = vmatprep.mubr.f32.mxu0 0.0
        %1251 = vmatmul.mubr.f32.gmra.mxu0 %v1084
        %v1252 = vpop.f32.mrf.mxu0
        %v1253 = vadd.f32 0.0, %v1252
        %v1254 = vpop.f32.mrf.mxu0
        %1255 = vmatprep.mubr.f32.mxu0 0.0
        %1256 = vmatmul.mubr.f32.gmra.mxu0 %v1087
        %v1257 = vpop.f32.mrf.mxu0
        %v1258 = vadd.f32 0.0, %v1257
        %v1259 = vpop.f32.mrf.mxu0
        %1260 = vmatprep.mubr.f32.mxu0 0.0
        %1261 = vmatmul.mubr.f32.gmra.mxu0 %v1090
        %v1262 = vpop.f32.mrf.mxu0
        %v1263 = vadd.f32 0.0, %v1262
        %v1264 = vpop.f32.mrf.mxu0
        %1265 = vdwg.mxu0
        %v1266 = vld [vmem:[%s6] sm:$0xff]
        %v1267 = vld [vmem:[%s6 + $0x8] sm:$0xff]
        %v1268 = vld [vmem:[%s6 + $0x10] sm:$0xff]
        %v1269 = vld [vmem:[%s6 + $0x18] sm:$0xff]
        %v1270 = vld [vmem:[%s6 + $0x20] sm:$0xff]
        %v1271 = vld [vmem:[%s6 + $0x28] sm:$0xff]
        %v1272 = vld [vmem:[%s6 + $0x30] sm:$0xff]
        %v1273 = vld [vmem:[%s6 + $0x38] sm:$0xff]
        %v1274 = vld [vmem:[%s6 + $0x40] sm:$0xff]
        %v1275 = vld [vmem:[%s6 + $0x48] sm:$0xff]
        %v1276 = vld [vmem:[%s6 + $0x50] sm:$0xff]
        %v1277 = vld [vmem:[%s6 + $0x58] sm:$0xff]
        %v1278 = vld [vmem:[%s6 + $0x60] sm:$0xff]
        %v1279 = vld [vmem:[%s6 + $0x68] sm:$0xff]
        %v1280 = vld [vmem:[%s6 + $0x70] sm:$0xff]
        %v1281 = vld [vmem:[%s6 + $0x78] sm:$0xff]
        %v1282 = vld [vmem:[%s6 + $0x80] sm:$0xff]
        %v1283 = vld [vmem:[%s6 + $0x88] sm:$0xff]
        %v1284 = vld [vmem:[%s6 + $0x90] sm:$0xff]
        %v1285 = vld [vmem:[%s6 + $0x98] sm:$0xff]
        %v1286 = vld [vmem:[%s6 + $0xa0] sm:$0xff]
        %v1287 = vld [vmem:[%s6 + $0xa8] sm:$0xff]
        %v1288 = vld [vmem:[%s6 + $0xb0] sm:$0xff]
        %v1289 = vld [vmem:[%s6 + $0xb8] sm:$0xff]
        %v1290 = vld [vmem:[%s6 + $0xc0] sm:$0xff]
        %v1291 = vld [vmem:[%s6 + $0xc8] sm:$0xff]
        %v1292 = vld [vmem:[%s6 + $0xd0] sm:$0xff]
        %v1293 = vld [vmem:[%s6 + $0xd8] sm:$0xff]
        %v1294 = vld [vmem:[%s6 + $0xe0] sm:$0xff]
        %v1295 = vld [vmem:[%s6 + $0xe8] sm:$0xff]
        %v1296 = vld [vmem:[%s6 + $0xf0] sm:$0xff]
        %v1297 = vld [vmem:[%s6 + $0xf8] sm:$0xff]
        %v1298 = vld [vmem:[%s6 + $0x100] sm:$0xff]
        %v1299 = vld [vmem:[%s6 + $0x108] sm:$0xff]
        %v1300 = vld [vmem:[%s6 + $0x110] sm:$0xff]
        %v1301 = vld [vmem:[%s6 + $0x118] sm:$0xff]
        %v1302 = vld [vmem:[%s6 + $0x120] sm:$0xff]
        %v1303 = vld [vmem:[%s6 + $0x128] sm:$0xff]
        %v1304 = vld [vmem:[%s6 + $0x130] sm:$0xff]
        %v1305 = vld [vmem:[%s6 + $0x138] sm:$0xff]
        %v1306 = vld [vmem:[%s6 + $0x140] sm:$0xff]
        %v1307 = vld [vmem:[%s6 + $0x148] sm:$0xff]
        %v1308 = vld [vmem:[%s6 + $0x150] sm:$0xff]
        %v1309 = vld [vmem:[%s6 + $0x158] sm:$0xff]
        %v1310 = vld [vmem:[%s6 + $0x160] sm:$0xff]
        %v1311 = vld [vmem:[%s6 + $0x168] sm:$0xff]
        %v1312 = vld [vmem:[%s6 + $0x170] sm:$0xff]
        %v1313 = vld [vmem:[%s6 + $0x178] sm:$0xff]
        %v1314 = vld [vmem:[%s6 + $0x180] sm:$0xff]
        %v1315 = vld [vmem:[%s6 + $0x188] sm:$0xff]
        %v1316 = vld [vmem:[%s6 + $0x190] sm:$0xff]
        %v1317 = vld [vmem:[%s6 + $0x198] sm:$0xff]
        %v1318 = vld [vmem:[%s6 + $0x1a0] sm:$0xff]
        %v1319 = vld [vmem:[%s6 + $0x1a8] sm:$0xff]
        %v1320 = vld [vmem:[%s6 + $0x1b0] sm:$0xff]
        %v1321 = vld [vmem:[%s6 + $0x1b8] sm:$0xff]
        %v1322 = vld [vmem:[%s6 + $0x1c0] sm:$0xff]
        %v1323 = vld [vmem:[%s6 + $0x1c8] sm:$0xff]
        %v1324 = vld [vmem:[%s6 + $0x1d0] sm:$0xff]
        %v1325 = vld [vmem:[%s6 + $0x1d8] sm:$0xff]
        %v1326 = vld [vmem:[%s6 + $0x1e0] sm:$0xff]
        %v1327 = vld [vmem:[%s6 + $0x1e8] sm:$0xff]
        %v1328 = vld [vmem:[%s6 + $0x1f0] sm:$0xff]
        %v1329 = vld [vmem:[%s6 + $0x1f8] sm:$0xff]
        %v1330 = vld [vmem:[%s6 + $0x200] sm:$0xff]
        %v1331 = vld [vmem:[%s6 + $0x208] sm:$0xff]
        %v1332 = vld [vmem:[%s6 + $0x210] sm:$0xff]
        %v1333 = vld [vmem:[%s6 + $0x218] sm:$0xff]
        %v1334 = vld [vmem:[%s6 + $0x220] sm:$0xff]
        %v1335 = vld [vmem:[%s6 + $0x228] sm:$0xff]
        %v1336 = vld [vmem:[%s6 + $0x230] sm:$0xff]
        %v1337 = vld [vmem:[%s6 + $0x238] sm:$0xff]
        %v1338 = vld [vmem:[%s6 + $0x240] sm:$0xff]
        %v1339 = vld [vmem:[%s6 + $0x248] sm:$0xff]
        %v1340 = vld [vmem:[%s6 + $0x250] sm:$0xff]
        %v1341 = vld [vmem:[%s6 + $0x258] sm:$0xff]
        %v1342 = vld [vmem:[%s6 + $0x260] sm:$0xff]
        %v1343 = vld [vmem:[%s6 + $0x268] sm:$0xff]
        %v1344 = vld [vmem:[%s6 + $0x270] sm:$0xff]
        %v1345 = vld [vmem:[%s6 + $0x278] sm:$0xff]
        %v1346 = vld [vmem:[%s6 + $0x280] sm:$0xff]
        %v1347 = vld [vmem:[%s6 + $0x288] sm:$0xff]
        %v1348 = vld [vmem:[%s6 + $0x290] sm:$0xff]
        %v1349 = vld [vmem:[%s6 + $0x298] sm:$0xff]
        %v1350 = vld [vmem:[%s6 + $0x2a0] sm:$0xff]
        %v1351 = vld [vmem:[%s6 + $0x2a8] sm:$0xff]
        %v1352 = vld [vmem:[%s6 + $0x2b0] sm:$0xff]
        %v1353 = vld [vmem:[%s6 + $0x2b8] sm:$0xff]
        %v1354 = vld [vmem:[%s6 + $0x2c0] sm:$0xff]
        %v1355 = vld [vmem:[%s6 + $0x2c8] sm:$0xff]
        %v1356 = vld [vmem:[%s6 + $0x2d0] sm:$0xff]
        %v1357 = vld [vmem:[%s6 + $0x2d8] sm:$0xff]
        %v1358 = vld [vmem:[%s6 + $0x2e0] sm:$0xff]
        %v1359 = vld [vmem:[%s6 + $0x2e8] sm:$0xff]
        %v1360 = vld [vmem:[%s6 + $0x2f0] sm:$0xff]
        %v1361 = vld [vmem:[%s6 + $0x2f8] sm:$0xff]
        %v1362 = vld [vmem:[%s6 + $0x300] sm:$0xff]
        %v1363 = vld [vmem:[%s6 + $0x308] sm:$0xff]
        %v1364 = vld [vmem:[%s6 + $0x310] sm:$0xff]
        %v1365 = vld [vmem:[%s6 + $0x318] sm:$0xff]
        %v1366 = vld [vmem:[%s6 + $0x320] sm:$0xff]
        %v1367 = vld [vmem:[%s6 + $0x328] sm:$0xff]
        %v1368 = vld [vmem:[%s6 + $0x330] sm:$0xff]
        %v1369 = vld [vmem:[%s6 + $0x338] sm:$0xff]
        %v1370 = vld [vmem:[%s6 + $0x340] sm:$0xff]
        %v1371 = vld [vmem:[%s6 + $0x348] sm:$0xff]
        %v1372 = vld [vmem:[%s6 + $0x350] sm:$0xff]
        %v1373 = vld [vmem:[%s6 + $0x358] sm:$0xff]
        %v1374 = vld [vmem:[%s6 + $0x360] sm:$0xff]
        %v1375 = vld [vmem:[%s6 + $0x368] sm:$0xff]
        %v1376 = vld [vmem:[%s6 + $0x370] sm:$0xff]
        %v1377 = vld [vmem:[%s6 + $0x378] sm:$0xff]
        %v1378 = vld [vmem:[%s6 + $0x380] sm:$0xff]
        %v1379 = vld [vmem:[%s6 + $0x388] sm:$0xff]
        %v1380 = vld [vmem:[%s6 + $0x390] sm:$0xff]
        %v1381 = vld [vmem:[%s6 + $0x398] sm:$0xff]
        %v1382 = vld [vmem:[%s6 + $0x3a0] sm:$0xff]
        %v1383 = vld [vmem:[%s6 + $0x3a8] sm:$0xff]
        %v1384 = vld [vmem:[%s6 + $0x3b0] sm:$0xff]
        %v1385 = vld [vmem:[%s6 + $0x3b8] sm:$0xff]
        %v1386 = vld [vmem:[%s6 + $0x3c0] sm:$0xff]
        %v1387 = vld [vmem:[%s6 + $0x3c8] sm:$0xff]
        %v1388 = vld [vmem:[%s6 + $0x3d0] sm:$0xff]
        %v1389 = vld [vmem:[%s6 + $0x3d8] sm:$0xff]
        %v1390 = vld [vmem:[%s6 + $0x3e0] sm:$0xff]
        %v1391 = vld [vmem:[%s6 + $0x3e8] sm:$0xff]
        %v1392 = vld [vmem:[%s6 + $0x3f0] sm:$0xff]
        %v1393 = vld [vmem:[%s6 + $0x3f8] sm:$0xff]
        %v1394 = vld [vmem:[%s6 + $0x400] sm:$0xff]
        %v1395 = vld [vmem:[%s6 + $0x408] sm:$0xff]
        %v1396 = vld [vmem:[%s6 + $0x410] sm:$0xff]
        %v1397 = vld [vmem:[%s6 + $0x418] sm:$0xff]
        %v1398 = vld [vmem:[%s6 + $0x420] sm:$0xff]
        %v1399 = vld [vmem:[%s6 + $0x428] sm:$0xff]
        %v1400 = vld [vmem:[%s6 + $0x430] sm:$0xff]
        %v1401 = vld [vmem:[%s6 + $0x438] sm:$0xff]
        %v1402 = vld [vmem:[%s6 + $0x440] sm:$0xff]
        %v1403 = vld [vmem:[%s6 + $0x448] sm:$0xff]
        %v1404 = vld [vmem:[%s6 + $0x450] sm:$0xff]
        %v1405 = vld [vmem:[%s6 + $0x458] sm:$0xff]
        %v1406 = vld [vmem:[%s6 + $0x460] sm:$0xff]
        %v1407 = vld [vmem:[%s6 + $0x468] sm:$0xff]
        %v1408 = vld [vmem:[%s6 + $0x470] sm:$0xff]
        %v1409 = vld [vmem:[%s6 + $0x478] sm:$0xff]
        %v1410 = vld [vmem:[%s6 + $0x480] sm:$0xff]
        %v1411 = vld [vmem:[%s6 + $0x488] sm:$0xff]
        %v1412 = vld [vmem:[%s6 + $0x490] sm:$0xff]
        %v1413 = vld [vmem:[%s6 + $0x498] sm:$0xff]
        %v1414 = vld [vmem:[%s6 + $0x4a0] sm:$0xff]
        %v1415 = vld [vmem:[%s6 + $0x4a8] sm:$0xff]
        %v1416 = vld [vmem:[%s6 + $0x4b0] sm:$0xff]
        %v1417 = vld [vmem:[%s6 + $0x4b8] sm:$0xff]
        %v1418 = vld [vmem:[%s6 + $0x4c0] sm:$0xff]
        %v1419 = vld [vmem:[%s6 + $0x4c8] sm:$0xff]
        %v1420 = vld [vmem:[%s6 + $0x4d0] sm:$0xff]
        %v1421 = vld [vmem:[%s6 + $0x4d8] sm:$0xff]
        %v1422 = vld [vmem:[%s6 + $0x4e0] sm:$0xff]
        %v1423 = vld [vmem:[%s6 + $0x4e8] sm:$0xff]
        %v1424 = vld [vmem:[%s6 + $0x4f0] sm:$0xff]
        %v1425 = vld [vmem:[%s6 + $0x4f8] sm:$0xff]
        %v1426 = vld [vmem:[%s6 + $0x500] sm:$0xff]
        %v1427 = vld [vmem:[%s6 + $0x508] sm:$0xff]
        %v1428 = vld [vmem:[%s6 + $0x510] sm:$0xff]
        %v1429 = vld [vmem:[%s6 + $0x518] sm:$0xff]
        %v1430 = vld [vmem:[%s6 + $0x520] sm:$0xff]
        %v1431 = vld [vmem:[%s6 + $0x528] sm:$0xff]
        %v1432 = vld [vmem:[%s6 + $0x530] sm:$0xff]
        %v1433 = vld [vmem:[%s6 + $0x538] sm:$0xff]
        %v1434 = vld [vmem:[%s6 + $0x540] sm:$0xff]
        %v1435 = vld [vmem:[%s6 + $0x548] sm:$0xff]
        %v1436 = vld [vmem:[%s6 + $0x550] sm:$0xff]
        %v1437 = vld [vmem:[%s6 + $0x558] sm:$0xff]
        %v1438 = vld [vmem:[%s6 + $0x560] sm:$0xff]
        %v1439 = vld [vmem:[%s6 + $0x568] sm:$0xff]
        %v1440 = vld [vmem:[%s6 + $0x570] sm:$0xff]
        %v1441 = vld [vmem:[%s6 + $0x578] sm:$0xff]
        %v1442 = vld [vmem:[%s6 + $0x580] sm:$0xff]
        %v1443 = vld [vmem:[%s6 + $0x588] sm:$0xff]
        %v1444 = vld [vmem:[%s6 + $0x590] sm:$0xff]
        %v1445 = vld [vmem:[%s6 + $0x598] sm:$0xff]
        %v1446 = vld [vmem:[%s6 + $0x5a0] sm:$0xff]
        %v1447 = vld [vmem:[%s6 + $0x5a8] sm:$0xff]
        %v1448 = vld [vmem:[%s6 + $0x5b0] sm:$0xff]
        %v1449 = vld [vmem:[%s6 + $0x5b8] sm:$0xff]
        %v1450 = vld [vmem:[%s6 + $0x5c0] sm:$0xff]
        %v1451 = vld [vmem:[%s6 + $0x5c8] sm:$0xff]
        %v1452 = vld [vmem:[%s6 + $0x5d0] sm:$0xff]
        %v1453 = vld [vmem:[%s6 + $0x5d8] sm:$0xff]
        %v1454 = vld [vmem:[%s6 + $0x5e0] sm:$0xff]
        %v1455 = vld [vmem:[%s6 + $0x5e8] sm:$0xff]
        %v1456 = vld [vmem:[%s6 + $0x5f0] sm:$0xff]
        %v1457 = vld [vmem:[%s6 + $0x5f8] sm:$0xff]
        %v1458 = vld [vmem:[%s6 + $0x600] sm:$0xff]
        %v1459 = vld [vmem:[%s6 + $0x608] sm:$0xff]
        %v1460 = vld [vmem:[%s6 + $0x610] sm:$0xff]
        %v1461 = vld [vmem:[%s6 + $0x618] sm:$0xff]
        %v1462 = vld [vmem:[%s6 + $0x620] sm:$0xff]
        %v1463 = vld [vmem:[%s6 + $0x628] sm:$0xff]
        %v1464 = vld [vmem:[%s6 + $0x630] sm:$0xff]
        %v1465 = vld [vmem:[%s6 + $0x638] sm:$0xff]
        %v1466 = vld [vmem:[%s6 + $0x640] sm:$0xff]
        %v1467 = vld [vmem:[%s6 + $0x648] sm:$0xff]
        %v1468 = vld [vmem:[%s6 + $0x650] sm:$0xff]
        %v1469 = vld [vmem:[%s6 + $0x658] sm:$0xff]
        %v1470 = vld [vmem:[%s6 + $0x660] sm:$0xff]
        %v1471 = vld [vmem:[%s6 + $0x668] sm:$0xff]
        %v1472 = vld [vmem:[%s6 + $0x670] sm:$0xff]
        %v1473 = vld [vmem:[%s6 + $0x678] sm:$0xff]
        %v1474 = vld [vmem:[%s6 + $0x680] sm:$0xff]
        %v1475 = vld [vmem:[%s6 + $0x688] sm:$0xff]
        %v1476 = vld [vmem:[%s6 + $0x690] sm:$0xff]
        %v1477 = vld [vmem:[%s6 + $0x698] sm:$0xff]
        %v1478 = vld [vmem:[%s6 + $0x6a0] sm:$0xff]
        %v1479 = vld [vmem:[%s6 + $0x6a8] sm:$0xff]
        %v1480 = vld [vmem:[%s6 + $0x6b0] sm:$0xff]
        %v1481 = vld [vmem:[%s6 + $0x6b8] sm:$0xff]
        %v1482 = vld [vmem:[%s6 + $0x6c0] sm:$0xff]
        %v1483 = vld [vmem:[%s6 + $0x6c8] sm:$0xff]
        %v1484 = vld [vmem:[%s6 + $0x6d0] sm:$0xff]
        %v1485 = vld [vmem:[%s6 + $0x6d8] sm:$0xff]
        %v1486 = vld [vmem:[%s6 + $0x6e0] sm:$0xff]
        %v1487 = vld [vmem:[%s6 + $0x6e8] sm:$0xff]
        %v1488 = vld [vmem:[%s6 + $0x6f0] sm:$0xff]
        %v1489 = vld [vmem:[%s6 + $0x6f8] sm:$0xff]
        %v1490 = vld [vmem:[%s6 + $0x700] sm:$0xff]
        %v1491 = vld [vmem:[%s6 + $0x708] sm:$0xff]
        %v1492 = vld [vmem:[%s6 + $0x710] sm:$0xff]
        %v1493 = vld [vmem:[%s6 + $0x718] sm:$0xff]
        %v1494 = vld [vmem:[%s6 + $0x720] sm:$0xff]
        %v1495 = vld [vmem:[%s6 + $0x728] sm:$0xff]
        %v1496 = vld [vmem:[%s6 + $0x730] sm:$0xff]
        %v1497 = vld [vmem:[%s6 + $0x738] sm:$0xff]
        %v1498 = vld [vmem:[%s6 + $0x740] sm:$0xff]
        %v1499 = vld [vmem:[%s6 + $0x748] sm:$0xff]
        %v1500 = vld [vmem:[%s6 + $0x750] sm:$0xff]
        %v1501 = vld [vmem:[%s6 + $0x758] sm:$0xff]
        %v1502 = vld [vmem:[%s6 + $0x760] sm:$0xff]
        %v1503 = vld [vmem:[%s6 + $0x768] sm:$0xff]
        %v1504 = vld [vmem:[%s6 + $0x770] sm:$0xff]
        %v1505 = vld [vmem:[%s6 + $0x778] sm:$0xff]
        %v1506 = vld [vmem:[%s6 + $0x780] sm:$0xff]
        %v1507 = vld [vmem:[%s6 + $0x788] sm:$0xff]
        %v1508 = vld [vmem:[%s6 + $0x790] sm:$0xff]
        %v1509 = vld [vmem:[%s6 + $0x798] sm:$0xff]
        %v1510 = vld [vmem:[%s6 + $0x7a0] sm:$0xff]
        %v1511 = vld [vmem:[%s6 + $0x7a8] sm:$0xff]
        %v1512 = vld [vmem:[%s6 + $0x7b0] sm:$0xff]
        %v1513 = vld [vmem:[%s6 + $0x7b8] sm:$0xff]
        %v1514 = vld [vmem:[%s6 + $0x7c0] sm:$0xff]
        %v1515 = vld [vmem:[%s6 + $0x7c8] sm:$0xff]
        %v1516 = vld [vmem:[%s6 + $0x7d0] sm:$0xff]
        %v1517 = vld [vmem:[%s6 + $0x7d8] sm:$0xff]
        %v1518 = vld [vmem:[%s6 + $0x7e0] sm:$0xff]
        %v1519 = vld [vmem:[%s6 + $0x7e8] sm:$0xff]
        %v1520 = vld [vmem:[%s6 + $0x7f0] sm:$0xff]
        %v1521 = vld [vmem:[%s6 + $0x7f8] sm:$0xff]
        %v1522 = vld [vmem:[%s6 + $0x800] sm:$0xff]
        %v1523 = vld [vmem:[%s6 + $0x808] sm:$0xff]
        %v1524 = vld [vmem:[%s6 + $0x810] sm:$0xff]
        %v1525 = vld [vmem:[%s6 + $0x818] sm:$0xff]
        %v1526 = vld [vmem:[%s6 + $0x820] sm:$0xff]
        %v1527 = vld [vmem:[%s6 + $0x828] sm:$0xff]
        %v1528 = vld [vmem:[%s6 + $0x830] sm:$0xff]
        %v1529 = vld [vmem:[%s6 + $0x838] sm:$0xff]
        %v1530 = vld [vmem:[%s6 + $0x840] sm:$0xff]
        %v1531 = vld [vmem:[%s6 + $0x848] sm:$0xff]
        %v1532 = vld [vmem:[%s6 + $0x850] sm:$0xff]
        %v1533 = vld [vmem:[%s6 + $0x858] sm:$0xff]
        %v1534 = vld [vmem:[%s6 + $0x860] sm:$0xff]
        %v1535 = vld [vmem:[%s6 + $0x868] sm:$0xff]
        %v1536 = vld [vmem:[%s6 + $0x870] sm:$0xff]
        %v1537 = vld [vmem:[%s6 + $0x878] sm:$0xff]
        %v1538 = vld [vmem:[%s6 + $0x880] sm:$0xff]
        %v1539 = vld [vmem:[%s6 + $0x888] sm:$0xff]
        %v1540 = vld [vmem:[%s6 + $0x890] sm:$0xff]
        %v1541 = vld [vmem:[%s6 + $0x898] sm:$0xff]
        %v1542 = vld [vmem:[%s6 + $0x8a0] sm:$0xff]
        %v1543 = vld [vmem:[%s6 + $0x8a8] sm:$0xff]
        %v1544 = vld [vmem:[%s6 + $0x8b0] sm:$0xff]
        %v1545 = vld [vmem:[%s6 + $0x8b8] sm:$0xff]
        %v1546 = vld [vmem:[%s6 + $0x8c0] sm:$0xff]
        %v1547 = vld [vmem:[%s6 + $0x8c8] sm:$0xff]
        %v1548 = vld [vmem:[%s6 + $0x8d0] sm:$0xff]
        %v1549 = vld [vmem:[%s6 + $0x8d8] sm:$0xff]
        %v1550 = vld [vmem:[%s6 + $0x8e0] sm:$0xff]
        %v1551 = vld [vmem:[%s6 + $0x8e8] sm:$0xff]
        %v1552 = vld [vmem:[%s6 + $0x8f0] sm:$0xff]
        %v1553 = vld [vmem:[%s6 + $0x8f8] sm:$0xff]
        %v1554 = vld [vmem:[%s6 + $0x900] sm:$0xff]
        %v1555 = vld [vmem:[%s6 + $0x908] sm:$0xff]
        %v1556 = vld [vmem:[%s6 + $0x910] sm:$0xff]
        %v1557 = vld [vmem:[%s6 + $0x918] sm:$0xff]
        %v1558 = vld [vmem:[%s6 + $0x920] sm:$0xff]
        %v1559 = vld [vmem:[%s6 + $0x928] sm:$0xff]
        %v1560 = vld [vmem:[%s6 + $0x930] sm:$0xff]
        %v1561 = vld [vmem:[%s6 + $0x938] sm:$0xff]
        %v1562 = vld [vmem:[%s6 + $0x940] sm:$0xf]
        %v1563 = vld [vmem:[%s6 + $0x948] sm:$0xf]
        %v1564 = vld [vmem:[%s6 + $0x950] sm:$0xf]
        %v1565 = vld [vmem:[%s6 + $0x958] sm:$0xf]
        %v1566 = vld [vmem:[%s6 + $0x960] sm:$0xf]
        %v1567 = vld [vmem:[%s6 + $0x968] sm:$0xf]
        %v1568 = vld [vmem:[%s6 + $0x970] sm:$0xf]
        %v1569 = vld [vmem:[%s6 + $0x978] sm:$0xf]
        %v1570 = vld [vmem:[%s8] sm:$0xff]
        %v1572 = vlaneseq
        %v1573 = vshrl.u32 %v1572, 7
        %v1574 = vsub.s32 0, %v1573
        %v1575 = vrot.slane %v1570, %v1574
        %v1576 = vlaneseq
        %v1577 = vshrl.u32 %v1576, 7
        %v1578 = vsub.s32 1, %v1577
        %v1579 = vrot.slane %v1570, %v1578
        %v1580 = vlaneseq
        %v1581 = vshrl.u32 %v1580, 7
        %v1582 = vsub.s32 2, %v1581
        %v1583 = vrot.slane %v1570, %v1582
        %v1584 = vlaneseq
        %v1585 = vshrl.u32 %v1584, 7
        %v1586 = vsub.s32 3, %v1585
        %v1587 = vrot.slane %v1570, %v1586
        %v1588 = vlaneseq
        %v1589 = vshrl.u32 %v1588, 7
        %v1590 = vsub.s32 4, %v1589
        %v1591 = vrot.slane %v1570, %v1590
        %v1592 = vlaneseq
        %v1593 = vshrl.u32 %v1592, 7
        %v1594 = vsub.s32 5, %v1593
        %v1595 = vrot.slane %v1570, %v1594
        %v1596 = vlaneseq
        %v1597 = vshrl.u32 %v1596, 7
        %v1598 = vsub.s32 6, %v1597
        %v1599 = vrot.slane %v1570, %v1598
        %v1600 = vlaneseq
        %v1601 = vshrl.u32 %v1600, 7
        %v1602 = vsub.s32 7, %v1601
        %v1603 = vrot.slane %v1570, %v1602
        %v1613 = vsel %vm549, %v1248, 0
        %v1616 = vsel %vm549, %v1253, 0
        %v1619 = vsel %vm549, %v1258, 0
        %v1622 = vsel %vm549, %v1263, 0
        %vm1624 = vcmask 1043456
        %v1626 = vsel %vm1624, %v1562, 0
        %v1629 = vsel %vm1624, %v1563, 0
        %v1632 = vsel %vm1624, %v1564, 0
        %v1635 = vsel %vm1624, %v1565, 0
        %v1638 = vsel %vm1624, %v1566, 0
        %v1641 = vsel %vm1624, %v1567, 0
        %v1644 = vsel %vm1624, %v1568, 0
        %v1647 = vsel %vm1624, %v1569, 0
        %1649 = vmatprep.subr.mxu0 %v1387
        %1650 = vmatpush1.msra.mxu0 %v1386
        %1651 = vmatprep.subr.mxu0 %v1379
        %1652 = vmatpush1.msra.mxu0 %v1378
        %1653 = vmatprep.subr.mxu0 %v1371
        %1654 = vmatpush1.msra.mxu0 %v1370
        %1655 = vmatprep.subr.mxu0 %v1363
        %1656 = vmatpush1.msra.mxu0 %v1362
        %1657 = vmatprep.subr.mxu0 %v1355
        %1658 = vmatpush1.msra.mxu0 %v1354
        %1659 = vmatprep.subr.mxu0 %v1347
        %1660 = vmatpush1.msra.mxu0 %v1346
        %1661 = vmatprep.subr.mxu0 %v1339
        %1662 = vmatpush1.msra.mxu0 %v1338
        %1663 = vmatprep.subr.mxu0 %v1331
        %1664 = vmatpush1.msra.mxu0 %v1330
        %1665 = vmatprep.subr.mxu0 %v1323
        %1666 = vmatpush1.msra.mxu0 %v1322
        %1667 = vmatprep.subr.mxu0 %v1315
        %1668 = vmatpush1.msra.mxu0 %v1314
        %1669 = vmatprep.subr.mxu0 %v1307
        %1670 = vmatpush1.msra.mxu0 %v1306
        %1671 = vmatprep.subr.mxu0 %v1299
        %1672 = vmatpush1.msra.mxu0 %v1298
        %1673 = vmatprep.subr.mxu0 %v1291
        %1674 = vmatpush1.msra.mxu0 %v1290
        %1675 = vmatprep.subr.mxu0 %v1283
        %1676 = vmatpush1.msra.mxu0 %v1282
        %1677 = vmatprep.subr.mxu0 %v1275
        %1678 = vmatpush1.msra.mxu0 %v1274
        %1679 = vmatprep.subr.mxu0 %v1267
        %1680 = vmatpush1.msra.mxu0 %v1266
        %1681 = vmatprep.subr.mxu0 %v1515
        %1682 = vmatpush2.msra.mxu0 %v1514
        %1683 = vmatprep.subr.mxu0 %v1507
        %1684 = vmatpush2.msra.mxu0 %v1506
        %1685 = vmatprep.subr.mxu0 %v1499
        %1686 = vmatpush2.msra.mxu0 %v1498
        %1687 = vmatprep.subr.mxu0 %v1491
        %1688 = vmatpush2.msra.mxu0 %v1490
        %1689 = vmatprep.subr.mxu0 %v1483
        %1690 = vmatpush2.msra.mxu0 %v1482
        %1691 = vmatprep.subr.mxu0 %v1475
        %1692 = vmatpush2.msra.mxu0 %v1474
        %1693 = vmatprep.subr.mxu0 %v1467
        %1694 = vmatpush2.msra.mxu0 %v1466
        %1695 = vmatprep.subr.mxu0 %v1459
        %1696 = vmatpush2.msra.mxu0 %v1458
        %1697 = vmatprep.subr.mxu0 %v1451
        %1698 = vmatpush2.msra.mxu0 %v1450
        %1699 = vmatprep.subr.mxu0 %v1443
        %1700 = vmatpush2.msra.mxu0 %v1442
        %1701 = vmatprep.subr.mxu0 %v1435
        %1702 = vmatpush2.msra.mxu0 %v1434
        %1703 = vmatprep.subr.mxu0 %v1427
        %1704 = vmatpush2.msra.mxu0 %v1426
        %1705 = vmatprep.subr.mxu0 %v1419
        %1706 = vmatpush2.msra.mxu0 %v1418
        %1707 = vmatprep.subr.mxu0 %v1411
        %1708 = vmatpush2.msra.mxu0 %v1410
        %1709 = vmatprep.subr.mxu0 %v1403
        %1710 = vmatpush2.msra.mxu0 %v1402
        %1711 = vmatprep.subr.mxu0 %v1395
        %1712 = vmatpush2.msra.mxu0 %v1394
        %1713 = vmatprep.mubr.f32.mxu0 %v1161
        %1714 = vmatmul.mubr.f32.gmra.mxu0 %v1159
        %v1715 = vpop.f32.mrf.mxu0
        %v1716 = vadd.f32 %v1575, %v1715
        %v1717 = vpop.f32.mrf.mxu0
        %v1718 = vadd.f32 %v1579, %v1717
        %1719 = vmatprep.mubr.f32.mxu0 %v1167
        %1720 = vmatmul.mubr.f32.gmra.mxu0 %v1165
        %v1721 = vpop.f32.mrf.mxu0
        %v1722 = vadd.f32 %v1575, %v1721
        %v1723 = vpop.f32.mrf.mxu0
        %v1724 = vadd.f32 %v1579, %v1723
        %1725 = vmatprep.mubr.f32.mxu0 %v1173
        %1726 = vmatmul.mubr.f32.gmra.mxu0 %v1171
        %v1727 = vpop.f32.mrf.mxu0
        %v1728 = vadd.f32 %v1575, %v1727
        %v1729 = vpop.f32.mrf.mxu0
        %v1730 = vadd.f32 %v1579, %v1729
        %1731 = vmatprep.mubr.f32.mxu0 %v1179
        %1732 = vmatmul.mubr.f32.gmra.mxu0 %v1177
        %v1733 = vpop.f32.mrf.mxu0
        %v1734 = vadd.f32 %v1575, %v1733
        %v1735 = vpop.f32.mrf.mxu0
        %v1736 = vadd.f32 %v1579, %v1735
        %1737 = vdwg.mxu0
        %1738 = vmatprep.subr.mxu0 0.0
        %1739 = vmatpush1.msra.mxu0 0.0
        %1740 = vmatprep.subr.mxu0 0.0
        %1741 = vmatpush1.msra.mxu0 0.0
        %1742 = vmatprep.subr.mxu0 0.0
        %1743 = vmatpush1.msra.mxu0 0.0
        %1744 = vmatprep.subr.mxu0 0.0
        %1745 = vmatpush1.msra.mxu0 0.0
        %1746 = vmatprep.subr.mxu0 0.0
        %1747 = vmatpush1.msra.mxu0 0.0
        %1748 = vmatprep.subr.mxu0 0.0
        %1749 = vmatpush1.msra.mxu0 0.0
        %1750 = vmatprep.subr.mxu0 0.0
        %1751 = vmatpush1.msra.mxu0 0.0
        %1752 = vmatprep.subr.mxu0 0.0
        %1753 = vmatpush1.msra.mxu0 0.0
        %1754 = vmatprep.subr.mxu0 0.0
        %1755 = vmatpush1.msra.mxu0 0.0
        %1756 = vmatprep.subr.mxu0 0.0
        %1757 = vmatpush1.msra.mxu0 0.0
        %1758 = vmatprep.subr.mxu0 %v1629
        %1759 = vmatpush1.msra.mxu0 %v1626
        %1760 = vmatprep.subr.mxu0 %v1555
        %1761 = vmatpush1.msra.mxu0 %v1554
        %1762 = vmatprep.subr.mxu0 %v1547
        %1763 = vmatpush1.msra.mxu0 %v1546
        %1764 = vmatprep.subr.mxu0 %v1539
        %1765 = vmatpush1.msra.mxu0 %v1538
        %1766 = vmatprep.subr.mxu0 %v1531
        %1767 = vmatpush1.msra.mxu0 %v1530
        %1768 = vmatprep.subr.mxu0 %v1523
        %1769 = vmatpush1.msra.mxu0 %v1522
        %1770 = vmatprep.subr.mxu0 0.0
        %1771 = vmatpush2.msra.mxu0 0.0
        %1772 = vmatprep.subr.mxu0 0.0
        %1773 = vmatpush2.msra.mxu0 0.0
        %1774 = vmatprep.subr.mxu0 0.0
        %1775 = vmatpush2.msra.mxu0 0.0
        %1776 = vmatprep.subr.mxu0 0.0
        %1777 = vmatpush2.msra.mxu0 0.0
        %1778 = vmatprep.subr.mxu0 0.0
        %1779 = vmatpush2.msra.mxu0 0.0
        %1780 = vmatprep.subr.mxu0 0.0
        %1781 = vmatpush2.msra.mxu0 0.0
        %1782 = vmatprep.subr.mxu0 0.0
        %1783 = vmatpush2.msra.mxu0 0.0
        %1784 = vmatprep.subr.mxu0 0.0
        %1785 = vmatpush2.msra.mxu0 0.0
        %1786 = vmatprep.subr.mxu0 0.0
        %1787 = vmatpush2.msra.mxu0 0.0
        %1788 = vmatprep.subr.mxu0 0.0
        %1789 = vmatpush2.msra.mxu0 0.0
        %1790 = vmatprep.subr.mxu0 0.0
        %1791 = vmatpush2.msra.mxu0 0.0
        %1792 = vmatprep.subr.mxu0 0.0
        %1793 = vmatpush2.msra.mxu0 0.0
        %1794 = vmatprep.subr.mxu0 0.0
        %1795 = vmatpush2.msra.mxu0 0.0
        %1796 = vmatprep.subr.mxu0 0.0
        %1797 = vmatpush2.msra.mxu0 0.0
        %1798 = vmatprep.subr.mxu0 0.0
        %1799 = vmatpush2.msra.mxu0 0.0
        %1800 = vmatprep.subr.mxu0 0.0
        %1801 = vmatpush2.msra.mxu0 0.0
        %1802 = vmatprep.mubr.f32.mxu0 0.0
        %1803 = vmatmul.mubr.f32.gmra.mxu0 %v1613
        %v1804 = vpop.f32.mrf.mxu0
        %v1805 = vadd.f32 %v1716, %v1804
        %v1806 = vpop.f32.mrf.mxu0
        %v1807 = vadd.f32 %v1718, %v1806
        %1808 = vmatprep.mubr.f32.mxu0 0.0
        %1809 = vmatmul.mubr.f32.gmra.mxu0 %v1616
        %v1810 = vpop.f32.mrf.mxu0
        %v1811 = vadd.f32 %v1722, %v1810
        %v1812 = vpop.f32.mrf.mxu0
        %v1813 = vadd.f32 %v1724, %v1812
        %1814 = vmatprep.mubr.f32.mxu0 0.0
        %1815 = vmatmul.mubr.f32.gmra.mxu0 %v1619
        %v1816 = vpop.f32.mrf.mxu0
        %v1817 = vadd.f32 %v1728, %v1816
        %v1818 = vpop.f32.mrf.mxu0
        %v1819 = vadd.f32 %v1730, %v1818
        %1820 = vmatprep.mubr.f32.mxu0 0.0
        %1821 = vmatmul.mubr.f32.gmra.mxu0 %v1622
        %v1822 = vpop.f32.mrf.mxu0
        %v1823 = vadd.f32 %v1734, %v1822
        %v1824 = vpop.f32.mrf.mxu0
        %v1825 = vadd.f32 %v1736, %v1824
        %1826 = vdwg.mxu0
        %1827 = vmatprep.subr.mxu0 %v1389
        %1828 = vmatpush1.msra.mxu0 %v1388
        %1829 = vmatprep.subr.mxu0 %v1381
        %1830 = vmatpush1.msra.mxu0 %v1380
        %1831 = vmatprep.subr.mxu0 %v1373
        %1832 = vmatpush1.msra.mxu0 %v1372
        %1833 = vmatprep.subr.mxu0 %v1365
        %1834 = vmatpush1.msra.mxu0 %v1364
        %1835 = vmatprep.subr.mxu0 %v1357
        %1836 = vmatpush1.msra.mxu0 %v1356
        %1837 = vmatprep.subr.mxu0 %v1349
        %1838 = vmatpush1.msra.mxu0 %v1348
        %1839 = vmatprep.subr.mxu0 %v1341
        %1840 = vmatpush1.msra.mxu0 %v1340
        %1841 = vmatprep.subr.mxu0 %v1333
        %1842 = vmatpush1.msra.mxu0 %v1332
        %1843 = vmatprep.subr.mxu0 %v1325
        %1844 = vmatpush1.msra.mxu0 %v1324
        %1845 = vmatprep.subr.mxu0 %v1317
        %1846 = vmatpush1.msra.mxu0 %v1316
        %1847 = vmatprep.subr.mxu0 %v1309
        %1848 = vmatpush1.msra.mxu0 %v1308
        %1849 = vmatprep.subr.mxu0 %v1301
        %1850 = vmatpush1.msra.mxu0 %v1300
        %1851 = vmatprep.subr.mxu0 %v1293
        %1852 = vmatpush1.msra.mxu0 %v1292
        %1853 = vmatprep.subr.mxu0 %v1285
        %1854 = vmatpush1.msra.mxu0 %v1284
        %1855 = vmatprep.subr.mxu0 %v1277
        %1856 = vmatpush1.msra.mxu0 %v1276
        %1857 = vmatprep.subr.mxu0 %v1269
        %1858 = vmatpush1.msra.mxu0 %v1268
        %1859 = vmatprep.subr.mxu0 %v1517
        %1860 = vmatpush2.msra.mxu0 %v1516
        %1861 = vmatprep.subr.mxu0 %v1509
        %1862 = vmatpush2.msra.mxu0 %v1508
        %1863 = vmatprep.subr.mxu0 %v1501
        %1864 = vmatpush2.msra.mxu0 %v1500
        %1865 = vmatprep.subr.mxu0 %v1493
        %1866 = vmatpush2.msra.mxu0 %v1492
        %1867 = vmatprep.subr.mxu0 %v1485
        %1868 = vmatpush2.msra.mxu0 %v1484
        %1869 = vmatprep.subr.mxu0 %v1477
        %1870 = vmatpush2.msra.mxu0 %v1476
        %1871 = vmatprep.subr.mxu0 %v1469
        %1872 = vmatpush2.msra.mxu0 %v1468
        %1873 = vmatprep.subr.mxu0 %v1461
        %1874 = vmatpush2.msra.mxu0 %v1460
        %1875 = vmatprep.subr.mxu0 %v1453
        %1876 = vmatpush2.msra.mxu0 %v1452
        %1877 = vmatprep.subr.mxu0 %v1445
        %1878 = vmatpush2.msra.mxu0 %v1444
        %1879 = vmatprep.subr.mxu0 %v1437
        %1880 = vmatpush2.msra.mxu0 %v1436
        %1881 = vmatprep.subr.mxu0 %v1429
        %1882 = vmatpush2.msra.mxu0 %v1428
        %1883 = vmatprep.subr.mxu0 %v1421
        %1884 = vmatpush2.msra.mxu0 %v1420
        %1885 = vmatprep.subr.mxu0 %v1413
        %1886 = vmatpush2.msra.mxu0 %v1412
        %1887 = vmatprep.subr.mxu0 %v1405
        %1888 = vmatpush2.msra.mxu0 %v1404
        %1889 = vmatprep.subr.mxu0 %v1397
        %1890 = vmatpush2.msra.mxu0 %v1396
        %1891 = vmatprep.mubr.f32.mxu0 %v1161
        %1892 = vmatmul.mubr.f32.gmra.mxu0 %v1159
        %v1893 = vpop.f32.mrf.mxu0
        %v1894 = vadd.f32 %v1583, %v1893
        %v1895 = vpop.f32.mrf.mxu0
        %v1896 = vadd.f32 %v1587, %v1895
        %1897 = vmatprep.mubr.f32.mxu0 %v1167
        %1898 = vmatmul.mubr.f32.gmra.mxu0 %v1165
        %v1899 = vpop.f32.mrf.mxu0
        %v1900 = vadd.f32 %v1583, %v1899
        %v1901 = vpop.f32.mrf.mxu0
        %v1902 = vadd.f32 %v1587, %v1901
        %1903 = vmatprep.mubr.f32.mxu0 %v1173
        %1904 = vmatmul.mubr.f32.gmra.mxu0 %v1171
        %v1905 = vpop.f32.mrf.mxu0
        %v1906 = vadd.f32 %v1583, %v1905
        %v1907 = vpop.f32.mrf.mxu0
        %v1908 = vadd.f32 %v1587, %v1907
        %1909 = vmatprep.mubr.f32.mxu0 %v1179
        %1910 = vmatmul.mubr.f32.gmra.mxu0 %v1177
        %v1911 = vpop.f32.mrf.mxu0
        %v1912 = vadd.f32 %v1583, %v1911
        %v1913 = vpop.f32.mrf.mxu0
        %v1914 = vadd.f32 %v1587, %v1913
        %1915 = vdwg.mxu0
        %1916 = vmatprep.subr.mxu0 0.0
        %1917 = vmatpush1.msra.mxu0 0.0
        %1918 = vmatprep.subr.mxu0 0.0
        %1919 = vmatpush1.msra.mxu0 0.0
        %1920 = vmatprep.subr.mxu0 0.0
        %1921 = vmatpush1.msra.mxu0 0.0
        %1922 = vmatprep.subr.mxu0 0.0
        %1923 = vmatpush1.msra.mxu0 0.0
        %1924 = vmatprep.subr.mxu0 0.0
        %1925 = vmatpush1.msra.mxu0 0.0
        %1926 = vmatprep.subr.mxu0 0.0
        %1927 = vmatpush1.msra.mxu0 0.0
        %1928 = vmatprep.subr.mxu0 0.0
        %1929 = vmatpush1.msra.mxu0 0.0
        %1930 = vmatprep.subr.mxu0 0.0
        %1931 = vmatpush1.msra.mxu0 0.0
        %1932 = vmatprep.subr.mxu0 0.0
        %1933 = vmatpush1.msra.mxu0 0.0
        %1934 = vmatprep.subr.mxu0 0.0
        %1935 = vmatpush1.msra.mxu0 0.0
        %1936 = vmatprep.subr.mxu0 %v1635
        %1937 = vmatpush1.msra.mxu0 %v1632
        %1938 = vmatprep.subr.mxu0 %v1557
        %1939 = vmatpush1.msra.mxu0 %v1556
        %1940 = vmatprep.subr.mxu0 %v1549
        %1941 = vmatpush1.msra.mxu0 %v1548
        %1942 = vmatprep.subr.mxu0 %v1541
        %1943 = vmatpush1.msra.mxu0 %v1540
        %1944 = vmatprep.subr.mxu0 %v1533
        %1945 = vmatpush1.msra.mxu0 %v1532
        %1946 = vmatprep.subr.mxu0 %v1525
        %1947 = vmatpush1.msra.mxu0 %v1524
        %1948 = vmatprep.subr.mxu0 0.0
        %1949 = vmatpush2.msra.mxu0 0.0
        %1950 = vmatprep.subr.mxu0 0.0
        %1951 = vmatpush2.msra.mxu0 0.0
        %1952 = vmatprep.subr.mxu0 0.0
        %1953 = vmatpush2.msra.mxu0 0.0
        %1954 = vmatprep.subr.mxu0 0.0
        %1955 = vmatpush2.msra.mxu0 0.0
        %1956 = vmatprep.subr.mxu0 0.0
        %1957 = vmatpush2.msra.mxu0 0.0
        %1958 = vmatprep.subr.mxu0 0.0
        %1959 = vmatpush2.msra.mxu0 0.0
        %1960 = vmatprep.subr.mxu0 0.0
        %1961 = vmatpush2.msra.mxu0 0.0
        %1962 = vmatprep.subr.mxu0 0.0
        %1963 = vmatpush2.msra.mxu0 0.0
        %1964 = vmatprep.subr.mxu0 0.0
        %1965 = vmatpush2.msra.mxu0 0.0
        %1966 = vmatprep.subr.mxu0 0.0
        %1967 = vmatpush2.msra.mxu0 0.0
        %1968 = vmatprep.subr.mxu0 0.0
        %1969 = vmatpush2.msra.mxu0 0.0
        %1970 = vmatprep.subr.mxu0 0.0
        %1971 = vmatpush2.msra.mxu0 0.0
        %1972 = vmatprep.subr.mxu0 0.0
        %1973 = vmatpush2.msra.mxu0 0.0
        %1974 = vmatprep.subr.mxu0 0.0
        %1975 = vmatpush2.msra.mxu0 0.0
        %1976 = vmatprep.subr.mxu0 0.0
        %1977 = vmatpush2.msra.mxu0 0.0
        %1978 = vmatprep.subr.mxu0 0.0
        %1979 = vmatpush2.msra.mxu0 0.0
        %1980 = vmatprep.mubr.f32.mxu0 0.0
        %1981 = vmatmul.mubr.f32.gmra.mxu0 %v1613
        %v1982 = vpop.f32.mrf.mxu0
        %v1983 = vadd.f32 %v1894, %v1982
        %v1984 = vpop.f32.mrf.mxu0
        %v1985 = vadd.f32 %v1896, %v1984
        %1986 = vmatprep.mubr.f32.mxu0 0.0
        %1987 = vmatmul.mubr.f32.gmra.mxu0 %v1616
        %v1988 = vpop.f32.mrf.mxu0
        %v1989 = vadd.f32 %v1900, %v1988
        %v1990 = vpop.f32.mrf.mxu0
        %v1991 = vadd.f32 %v1902, %v1990
        %1992 = vmatprep.mubr.f32.mxu0 0.0
        %1993 = vmatmul.mubr.f32.gmra.mxu0 %v1619
        %v1994 = vpop.f32.mrf.mxu0
        %v1995 = vadd.f32 %v1906, %v1994
        %v1996 = vpop.f32.mrf.mxu0
        %v1997 = vadd.f32 %v1908, %v1996
        %1998 = vmatprep.mubr.f32.mxu0 0.0
        %1999 = vmatmul.mubr.f32.gmra.mxu0 %v1622
        %v2000 = vpop.f32.mrf.mxu0
        %v2001 = vadd.f32 %v1912, %v2000
        %v2002 = vpop.f32.mrf.mxu0
        %v2003 = vadd.f32 %v1914, %v2002
        %2004 = vdwg.mxu0
        %2005 = vmatprep.subr.mxu0 %v1391
        %2006 = vmatpush1.msra.mxu0 %v1390
        %2007 = vmatprep.subr.mxu0 %v1383
        %2008 = vmatpush1.msra.mxu0 %v1382
        %2009 = vmatprep.subr.mxu0 %v1375
        %2010 = vmatpush1.msra.mxu0 %v1374
        %2011 = vmatprep.subr.mxu0 %v1367
        %2012 = vmatpush1.msra.mxu0 %v1366
        %2013 = vmatprep.subr.mxu0 %v1359
        %2014 = vmatpush1.msra.mxu0 %v1358
        %2015 = vmatprep.subr.mxu0 %v1351
        %2016 = vmatpush1.msra.mxu0 %v1350
        %2017 = vmatprep.subr.mxu0 %v1343
        %2018 = vmatpush1.msra.mxu0 %v1342
        %2019 = vmatprep.subr.mxu0 %v1335
        %2020 = vmatpush1.msra.mxu0 %v1334
        %2021 = vmatprep.subr.mxu0 %v1327
        %2022 = vmatpush1.msra.mxu0 %v1326
        %2023 = vmatprep.subr.mxu0 %v1319
        %2024 = vmatpush1.msra.mxu0 %v1318
        %2025 = vmatprep.subr.mxu0 %v1311
        %2026 = vmatpush1.msra.mxu0 %v1310
        %2027 = vmatprep.subr.mxu0 %v1303
        %2028 = vmatpush1.msra.mxu0 %v1302
        %2029 = vmatprep.subr.mxu0 %v1295
        %2030 = vmatpush1.msra.mxu0 %v1294
        %2031 = vmatprep.subr.mxu0 %v1287
        %2032 = vmatpush1.msra.mxu0 %v1286
        %2033 = vmatprep.subr.mxu0 %v1279
        %2034 = vmatpush1.msra.mxu0 %v1278
        %2035 = vmatprep.subr.mxu0 %v1271
        %2036 = vmatpush1.msra.mxu0 %v1270
        %2037 = vmatprep.subr.mxu0 %v1519
        %2038 = vmatpush2.msra.mxu0 %v1518
        %2039 = vmatprep.subr.mxu0 %v1511
        %2040 = vmatpush2.msra.mxu0 %v1510
        %2041 = vmatprep.subr.mxu0 %v1503
        %2042 = vmatpush2.msra.mxu0 %v1502
        %2043 = vmatprep.subr.mxu0 %v1495
        %2044 = vmatpush2.msra.mxu0 %v1494
        %2045 = vmatprep.subr.mxu0 %v1487
        %2046 = vmatpush2.msra.mxu0 %v1486
        %2047 = vmatprep.subr.mxu0 %v1479
        %2048 = vmatpush2.msra.mxu0 %v1478
        %2049 = vmatprep.subr.mxu0 %v1471
        %2050 = vmatpush2.msra.mxu0 %v1470
        %2051 = vmatprep.subr.mxu0 %v1463
        %2052 = vmatpush2.msra.mxu0 %v1462
        %2053 = vmatprep.subr.mxu0 %v1455
        %2054 = vmatpush2.msra.mxu0 %v1454
        %2055 = vmatprep.subr.mxu0 %v1447
        %2056 = vmatpush2.msra.mxu0 %v1446
        %2057 = vmatprep.subr.mxu0 %v1439
        %2058 = vmatpush2.msra.mxu0 %v1438
        %2059 = vmatprep.subr.mxu0 %v1431
        %2060 = vmatpush2.msra.mxu0 %v1430
        %2061 = vmatprep.subr.mxu0 %v1423
        %2062 = vmatpush2.msra.mxu0 %v1422
        %2063 = vmatprep.subr.mxu0 %v1415
        %2064 = vmatpush2.msra.mxu0 %v1414
        %2065 = vmatprep.subr.mxu0 %v1407
        %2066 = vmatpush2.msra.mxu0 %v1406
        %2067 = vmatprep.subr.mxu0 %v1399
        %2068 = vmatpush2.msra.mxu0 %v1398
        %2069 = vmatprep.mubr.f32.mxu0 %v1161
        %2070 = vmatmul.mubr.f32.gmra.mxu0 %v1159
        %v2071 = vpop.f32.mrf.mxu0
        %v2072 = vadd.f32 %v1591, %v2071
        %v2073 = vpop.f32.mrf.mxu0
        %v2074 = vadd.f32 %v1595, %v2073
        %2075 = vmatprep.mubr.f32.mxu0 %v1167
        %2076 = vmatmul.mubr.f32.gmra.mxu0 %v1165
        %v2077 = vpop.f32.mrf.mxu0
        %v2078 = vadd.f32 %v1591, %v2077
        %v2079 = vpop.f32.mrf.mxu0
        %v2080 = vadd.f32 %v1595, %v2079
        %2081 = vmatprep.mubr.f32.mxu0 %v1173
        %2082 = vmatmul.mubr.f32.gmra.mxu0 %v1171
        %v2083 = vpop.f32.mrf.mxu0
        %v2084 = vadd.f32 %v1591, %v2083
        %v2085 = vpop.f32.mrf.mxu0
        %v2086 = vadd.f32 %v1595, %v2085
        %2087 = vmatprep.mubr.f32.mxu0 %v1179
        %2088 = vmatmul.mubr.f32.gmra.mxu0 %v1177
        %v2089 = vpop.f32.mrf.mxu0
        %v2090 = vadd.f32 %v1591, %v2089
        %v2091 = vpop.f32.mrf.mxu0
        %v2092 = vadd.f32 %v1595, %v2091
        %2093 = vdwg.mxu0
        %2094 = vmatprep.subr.mxu0 0.0
        %2095 = vmatpush1.msra.mxu0 0.0
        %2096 = vmatprep.subr.mxu0 0.0
        %2097 = vmatpush1.msra.mxu0 0.0
        %2098 = vmatprep.subr.mxu0 0.0
        %2099 = vmatpush1.msra.mxu0 0.0
        %2100 = vmatprep.subr.mxu0 0.0
        %2101 = vmatpush1.msra.mxu0 0.0
        %2102 = vmatprep.subr.mxu0 0.0
        %2103 = vmatpush1.msra.mxu0 0.0
        %2104 = vmatprep.subr.mxu0 0.0
        %2105 = vmatpush1.msra.mxu0 0.0
        %2106 = vmatprep.subr.mxu0 0.0
        %2107 = vmatpush1.msra.mxu0 0.0
        %2108 = vmatprep.subr.mxu0 0.0
        %2109 = vmatpush1.msra.mxu0 0.0
        %2110 = vmatprep.subr.mxu0 0.0
        %2111 = vmatpush1.msra.mxu0 0.0
        %2112 = vmatprep.subr.mxu0 0.0
        %2113 = vmatpush1.msra.mxu0 0.0
        %2114 = vmatprep.subr.mxu0 %v1641
        %2115 = vmatpush1.msra.mxu0 %v1638
        %2116 = vmatprep.subr.mxu0 %v1559
        %2117 = vmatpush1.msra.mxu0 %v1558
        %2118 = vmatprep.subr.mxu0 %v1551
        %2119 = vmatpush1.msra.mxu0 %v1550
        %2120 = vmatprep.subr.mxu0 %v1543
        %2121 = vmatpush1.msra.mxu0 %v1542
        %2122 = vmatprep.subr.mxu0 %v1535
        %2123 = vmatpush1.msra.mxu0 %v1534
        %2124 = vmatprep.subr.mxu0 %v1527
        %2125 = vmatpush1.msra.mxu0 %v1526
        %2126 = vmatprep.subr.mxu0 0.0
        %2127 = vmatpush2.msra.mxu0 0.0
        %2128 = vmatprep.subr.mxu0 0.0
        %2129 = vmatpush2.msra.mxu0 0.0
        %2130 = vmatprep.subr.mxu0 0.0
        %2131 = vmatpush2.msra.mxu0 0.0
        %2132 = vmatprep.subr.mxu0 0.0
        %2133 = vmatpush2.msra.mxu0 0.0
        %2134 = vmatprep.subr.mxu0 0.0
        %2135 = vmatpush2.msra.mxu0 0.0
        %2136 = vmatprep.subr.mxu0 0.0
        %2137 = vmatpush2.msra.mxu0 0.0
        %2138 = vmatprep.subr.mxu0 0.0
        %2139 = vmatpush2.msra.mxu0 0.0
        %2140 = vmatprep.subr.mxu0 0.0
        %2141 = vmatpush2.msra.mxu0 0.0
        %2142 = vmatprep.subr.mxu0 0.0
        %2143 = vmatpush2.msra.mxu0 0.0
        %2144 = vmatprep.subr.mxu0 0.0
        %2145 = vmatpush2.msra.mxu0 0.0
        %2146 = vmatprep.subr.mxu0 0.0
        %2147 = vmatpush2.msra.mxu0 0.0
        %2148 = vmatprep.subr.mxu0 0.0
        %2149 = vmatpush2.msra.mxu0 0.0
        %2150 = vmatprep.subr.mxu0 0.0
        %2151 = vmatpush2.msra.mxu0 0.0
        %2152 = vmatprep.subr.mxu0 0.0
        %2153 = vmatpush2.msra.mxu0 0.0
        %2154 = vmatprep.subr.mxu0 0.0
        %2155 = vmatpush2.msra.mxu0 0.0
        %2156 = vmatprep.subr.mxu0 0.0
        %2157 = vmatpush2.msra.mxu0 0.0
        %2158 = vmatprep.mubr.f32.mxu0 0.0
        %2159 = vmatmul.mubr.f32.gmra.mxu0 %v1613
        %v2160 = vpop.f32.mrf.mxu0
        %v2161 = vadd.f32 %v2072, %v2160
        %v2162 = vpop.f32.mrf.mxu0
        %v2163 = vadd.f32 %v2074, %v2162
        %2164 = vmatprep.mubr.f32.mxu0 0.0
        %2165 = vmatmul.mubr.f32.gmra.mxu0 %v1616
        %v2166 = vpop.f32.mrf.mxu0
        %v2167 = vadd.f32 %v2078, %v2166
        %v2168 = vpop.f32.mrf.mxu0
        %v2169 = vadd.f32 %v2080, %v2168
        %2170 = vmatprep.mubr.f32.mxu0 0.0
        %2171 = vmatmul.mubr.f32.gmra.mxu0 %v1619
        %v2172 = vpop.f32.mrf.mxu0
        %v2173 = vadd.f32 %v2084, %v2172
        %v2174 = vpop.f32.mrf.mxu0
        %v2175 = vadd.f32 %v2086, %v2174
        %2176 = vmatprep.mubr.f32.mxu0 0.0
        %2177 = vmatmul.mubr.f32.gmra.mxu0 %v1622
        %v2178 = vpop.f32.mrf.mxu0
        %v2179 = vadd.f32 %v2090, %v2178
        %v2180 = vpop.f32.mrf.mxu0
        %v2181 = vadd.f32 %v2092, %v2180
        %2182 = vdwg.mxu0
        %2183 = vmatprep.subr.mxu0 %v1393
        %2184 = vmatpush1.msra.mxu0 %v1392
        %2185 = vmatprep.subr.mxu0 %v1385
        %2186 = vmatpush1.msra.mxu0 %v1384
        %2187 = vmatprep.subr.mxu0 %v1377
        %2188 = vmatpush1.msra.mxu0 %v1376
        %2189 = vmatprep.subr.mxu0 %v1369
        %2190 = vmatpush1.msra.mxu0 %v1368
        %2191 = vmatprep.subr.mxu0 %v1361
        %2192 = vmatpush1.msra.mxu0 %v1360
        %2193 = vmatprep.subr.mxu0 %v1353
        %2194 = vmatpush1.msra.mxu0 %v1352
        %2195 = vmatprep.subr.mxu0 %v1345
        %2196 = vmatpush1.msra.mxu0 %v1344
        %2197 = vmatprep.subr.mxu0 %v1337
        %2198 = vmatpush1.msra.mxu0 %v1336
        %2199 = vmatprep.subr.mxu0 %v1329
        %2200 = vmatpush1.msra.mxu0 %v1328
        %2201 = vmatprep.subr.mxu0 %v1321
        %2202 = vmatpush1.msra.mxu0 %v1320
        %2203 = vmatprep.subr.mxu0 %v1313
        %2204 = vmatpush1.msra.mxu0 %v1312
        %2205 = vmatprep.subr.mxu0 %v1305
        %2206 = vmatpush1.msra.mxu0 %v1304
        %2207 = vmatprep.subr.mxu0 %v1297
        %2208 = vmatpush1.msra.mxu0 %v1296
        %2209 = vmatprep.subr.mxu0 %v1289
        %2210 = vmatpush1.msra.mxu0 %v1288
        %2211 = vmatprep.subr.mxu0 %v1281
        %2212 = vmatpush1.msra.mxu0 %v1280
        %2213 = vmatprep.subr.mxu0 %v1273
        %2214 = vmatpush1.msra.mxu0 %v1272
        %2215 = vmatprep.subr.mxu0 %v1521
        %2216 = vmatpush2.msra.mxu0 %v1520
        %2217 = vmatprep.subr.mxu0 %v1513
        %2218 = vmatpush2.msra.mxu0 %v1512
        %2219 = vmatprep.subr.mxu0 %v1505
        %2220 = vmatpush2.msra.mxu0 %v1504
        %2221 = vmatprep.subr.mxu0 %v1497
        %2222 = vmatpush2.msra.mxu0 %v1496
        %2223 = vmatprep.subr.mxu0 %v1489
        %2224 = vmatpush2.msra.mxu0 %v1488
        %2225 = vmatprep.subr.mxu0 %v1481
        %2226 = vmatpush2.msra.mxu0 %v1480
        %2227 = vmatprep.subr.mxu0 %v1473
        %2228 = vmatpush2.msra.mxu0 %v1472
        %2229 = vmatprep.subr.mxu0 %v1465
        %2230 = vmatpush2.msra.mxu0 %v1464
        %2231 = vmatprep.subr.mxu0 %v1457
        %2232 = vmatpush2.msra.mxu0 %v1456
        %2233 = vmatprep.subr.mxu0 %v1449
        %2234 = vmatpush2.msra.mxu0 %v1448
        %2235 = vmatprep.subr.mxu0 %v1441
        %2236 = vmatpush2.msra.mxu0 %v1440
        %2237 = vmatprep.subr.mxu0 %v1433
        %2238 = vmatpush2.msra.mxu0 %v1432
        %2239 = vmatprep.subr.mxu0 %v1425
        %2240 = vmatpush2.msra.mxu0 %v1424
        %2241 = vmatprep.subr.mxu0 %v1417
        %2242 = vmatpush2.msra.mxu0 %v1416
        %2243 = vmatprep.subr.mxu0 %v1409
        %2244 = vmatpush2.msra.mxu0 %v1408
        %2245 = vmatprep.subr.mxu0 %v1401
        %2246 = vmatpush2.msra.mxu0 %v1400
        %2247 = vmatprep.mubr.f32.mxu0 %v1161
        %2248 = vmatmul.mubr.f32.gmra.mxu0 %v1159
        %v2249 = vpop.f32.mrf.mxu0
        %v2250 = vadd.f32 %v1599, %v2249
        %v2251 = vpop.f32.mrf.mxu0
        %v2252 = vadd.f32 %v1603, %v2251
        %2253 = vmatprep.mubr.f32.mxu0 %v1167
        %2254 = vmatmul.mubr.f32.gmra.mxu0 %v1165
        %v2255 = vpop.f32.mrf.mxu0
        %v2256 = vadd.f32 %v1599, %v2255
        %v2257 = vpop.f32.mrf.mxu0
        %v2258 = vadd.f32 %v1603, %v2257
        %2259 = vmatprep.mubr.f32.mxu0 %v1173
        %2260 = vmatmul.mubr.f32.gmra.mxu0 %v1171
        %v2261 = vpop.f32.mrf.mxu0
        %v2262 = vadd.f32 %v1599, %v2261
        %v2263 = vpop.f32.mrf.mxu0
        %v2264 = vadd.f32 %v1603, %v2263
        %2265 = vmatprep.mubr.f32.mxu0 %v1179
        %2266 = vmatmul.mubr.f32.gmra.mxu0 %v1177
        %v2267 = vpop.f32.mrf.mxu0
        %v2268 = vadd.f32 %v1599, %v2267
        %v2269 = vpop.f32.mrf.mxu0
        %v2270 = vadd.f32 %v1603, %v2269
        %2271 = vdwg.mxu0
        %2272 = vmatprep.subr.mxu0 0.0
        %2273 = vmatpush1.msra.mxu0 0.0
        %2274 = vmatprep.subr.mxu0 0.0
        %2275 = vmatpush1.msra.mxu0 0.0
        %2276 = vmatprep.subr.mxu0 0.0
        %2277 = vmatpush1.msra.mxu0 0.0
        %2278 = vmatprep.subr.mxu0 0.0
        %2279 = vmatpush1.msra.mxu0 0.0
        %2280 = vmatprep.subr.mxu0 0.0
        %2281 = vmatpush1.msra.mxu0 0.0
        %2282 = vmatprep.subr.mxu0 0.0
        %2283 = vmatpush1.msra.mxu0 0.0
        %2284 = vmatprep.subr.mxu0 0.0
        %2285 = vmatpush1.msra.mxu0 0.0
        %2286 = vmatprep.subr.mxu0 0.0
        %2287 = vmatpush1.msra.mxu0 0.0
        %2288 = vmatprep.subr.mxu0 0.0
        %2289 = vmatpush1.msra.mxu0 0.0
        %2290 = vmatprep.subr.mxu0 0.0
        %2291 = vmatpush1.msra.mxu0 0.0
        %2292 = vmatprep.subr.mxu0 %v1647
        %2293 = vmatpush1.msra.mxu0 %v1644
        %2294 = vmatprep.subr.mxu0 %v1561
        %2295 = vmatpush1.msra.mxu0 %v1560
        %2296 = vmatprep.subr.mxu0 %v1553
        %2297 = vmatpush1.msra.mxu0 %v1552
        %2298 = vmatprep.subr.mxu0 %v1545
        %2299 = vmatpush1.msra.mxu0 %v1544
        %2300 = vmatprep.subr.mxu0 %v1537
        %2301 = vmatpush1.msra.mxu0 %v1536
        %2302 = vmatprep.subr.mxu0 %v1529
        %2303 = vmatpush1.msra.mxu0 %v1528
        %2304 = vmatprep.subr.mxu0 0.0
        %2305 = vmatpush2.msra.mxu0 0.0
        %2306 = vmatprep.subr.mxu0 0.0
        %2307 = vmatpush2.msra.mxu0 0.0
        %2308 = vmatprep.subr.mxu0 0.0
        %2309 = vmatpush2.msra.mxu0 0.0
        %2310 = vmatprep.subr.mxu0 0.0
        %2311 = vmatpush2.msra.mxu0 0.0
        %2312 = vmatprep.subr.mxu0 0.0
        %2313 = vmatpush2.msra.mxu0 0.0
        %2314 = vmatprep.subr.mxu0 0.0
        %2315 = vmatpush2.msra.mxu0 0.0
        %2316 = vmatprep.subr.mxu0 0.0
        %2317 = vmatpush2.msra.mxu0 0.0
        %2318 = vmatprep.subr.mxu0 0.0
        %2319 = vmatpush2.msra.mxu0 0.0
        %2320 = vmatprep.subr.mxu0 0.0
        %2321 = vmatpush2.msra.mxu0 0.0
        %2322 = vmatprep.subr.mxu0 0.0
        %2323 = vmatpush2.msra.mxu0 0.0
        %2324 = vmatprep.subr.mxu0 0.0
        %2325 = vmatpush2.msra.mxu0 0.0
        %2326 = vmatprep.subr.mxu0 0.0
        %2327 = vmatpush2.msra.mxu0 0.0
        %2328 = vmatprep.subr.mxu0 0.0
        %2329 = vmatpush2.msra.mxu0 0.0
        %2330 = vmatprep.subr.mxu0 0.0
        %2331 = vmatpush2.msra.mxu0 0.0
        %2332 = vmatprep.subr.mxu0 0.0
        %2333 = vmatpush2.msra.mxu0 0.0
        %2334 = vmatprep.subr.mxu0 0.0
        %2335 = vmatpush2.msra.mxu0 0.0
        %2336 = vmatprep.mubr.f32.mxu0 0.0
        %2337 = vmatmul.mubr.f32.gmra.mxu0 %v1613
        %v2338 = vpop.f32.mrf.mxu0
        %v2339 = vadd.f32 %v2250, %v2338
        %v2340 = vpop.f32.mrf.mxu0
        %v2341 = vadd.f32 %v2252, %v2340
        %2342 = vmatprep.mubr.f32.mxu0 0.0
        %2343 = vmatmul.mubr.f32.gmra.mxu0 %v1616
        %v2344 = vpop.f32.mrf.mxu0
        %v2345 = vadd.f32 %v2256, %v2344
        %v2346 = vpop.f32.mrf.mxu0
        %v2347 = vadd.f32 %v2258, %v2346
        %2348 = vmatprep.mubr.f32.mxu0 0.0
        %2349 = vmatmul.mubr.f32.gmra.mxu0 %v1619
        %v2350 = vpop.f32.mrf.mxu0
        %v2351 = vadd.f32 %v2262, %v2350
        %v2352 = vpop.f32.mrf.mxu0
        %v2353 = vadd.f32 %v2264, %v2352
        %2354 = vmatprep.mubr.f32.mxu0 0.0
        %2355 = vmatmul.mubr.f32.gmra.mxu0 %v1622
        %v2356 = vpop.f32.mrf.mxu0
        %v2357 = vadd.f32 %v2268, %v2356
        %v2358 = vpop.f32.mrf.mxu0
        %v2359 = vadd.f32 %v2270, %v2358
        %2360 = vdwg.mxu0
        %2361 = vst [vmem:[#allocation2] sm:$0xff] %v1805
        %2362 = vst [vmem:[#allocation2 + $0x8] sm:$0xff] %v1807
        %2363 = vst [vmem:[#allocation2 + $0x10] sm:$0xff] %v1983
        %2364 = vst [vmem:[#allocation2 + $0x18] sm:$0xff] %v1985
        %2365 = vst [vmem:[#allocation2 + $0x20] sm:$0xff] %v2161
        %2366 = vst [vmem:[#allocation2 + $0x28] sm:$0xff] %v2163
        %2367 = vst [vmem:[#allocation2 + $0x30] sm:$0xff] %v2339
        %2368 = vst [vmem:[#allocation2 + $0x38] sm:$0xff] %v2341
        %2369 = vst [vmem:[#allocation2 + $0x40] sm:$0xff] %v1811
        %2370 = vst [vmem:[#allocation2 + $0x48] sm:$0xff] %v1813
        %2371 = vst [vmem:[#allocation2 + $0x50] sm:$0xff] %v1989
        %2372 = vst [vmem:[#allocation2 + $0x58] sm:$0xff] %v1991
        %2373 = vst [vmem:[#allocation2 + $0x60] sm:$0xff] %v2167
        %2374 = vst [vmem:[#allocation2 + $0x68] sm:$0xff] %v2169
        %2375 = vst [vmem:[#allocation2 + $0x70] sm:$0xff] %v2345
        %2376 = vst [vmem:[#allocation2 + $0x78] sm:$0xff] %v2347
        %2377 = vst [vmem:[#allocation2 + $0x80] sm:$0xff] %v1817
        %2378 = vst [vmem:[#allocation2 + $0x88] sm:$0xff] %v1819
        %2379 = vst [vmem:[#allocation2 + $0x90] sm:$0xff] %v1995
        %2380 = vst [vmem:[#allocation2 + $0x98] sm:$0xff] %v1997
        %2381 = vst [vmem:[#allocation2 + $0xa0] sm:$0xff] %v2173
        %2382 = vst [vmem:[#allocation2 + $0xa8] sm:$0xff] %v2175
        %2383 = vst [vmem:[#allocation2 + $0xb0] sm:$0xff] %v2351
        %2384 = vst [vmem:[#allocation2 + $0xb8] sm:$0xff] %v2353
        %2385 = vst [vmem:[#allocation2 + $0xc0] sm:$0xff] %v1823
        %2386 = vst [vmem:[#allocation2 + $0xc8] sm:$0xff] %v1825
        %2387 = vst [vmem:[#allocation2 + $0xd0] sm:$0xff] %v2001
        %2388 = vst [vmem:[#allocation2 + $0xd8] sm:$0xff] %v2003
        %2389 = vst [vmem:[#allocation2 + $0xe0] sm:$0xff] %v2179
        %2390 = vst [vmem:[#allocation2 + $0xe8] sm:$0xff] %v2181
        %2391 = vst [vmem:[#allocation2 + $0xf0] sm:$0xff] %v2357
        %2392 = vst [vmem:[#allocation2 + $0xf8] sm:$0xff] %v2359
        %v2393 = vld [vmem:[#allocation11] sm:$0xff]
        %v2394 = vld [vmem:[#allocation11 + $0x8] sm:$0xff]
        %v2395 = vld [vmem:[#allocation11 + $0x10] sm:$0xff]
        %v2396 = vld [vmem:[#allocation11 + $0x18] sm:$0xff]
        %v2397 = vld [vmem:[#allocation11 + $0x20] sm:$0xff]
        %v2398 = vld [vmem:[#allocation11 + $0x28] sm:$0xff]
        %v2399 = vld [vmem:[#allocation11 + $0x30] sm:$0xff]
        %v2400 = vld [vmem:[#allocation11 + $0x38] sm:$0xff]
        %v2401 = vld [vmem:[#allocation11 + $0x40] sm:$0xff]
        %v2402 = vld [vmem:[#allocation11 + $0x48] sm:$0xff]
        %v2403 = vld [vmem:[#allocation11 + $0x50] sm:$0xff]
        %v2404 = vld [vmem:[#allocation11 + $0x58] sm:$0xff]
        %v2405 = vld [vmem:[#allocation11 + $0x60] sm:$0xff]
        %v2406 = vld [vmem:[#allocation11 + $0x68] sm:$0xff]
        %v2407 = vld [vmem:[#allocation11 + $0x70] sm:$0xff]
        %v2408 = vld [vmem:[#allocation11 + $0x78] sm:$0xff]
        %v2409 = vld [vmem:[#allocation11 + $0x80] sm:$0xff]
        %v2410 = vld [vmem:[#allocation11 + $0x88] sm:$0xff]
        %v2411 = vld [vmem:[#allocation11 + $0x90] sm:$0xff]
        %v2412 = vld [vmem:[#allocation11 + $0x98] sm:$0xff]
        %v2413 = vld [vmem:[#allocation11 + $0xa0] sm:$0xff]
        %v2414 = vld [vmem:[#allocation11 + $0xa8] sm:$0xff]
        %v2415 = vld [vmem:[#allocation11 + $0xb0] sm:$0xff]
        %v2416 = vld [vmem:[#allocation11 + $0xb8] sm:$0xff]
        %v2417 = vld [vmem:[#allocation11 + $0xc0] sm:$0xff]
        %v2418 = vld [vmem:[#allocation11 + $0xc8] sm:$0xff]
        %v2419 = vld [vmem:[#allocation11 + $0xd0] sm:$0xff]
        %v2420 = vld [vmem:[#allocation11 + $0xd8] sm:$0xff]
        %v2421 = vld [vmem:[#allocation11 + $0xe0] sm:$0xff]
        %v2422 = vld [vmem:[#allocation11 + $0xe8] sm:$0xff]
        %v2423 = vld [vmem:[#allocation11 + $0xf0] sm:$0xff]
        %v2424 = vld [vmem:[#allocation11 + $0xf8] sm:$0xff]
        %v2425 = vld [vmem:[#allocation11 + $0x100] sm:$0xff]
        %v2426 = vld [vmem:[#allocation11 + $0x108] sm:$0xff]
        %v2427 = vld [vmem:[#allocation11 + $0x110] sm:$0xff]
        %v2428 = vld [vmem:[#allocation11 + $0x118] sm:$0xff]
        %v2429 = vld [vmem:[#allocation11 + $0x120] sm:$0xff]
        %v2430 = vld [vmem:[#allocation11 + $0x128] sm:$0xff]
        %v2431 = vld [vmem:[#allocation11 + $0x130] sm:$0xff]
        %v2432 = vld [vmem:[#allocation11 + $0x138] sm:$0xff]
        %v2433 = vld [vmem:[#allocation11 + $0x140] sm:$0xff]
        %v2434 = vld [vmem:[#allocation11 + $0x148] sm:$0xff]
        %v2435 = vld [vmem:[#allocation11 + $0x150] sm:$0xff]
        %v2436 = vld [vmem:[#allocation11 + $0x158] sm:$0xff]
        %v2437 = vld [vmem:[#allocation11 + $0x160] sm:$0xff]
        %v2438 = vld [vmem:[#allocation11 + $0x168] sm:$0xff]
        %v2439 = vld [vmem:[#allocation11 + $0x170] sm:$0xff]
        %v2440 = vld [vmem:[#allocation11 + $0x178] sm:$0xff]
        %v2441 = vld [vmem:[#allocation11 + $0x180] sm:$0xff]
        %v2442 = vld [vmem:[#allocation11 + $0x188] sm:$0xff]
        %v2443 = vld [vmem:[#allocation11 + $0x190] sm:$0xff]
        %v2444 = vld [vmem:[#allocation11 + $0x198] sm:$0xff]
        %v2445 = vld [vmem:[#allocation11 + $0x1a0] sm:$0xff]
        %v2446 = vld [vmem:[#allocation11 + $0x1a8] sm:$0xff]
        %v2447 = vld [vmem:[#allocation11 + $0x1b0] sm:$0xff]
        %v2448 = vld [vmem:[#allocation11 + $0x1b8] sm:$0xff]
        %v2449 = vld [vmem:[#allocation11 + $0x1c0] sm:$0xff]
        %v2450 = vld [vmem:[#allocation11 + $0x1c8] sm:$0xff]
        %v2451 = vld [vmem:[#allocation11 + $0x1d0] sm:$0xff]
        %v2452 = vld [vmem:[#allocation11 + $0x1d8] sm:$0xff]
        %v2453 = vld [vmem:[#allocation11 + $0x1e0] sm:$0xff]
        %v2454 = vld [vmem:[#allocation11 + $0x1e8] sm:$0xff]
        %v2455 = vld [vmem:[#allocation11 + $0x1f0] sm:$0xff]
        %v2456 = vld [vmem:[#allocation11 + $0x1f8] sm:$0xff]
        %v2457 = vld [vmem:[#allocation11 + $0x200] sm:$0xff]
        %v2458 = vld [vmem:[#allocation11 + $0x208] sm:$0xff]
        %v2459 = vld [vmem:[#allocation11 + $0x210] sm:$0xff]
        %v2460 = vld [vmem:[#allocation11 + $0x218] sm:$0xff]
        %v2461 = vld [vmem:[#allocation11 + $0x220] sm:$0xff]
        %v2462 = vld [vmem:[#allocation11 + $0x228] sm:$0xff]
        %v2463 = vld [vmem:[#allocation11 + $0x230] sm:$0xff]
        %v2464 = vld [vmem:[#allocation11 + $0x238] sm:$0xff]
        %v2465 = vld [vmem:[#allocation11 + $0x240] sm:$0xff]
        %v2466 = vld [vmem:[#allocation11 + $0x248] sm:$0xff]
        %v2467 = vld [vmem:[#allocation11 + $0x250] sm:$0xff]
        %v2468 = vld [vmem:[#allocation11 + $0x258] sm:$0xff]
        %v2469 = vld [vmem:[#allocation11 + $0x260] sm:$0xff]
        %v2470 = vld [vmem:[#allocation11 + $0x268] sm:$0xff]
        %v2471 = vld [vmem:[#allocation11 + $0x270] sm:$0xff]
        %v2472 = vld [vmem:[#allocation11 + $0x278] sm:$0xff]
        %v2473 = vld [vmem:[#allocation11 + $0x280] sm:$0xff]
        %v2474 = vld [vmem:[#allocation11 + $0x288] sm:$0xff]
        %v2475 = vld [vmem:[#allocation11 + $0x290] sm:$0xff]
        %v2476 = vld [vmem:[#allocation11 + $0x298] sm:$0xff]
        %v2477 = vld [vmem:[#allocation11 + $0x2a0] sm:$0xff]
        %v2478 = vld [vmem:[#allocation11 + $0x2a8] sm:$0xff]
        %v2479 = vld [vmem:[#allocation11 + $0x2b0] sm:$0xff]
        %v2480 = vld [vmem:[#allocation11 + $0x2b8] sm:$0xff]
        %v2481 = vld [vmem:[#allocation11 + $0x2c0] sm:$0xff]
        %v2482 = vld [vmem:[#allocation11 + $0x2c8] sm:$0xff]
        %v2483 = vld [vmem:[#allocation11 + $0x2d0] sm:$0xff]
        %v2484 = vld [vmem:[#allocation11 + $0x2d8] sm:$0xff]
        %v2485 = vld [vmem:[#allocation11 + $0x2e0] sm:$0xff]
        %v2486 = vld [vmem:[#allocation11 + $0x2e8] sm:$0xff]
        %v2487 = vld [vmem:[#allocation11 + $0x2f0] sm:$0xff]
        %v2488 = vld [vmem:[#allocation11 + $0x2f8] sm:$0xff]
        %v2489 = vld [vmem:[#allocation11 + $0x300] sm:$0xff]
        %v2490 = vld [vmem:[#allocation11 + $0x308] sm:$0xff]
        %v2491 = vld [vmem:[#allocation11 + $0x310] sm:$0xff]
        %v2492 = vld [vmem:[#allocation11 + $0x318] sm:$0xff]
        %v2493 = vld [vmem:[#allocation11 + $0x320] sm:$0xff]
        %v2494 = vld [vmem:[#allocation11 + $0x328] sm:$0xff]
        %v2495 = vld [vmem:[#allocation11 + $0x330] sm:$0xff]
        %v2496 = vld [vmem:[#allocation11 + $0x338] sm:$0xff]
        %v2497 = vld [vmem:[#allocation11 + $0x340] sm:$0xff]
        %v2498 = vld [vmem:[#allocation11 + $0x348] sm:$0xff]
        %v2499 = vld [vmem:[#allocation11 + $0x350] sm:$0xff]
        %v2500 = vld [vmem:[#allocation11 + $0x358] sm:$0xff]
        %v2501 = vld [vmem:[#allocation11 + $0x360] sm:$0xff]
        %v2502 = vld [vmem:[#allocation11 + $0x368] sm:$0xff]
        %v2503 = vld [vmem:[#allocation11 + $0x370] sm:$0xff]
        %v2504 = vld [vmem:[#allocation11 + $0x378] sm:$0xff]
        %v2505 = vld [vmem:[#allocation11 + $0x380] sm:$0xff]
        %v2506 = vld [vmem:[#allocation11 + $0x388] sm:$0xff]
        %v2507 = vld [vmem:[#allocation11 + $0x390] sm:$0xff]
        %v2508 = vld [vmem:[#allocation11 + $0x398] sm:$0xff]
        %v2509 = vld [vmem:[#allocation11 + $0x3a0] sm:$0xff]
        %v2510 = vld [vmem:[#allocation11 + $0x3a8] sm:$0xff]
        %v2511 = vld [vmem:[#allocation11 + $0x3b0] sm:$0xff]
        %v2512 = vld [vmem:[#allocation11 + $0x3b8] sm:$0xff]
        %v2513 = vld [vmem:[#allocation11 + $0x3c0] sm:$0xff]
        %v2514 = vld [vmem:[#allocation11 + $0x3c8] sm:$0xff]
        %v2515 = vld [vmem:[#allocation11 + $0x3d0] sm:$0xff]
        %v2516 = vld [vmem:[#allocation11 + $0x3d8] sm:$0xff]
        %v2517 = vld [vmem:[#allocation11 + $0x3e0] sm:$0xff]
        %v2518 = vld [vmem:[#allocation11 + $0x3e8] sm:$0xff]
        %v2519 = vld [vmem:[#allocation11 + $0x3f0] sm:$0xff]
        %v2520 = vld [vmem:[#allocation11 + $0x3f8] sm:$0xff]
        %v2521 = vld [vmem:[#allocation11 + $0x400] sm:$0xff]
        %v2522 = vld [vmem:[#allocation11 + $0x408] sm:$0xff]
        %v2523 = vld [vmem:[#allocation11 + $0x410] sm:$0xff]
        %v2524 = vld [vmem:[#allocation11 + $0x418] sm:$0xff]
        %v2525 = vld [vmem:[#allocation11 + $0x420] sm:$0xff]
        %v2526 = vld [vmem:[#allocation11 + $0x428] sm:$0xff]
        %v2527 = vld [vmem:[#allocation11 + $0x430] sm:$0xff]
        %v2528 = vld [vmem:[#allocation11 + $0x438] sm:$0xff]
        %v2529 = vld [vmem:[#allocation11 + $0x440] sm:$0xff]
        %v2530 = vld [vmem:[#allocation11 + $0x448] sm:$0xff]
        %v2531 = vld [vmem:[#allocation11 + $0x450] sm:$0xff]
        %v2532 = vld [vmem:[#allocation11 + $0x458] sm:$0xff]
        %v2533 = vld [vmem:[#allocation11 + $0x460] sm:$0xff]
        %v2534 = vld [vmem:[#allocation11 + $0x468] sm:$0xff]
        %v2535 = vld [vmem:[#allocation11 + $0x470] sm:$0xff]
        %v2536 = vld [vmem:[#allocation11 + $0x478] sm:$0xff]
        %v2537 = vld [vmem:[#allocation11 + $0x480] sm:$0xff]
        %v2538 = vld [vmem:[#allocation11 + $0x488] sm:$0xff]
        %v2539 = vld [vmem:[#allocation11 + $0x490] sm:$0xff]
        %v2540 = vld [vmem:[#allocation11 + $0x498] sm:$0xff]
        %v2541 = vld [vmem:[#allocation11 + $0x4a0] sm:$0xff]
        %v2542 = vld [vmem:[#allocation11 + $0x4a8] sm:$0xff]
        %v2543 = vld [vmem:[#allocation11 + $0x4b0] sm:$0xff]
        %v2544 = vld [vmem:[#allocation11 + $0x4b8] sm:$0xff]
        %v2545 = vld [vmem:[#allocation11 + $0x4c0] sm:$0xff]
        %v2546 = vld [vmem:[#allocation11 + $0x4c8] sm:$0xff]
        %v2547 = vld [vmem:[#allocation11 + $0x4d0] sm:$0xff]
        %v2548 = vld [vmem:[#allocation11 + $0x4d8] sm:$0xff]
        %v2549 = vld [vmem:[#allocation11 + $0x4e0] sm:$0xff]
        %v2550 = vld [vmem:[#allocation11 + $0x4e8] sm:$0xff]
        %v2551 = vld [vmem:[#allocation11 + $0x4f0] sm:$0xff]
        %v2552 = vld [vmem:[#allocation11 + $0x4f8] sm:$0xff]
        %v2553 = vld [vmem:[#allocation11 + $0x500] sm:$0xff]
        %v2554 = vld [vmem:[#allocation11 + $0x508] sm:$0xff]
        %v2555 = vld [vmem:[#allocation11 + $0x510] sm:$0xff]
        %v2556 = vld [vmem:[#allocation11 + $0x518] sm:$0xff]
        %v2557 = vld [vmem:[#allocation11 + $0x520] sm:$0xff]
        %v2558 = vld [vmem:[#allocation11 + $0x528] sm:$0xff]
        %v2559 = vld [vmem:[#allocation11 + $0x530] sm:$0xff]
        %v2560 = vld [vmem:[#allocation11 + $0x538] sm:$0xff]
        %v2561 = vld [vmem:[#allocation11 + $0x540] sm:$0xff]
        %v2562 = vld [vmem:[#allocation11 + $0x548] sm:$0xff]
        %v2563 = vld [vmem:[#allocation11 + $0x550] sm:$0xff]
        %v2564 = vld [vmem:[#allocation11 + $0x558] sm:$0xff]
        %v2565 = vld [vmem:[#allocation11 + $0x560] sm:$0xff]
        %v2566 = vld [vmem:[#allocation11 + $0x568] sm:$0xff]
        %v2567 = vld [vmem:[#allocation11 + $0x570] sm:$0xff]
        %v2568 = vld [vmem:[#allocation11 + $0x578] sm:$0xff]
        %v2569 = vld [vmem:[#allocation11 + $0x580] sm:$0xff]
        %v2570 = vld [vmem:[#allocation11 + $0x588] sm:$0xff]
        %v2571 = vld [vmem:[#allocation11 + $0x590] sm:$0xff]
        %v2572 = vld [vmem:[#allocation11 + $0x598] sm:$0xff]
        %v2573 = vld [vmem:[#allocation11 + $0x5a0] sm:$0xff]
        %v2574 = vld [vmem:[#allocation11 + $0x5a8] sm:$0xff]
        %v2575 = vld [vmem:[#allocation11 + $0x5b0] sm:$0xff]
        %v2576 = vld [vmem:[#allocation11 + $0x5b8] sm:$0xff]
        %v2577 = vld [vmem:[#allocation11 + $0x5c0] sm:$0xff]
        %v2578 = vld [vmem:[#allocation11 + $0x5c8] sm:$0xff]
        %v2579 = vld [vmem:[#allocation11 + $0x5d0] sm:$0xff]
        %v2580 = vld [vmem:[#allocation11 + $0x5d8] sm:$0xff]
        %v2581 = vld [vmem:[#allocation11 + $0x5e0] sm:$0xff]
        %v2582 = vld [vmem:[#allocation11 + $0x5e8] sm:$0xff]
        %v2583 = vld [vmem:[#allocation11 + $0x5f0] sm:$0xff]
        %v2584 = vld [vmem:[#allocation11 + $0x5f8] sm:$0xff]
        %v2585 = vld [vmem:[#allocation11 + $0x600] sm:$0xff]
        %v2586 = vld [vmem:[#allocation11 + $0x608] sm:$0xff]
        %v2587 = vld [vmem:[#allocation11 + $0x610] sm:$0xff]
        %v2588 = vld [vmem:[#allocation11 + $0x618] sm:$0xff]
        %v2589 = vld [vmem:[#allocation11 + $0x620] sm:$0xff]
        %v2590 = vld [vmem:[#allocation11 + $0x628] sm:$0xff]
        %v2591 = vld [vmem:[#allocation11 + $0x630] sm:$0xff]
        %v2592 = vld [vmem:[#allocation11 + $0x638] sm:$0xff]
        %v2593 = vld [vmem:[#allocation11 + $0x640] sm:$0xff]
        %v2594 = vld [vmem:[#allocation11 + $0x648] sm:$0xff]
        %v2595 = vld [vmem:[#allocation11 + $0x650] sm:$0xff]
        %v2596 = vld [vmem:[#allocation11 + $0x658] sm:$0xff]
        %v2597 = vld [vmem:[#allocation11 + $0x660] sm:$0xff]
        %v2598 = vld [vmem:[#allocation11 + $0x668] sm:$0xff]
        %v2599 = vld [vmem:[#allocation11 + $0x670] sm:$0xff]
        %v2600 = vld [vmem:[#allocation11 + $0x678] sm:$0xff]
        %v2601 = vld [vmem:[#allocation11 + $0x680] sm:$0xff]
        %v2602 = vld [vmem:[#allocation11 + $0x688] sm:$0xff]
        %v2603 = vld [vmem:[#allocation11 + $0x690] sm:$0xff]
        %v2604 = vld [vmem:[#allocation11 + $0x698] sm:$0xff]
        %v2605 = vld [vmem:[#allocation11 + $0x6a0] sm:$0xff]
        %v2606 = vld [vmem:[#allocation11 + $0x6a8] sm:$0xff]
        %v2607 = vld [vmem:[#allocation11 + $0x6b0] sm:$0xff]
        %v2608 = vld [vmem:[#allocation11 + $0x6b8] sm:$0xff]
        %v2609 = vld [vmem:[#allocation11 + $0x6c0] sm:$0xff]
        %v2610 = vld [vmem:[#allocation11 + $0x6c8] sm:$0xff]
        %v2611 = vld [vmem:[#allocation11 + $0x6d0] sm:$0xff]
        %v2612 = vld [vmem:[#allocation11 + $0x6d8] sm:$0xff]
        %v2613 = vld [vmem:[#allocation11 + $0x6e0] sm:$0xff]
        %v2614 = vld [vmem:[#allocation11 + $0x6e8] sm:$0xff]
        %v2615 = vld [vmem:[#allocation11 + $0x6f0] sm:$0xff]
        %v2616 = vld [vmem:[#allocation11 + $0x6f8] sm:$0xff]
        %v2617 = vld [vmem:[#allocation11 + $0x700] sm:$0xff]
        %v2618 = vld [vmem:[#allocation11 + $0x708] sm:$0xff]
        %v2619 = vld [vmem:[#allocation11 + $0x710] sm:$0xff]
        %v2620 = vld [vmem:[#allocation11 + $0x718] sm:$0xff]
        %v2621 = vld [vmem:[#allocation11 + $0x720] sm:$0xff]
        %v2622 = vld [vmem:[#allocation11 + $0x728] sm:$0xff]
        %v2623 = vld [vmem:[#allocation11 + $0x730] sm:$0xff]
        %v2624 = vld [vmem:[#allocation11 + $0x738] sm:$0xff]
        %v2625 = vld [vmem:[#allocation11 + $0x740] sm:$0xff]
        %v2626 = vld [vmem:[#allocation11 + $0x748] sm:$0xff]
        %v2627 = vld [vmem:[#allocation11 + $0x750] sm:$0xff]
        %v2628 = vld [vmem:[#allocation11 + $0x758] sm:$0xff]
        %v2629 = vld [vmem:[#allocation11 + $0x760] sm:$0xff]
        %v2630 = vld [vmem:[#allocation11 + $0x768] sm:$0xff]
        %v2631 = vld [vmem:[#allocation11 + $0x770] sm:$0xff]
        %v2632 = vld [vmem:[#allocation11 + $0x778] sm:$0xff]
        %v2633 = vld [vmem:[#allocation11 + $0x780] sm:$0xff]
        %v2634 = vld [vmem:[#allocation11 + $0x788] sm:$0xff]
        %v2635 = vld [vmem:[#allocation11 + $0x790] sm:$0xff]
        %v2636 = vld [vmem:[#allocation11 + $0x798] sm:$0xff]
        %v2637 = vld [vmem:[#allocation11 + $0x7a0] sm:$0xff]
        %v2638 = vld [vmem:[#allocation11 + $0x7a8] sm:$0xff]
        %v2639 = vld [vmem:[#allocation11 + $0x7b0] sm:$0xff]
        %v2640 = vld [vmem:[#allocation11 + $0x7b8] sm:$0xff]
        %v2641 = vld [vmem:[#allocation11 + $0x7c0] sm:$0xff]
        %v2642 = vld [vmem:[#allocation11 + $0x7c8] sm:$0xff]
        %v2643 = vld [vmem:[#allocation11 + $0x7d0] sm:$0xff]
        %v2644 = vld [vmem:[#allocation11 + $0x7d8] sm:$0xff]
        %v2645 = vld [vmem:[#allocation11 + $0x7e0] sm:$0xff]
        %v2646 = vld [vmem:[#allocation11 + $0x7e8] sm:$0xff]
        %v2647 = vld [vmem:[#allocation11 + $0x7f0] sm:$0xff]
        %v2648 = vld [vmem:[#allocation11 + $0x7f8] sm:$0xff]
        %v2649 = vld [vmem:[#allocation11 + $0x800] sm:$0xff]
        %v2650 = vld [vmem:[#allocation11 + $0x808] sm:$0xff]
        %v2651 = vld [vmem:[#allocation11 + $0x810] sm:$0xff]
        %v2652 = vld [vmem:[#allocation11 + $0x818] sm:$0xff]
        %v2653 = vld [vmem:[#allocation11 + $0x820] sm:$0xff]
        %v2654 = vld [vmem:[#allocation11 + $0x828] sm:$0xff]
        %v2655 = vld [vmem:[#allocation11 + $0x830] sm:$0xff]
        %v2656 = vld [vmem:[#allocation11 + $0x838] sm:$0xff]
        %v2657 = vld [vmem:[#allocation11 + $0x840] sm:$0xff]
        %v2658 = vld [vmem:[#allocation11 + $0x848] sm:$0xff]
        %v2659 = vld [vmem:[#allocation11 + $0x850] sm:$0xff]
        %v2660 = vld [vmem:[#allocation11 + $0x858] sm:$0xff]
        %v2661 = vld [vmem:[#allocation11 + $0x860] sm:$0xff]
        %v2662 = vld [vmem:[#allocation11 + $0x868] sm:$0xff]
        %v2663 = vld [vmem:[#allocation11 + $0x870] sm:$0xff]
        %v2664 = vld [vmem:[#allocation11 + $0x878] sm:$0xff]
        %v2665 = vld [vmem:[#allocation11 + $0x880] sm:$0xff]
        %v2666 = vld [vmem:[#allocation11 + $0x888] sm:$0xff]
        %v2667 = vld [vmem:[#allocation11 + $0x890] sm:$0xff]
        %v2668 = vld [vmem:[#allocation11 + $0x898] sm:$0xff]
        %v2669 = vld [vmem:[#allocation11 + $0x8a0] sm:$0xff]
        %v2670 = vld [vmem:[#allocation11 + $0x8a8] sm:$0xff]
        %v2671 = vld [vmem:[#allocation11 + $0x8b0] sm:$0xff]
        %v2672 = vld [vmem:[#allocation11 + $0x8b8] sm:$0xff]
        %v2673 = vld [vmem:[#allocation11 + $0x8c0] sm:$0xff]
        %v2674 = vld [vmem:[#allocation11 + $0x8c8] sm:$0xff]
        %v2675 = vld [vmem:[#allocation11 + $0x8d0] sm:$0xff]
        %v2676 = vld [vmem:[#allocation11 + $0x8d8] sm:$0xff]
        %v2677 = vld [vmem:[#allocation11 + $0x8e0] sm:$0xff]
        %v2678 = vld [vmem:[#allocation11 + $0x8e8] sm:$0xff]
        %v2679 = vld [vmem:[#allocation11 + $0x8f0] sm:$0xff]
        %v2680 = vld [vmem:[#allocation11 + $0x8f8] sm:$0xff]
        %v2681 = vld [vmem:[#allocation11 + $0x900] sm:$0xff]
        %v2682 = vld [vmem:[#allocation11 + $0x908] sm:$0xff]
        %v2683 = vld [vmem:[#allocation11 + $0x910] sm:$0xff]
        %v2684 = vld [vmem:[#allocation11 + $0x918] sm:$0xff]
        %v2685 = vld [vmem:[#allocation11 + $0x920] sm:$0xff]
        %v2686 = vld [vmem:[#allocation11 + $0x928] sm:$0xff]
        %v2687 = vld [vmem:[#allocation11 + $0x930] sm:$0xff]
        %v2688 = vld [vmem:[#allocation11 + $0x938] sm:$0xff]
        %v2689 = vld [vmem:[#allocation11 + $0x940] sm:$0xf]
        %v2690 = vld [vmem:[#allocation11 + $0x948] sm:$0xf]
        %v2691 = vld [vmem:[#allocation11 + $0x950] sm:$0xf]
        %v2692 = vld [vmem:[#allocation11 + $0x958] sm:$0xf]
        %v2693 = vld [vmem:[#allocation11 + $0x960] sm:$0xf]
        %v2694 = vld [vmem:[#allocation11 + $0x968] sm:$0xf]
        %v2695 = vld [vmem:[#allocation11 + $0x970] sm:$0xf]
        %v2696 = vld [vmem:[#allocation11 + $0x978] sm:$0xf]
        %v2697 = vld [vmem:[%s11] sm:$0xff]
        %v2699 = vlaneseq
        %v2700 = vshrl.u32 %v2699, 7
        %v2701 = vsub.s32 0, %v2700
        %v2702 = vrot.slane %v2697, %v2701
        %v2703 = vlaneseq
        %v2704 = vshrl.u32 %v2703, 7
        %v2705 = vsub.s32 1, %v2704
        %v2706 = vrot.slane %v2697, %v2705
        %v2707 = vlaneseq
        %v2708 = vshrl.u32 %v2707, 7
        %v2709 = vsub.s32 2, %v2708
        %v2710 = vrot.slane %v2697, %v2709
        %v2711 = vlaneseq
        %v2712 = vshrl.u32 %v2711, 7
        %v2713 = vsub.s32 3, %v2712
        %v2714 = vrot.slane %v2697, %v2713
        %v2715 = vlaneseq
        %v2716 = vshrl.u32 %v2715, 7
        %v2717 = vsub.s32 4, %v2716
        %v2718 = vrot.slane %v2697, %v2717
        %v2719 = vlaneseq
        %v2720 = vshrl.u32 %v2719, 7
        %v2721 = vsub.s32 5, %v2720
        %v2722 = vrot.slane %v2697, %v2721
        %v2723 = vlaneseq
        %v2724 = vshrl.u32 %v2723, 7
        %v2725 = vsub.s32 6, %v2724
        %v2726 = vrot.slane %v2697, %v2725
        %v2727 = vlaneseq
        %v2728 = vshrl.u32 %v2727, 7
        %v2729 = vsub.s32 7, %v2728
        %v2730 = vrot.slane %v2697, %v2729
        %v2740 = vsel %vm1624, %v2689, 0
        %v2743 = vsel %vm1624, %v2690, 0
        %v2746 = vsel %vm1624, %v2691, 0
        %v2749 = vsel %vm1624, %v2692, 0
        %v2752 = vsel %vm1624, %v2693, 0
        %v2755 = vsel %vm1624, %v2694, 0
        %v2758 = vsel %vm1624, %v2695, 0
        %v2761 = vsel %vm1624, %v2696, 0
        %2763 = vmatprep.subr.mxu0 %v2514
        %2764 = vmatpush1.msra.mxu0 %v2513
        %2765 = vmatprep.subr.mxu0 %v2506
        %2766 = vmatpush1.msra.mxu0 %v2505
        %2767 = vmatprep.subr.mxu0 %v2498
        %2768 = vmatpush1.msra.mxu0 %v2497
        %2769 = vmatprep.subr.mxu0 %v2490
        %2770 = vmatpush1.msra.mxu0 %v2489
        %2771 = vmatprep.subr.mxu0 %v2482
        %2772 = vmatpush1.msra.mxu0 %v2481
        %2773 = vmatprep.subr.mxu0 %v2474
        %2774 = vmatpush1.msra.mxu0 %v2473
        %2775 = vmatprep.subr.mxu0 %v2466
        %2776 = vmatpush1.msra.mxu0 %v2465
        %2777 = vmatprep.subr.mxu0 %v2458
        %2778 = vmatpush1.msra.mxu0 %v2457
        %2779 = vmatprep.subr.mxu0 %v2450
        %2780 = vmatpush1.msra.mxu0 %v2449
        %2781 = vmatprep.subr.mxu0 %v2442
        %2782 = vmatpush1.msra.mxu0 %v2441
        %2783 = vmatprep.subr.mxu0 %v2434
        %2784 = vmatpush1.msra.mxu0 %v2433
        %2785 = vmatprep.subr.mxu0 %v2426
        %2786 = vmatpush1.msra.mxu0 %v2425
        %2787 = vmatprep.subr.mxu0 %v2418
        %2788 = vmatpush1.msra.mxu0 %v2417
        %2789 = vmatprep.subr.mxu0 %v2410
        %2790 = vmatpush1.msra.mxu0 %v2409
        %2791 = vmatprep.subr.mxu0 %v2402
        %2792 = vmatpush1.msra.mxu0 %v2401
        %2793 = vmatprep.subr.mxu0 %v2394
        %2794 = vmatpush1.msra.mxu0 %v2393
        %2795 = vmatprep.subr.mxu0 %v2642
        %2796 = vmatpush2.msra.mxu0 %v2641
        %2797 = vmatprep.subr.mxu0 %v2634
        %2798 = vmatpush2.msra.mxu0 %v2633
        %2799 = vmatprep.subr.mxu0 %v2626
        %2800 = vmatpush2.msra.mxu0 %v2625
        %2801 = vmatprep.subr.mxu0 %v2618
        %2802 = vmatpush2.msra.mxu0 %v2617
        %2803 = vmatprep.subr.mxu0 %v2610
        %2804 = vmatpush2.msra.mxu0 %v2609
        %2805 = vmatprep.subr.mxu0 %v2602
        %2806 = vmatpush2.msra.mxu0 %v2601
        %2807 = vmatprep.subr.mxu0 %v2594
        %2808 = vmatpush2.msra.mxu0 %v2593
        %2809 = vmatprep.subr.mxu0 %v2586
        %2810 = vmatpush2.msra.mxu0 %v2585
        %2811 = vmatprep.subr.mxu0 %v2578
        %2812 = vmatpush2.msra.mxu0 %v2577
        %2813 = vmatprep.subr.mxu0 %v2570
        %2814 = vmatpush2.msra.mxu0 %v2569
        %2815 = vmatprep.subr.mxu0 %v2562
        %2816 = vmatpush2.msra.mxu0 %v2561
        %2817 = vmatprep.subr.mxu0 %v2554
        %2818 = vmatpush2.msra.mxu0 %v2553
        %2819 = vmatprep.subr.mxu0 %v2546
        %2820 = vmatpush2.msra.mxu0 %v2545
        %2821 = vmatprep.subr.mxu0 %v2538
        %2822 = vmatpush2.msra.mxu0 %v2537
        %2823 = vmatprep.subr.mxu0 %v2530
        %2824 = vmatpush2.msra.mxu0 %v2529
        %2825 = vmatprep.subr.mxu0 %v2522
        %2826 = vmatpush2.msra.mxu0 %v2521
        %2827 = vmatprep.mubr.f32.mxu0 %v1161
        %2828 = vmatmul.mubr.f32.gmra.mxu0 %v1159
        %v2829 = vpop.f32.mrf.mxu0
        %v2830 = vadd.f32 %v2702, %v2829
        %v2831 = vpop.f32.mrf.mxu0
        %v2832 = vadd.f32 %v2706, %v2831
        %2833 = vmatprep.mubr.f32.mxu0 %v1167
        %2834 = vmatmul.mubr.f32.gmra.mxu0 %v1165
        %v2835 = vpop.f32.mrf.mxu0
        %v2836 = vadd.f32 %v2702, %v2835
        %v2837 = vpop.f32.mrf.mxu0
        %v2838 = vadd.f32 %v2706, %v2837
        %2839 = vmatprep.mubr.f32.mxu0 %v1173
        %2840 = vmatmul.mubr.f32.gmra.mxu0 %v1171
        %v2841 = vpop.f32.mrf.mxu0
        %v2842 = vadd.f32 %v2702, %v2841
        %v2843 = vpop.f32.mrf.mxu0
        %v2844 = vadd.f32 %v2706, %v2843
        %2845 = vmatprep.mubr.f32.mxu0 %v1179
        %2846 = vmatmul.mubr.f32.gmra.mxu0 %v1177
        %v2847 = vpop.f32.mrf.mxu0
        %v2848 = vadd.f32 %v2702, %v2847
        %v2849 = vpop.f32.mrf.mxu0
        %v2850 = vadd.f32 %v2706, %v2849
        %2851 = vdwg.mxu0
        %2852 = vmatprep.subr.mxu0 0.0
        %2853 = vmatpush1.msra.mxu0 0.0
        %2854 = vmatprep.subr.mxu0 0.0
        %2855 = vmatpush1.msra.mxu0 0.0
        %2856 = vmatprep.subr.mxu0 0.0
        %2857 = vmatpush1.msra.mxu0 0.0
        %2858 = vmatprep.subr.mxu0 0.0
        %2859 = vmatpush1.msra.mxu0 0.0
        %2860 = vmatprep.subr.mxu0 0.0
        %2861 = vmatpush1.msra.mxu0 0.0
        %2862 = vmatprep.subr.mxu0 0.0
        %2863 = vmatpush1.msra.mxu0 0.0
        %2864 = vmatprep.subr.mxu0 0.0
        %2865 = vmatpush1.msra.mxu0 0.0
        %2866 = vmatprep.subr.mxu0 0.0
        %2867 = vmatpush1.msra.mxu0 0.0
        %2868 = vmatprep.subr.mxu0 0.0
        %2869 = vmatpush1.msra.mxu0 0.0
        %2870 = vmatprep.subr.mxu0 0.0
        %2871 = vmatpush1.msra.mxu0 0.0
        %2872 = vmatprep.subr.mxu0 %v2743
        %2873 = vmatpush1.msra.mxu0 %v2740
        %2874 = vmatprep.subr.mxu0 %v2682
        %2875 = vmatpush1.msra.mxu0 %v2681
        %2876 = vmatprep.subr.mxu0 %v2674
        %2877 = vmatpush1.msra.mxu0 %v2673
        %2878 = vmatprep.subr.mxu0 %v2666
        %2879 = vmatpush1.msra.mxu0 %v2665
        %2880 = vmatprep.subr.mxu0 %v2658
        %2881 = vmatpush1.msra.mxu0 %v2657
        %2882 = vmatprep.subr.mxu0 %v2650
        %2883 = vmatpush1.msra.mxu0 %v2649
        %2884 = vmatprep.subr.mxu0 0.0
        %2885 = vmatpush2.msra.mxu0 0.0
        %2886 = vmatprep.subr.mxu0 0.0
        %2887 = vmatpush2.msra.mxu0 0.0
        %2888 = vmatprep.subr.mxu0 0.0
        %2889 = vmatpush2.msra.mxu0 0.0
        %2890 = vmatprep.subr.mxu0 0.0
        %2891 = vmatpush2.msra.mxu0 0.0
        %2892 = vmatprep.subr.mxu0 0.0
        %2893 = vmatpush2.msra.mxu0 0.0
        %2894 = vmatprep.subr.mxu0 0.0
        %2895 = vmatpush2.msra.mxu0 0.0
        %2896 = vmatprep.subr.mxu0 0.0
        %2897 = vmatpush2.msra.mxu0 0.0
        %2898 = vmatprep.subr.mxu0 0.0
        %2899 = vmatpush2.msra.mxu0 0.0
        %2900 = vmatprep.subr.mxu0 0.0
        %2901 = vmatpush2.msra.mxu0 0.0
        %2902 = vmatprep.subr.mxu0 0.0
        %2903 = vmatpush2.msra.mxu0 0.0
        %2904 = vmatprep.subr.mxu0 0.0
        %2905 = vmatpush2.msra.mxu0 0.0
        %2906 = vmatprep.subr.mxu0 0.0
        %2907 = vmatpush2.msra.mxu0 0.0
        %2908 = vmatprep.subr.mxu0 0.0
        %2909 = vmatpush2.msra.mxu0 0.0
        %2910 = vmatprep.subr.mxu0 0.0
        %2911 = vmatpush2.msra.mxu0 0.0
        %2912 = vmatprep.subr.mxu0 0.0
        %2913 = vmatpush2.msra.mxu0 0.0
        %2914 = vmatprep.subr.mxu0 0.0
        %2915 = vmatpush2.msra.mxu0 0.0
        %2916 = vmatprep.mubr.f32.mxu0 0.0
        %2917 = vmatmul.mubr.f32.gmra.mxu0 %v1613
        %v2918 = vpop.f32.mrf.mxu0
        %v2919 = vadd.f32 %v2830, %v2918
        %v2920 = vpop.f32.mrf.mxu0
        %v2921 = vadd.f32 %v2832, %v2920
        %2922 = vmatprep.mubr.f32.mxu0 0.0
        %2923 = vmatmul.mubr.f32.gmra.mxu0 %v1616
        %v2924 = vpop.f32.mrf.mxu0
        %v2925 = vadd.f32 %v2836, %v2924
        %v2926 = vpop.f32.mrf.mxu0
        %v2927 = vadd.f32 %v2838, %v2926
        %2928 = vmatprep.mubr.f32.mxu0 0.0
        %2929 = vmatmul.mubr.f32.gmra.mxu0 %v1619
        %v2930 = vpop.f32.mrf.mxu0
        %v2931 = vadd.f32 %v2842, %v2930
        %v2932 = vpop.f32.mrf.mxu0
        %v2933 = vadd.f32 %v2844, %v2932
        %2934 = vmatprep.mubr.f32.mxu0 0.0
        %2935 = vmatmul.mubr.f32.gmra.mxu0 %v1622
        %v2936 = vpop.f32.mrf.mxu0
        %v2937 = vadd.f32 %v2848, %v2936
        %v2938 = vpop.f32.mrf.mxu0
        %v2939 = vadd.f32 %v2850, %v2938
        %2940 = vdwg.mxu0
        %2941 = vmatprep.subr.mxu0 %v2516
        %2942 = vmatpush1.msra.mxu0 %v2515
        %2943 = vmatprep.subr.mxu0 %v2508
        %2944 = vmatpush1.msra.mxu0 %v2507
        %2945 = vmatprep.subr.mxu0 %v2500
        %2946 = vmatpush1.msra.mxu0 %v2499
        %2947 = vmatprep.subr.mxu0 %v2492
        %2948 = vmatpush1.msra.mxu0 %v2491
        %2949 = vmatprep.subr.mxu0 %v2484
        %2950 = vmatpush1.msra.mxu0 %v2483
        %2951 = vmatprep.subr.mxu0 %v2476
        %2952 = vmatpush1.msra.mxu0 %v2475
        %2953 = vmatprep.subr.mxu0 %v2468
        %2954 = vmatpush1.msra.mxu0 %v2467
        %2955 = vmatprep.subr.mxu0 %v2460
        %2956 = vmatpush1.msra.mxu0 %v2459
        %2957 = vmatprep.subr.mxu0 %v2452
        %2958 = vmatpush1.msra.mxu0 %v2451
        %2959 = vmatprep.subr.mxu0 %v2444
        %2960 = vmatpush1.msra.mxu0 %v2443
        %2961 = vmatprep.subr.mxu0 %v2436
        %2962 = vmatpush1.msra.mxu0 %v2435
        %2963 = vmatprep.subr.mxu0 %v2428
        %2964 = vmatpush1.msra.mxu0 %v2427
        %2965 = vmatprep.subr.mxu0 %v2420
        %2966 = vmatpush1.msra.mxu0 %v2419
        %2967 = vmatprep.subr.mxu0 %v2412
        %2968 = vmatpush1.msra.mxu0 %v2411
        %2969 = vmatprep.subr.mxu0 %v2404
        %2970 = vmatpush1.msra.mxu0 %v2403
        %2971 = vmatprep.subr.mxu0 %v2396
        %2972 = vmatpush1.msra.mxu0 %v2395
        %2973 = vmatprep.subr.mxu0 %v2644
        %2974 = vmatpush2.msra.mxu0 %v2643
        %2975 = vmatprep.subr.mxu0 %v2636
        %2976 = vmatpush2.msra.mxu0 %v2635
        %2977 = vmatprep.subr.mxu0 %v2628
        %2978 = vmatpush2.msra.mxu0 %v2627
        %2979 = vmatprep.subr.mxu0 %v2620
        %2980 = vmatpush2.msra.mxu0 %v2619
        %2981 = vmatprep.subr.mxu0 %v2612
        %2982 = vmatpush2.msra.mxu0 %v2611
        %2983 = vmatprep.subr.mxu0 %v2604
        %2984 = vmatpush2.msra.mxu0 %v2603
        %2985 = vmatprep.subr.mxu0 %v2596
        %2986 = vmatpush2.msra.mxu0 %v2595
        %2987 = vmatprep.subr.mxu0 %v2588
        %2988 = vmatpush2.msra.mxu0 %v2587
        %2989 = vmatprep.subr.mxu0 %v2580
        %2990 = vmatpush2.msra.mxu0 %v2579
        %2991 = vmatprep.subr.mxu0 %v2572
        %2992 = vmatpush2.msra.mxu0 %v2571
        %2993 = vmatprep.subr.mxu0 %v2564
        %2994 = vmatpush2.msra.mxu0 %v2563
        %2995 = vmatprep.subr.mxu0 %v2556
        %2996 = vmatpush2.msra.mxu0 %v2555
        %2997 = vmatprep.subr.mxu0 %v2548
        %2998 = vmatpush2.msra.mxu0 %v2547
        %2999 = vmatprep.subr.mxu0 %v2540
        %3000 = vmatpush2.msra.mxu0 %v2539
        %3001 = vmatprep.subr.mxu0 %v2532
        %3002 = vmatpush2.msra.mxu0 %v2531
        %3003 = vmatprep.subr.mxu0 %v2524
        %3004 = vmatpush2.msra.mxu0 %v2523
        %3005 = vmatprep.mubr.f32.mxu0 %v1161
        %3006 = vmatmul.mubr.f32.gmra.mxu0 %v1159
        %v3007 = vpop.f32.mrf.mxu0
        %v3008 = vadd.f32 %v2710, %v3007
        %v3009 = vpop.f32.mrf.mxu0
        %v3010 = vadd.f32 %v2714, %v3009
        %3011 = vmatprep.mubr.f32.mxu0 %v1167
        %3012 = vmatmul.mubr.f32.gmra.mxu0 %v1165
        %v3013 = vpop.f32.mrf.mxu0
        %v3014 = vadd.f32 %v2710, %v3013
        %v3015 = vpop.f32.mrf.mxu0
        %v3016 = vadd.f32 %v2714, %v3015
        %3017 = vmatprep.mubr.f32.mxu0 %v1173
        %3018 = vmatmul.mubr.f32.gmra.mxu0 %v1171
        %v3019 = vpop.f32.mrf.mxu0
        %v3020 = vadd.f32 %v2710, %v3019
        %v3021 = vpop.f32.mrf.mxu0
        %v3022 = vadd.f32 %v2714, %v3021
        %3023 = vmatprep.mubr.f32.mxu0 %v1179
        %3024 = vmatmul.mubr.f32.gmra.mxu0 %v1177
        %v3025 = vpop.f32.mrf.mxu0
        %v3026 = vadd.f32 %v2710, %v3025
        %v3027 = vpop.f32.mrf.mxu0
        %v3028 = vadd.f32 %v2714, %v3027
        %3029 = vdwg.mxu0
        %3030 = vmatprep.subr.mxu0 0.0
        %3031 = vmatpush1.msra.mxu0 0.0
        %3032 = vmatprep.subr.mxu0 0.0
        %3033 = vmatpush1.msra.mxu0 0.0
        %3034 = vmatprep.subr.mxu0 0.0
        %3035 = vmatpush1.msra.mxu0 0.0
        %3036 = vmatprep.subr.mxu0 0.0
        %3037 = vmatpush1.msra.mxu0 0.0
        %3038 = vmatprep.subr.mxu0 0.0
        %3039 = vmatpush1.msra.mxu0 0.0
        %3040 = vmatprep.subr.mxu0 0.0
        %3041 = vmatpush1.msra.mxu0 0.0
        %3042 = vmatprep.subr.mxu0 0.0
        %3043 = vmatpush1.msra.mxu0 0.0
        %3044 = vmatprep.subr.mxu0 0.0
        %3045 = vmatpush1.msra.mxu0 0.0
        %3046 = vmatprep.subr.mxu0 0.0
        %3047 = vmatpush1.msra.mxu0 0.0
        %3048 = vmatprep.subr.mxu0 0.0
        %3049 = vmatpush1.msra.mxu0 0.0
        %3050 = vmatprep.subr.mxu0 %v2749
        %3051 = vmatpush1.msra.mxu0 %v2746
        %3052 = vmatprep.subr.mxu0 %v2684
        %3053 = vmatpush1.msra.mxu0 %v2683
        %3054 = vmatprep.subr.mxu0 %v2676
        %3055 = vmatpush1.msra.mxu0 %v2675
        %3056 = vmatprep.subr.mxu0 %v2668
        %3057 = vmatpush1.msra.mxu0 %v2667
        %3058 = vmatprep.subr.mxu0 %v2660
        %3059 = vmatpush1.msra.mxu0 %v2659
        %3060 = vmatprep.subr.mxu0 %v2652
        %3061 = vmatpush1.msra.mxu0 %v2651
        %3062 = vmatprep.subr.mxu0 0.0
        %3063 = vmatpush2.msra.mxu0 0.0
        %3064 = vmatprep.subr.mxu0 0.0
        %3065 = vmatpush2.msra.mxu0 0.0
        %3066 = vmatprep.subr.mxu0 0.0
        %3067 = vmatpush2.msra.mxu0 0.0
        %3068 = vmatprep.subr.mxu0 0.0
        %3069 = vmatpush2.msra.mxu0 0.0
        %3070 = vmatprep.subr.mxu0 0.0
        %3071 = vmatpush2.msra.mxu0 0.0
        %3072 = vmatprep.subr.mxu0 0.0
        %3073 = vmatpush2.msra.mxu0 0.0
        %3074 = vmatprep.subr.mxu0 0.0
        %3075 = vmatpush2.msra.mxu0 0.0
        %3076 = vmatprep.subr.mxu0 0.0
        %3077 = vmatpush2.msra.mxu0 0.0
        %3078 = vmatprep.subr.mxu0 0.0
        %3079 = vmatpush2.msra.mxu0 0.0
        %3080 = vmatprep.subr.mxu0 0.0
        %3081 = vmatpush2.msra.mxu0 0.0
        %3082 = vmatprep.subr.mxu0 0.0
        %3083 = vmatpush2.msra.mxu0 0.0
        %3084 = vmatprep.subr.mxu0 0.0
        %3085 = vmatpush2.msra.mxu0 0.0
        %3086 = vmatprep.subr.mxu0 0.0
        %3087 = vmatpush2.msra.mxu0 0.0
        %3088 = vmatprep.subr.mxu0 0.0
        %3089 = vmatpush2.msra.mxu0 0.0
        %3090 = vmatprep.subr.mxu0 0.0
        %3091 = vmatpush2.msra.mxu0 0.0
        %3092 = vmatprep.subr.mxu0 0.0
        %3093 = vmatpush2.msra.mxu0 0.0
        %3094 = vmatprep.mubr.f32.mxu0 0.0
        %3095 = vmatmul.mubr.f32.gmra.mxu0 %v1613
        %v3096 = vpop.f32.mrf.mxu0
        %v3097 = vadd.f32 %v3008, %v3096
        %v3098 = vpop.f32.mrf.mxu0
        %v3099 = vadd.f32 %v3010, %v3098
        %3100 = vmatprep.mubr.f32.mxu0 0.0
        %3101 = vmatmul.mubr.f32.gmra.mxu0 %v1616
        %v3102 = vpop.f32.mrf.mxu0
        %v3103 = vadd.f32 %v3014, %v3102
        %v3104 = vpop.f32.mrf.mxu0
        %v3105 = vadd.f32 %v3016, %v3104
        %3106 = vmatprep.mubr.f32.mxu0 0.0
        %3107 = vmatmul.mubr.f32.gmra.mxu0 %v1619
        %v3108 = vpop.f32.mrf.mxu0
        %v3109 = vadd.f32 %v3020, %v3108
        %v3110 = vpop.f32.mrf.mxu0
        %v3111 = vadd.f32 %v3022, %v3110
        %3112 = vmatprep.mubr.f32.mxu0 0.0
        %3113 = vmatmul.mubr.f32.gmra.mxu0 %v1622
        %v3114 = vpop.f32.mrf.mxu0
        %v3115 = vadd.f32 %v3026, %v3114
        %v3116 = vpop.f32.mrf.mxu0
        %v3117 = vadd.f32 %v3028, %v3116
        %3118 = vdwg.mxu0
        %3119 = vmatprep.subr.mxu0 %v2518
        %3120 = vmatpush1.msra.mxu0 %v2517
        %3121 = vmatprep.subr.mxu0 %v2510
        %3122 = vmatpush1.msra.mxu0 %v2509
        %3123 = vmatprep.subr.mxu0 %v2502
        %3124 = vmatpush1.msra.mxu0 %v2501
        %3125 = vmatprep.subr.mxu0 %v2494
        %3126 = vmatpush1.msra.mxu0 %v2493
        %3127 = vmatprep.subr.mxu0 %v2486
        %3128 = vmatpush1.msra.mxu0 %v2485
        %3129 = vmatprep.subr.mxu0 %v2478
        %3130 = vmatpush1.msra.mxu0 %v2477
        %3131 = vmatprep.subr.mxu0 %v2470
        %3132 = vmatpush1.msra.mxu0 %v2469
        %3133 = vmatprep.subr.mxu0 %v2462
        %3134 = vmatpush1.msra.mxu0 %v2461
        %3135 = vmatprep.subr.mxu0 %v2454
        %3136 = vmatpush1.msra.mxu0 %v2453
        %3137 = vmatprep.subr.mxu0 %v2446
        %3138 = vmatpush1.msra.mxu0 %v2445
        %3139 = vmatprep.subr.mxu0 %v2438
        %3140 = vmatpush1.msra.mxu0 %v2437
        %3141 = vmatprep.subr.mxu0 %v2430
        %3142 = vmatpush1.msra.mxu0 %v2429
        %3143 = vmatprep.subr.mxu0 %v2422
        %3144 = vmatpush1.msra.mxu0 %v2421
        %3145 = vmatprep.subr.mxu0 %v2414
        %3146 = vmatpush1.msra.mxu0 %v2413
        %3147 = vmatprep.subr.mxu0 %v2406
        %3148 = vmatpush1.msra.mxu0 %v2405
        %3149 = vmatprep.subr.mxu0 %v2398
        %3150 = vmatpush1.msra.mxu0 %v2397
        %3151 = vmatprep.subr.mxu0 %v2646
        %3152 = vmatpush2.msra.mxu0 %v2645
        %3153 = vmatprep.subr.mxu0 %v2638
        %3154 = vmatpush2.msra.mxu0 %v2637
        %3155 = vmatprep.subr.mxu0 %v2630
        %3156 = vmatpush2.msra.mxu0 %v2629
        %3157 = vmatprep.subr.mxu0 %v2622
        %3158 = vmatpush2.msra.mxu0 %v2621
        %3159 = vmatprep.subr.mxu0 %v2614
        %3160 = vmatpush2.msra.mxu0 %v2613
        %3161 = vmatprep.subr.mxu0 %v2606
        %3162 = vmatpush2.msra.mxu0 %v2605
        %3163 = vmatprep.subr.mxu0 %v2598
        %3164 = vmatpush2.msra.mxu0 %v2597
        %3165 = vmatprep.subr.mxu0 %v2590
        %3166 = vmatpush2.msra.mxu0 %v2589
        %3167 = vmatprep.subr.mxu0 %v2582
        %3168 = vmatpush2.msra.mxu0 %v2581
        %3169 = vmatprep.subr.mxu0 %v2574
        %3170 = vmatpush2.msra.mxu0 %v2573
        %3171 = vmatprep.subr.mxu0 %v2566
        %3172 = vmatpush2.msra.mxu0 %v2565
        %3173 = vmatprep.subr.mxu0 %v2558
        %3174 = vmatpush2.msra.mxu0 %v2557
        %3175 = vmatprep.subr.mxu0 %v2550
        %3176 = vmatpush2.msra.mxu0 %v2549
        %3177 = vmatprep.subr.mxu0 %v2542
        %3178 = vmatpush2.msra.mxu0 %v2541
        %3179 = vmatprep.subr.mxu0 %v2534
        %3180 = vmatpush2.msra.mxu0 %v2533
        %3181 = vmatprep.subr.mxu0 %v2526
        %3182 = vmatpush2.msra.mxu0 %v2525
        %3183 = vmatprep.mubr.f32.mxu0 %v1161
        %3184 = vmatmul.mubr.f32.gmra.mxu0 %v1159
        %v3185 = vpop.f32.mrf.mxu0
        %v3186 = vadd.f32 %v2718, %v3185
        %v3187 = vpop.f32.mrf.mxu0
        %v3188 = vadd.f32 %v2722, %v3187
        %3189 = vmatprep.mubr.f32.mxu0 %v1167
        %3190 = vmatmul.mubr.f32.gmra.mxu0 %v1165
        %v3191 = vpop.f32.mrf.mxu0
        %v3192 = vadd.f32 %v2718, %v3191
        %v3193 = vpop.f32.mrf.mxu0
        %v3194 = vadd.f32 %v2722, %v3193
        %3195 = vmatprep.mubr.f32.mxu0 %v1173
        %3196 = vmatmul.mubr.f32.gmra.mxu0 %v1171
        %v3197 = vpop.f32.mrf.mxu0
        %v3198 = vadd.f32 %v2718, %v3197
        %v3199 = vpop.f32.mrf.mxu0
        %v3200 = vadd.f32 %v2722, %v3199
        %3201 = vmatprep.mubr.f32.mxu0 %v1179
        %3202 = vmatmul.mubr.f32.gmra.mxu0 %v1177
        %v3203 = vpop.f32.mrf.mxu0
        %v3204 = vadd.f32 %v2718, %v3203
        %v3205 = vpop.f32.mrf.mxu0
        %v3206 = vadd.f32 %v2722, %v3205
        %3207 = vdwg.mxu0
        %3208 = vmatprep.subr.mxu0 0.0
        %3209 = vmatpush1.msra.mxu0 0.0
        %3210 = vmatprep.subr.mxu0 0.0
        %3211 = vmatpush1.msra.mxu0 0.0
        %3212 = vmatprep.subr.mxu0 0.0
        %3213 = vmatpush1.msra.mxu0 0.0
        %3214 = vmatprep.subr.mxu0 0.0
        %3215 = vmatpush1.msra.mxu0 0.0
        %3216 = vmatprep.subr.mxu0 0.0
        %3217 = vmatpush1.msra.mxu0 0.0
        %3218 = vmatprep.subr.mxu0 0.0
        %3219 = vmatpush1.msra.mxu0 0.0
        %3220 = vmatprep.subr.mxu0 0.0
        %3221 = vmatpush1.msra.mxu0 0.0
        %3222 = vmatprep.subr.mxu0 0.0
        %3223 = vmatpush1.msra.mxu0 0.0
        %3224 = vmatprep.subr.mxu0 0.0
        %3225 = vmatpush1.msra.mxu0 0.0
        %3226 = vmatprep.subr.mxu0 0.0
        %3227 = vmatpush1.msra.mxu0 0.0
        %3228 = vmatprep.subr.mxu0 %v2755
        %3229 = vmatpush1.msra.mxu0 %v2752
        %3230 = vmatprep.subr.mxu0 %v2686
        %3231 = vmatpush1.msra.mxu0 %v2685
        %3232 = vmatprep.subr.mxu0 %v2678
        %3233 = vmatpush1.msra.mxu0 %v2677
        %3234 = vmatprep.subr.mxu0 %v2670
        %3235 = vmatpush1.msra.mxu0 %v2669
        %3236 = vmatprep.subr.mxu0 %v2662
        %3237 = vmatpush1.msra.mxu0 %v2661
        %3238 = vmatprep.subr.mxu0 %v2654
        %3239 = vmatpush1.msra.mxu0 %v2653
        %3240 = vmatprep.subr.mxu0 0.0
        %3241 = vmatpush2.msra.mxu0 0.0
        %3242 = vmatprep.subr.mxu0 0.0
        %3243 = vmatpush2.msra.mxu0 0.0
        %3244 = vmatprep.subr.mxu0 0.0
        %3245 = vmatpush2.msra.mxu0 0.0
        %3246 = vmatprep.subr.mxu0 0.0
        %3247 = vmatpush2.msra.mxu0 0.0
        %3248 = vmatprep.subr.mxu0 0.0
        %3249 = vmatpush2.msra.mxu0 0.0
        %3250 = vmatprep.subr.mxu0 0.0
        %3251 = vmatpush2.msra.mxu0 0.0
        %3252 = vmatprep.subr.mxu0 0.0
        %3253 = vmatpush2.msra.mxu0 0.0
        %3254 = vmatprep.subr.mxu0 0.0
        %3255 = vmatpush2.msra.mxu0 0.0
        %3256 = vmatprep.subr.mxu0 0.0
        %3257 = vmatpush2.msra.mxu0 0.0
        %3258 = vmatprep.subr.mxu0 0.0
        %3259 = vmatpush2.msra.mxu0 0.0
        %3260 = vmatprep.subr.mxu0 0.0
        %3261 = vmatpush2.msra.mxu0 0.0
        %3262 = vmatprep.subr.mxu0 0.0
        %3263 = vmatpush2.msra.mxu0 0.0
        %3264 = vmatprep.subr.mxu0 0.0
        %3265 = vmatpush2.msra.mxu0 0.0
        %3266 = vmatprep.subr.mxu0 0.0
        %3267 = vmatpush2.msra.mxu0 0.0
        %3268 = vmatprep.subr.mxu0 0.0
        %3269 = vmatpush2.msra.mxu0 0.0
        %3270 = vmatprep.subr.mxu0 0.0
        %3271 = vmatpush2.msra.mxu0 0.0
        %3272 = vmatprep.mubr.f32.mxu0 0.0
        %3273 = vmatmul.mubr.f32.gmra.mxu0 %v1613
        %v3274 = vpop.f32.mrf.mxu0
        %v3275 = vadd.f32 %v3186, %v3274
        %v3276 = vpop.f32.mrf.mxu0
        %v3277 = vadd.f32 %v3188, %v3276
        %3278 = vmatprep.mubr.f32.mxu0 0.0
        %3279 = vmatmul.mubr.f32.gmra.mxu0 %v1616
        %v3280 = vpop.f32.mrf.mxu0
        %v3281 = vadd.f32 %v3192, %v3280
        %v3282 = vpop.f32.mrf.mxu0
        %v3283 = vadd.f32 %v3194, %v3282
        %3284 = vmatprep.mubr.f32.mxu0 0.0
        %3285 = vmatmul.mubr.f32.gmra.mxu0 %v1619
        %v3286 = vpop.f32.mrf.mxu0
        %v3287 = vadd.f32 %v3198, %v3286
        %v3288 = vpop.f32.mrf.mxu0
        %v3289 = vadd.f32 %v3200, %v3288
        %3290 = vmatprep.mubr.f32.mxu0 0.0
        %3291 = vmatmul.mubr.f32.gmra.mxu0 %v1622
        %v3292 = vpop.f32.mrf.mxu0
        %v3293 = vadd.f32 %v3204, %v3292
        %v3294 = vpop.f32.mrf.mxu0
        %v3295 = vadd.f32 %v3206, %v3294
        %3296 = vdwg.mxu0
        %3297 = vmatprep.subr.mxu0 %v2520
        %3298 = vmatpush1.msra.mxu0 %v2519
        %3299 = vmatprep.subr.mxu0 %v2512
        %3300 = vmatpush1.msra.mxu0 %v2511
        %3301 = vmatprep.subr.mxu0 %v2504
        %3302 = vmatpush1.msra.mxu0 %v2503
        %3303 = vmatprep.subr.mxu0 %v2496
        %3304 = vmatpush1.msra.mxu0 %v2495
        %3305 = vmatprep.subr.mxu0 %v2488
        %3306 = vmatpush1.msra.mxu0 %v2487
        %3307 = vmatprep.subr.mxu0 %v2480
        %3308 = vmatpush1.msra.mxu0 %v2479
        %3309 = vmatprep.subr.mxu0 %v2472
        %3310 = vmatpush1.msra.mxu0 %v2471
        %3311 = vmatprep.subr.mxu0 %v2464
        %3312 = vmatpush1.msra.mxu0 %v2463
        %3313 = vmatprep.subr.mxu0 %v2456
        %3314 = vmatpush1.msra.mxu0 %v2455
        %3315 = vmatprep.subr.mxu0 %v2448
        %3316 = vmatpush1.msra.mxu0 %v2447
        %3317 = vmatprep.subr.mxu0 %v2440
        %3318 = vmatpush1.msra.mxu0 %v2439
        %3319 = vmatprep.subr.mxu0 %v2432
        %3320 = vmatpush1.msra.mxu0 %v2431
        %3321 = vmatprep.subr.mxu0 %v2424
        %3322 = vmatpush1.msra.mxu0 %v2423
        %3323 = vmatprep.subr.mxu0 %v2416
        %3324 = vmatpush1.msra.mxu0 %v2415
        %3325 = vmatprep.subr.mxu0 %v2408
        %3326 = vmatpush1.msra.mxu0 %v2407
        %3327 = vmatprep.subr.mxu0 %v2400
        %3328 = vmatpush1.msra.mxu0 %v2399
        %3329 = vmatprep.subr.mxu0 %v2648
        %3330 = vmatpush2.msra.mxu0 %v2647
        %3331 = vmatprep.subr.mxu0 %v2640
        %3332 = vmatpush2.msra.mxu0 %v2639
        %3333 = vmatprep.subr.mxu0 %v2632
        %3334 = vmatpush2.msra.mxu0 %v2631
        %3335 = vmatprep.subr.mxu0 %v2624
        %3336 = vmatpush2.msra.mxu0 %v2623
        %3337 = vmatprep.subr.mxu0 %v2616
        %3338 = vmatpush2.msra.mxu0 %v2615
        %3339 = vmatprep.subr.mxu0 %v2608
        %3340 = vmatpush2.msra.mxu0 %v2607
        %3341 = vmatprep.subr.mxu0 %v2600
        %3342 = vmatpush2.msra.mxu0 %v2599
        %3343 = vmatprep.subr.mxu0 %v2592
        %3344 = vmatpush2.msra.mxu0 %v2591
        %3345 = vmatprep.subr.mxu0 %v2584
        %3346 = vmatpush2.msra.mxu0 %v2583
        %3347 = vmatprep.subr.mxu0 %v2576
        %3348 = vmatpush2.msra.mxu0 %v2575
        %3349 = vmatprep.subr.mxu0 %v2568
        %3350 = vmatpush2.msra.mxu0 %v2567
        %3351 = vmatprep.subr.mxu0 %v2560
        %3352 = vmatpush2.msra.mxu0 %v2559
        %3353 = vmatprep.subr.mxu0 %v2552
        %3354 = vmatpush2.msra.mxu0 %v2551
        %3355 = vmatprep.subr.mxu0 %v2544
        %3356 = vmatpush2.msra.mxu0 %v2543
        %3357 = vmatprep.subr.mxu0 %v2536
        %3358 = vmatpush2.msra.mxu0 %v2535
        %3359 = vmatprep.subr.mxu0 %v2528
        %3360 = vmatpush2.msra.mxu0 %v2527
        %3361 = vmatprep.mubr.f32.mxu0 %v1161
        %3362 = vmatmul.mubr.f32.gmra.mxu0 %v1159
        %v3363 = vpop.f32.mrf.mxu0
        %v3364 = vadd.f32 %v2726, %v3363
        %v3365 = vpop.f32.mrf.mxu0
        %v3366 = vadd.f32 %v2730, %v3365
        %3367 = vmatprep.mubr.f32.mxu0 %v1167
        %3368 = vmatmul.mubr.f32.gmra.mxu0 %v1165
        %v3369 = vpop.f32.mrf.mxu0
        %v3370 = vadd.f32 %v2726, %v3369
        %v3371 = vpop.f32.mrf.mxu0
        %v3372 = vadd.f32 %v2730, %v3371
        %3373 = vmatprep.mubr.f32.mxu0 %v1173
        %3374 = vmatmul.mubr.f32.gmra.mxu0 %v1171
        %v3375 = vpop.f32.mrf.mxu0
        %v3376 = vadd.f32 %v2726, %v3375
        %v3377 = vpop.f32.mrf.mxu0
        %v3378 = vadd.f32 %v2730, %v3377
        %3379 = vmatprep.mubr.f32.mxu0 %v1179
        %3380 = vmatmul.mubr.f32.gmra.mxu0 %v1177
        %v3381 = vpop.f32.mrf.mxu0
        %v3382 = vadd.f32 %v2726, %v3381
        %v3383 = vpop.f32.mrf.mxu0
        %v3384 = vadd.f32 %v2730, %v3383
        %3385 = vdwg.mxu0
        %3386 = vmatprep.subr.mxu0 0.0
        %3387 = vmatpush1.msra.mxu0 0.0
        %3388 = vmatprep.subr.mxu0 0.0
        %3389 = vmatpush1.msra.mxu0 0.0
        %3390 = vmatprep.subr.mxu0 0.0
        %3391 = vmatpush1.msra.mxu0 0.0
        %3392 = vmatprep.subr.mxu0 0.0
        %3393 = vmatpush1.msra.mxu0 0.0
        %3394 = vmatprep.subr.mxu0 0.0
        %3395 = vmatpush1.msra.mxu0 0.0
        %3396 = vmatprep.subr.mxu0 0.0
        %3397 = vmatpush1.msra.mxu0 0.0
        %3398 = vmatprep.subr.mxu0 0.0
        %3399 = vmatpush1.msra.mxu0 0.0
        %3400 = vmatprep.subr.mxu0 0.0
        %3401 = vmatpush1.msra.mxu0 0.0
        %3402 = vmatprep.subr.mxu0 0.0
        %3403 = vmatpush1.msra.mxu0 0.0
        %3404 = vmatprep.subr.mxu0 0.0
        %3405 = vmatpush1.msra.mxu0 0.0
        %3406 = vmatprep.subr.mxu0 %v2761
        %3407 = vmatpush1.msra.mxu0 %v2758
        %3408 = vmatprep.subr.mxu0 %v2688
        %3409 = vmatpush1.msra.mxu0 %v2687
        %3410 = vmatprep.subr.mxu0 %v2680
        %3411 = vmatpush1.msra.mxu0 %v2679
        %3412 = vmatprep.subr.mxu0 %v2672
        %3413 = vmatpush1.msra.mxu0 %v2671
        %3414 = vmatprep.subr.mxu0 %v2664
        %3415 = vmatpush1.msra.mxu0 %v2663
        %3416 = vmatprep.subr.mxu0 %v2656
        %3417 = vmatpush1.msra.mxu0 %v2655
        %3418 = vmatprep.subr.mxu0 0.0
        %3419 = vmatpush2.msra.mxu0 0.0
        %3420 = vmatprep.subr.mxu0 0.0
        %3421 = vmatpush2.msra.mxu0 0.0
        %3422 = vmatprep.subr.mxu0 0.0
        %3423 = vmatpush2.msra.mxu0 0.0
        %3424 = vmatprep.subr.mxu0 0.0
        %3425 = vmatpush2.msra.mxu0 0.0
        %3426 = vmatprep.subr.mxu0 0.0
        %3427 = vmatpush2.msra.mxu0 0.0
        %3428 = vmatprep.subr.mxu0 0.0
        %3429 = vmatpush2.msra.mxu0 0.0
        %3430 = vmatprep.subr.mxu0 0.0
        %3431 = vmatpush2.msra.mxu0 0.0
        %3432 = vmatprep.subr.mxu0 0.0
        %3433 = vmatpush2.msra.mxu0 0.0
        %3434 = vmatprep.subr.mxu0 0.0
        %3435 = vmatpush2.msra.mxu0 0.0
        %3436 = vmatprep.subr.mxu0 0.0
        %3437 = vmatpush2.msra.mxu0 0.0
        %3438 = vmatprep.subr.mxu0 0.0
        %3439 = vmatpush2.msra.mxu0 0.0
        %3440 = vmatprep.subr.mxu0 0.0
        %3441 = vmatpush2.msra.mxu0 0.0
        %3442 = vmatprep.subr.mxu0 0.0
        %3443 = vmatpush2.msra.mxu0 0.0
        %3444 = vmatprep.subr.mxu0 0.0
        %3445 = vmatpush2.msra.mxu0 0.0
        %3446 = vmatprep.subr.mxu0 0.0
        %3447 = vmatpush2.msra.mxu0 0.0
        %3448 = vmatprep.subr.mxu0 0.0
        %3449 = vmatpush2.msra.mxu0 0.0
        %3450 = vmatprep.mubr.f32.mxu0 0.0
        %3451 = vmatmul.mubr.f32.gmra.mxu0 %v1613
        %v3452 = vpop.f32.mrf.mxu0
        %v3453 = vadd.f32 %v3364, %v3452
        %v3454 = vpop.f32.mrf.mxu0
        %v3455 = vadd.f32 %v3366, %v3454
        %3456 = vmatprep.mubr.f32.mxu0 0.0
        %3457 = vmatmul.mubr.f32.gmra.mxu0 %v1616
        %v3458 = vpop.f32.mrf.mxu0
        %v3459 = vadd.f32 %v3370, %v3458
        %v3460 = vpop.f32.mrf.mxu0
        %v3461 = vadd.f32 %v3372, %v3460
        %3462 = vmatprep.mubr.f32.mxu0 0.0
        %3463 = vmatmul.mubr.f32.gmra.mxu0 %v1619
        %v3464 = vpop.f32.mrf.mxu0
        %v3465 = vadd.f32 %v3376, %v3464
        %v3466 = vpop.f32.mrf.mxu0
        %v3467 = vadd.f32 %v3378, %v3466
        %3468 = vmatprep.mubr.f32.mxu0 0.0
        %3469 = vmatmul.mubr.f32.gmra.mxu0 %v1622
        %v3470 = vpop.f32.mrf.mxu0
        %v3471 = vadd.f32 %v3382, %v3470
        %v3472 = vpop.f32.mrf.mxu0
        %v3473 = vadd.f32 %v3384, %v3472
        %3474 = vdwg.mxu0
        %3475 = vst [vmem:[#allocation3] sm:$0xff] %v2919
        %3476 = vst [vmem:[#allocation3 + $0x8] sm:$0xff] %v2921
        %3477 = vst [vmem:[#allocation3 + $0x10] sm:$0xff] %v3097
        %3478 = vst [vmem:[#allocation3 + $0x18] sm:$0xff] %v3099
        %3479 = vst [vmem:[#allocation3 + $0x20] sm:$0xff] %v3275
        %3480 = vst [vmem:[#allocation3 + $0x28] sm:$0xff] %v3277
        %3481 = vst [vmem:[#allocation3 + $0x30] sm:$0xff] %v3453
        %3482 = vst [vmem:[#allocation3 + $0x38] sm:$0xff] %v3455
        %3483 = vst [vmem:[#allocation3 + $0x40] sm:$0xff] %v2925
        %3484 = vst [vmem:[#allocation3 + $0x48] sm:$0xff] %v2927
        %3485 = vst [vmem:[#allocation3 + $0x50] sm:$0xff] %v3103
        %3486 = vst [vmem:[#allocation3 + $0x58] sm:$0xff] %v3105
        %3487 = vst [vmem:[#allocation3 + $0x60] sm:$0xff] %v3281
        %3488 = vst [vmem:[#allocation3 + $0x68] sm:$0xff] %v3283
        %3489 = vst [vmem:[#allocation3 + $0x70] sm:$0xff] %v3459
        %3490 = vst [vmem:[#allocation3 + $0x78] sm:$0xff] %v3461
        %3491 = vst [vmem:[#allocation3 + $0x80] sm:$0xff] %v2931
        %3492 = vst [vmem:[#allocation3 + $0x88] sm:$0xff] %v2933
        %3493 = vst [vmem:[#allocation3 + $0x90] sm:$0xff] %v3109
        %3494 = vst [vmem:[#allocation3 + $0x98] sm:$0xff] %v3111
        %3495 = vst [vmem:[#allocation3 + $0xa0] sm:$0xff] %v3287
        %3496 = vst [vmem:[#allocation3 + $0xa8] sm:$0xff] %v3289
        %3497 = vst [vmem:[#allocation3 + $0xb0] sm:$0xff] %v3465
        %3498 = vst [vmem:[#allocation3 + $0xb8] sm:$0xff] %v3467
        %3499 = vst [vmem:[#allocation3 + $0xc0] sm:$0xff] %v2937
        %3500 = vst [vmem:[#allocation3 + $0xc8] sm:$0xff] %v2939
        %3501 = vst [vmem:[#allocation3 + $0xd0] sm:$0xff] %v3115
        %3502 = vst [vmem:[#allocation3 + $0xd8] sm:$0xff] %v3117
        %3503 = vst [vmem:[#allocation3 + $0xe0] sm:$0xff] %v3293
        %3504 = vst [vmem:[#allocation3 + $0xe8] sm:$0xff] %v3295
        %3505 = vst [vmem:[#allocation3 + $0xf0] sm:$0xff] %v3471
        %3506 = vst [vmem:[#allocation3 + $0xf8] sm:$0xff] %v3473
        %v3507 = vld [vmem:[#allocation8] sm:$0xff]
        %v3508 = vld [vmem:[#allocation8 + $0x8] sm:$0xff]
        %v3509 = vld [vmem:[#allocation8 + $0x10] sm:$0xff]
        %v3510 = vld [vmem:[#allocation8 + $0x18] sm:$0xff]
        %v3511 = vld [vmem:[#allocation8 + $0x20] sm:$0xff]
        %v3512 = vld [vmem:[#allocation8 + $0x28] sm:$0xff]
        %v3513 = vld [vmem:[#allocation8 + $0x30] sm:$0xff]
        %v3514 = vld [vmem:[#allocation8 + $0x38] sm:$0xff]
        %v3515 = vld [vmem:[#allocation8 + $0x40] sm:$0xff]
        %v3516 = vld [vmem:[#allocation8 + $0x48] sm:$0xff]
        %v3517 = vld [vmem:[#allocation8 + $0x50] sm:$0xff]
        %v3518 = vld [vmem:[#allocation8 + $0x58] sm:$0xff]
        %v3519 = vld [vmem:[#allocation8 + $0x60] sm:$0xff]
        %v3520 = vld [vmem:[#allocation8 + $0x68] sm:$0xff]
        %v3521 = vld [vmem:[#allocation8 + $0x70] sm:$0xff]
        %v3522 = vld [vmem:[#allocation8 + $0x78] sm:$0xff]
        %v3523 = vld [vmem:[#allocation8 + $0x80] sm:$0xff]
        %v3524 = vld [vmem:[#allocation8 + $0x88] sm:$0xff]
        %v3525 = vld [vmem:[#allocation8 + $0x90] sm:$0xff]
        %v3526 = vld [vmem:[#allocation8 + $0x98] sm:$0xff]
        %v3527 = vld [vmem:[#allocation8 + $0xa0] sm:$0xff]
        %v3528 = vld [vmem:[#allocation8 + $0xa8] sm:$0xff]
        %v3529 = vld [vmem:[#allocation8 + $0xb0] sm:$0xff]
        %v3530 = vld [vmem:[#allocation8 + $0xb8] sm:$0xff]
        %v3531 = vld [vmem:[#allocation8 + $0xc0] sm:$0xff]
        %v3532 = vld [vmem:[#allocation8 + $0xc8] sm:$0xff]
        %v3533 = vld [vmem:[#allocation8 + $0xd0] sm:$0xff]
        %v3534 = vld [vmem:[#allocation8 + $0xd8] sm:$0xff]
        %v3535 = vld [vmem:[#allocation8 + $0xe0] sm:$0xff]
        %v3536 = vld [vmem:[#allocation8 + $0xe8] sm:$0xff]
        %v3537 = vld [vmem:[#allocation8 + $0xf0] sm:$0xff]
        %v3538 = vld [vmem:[#allocation8 + $0xf8] sm:$0xff]
        %v3539 = vld [vmem:[#allocation8 + $0x100] sm:$0xff]
        %v3540 = vld [vmem:[#allocation8 + $0x108] sm:$0xff]
        %v3541 = vld [vmem:[#allocation8 + $0x110] sm:$0xff]
        %v3542 = vld [vmem:[#allocation8 + $0x118] sm:$0xff]
        %v3543 = vld [vmem:[#allocation8 + $0x120] sm:$0xff]
        %v3544 = vld [vmem:[#allocation8 + $0x128] sm:$0xff]
        %v3545 = vld [vmem:[#allocation8 + $0x130] sm:$0xff]
        %v3546 = vld [vmem:[#allocation8 + $0x138] sm:$0xff]
        %v3547 = vld [vmem:[#allocation8 + $0x140] sm:$0xff]
        %v3548 = vld [vmem:[#allocation8 + $0x148] sm:$0xff]
        %v3549 = vld [vmem:[#allocation8 + $0x150] sm:$0xff]
        %v3550 = vld [vmem:[#allocation8 + $0x158] sm:$0xff]
        %v3551 = vld [vmem:[#allocation8 + $0x160] sm:$0xff]
        %v3552 = vld [vmem:[#allocation8 + $0x168] sm:$0xff]
        %v3553 = vld [vmem:[#allocation8 + $0x170] sm:$0xff]
        %v3554 = vld [vmem:[#allocation8 + $0x178] sm:$0xff]
        %v3555 = vld [vmem:[#allocation8 + $0x180] sm:$0xff]
        %v3556 = vld [vmem:[#allocation8 + $0x188] sm:$0xff]
        %v3557 = vld [vmem:[#allocation8 + $0x190] sm:$0xff]
        %v3558 = vld [vmem:[#allocation8 + $0x198] sm:$0xff]
        %v3559 = vld [vmem:[#allocation8 + $0x1a0] sm:$0xff]
        %v3560 = vld [vmem:[#allocation8 + $0x1a8] sm:$0xff]
        %v3561 = vld [vmem:[#allocation8 + $0x1b0] sm:$0xff]
        %v3562 = vld [vmem:[#allocation8 + $0x1b8] sm:$0xff]
        %v3563 = vld [vmem:[#allocation8 + $0x1c0] sm:$0xff]
        %v3564 = vld [vmem:[#allocation8 + $0x1c8] sm:$0xff]
        %v3565 = vld [vmem:[#allocation8 + $0x1d0] sm:$0xff]
        %v3566 = vld [vmem:[#allocation8 + $0x1d8] sm:$0xff]
        %v3567 = vld [vmem:[#allocation8 + $0x1e0] sm:$0xff]
        %v3568 = vld [vmem:[#allocation8 + $0x1e8] sm:$0xff]
        %v3569 = vld [vmem:[#allocation8 + $0x1f0] sm:$0xff]
        %v3570 = vld [vmem:[#allocation8 + $0x1f8] sm:$0xff]
        %v3571 = vld [vmem:[#allocation8 + $0x200] sm:$0xff]
        %v3572 = vld [vmem:[#allocation8 + $0x208] sm:$0xff]
        %v3573 = vld [vmem:[#allocation8 + $0x210] sm:$0xff]
        %v3574 = vld [vmem:[#allocation8 + $0x218] sm:$0xff]
        %v3575 = vld [vmem:[#allocation8 + $0x220] sm:$0xff]
        %v3576 = vld [vmem:[#allocation8 + $0x228] sm:$0xff]
        %v3577 = vld [vmem:[#allocation8 + $0x230] sm:$0xff]
        %v3578 = vld [vmem:[#allocation8 + $0x238] sm:$0xff]
        %v3579 = vld [vmem:[#allocation8 + $0x240] sm:$0xff]
        %v3580 = vld [vmem:[#allocation8 + $0x248] sm:$0xff]
        %v3581 = vld [vmem:[#allocation8 + $0x250] sm:$0xff]
        %v3582 = vld [vmem:[#allocation8 + $0x258] sm:$0xff]
        %v3583 = vld [vmem:[#allocation8 + $0x260] sm:$0xff]
        %v3584 = vld [vmem:[#allocation8 + $0x268] sm:$0xff]
        %v3585 = vld [vmem:[#allocation8 + $0x270] sm:$0xff]
        %v3586 = vld [vmem:[#allocation8 + $0x278] sm:$0xff]
        %v3587 = vld [vmem:[#allocation8 + $0x280] sm:$0xff]
        %v3588 = vld [vmem:[#allocation8 + $0x288] sm:$0xff]
        %v3589 = vld [vmem:[#allocation8 + $0x290] sm:$0xff]
        %v3590 = vld [vmem:[#allocation8 + $0x298] sm:$0xff]
        %v3591 = vld [vmem:[#allocation8 + $0x2a0] sm:$0xff]
        %v3592 = vld [vmem:[#allocation8 + $0x2a8] sm:$0xff]
        %v3593 = vld [vmem:[#allocation8 + $0x2b0] sm:$0xff]
        %v3594 = vld [vmem:[#allocation8 + $0x2b8] sm:$0xff]
        %v3595 = vld [vmem:[#allocation8 + $0x2c0] sm:$0xff]
        %v3596 = vld [vmem:[#allocation8 + $0x2c8] sm:$0xff]
        %v3597 = vld [vmem:[#allocation8 + $0x2d0] sm:$0xff]
        %v3598 = vld [vmem:[#allocation8 + $0x2d8] sm:$0xff]
        %v3599 = vld [vmem:[#allocation8 + $0x2e0] sm:$0xff]
        %v3600 = vld [vmem:[#allocation8 + $0x2e8] sm:$0xff]
        %v3601 = vld [vmem:[#allocation8 + $0x2f0] sm:$0xff]
        %v3602 = vld [vmem:[#allocation8 + $0x2f8] sm:$0xff]
        %v3603 = vld [vmem:[#allocation8 + $0x300] sm:$0xff]
        %v3604 = vld [vmem:[#allocation8 + $0x308] sm:$0xff]
        %v3605 = vld [vmem:[#allocation8 + $0x310] sm:$0xff]
        %v3606 = vld [vmem:[#allocation8 + $0x318] sm:$0xff]
        %v3607 = vld [vmem:[#allocation8 + $0x320] sm:$0xff]
        %v3608 = vld [vmem:[#allocation8 + $0x328] sm:$0xff]
        %v3609 = vld [vmem:[#allocation8 + $0x330] sm:$0xff]
        %v3610 = vld [vmem:[#allocation8 + $0x338] sm:$0xff]
        %v3611 = vld [vmem:[#allocation8 + $0x340] sm:$0xff]
        %v3612 = vld [vmem:[#allocation8 + $0x348] sm:$0xff]
        %v3613 = vld [vmem:[#allocation8 + $0x350] sm:$0xff]
        %v3614 = vld [vmem:[#allocation8 + $0x358] sm:$0xff]
        %v3615 = vld [vmem:[#allocation8 + $0x360] sm:$0xff]
        %v3616 = vld [vmem:[#allocation8 + $0x368] sm:$0xff]
        %v3617 = vld [vmem:[#allocation8 + $0x370] sm:$0xff]
        %v3618 = vld [vmem:[#allocation8 + $0x378] sm:$0xff]
        %v3619 = vld [vmem:[#allocation8 + $0x380] sm:$0xff]
        %v3620 = vld [vmem:[#allocation8 + $0x388] sm:$0xff]
        %v3621 = vld [vmem:[#allocation8 + $0x390] sm:$0xff]
        %v3622 = vld [vmem:[#allocation8 + $0x398] sm:$0xff]
        %v3623 = vld [vmem:[#allocation8 + $0x3a0] sm:$0xff]
        %v3624 = vld [vmem:[#allocation8 + $0x3a8] sm:$0xff]
        %v3625 = vld [vmem:[#allocation8 + $0x3b0] sm:$0xff]
        %v3626 = vld [vmem:[#allocation8 + $0x3b8] sm:$0xff]
        %v3627 = vld [vmem:[#allocation8 + $0x3c0] sm:$0xff]
        %v3628 = vld [vmem:[#allocation8 + $0x3c8] sm:$0xff]
        %v3629 = vld [vmem:[#allocation8 + $0x3d0] sm:$0xff]
        %v3630 = vld [vmem:[#allocation8 + $0x3d8] sm:$0xff]
        %v3631 = vld [vmem:[#allocation8 + $0x3e0] sm:$0xff]
        %v3632 = vld [vmem:[#allocation8 + $0x3e8] sm:$0xff]
        %v3633 = vld [vmem:[#allocation8 + $0x3f0] sm:$0xff]
        %v3634 = vld [vmem:[#allocation8 + $0x3f8] sm:$0xff]
        %v3635 = vld [vmem:[#allocation8 + $0x400] sm:$0xff]
        %v3636 = vld [vmem:[#allocation8 + $0x408] sm:$0xff]
        %v3637 = vld [vmem:[#allocation8 + $0x410] sm:$0xff]
        %v3638 = vld [vmem:[#allocation8 + $0x418] sm:$0xff]
        %v3639 = vld [vmem:[#allocation8 + $0x420] sm:$0xff]
        %v3640 = vld [vmem:[#allocation8 + $0x428] sm:$0xff]
        %v3641 = vld [vmem:[#allocation8 + $0x430] sm:$0xff]
        %v3642 = vld [vmem:[#allocation8 + $0x438] sm:$0xff]
        %v3643 = vld [vmem:[#allocation8 + $0x440] sm:$0xff]
        %v3644 = vld [vmem:[#allocation8 + $0x448] sm:$0xff]
        %v3645 = vld [vmem:[#allocation8 + $0x450] sm:$0xff]
        %v3646 = vld [vmem:[#allocation8 + $0x458] sm:$0xff]
        %v3647 = vld [vmem:[#allocation8 + $0x460] sm:$0xff]
        %v3648 = vld [vmem:[#allocation8 + $0x468] sm:$0xff]
        %v3649 = vld [vmem:[#allocation8 + $0x470] sm:$0xff]
        %v3650 = vld [vmem:[#allocation8 + $0x478] sm:$0xff]
        %v3651 = vld [vmem:[#allocation8 + $0x480] sm:$0xff]
        %v3652 = vld [vmem:[#allocation8 + $0x488] sm:$0xff]
        %v3653 = vld [vmem:[#allocation8 + $0x490] sm:$0xff]
        %v3654 = vld [vmem:[#allocation8 + $0x498] sm:$0xff]
        %v3655 = vld [vmem:[#allocation8 + $0x4a0] sm:$0xff]
        %v3656 = vld [vmem:[#allocation8 + $0x4a8] sm:$0xff]
        %v3657 = vld [vmem:[#allocation8 + $0x4b0] sm:$0xff]
        %v3658 = vld [vmem:[#allocation8 + $0x4b8] sm:$0xff]
        %v3659 = vld [vmem:[#allocation8 + $0x4c0] sm:$0xff]
        %v3660 = vld [vmem:[#allocation8 + $0x4c8] sm:$0xff]
        %v3661 = vld [vmem:[#allocation8 + $0x4d0] sm:$0xff]
        %v3662 = vld [vmem:[#allocation8 + $0x4d8] sm:$0xff]
        %v3663 = vld [vmem:[#allocation8 + $0x4e0] sm:$0xff]
        %v3664 = vld [vmem:[#allocation8 + $0x4e8] sm:$0xff]
        %v3665 = vld [vmem:[#allocation8 + $0x4f0] sm:$0xff]
        %v3666 = vld [vmem:[#allocation8 + $0x4f8] sm:$0xff]
        %v3667 = vld [vmem:[#allocation8 + $0x500] sm:$0xff]
        %v3668 = vld [vmem:[#allocation8 + $0x508] sm:$0xff]
        %v3669 = vld [vmem:[#allocation8 + $0x510] sm:$0xff]
        %v3670 = vld [vmem:[#allocation8 + $0x518] sm:$0xff]
        %v3671 = vld [vmem:[#allocation8 + $0x520] sm:$0xff]
        %v3672 = vld [vmem:[#allocation8 + $0x528] sm:$0xff]
        %v3673 = vld [vmem:[#allocation8 + $0x530] sm:$0xff]
        %v3674 = vld [vmem:[#allocation8 + $0x538] sm:$0xff]
        %v3675 = vld [vmem:[#allocation8 + $0x540] sm:$0xff]
        %v3676 = vld [vmem:[#allocation8 + $0x548] sm:$0xff]
        %v3677 = vld [vmem:[#allocation8 + $0x550] sm:$0xff]
        %v3678 = vld [vmem:[#allocation8 + $0x558] sm:$0xff]
        %v3679 = vld [vmem:[#allocation8 + $0x560] sm:$0xff]
        %v3680 = vld [vmem:[#allocation8 + $0x568] sm:$0xff]
        %v3681 = vld [vmem:[#allocation8 + $0x570] sm:$0xff]
        %v3682 = vld [vmem:[#allocation8 + $0x578] sm:$0xff]
        %v3683 = vld [vmem:[#allocation8 + $0x580] sm:$0xff]
        %v3684 = vld [vmem:[#allocation8 + $0x588] sm:$0xff]
        %v3685 = vld [vmem:[#allocation8 + $0x590] sm:$0xff]
        %v3686 = vld [vmem:[#allocation8 + $0x598] sm:$0xff]
        %v3687 = vld [vmem:[#allocation8 + $0x5a0] sm:$0xff]
        %v3688 = vld [vmem:[#allocation8 + $0x5a8] sm:$0xff]
        %v3689 = vld [vmem:[#allocation8 + $0x5b0] sm:$0xff]
        %v3690 = vld [vmem:[#allocation8 + $0x5b8] sm:$0xff]
        %v3691 = vld [vmem:[#allocation8 + $0x5c0] sm:$0xff]
        %v3692 = vld [vmem:[#allocation8 + $0x5c8] sm:$0xff]
        %v3693 = vld [vmem:[#allocation8 + $0x5d0] sm:$0xff]
        %v3694 = vld [vmem:[#allocation8 + $0x5d8] sm:$0xff]
        %v3695 = vld [vmem:[#allocation8 + $0x5e0] sm:$0xff]
        %v3696 = vld [vmem:[#allocation8 + $0x5e8] sm:$0xff]
        %v3697 = vld [vmem:[#allocation8 + $0x5f0] sm:$0xff]
        %v3698 = vld [vmem:[#allocation8 + $0x5f8] sm:$0xff]
        %v3699 = vld [vmem:[#allocation8 + $0x600] sm:$0xff]
        %v3700 = vld [vmem:[#allocation8 + $0x608] sm:$0xff]
        %v3701 = vld [vmem:[#allocation8 + $0x610] sm:$0xff]
        %v3702 = vld [vmem:[#allocation8 + $0x618] sm:$0xff]
        %v3703 = vld [vmem:[#allocation8 + $0x620] sm:$0xff]
        %v3704 = vld [vmem:[#allocation8 + $0x628] sm:$0xff]
        %v3705 = vld [vmem:[#allocation8 + $0x630] sm:$0xff]
        %v3706 = vld [vmem:[#allocation8 + $0x638] sm:$0xff]
        %v3707 = vld [vmem:[#allocation8 + $0x640] sm:$0xff]
        %v3708 = vld [vmem:[#allocation8 + $0x648] sm:$0xff]
        %v3709 = vld [vmem:[#allocation8 + $0x650] sm:$0xff]
        %v3710 = vld [vmem:[#allocation8 + $0x658] sm:$0xff]
        %v3711 = vld [vmem:[#allocation8 + $0x660] sm:$0xff]
        %v3712 = vld [vmem:[#allocation8 + $0x668] sm:$0xff]
        %v3713 = vld [vmem:[#allocation8 + $0x670] sm:$0xff]
        %v3714 = vld [vmem:[#allocation8 + $0x678] sm:$0xff]
        %v3715 = vld [vmem:[#allocation8 + $0x680] sm:$0xff]
        %v3716 = vld [vmem:[#allocation8 + $0x688] sm:$0xff]
        %v3717 = vld [vmem:[#allocation8 + $0x690] sm:$0xff]
        %v3718 = vld [vmem:[#allocation8 + $0x698] sm:$0xff]
        %v3719 = vld [vmem:[#allocation8 + $0x6a0] sm:$0xff]
        %v3720 = vld [vmem:[#allocation8 + $0x6a8] sm:$0xff]
        %v3721 = vld [vmem:[#allocation8 + $0x6b0] sm:$0xff]
        %v3722 = vld [vmem:[#allocation8 + $0x6b8] sm:$0xff]
        %v3723 = vld [vmem:[#allocation8 + $0x6c0] sm:$0xff]
        %v3724 = vld [vmem:[#allocation8 + $0x6c8] sm:$0xff]
        %v3725 = vld [vmem:[#allocation8 + $0x6d0] sm:$0xff]
        %v3726 = vld [vmem:[#allocation8 + $0x6d8] sm:$0xff]
        %v3727 = vld [vmem:[#allocation8 + $0x6e0] sm:$0xff]
        %v3728 = vld [vmem:[#allocation8 + $0x6e8] sm:$0xff]
        %v3729 = vld [vmem:[#allocation8 + $0x6f0] sm:$0xff]
        %v3730 = vld [vmem:[#allocation8 + $0x6f8] sm:$0xff]
        %v3731 = vld [vmem:[#allocation8 + $0x700] sm:$0xff]
        %v3732 = vld [vmem:[#allocation8 + $0x708] sm:$0xff]
        %v3733 = vld [vmem:[#allocation8 + $0x710] sm:$0xff]
        %v3734 = vld [vmem:[#allocation8 + $0x718] sm:$0xff]
        %v3735 = vld [vmem:[#allocation8 + $0x720] sm:$0xff]
        %v3736 = vld [vmem:[#allocation8 + $0x728] sm:$0xff]
        %v3737 = vld [vmem:[#allocation8 + $0x730] sm:$0xff]
        %v3738 = vld [vmem:[#allocation8 + $0x738] sm:$0xff]
        %v3739 = vld [vmem:[#allocation8 + $0x740] sm:$0xff]
        %v3740 = vld [vmem:[#allocation8 + $0x748] sm:$0xff]
        %v3741 = vld [vmem:[#allocation8 + $0x750] sm:$0xff]
        %v3742 = vld [vmem:[#allocation8 + $0x758] sm:$0xff]
        %v3743 = vld [vmem:[#allocation8 + $0x760] sm:$0xff]
        %v3744 = vld [vmem:[#allocation8 + $0x768] sm:$0xff]
        %v3745 = vld [vmem:[#allocation8 + $0x770] sm:$0xff]
        %v3746 = vld [vmem:[#allocation8 + $0x778] sm:$0xff]
        %v3747 = vld [vmem:[#allocation8 + $0x780] sm:$0xff]
        %v3748 = vld [vmem:[#allocation8 + $0x788] sm:$0xff]
        %v3749 = vld [vmem:[#allocation8 + $0x790] sm:$0xff]
        %v3750 = vld [vmem:[#allocation8 + $0x798] sm:$0xff]
        %v3751 = vld [vmem:[#allocation8 + $0x7a0] sm:$0xff]
        %v3752 = vld [vmem:[#allocation8 + $0x7a8] sm:$0xff]
        %v3753 = vld [vmem:[#allocation8 + $0x7b0] sm:$0xff]
        %v3754 = vld [vmem:[#allocation8 + $0x7b8] sm:$0xff]
        %v3755 = vld [vmem:[#allocation8 + $0x7c0] sm:$0xff]
        %v3756 = vld [vmem:[#allocation8 + $0x7c8] sm:$0xff]
        %v3757 = vld [vmem:[#allocation8 + $0x7d0] sm:$0xff]
        %v3758 = vld [vmem:[#allocation8 + $0x7d8] sm:$0xff]
        %v3759 = vld [vmem:[#allocation8 + $0x7e0] sm:$0xff]
        %v3760 = vld [vmem:[#allocation8 + $0x7e8] sm:$0xff]
        %v3761 = vld [vmem:[#allocation8 + $0x7f0] sm:$0xff]
        %v3762 = vld [vmem:[#allocation8 + $0x7f8] sm:$0xff]
        %v3763 = vld [vmem:[#allocation13] sm:$0xff]
        %v3764 = vld [vmem:[#allocation13 + $0x8] sm:$0xff]
        %v3765 = vld [vmem:[#allocation13 + $0x10] sm:$0xff]
        %v3766 = vld [vmem:[#allocation13 + $0x18] sm:$0xff]
        %v3767 = vld [vmem:[#allocation13 + $0x20] sm:$0xff]
        %v3768 = vld [vmem:[#allocation13 + $0x28] sm:$0xff]
        %v3769 = vld [vmem:[#allocation13 + $0x30] sm:$0xff]
        %v3770 = vld [vmem:[#allocation13 + $0x38] sm:$0xff]
        %v3771 = vld [vmem:[#allocation13 + $0x40] sm:$0xff]
        %v3772 = vld [vmem:[#allocation13 + $0x48] sm:$0xff]
        %v3773 = vld [vmem:[#allocation13 + $0x50] sm:$0xff]
        %v3774 = vld [vmem:[#allocation13 + $0x58] sm:$0xff]
        %v3775 = vld [vmem:[#allocation13 + $0x60] sm:$0xff]
        %v3776 = vld [vmem:[#allocation13 + $0x68] sm:$0xff]
        %v3777 = vld [vmem:[#allocation13 + $0x70] sm:$0xff]
        %v3778 = vld [vmem:[#allocation13 + $0x78] sm:$0xff]
        %v3779 = vld [vmem:[#allocation13 + $0x80] sm:$0xff]
        %v3780 = vld [vmem:[#allocation13 + $0x88] sm:$0xff]
        %v3781 = vld [vmem:[#allocation13 + $0x90] sm:$0xff]
        %v3782 = vld [vmem:[#allocation13 + $0x98] sm:$0xff]
        %v3783 = vld [vmem:[#allocation13 + $0xa0] sm:$0xff]
        %v3784 = vld [vmem:[#allocation13 + $0xa8] sm:$0xff]
        %v3785 = vld [vmem:[#allocation13 + $0xb0] sm:$0xff]
        %v3786 = vld [vmem:[#allocation13 + $0xb8] sm:$0xff]
        %v3787 = vld [vmem:[#allocation13 + $0xc0] sm:$0xff]
        %v3788 = vld [vmem:[#allocation13 + $0xc8] sm:$0xff]
        %v3789 = vld [vmem:[#allocation13 + $0xd0] sm:$0xff]
        %v3790 = vld [vmem:[#allocation13 + $0xd8] sm:$0xff]
        %v3791 = vld [vmem:[#allocation13 + $0xe0] sm:$0xff]
        %v3792 = vld [vmem:[#allocation13 + $0xe8] sm:$0xff]
        %v3793 = vld [vmem:[#allocation13 + $0xf0] sm:$0xff]
        %v3794 = vld [vmem:[#allocation13 + $0xf8] sm:$0xff]
        %v3795 = vld [vmem:[#allocation13 + $0x100] sm:$0xff]
        %v3796 = vld [vmem:[#allocation13 + $0x108] sm:$0xff]
        %v3797 = vld [vmem:[#allocation13 + $0x110] sm:$0xff]
        %v3798 = vld [vmem:[#allocation13 + $0x118] sm:$0xff]
        %v3799 = vld [vmem:[#allocation13 + $0x120] sm:$0xff]
        %v3800 = vld [vmem:[#allocation13 + $0x128] sm:$0xff]
        %v3801 = vld [vmem:[#allocation13 + $0x130] sm:$0xff]
        %v3802 = vld [vmem:[#allocation13 + $0x138] sm:$0xff]
        %v3803 = vld [vmem:[#allocation13 + $0x140] sm:$0xff]
        %v3804 = vld [vmem:[#allocation13 + $0x148] sm:$0xff]
        %v3805 = vld [vmem:[#allocation13 + $0x150] sm:$0xff]
        %v3806 = vld [vmem:[#allocation13 + $0x158] sm:$0xff]
        %v3807 = vld [vmem:[#allocation13 + $0x160] sm:$0xff]
        %v3808 = vld [vmem:[#allocation13 + $0x168] sm:$0xff]
        %v3809 = vld [vmem:[#allocation13 + $0x170] sm:$0xff]
        %v3810 = vld [vmem:[#allocation13 + $0x178] sm:$0xff]
        %v3811 = vld [vmem:[#allocation13 + $0x180] sm:$0xff]
        %v3812 = vld [vmem:[#allocation13 + $0x188] sm:$0xff]
        %v3813 = vld [vmem:[#allocation13 + $0x190] sm:$0xff]
        %v3814 = vld [vmem:[#allocation13 + $0x198] sm:$0xff]
        %v3815 = vld [vmem:[#allocation13 + $0x1a0] sm:$0xff]
        %v3816 = vld [vmem:[#allocation13 + $0x1a8] sm:$0xff]
        %v3817 = vld [vmem:[#allocation13 + $0x1b0] sm:$0xff]
        %v3818 = vld [vmem:[#allocation13 + $0x1b8] sm:$0xff]
        %v3819 = vld [vmem:[#allocation13 + $0x1c0] sm:$0xff]
        %v3820 = vld [vmem:[#allocation13 + $0x1c8] sm:$0xff]
        %v3821 = vld [vmem:[#allocation13 + $0x1d0] sm:$0xff]
        %v3822 = vld [vmem:[#allocation13 + $0x1d8] sm:$0xff]
        %v3823 = vld [vmem:[#allocation13 + $0x1e0] sm:$0xff]
        %v3824 = vld [vmem:[#allocation13 + $0x1e8] sm:$0xff]
        %v3825 = vld [vmem:[#allocation13 + $0x1f0] sm:$0xff]
        %v3826 = vld [vmem:[#allocation13 + $0x1f8] sm:$0xff]
        %v3827 = vld [vmem:[#allocation13 + $0x200] sm:$0xff]
        %v3828 = vld [vmem:[#allocation13 + $0x208] sm:$0xff]
        %v3829 = vld [vmem:[#allocation13 + $0x210] sm:$0xff]
        %v3830 = vld [vmem:[#allocation13 + $0x218] sm:$0xff]
        %v3831 = vld [vmem:[#allocation13 + $0x220] sm:$0xff]
        %v3832 = vld [vmem:[#allocation13 + $0x228] sm:$0xff]
        %v3833 = vld [vmem:[#allocation13 + $0x230] sm:$0xff]
        %v3834 = vld [vmem:[#allocation13 + $0x238] sm:$0xff]
        %v3835 = vld [vmem:[#allocation13 + $0x240] sm:$0xff]
        %v3836 = vld [vmem:[#allocation13 + $0x248] sm:$0xff]
        %v3837 = vld [vmem:[#allocation13 + $0x250] sm:$0xff]
        %v3838 = vld [vmem:[#allocation13 + $0x258] sm:$0xff]
        %v3839 = vld [vmem:[#allocation13 + $0x260] sm:$0xff]
        %v3840 = vld [vmem:[#allocation13 + $0x268] sm:$0xff]
        %v3841 = vld [vmem:[#allocation13 + $0x270] sm:$0xff]
        %v3842 = vld [vmem:[#allocation13 + $0x278] sm:$0xff]
        %v3843 = vld [vmem:[#allocation13 + $0x280] sm:$0xff]
        %v3844 = vld [vmem:[#allocation13 + $0x288] sm:$0xff]
        %v3845 = vld [vmem:[#allocation13 + $0x290] sm:$0xff]
        %v3846 = vld [vmem:[#allocation13 + $0x298] sm:$0xff]
        %v3847 = vld [vmem:[#allocation13 + $0x2a0] sm:$0xff]
        %v3848 = vld [vmem:[#allocation13 + $0x2a8] sm:$0xff]
        %v3849 = vld [vmem:[#allocation13 + $0x2b0] sm:$0xff]
        %v3850 = vld [vmem:[#allocation13 + $0x2b8] sm:$0xff]
        %v3851 = vld [vmem:[#allocation13 + $0x2c0] sm:$0xff]
        %v3852 = vld [vmem:[#allocation13 + $0x2c8] sm:$0xff]
        %v3853 = vld [vmem:[#allocation13 + $0x2d0] sm:$0xff]
        %v3854 = vld [vmem:[#allocation13 + $0x2d8] sm:$0xff]
        %v3855 = vld [vmem:[#allocation13 + $0x2e0] sm:$0xff]
        %v3856 = vld [vmem:[#allocation13 + $0x2e8] sm:$0xff]
        %v3857 = vld [vmem:[#allocation13 + $0x2f0] sm:$0xff]
        %v3858 = vld [vmem:[#allocation13 + $0x2f8] sm:$0xff]
        %v3859 = vld [vmem:[#allocation13 + $0x300] sm:$0xff]
        %v3860 = vld [vmem:[#allocation13 + $0x308] sm:$0xff]
        %v3861 = vld [vmem:[#allocation13 + $0x310] sm:$0xff]
        %v3862 = vld [vmem:[#allocation13 + $0x318] sm:$0xff]
        %v3863 = vld [vmem:[#allocation13 + $0x320] sm:$0xff]
        %v3864 = vld [vmem:[#allocation13 + $0x328] sm:$0xff]
        %v3865 = vld [vmem:[#allocation13 + $0x330] sm:$0xff]
        %v3866 = vld [vmem:[#allocation13 + $0x338] sm:$0xff]
        %v3867 = vld [vmem:[#allocation13 + $0x340] sm:$0xff]
        %v3868 = vld [vmem:[#allocation13 + $0x348] sm:$0xff]
        %v3869 = vld [vmem:[#allocation13 + $0x350] sm:$0xff]
        %v3870 = vld [vmem:[#allocation13 + $0x358] sm:$0xff]
        %v3871 = vld [vmem:[#allocation13 + $0x360] sm:$0xff]
        %v3872 = vld [vmem:[#allocation13 + $0x368] sm:$0xff]
        %v3873 = vld [vmem:[#allocation13 + $0x370] sm:$0xff]
        %v3874 = vld [vmem:[#allocation13 + $0x378] sm:$0xff]
        %v3875 = vld [vmem:[#allocation13 + $0x380] sm:$0xff]
        %v3876 = vld [vmem:[#allocation13 + $0x388] sm:$0xff]
        %v3877 = vld [vmem:[#allocation13 + $0x390] sm:$0xff]
        %v3878 = vld [vmem:[#allocation13 + $0x398] sm:$0xff]
        %v3879 = vld [vmem:[#allocation13 + $0x3a0] sm:$0xff]
        %v3880 = vld [vmem:[#allocation13 + $0x3a8] sm:$0xff]
        %v3881 = vld [vmem:[#allocation13 + $0x3b0] sm:$0xff]
        %v3882 = vld [vmem:[#allocation13 + $0x3b8] sm:$0xff]
        %v3883 = vld [vmem:[#allocation13 + $0x3c0] sm:$0xff]
        %v3884 = vld [vmem:[#allocation13 + $0x3c8] sm:$0xff]
        %v3885 = vld [vmem:[#allocation13 + $0x3d0] sm:$0xff]
        %v3886 = vld [vmem:[#allocation13 + $0x3d8] sm:$0xff]
        %v3887 = vld [vmem:[#allocation13 + $0x3e0] sm:$0xff]
        %v3888 = vld [vmem:[#allocation13 + $0x3e8] sm:$0xff]
        %v3889 = vld [vmem:[#allocation13 + $0x3f0] sm:$0xff]
        %v3890 = vld [vmem:[#allocation13 + $0x3f8] sm:$0xff]
        %v3891 = vld [vmem:[#allocation13 + $0x400] sm:$0xff]
        %v3892 = vld [vmem:[#allocation13 + $0x408] sm:$0xff]
        %v3893 = vld [vmem:[#allocation13 + $0x410] sm:$0xff]
        %v3894 = vld [vmem:[#allocation13 + $0x418] sm:$0xff]
        %v3895 = vld [vmem:[#allocation13 + $0x420] sm:$0xff]
        %v3896 = vld [vmem:[#allocation13 + $0x428] sm:$0xff]
        %v3897 = vld [vmem:[#allocation13 + $0x430] sm:$0xff]
        %v3898 = vld [vmem:[#allocation13 + $0x438] sm:$0xff]
        %v3899 = vld [vmem:[#allocation13 + $0x440] sm:$0xff]
        %v3900 = vld [vmem:[#allocation13 + $0x448] sm:$0xff]
        %v3901 = vld [vmem:[#allocation13 + $0x450] sm:$0xff]
        %v3902 = vld [vmem:[#allocation13 + $0x458] sm:$0xff]
        %v3903 = vld [vmem:[#allocation13 + $0x460] sm:$0xff]
        %v3904 = vld [vmem:[#allocation13 + $0x468] sm:$0xff]
        %v3905 = vld [vmem:[#allocation13 + $0x470] sm:$0xff]
        %v3906 = vld [vmem:[#allocation13 + $0x478] sm:$0xff]
        %v3907 = vld [vmem:[#allocation13 + $0x480] sm:$0xff]
        %v3908 = vld [vmem:[#allocation13 + $0x488] sm:$0xff]
        %v3909 = vld [vmem:[#allocation13 + $0x490] sm:$0xff]
        %v3910 = vld [vmem:[#allocation13 + $0x498] sm:$0xff]
        %v3911 = vld [vmem:[#allocation13 + $0x4a0] sm:$0xff]
        %v3912 = vld [vmem:[#allocation13 + $0x4a8] sm:$0xff]
        %v3913 = vld [vmem:[#allocation13 + $0x4b0] sm:$0xff]
        %v3914 = vld [vmem:[#allocation13 + $0x4b8] sm:$0xff]
        %v3915 = vld [vmem:[#allocation13 + $0x4c0] sm:$0xff]
        %v3916 = vld [vmem:[#allocation13 + $0x4c8] sm:$0xff]
        %v3917 = vld [vmem:[#allocation13 + $0x4d0] sm:$0xff]
        %v3918 = vld [vmem:[#allocation13 + $0x4d8] sm:$0xff]
        %v3919 = vld [vmem:[#allocation13 + $0x4e0] sm:$0xff]
        %v3920 = vld [vmem:[#allocation13 + $0x4e8] sm:$0xff]
        %v3921 = vld [vmem:[#allocation13 + $0x4f0] sm:$0xff]
        %v3922 = vld [vmem:[#allocation13 + $0x4f8] sm:$0xff]
        %v3923 = vld [vmem:[#allocation13 + $0x500] sm:$0xff]
        %v3924 = vld [vmem:[#allocation13 + $0x508] sm:$0xff]
        %v3925 = vld [vmem:[#allocation13 + $0x510] sm:$0xff]
        %v3926 = vld [vmem:[#allocation13 + $0x518] sm:$0xff]
        %v3927 = vld [vmem:[#allocation13 + $0x520] sm:$0xff]
        %v3928 = vld [vmem:[#allocation13 + $0x528] sm:$0xff]
        %v3929 = vld [vmem:[#allocation13 + $0x530] sm:$0xff]
        %v3930 = vld [vmem:[#allocation13 + $0x538] sm:$0xff]
        %v3931 = vld [vmem:[#allocation13 + $0x540] sm:$0xff]
        %v3932 = vld [vmem:[#allocation13 + $0x548] sm:$0xff]
        %v3933 = vld [vmem:[#allocation13 + $0x550] sm:$0xff]
        %v3934 = vld [vmem:[#allocation13 + $0x558] sm:$0xff]
        %v3935 = vld [vmem:[#allocation13 + $0x560] sm:$0xff]
        %v3936 = vld [vmem:[#allocation13 + $0x568] sm:$0xff]
        %v3937 = vld [vmem:[#allocation13 + $0x570] sm:$0xff]
        %v3938 = vld [vmem:[#allocation13 + $0x578] sm:$0xff]
        %v3939 = vld [vmem:[#allocation13 + $0x580] sm:$0xff]
        %v3940 = vld [vmem:[#allocation13 + $0x588] sm:$0xff]
        %v3941 = vld [vmem:[#allocation13 + $0x590] sm:$0xff]
        %v3942 = vld [vmem:[#allocation13 + $0x598] sm:$0xff]
        %v3943 = vld [vmem:[#allocation13 + $0x5a0] sm:$0xff]
        %v3944 = vld [vmem:[#allocation13 + $0x5a8] sm:$0xff]
        %v3945 = vld [vmem:[#allocation13 + $0x5b0] sm:$0xff]
        %v3946 = vld [vmem:[#allocation13 + $0x5b8] sm:$0xff]
        %v3947 = vld [vmem:[#allocation13 + $0x5c0] sm:$0xff]
        %v3948 = vld [vmem:[#allocation13 + $0x5c8] sm:$0xff]
        %v3949 = vld [vmem:[#allocation13 + $0x5d0] sm:$0xff]
        %v3950 = vld [vmem:[#allocation13 + $0x5d8] sm:$0xff]
        %v3951 = vld [vmem:[#allocation13 + $0x5e0] sm:$0xff]
        %v3952 = vld [vmem:[#allocation13 + $0x5e8] sm:$0xff]
        %v3953 = vld [vmem:[#allocation13 + $0x5f0] sm:$0xff]
        %v3954 = vld [vmem:[#allocation13 + $0x5f8] sm:$0xff]
        %v3955 = vld [vmem:[#allocation13 + $0x600] sm:$0xff]
        %v3956 = vld [vmem:[#allocation13 + $0x608] sm:$0xff]
        %v3957 = vld [vmem:[#allocation13 + $0x610] sm:$0xff]
        %v3958 = vld [vmem:[#allocation13 + $0x618] sm:$0xff]
        %v3959 = vld [vmem:[#allocation13 + $0x620] sm:$0xff]
        %v3960 = vld [vmem:[#allocation13 + $0x628] sm:$0xff]
        %v3961 = vld [vmem:[#allocation13 + $0x630] sm:$0xff]
        %v3962 = vld [vmem:[#allocation13 + $0x638] sm:$0xff]
        %v3963 = vld [vmem:[#allocation13 + $0x640] sm:$0xff]
        %v3964 = vld [vmem:[#allocation13 + $0x648] sm:$0xff]
        %v3965 = vld [vmem:[#allocation13 + $0x650] sm:$0xff]
        %v3966 = vld [vmem:[#allocation13 + $0x658] sm:$0xff]
        %v3967 = vld [vmem:[#allocation13 + $0x660] sm:$0xff]
        %v3968 = vld [vmem:[#allocation13 + $0x668] sm:$0xff]
        %v3969 = vld [vmem:[#allocation13 + $0x670] sm:$0xff]
        %v3970 = vld [vmem:[#allocation13 + $0x678] sm:$0xff]
        %v3971 = vld [vmem:[#allocation13 + $0x680] sm:$0xff]
        %v3972 = vld [vmem:[#allocation13 + $0x688] sm:$0xff]
        %v3973 = vld [vmem:[#allocation13 + $0x690] sm:$0xff]
        %v3974 = vld [vmem:[#allocation13 + $0x698] sm:$0xff]
        %v3975 = vld [vmem:[#allocation13 + $0x6a0] sm:$0xff]
        %v3976 = vld [vmem:[#allocation13 + $0x6a8] sm:$0xff]
        %v3977 = vld [vmem:[#allocation13 + $0x6b0] sm:$0xff]
        %v3978 = vld [vmem:[#allocation13 + $0x6b8] sm:$0xff]
        %v3979 = vld [vmem:[#allocation13 + $0x6c0] sm:$0xff]
        %v3980 = vld [vmem:[#allocation13 + $0x6c8] sm:$0xff]
        %v3981 = vld [vmem:[#allocation13 + $0x6d0] sm:$0xff]
        %v3982 = vld [vmem:[#allocation13 + $0x6d8] sm:$0xff]
        %v3983 = vld [vmem:[#allocation13 + $0x6e0] sm:$0xff]
        %v3984 = vld [vmem:[#allocation13 + $0x6e8] sm:$0xff]
        %v3985 = vld [vmem:[#allocation13 + $0x6f0] sm:$0xff]
        %v3986 = vld [vmem:[#allocation13 + $0x6f8] sm:$0xff]
        %v3987 = vld [vmem:[#allocation13 + $0x700] sm:$0xff]
        %v3988 = vld [vmem:[#allocation13 + $0x708] sm:$0xff]
        %v3989 = vld [vmem:[#allocation13 + $0x710] sm:$0xff]
        %v3990 = vld [vmem:[#allocation13 + $0x718] sm:$0xff]
        %v3991 = vld [vmem:[#allocation13 + $0x720] sm:$0xff]
        %v3992 = vld [vmem:[#allocation13 + $0x728] sm:$0xff]
        %v3993 = vld [vmem:[#allocation13 + $0x730] sm:$0xff]
        %v3994 = vld [vmem:[#allocation13 + $0x738] sm:$0xff]
        %v3995 = vld [vmem:[#allocation13 + $0x740] sm:$0xff]
        %v3996 = vld [vmem:[#allocation13 + $0x748] sm:$0xff]
        %v3997 = vld [vmem:[#allocation13 + $0x750] sm:$0xff]
        %v3998 = vld [vmem:[#allocation13 + $0x758] sm:$0xff]
        %v3999 = vld [vmem:[#allocation13 + $0x760] sm:$0xff]
        %v4000 = vld [vmem:[#allocation13 + $0x768] sm:$0xff]
        %v4001 = vld [vmem:[#allocation13 + $0x770] sm:$0xff]
        %v4002 = vld [vmem:[#allocation13 + $0x778] sm:$0xff]
        %v4003 = vld [vmem:[#allocation13 + $0x780] sm:$0xff]
        %v4004 = vld [vmem:[#allocation13 + $0x788] sm:$0xff]
        %v4005 = vld [vmem:[#allocation13 + $0x790] sm:$0xff]
        %v4006 = vld [vmem:[#allocation13 + $0x798] sm:$0xff]
        %v4007 = vld [vmem:[#allocation13 + $0x7a0] sm:$0xff]
        %v4008 = vld [vmem:[#allocation13 + $0x7a8] sm:$0xff]
        %v4009 = vld [vmem:[#allocation13 + $0x7b0] sm:$0xff]
        %v4010 = vld [vmem:[#allocation13 + $0x7b8] sm:$0xff]
        %v4011 = vld [vmem:[#allocation13 + $0x7c0] sm:$0xff]
        %v4012 = vld [vmem:[#allocation13 + $0x7c8] sm:$0xff]
        %v4013 = vld [vmem:[#allocation13 + $0x7d0] sm:$0xff]
        %v4014 = vld [vmem:[#allocation13 + $0x7d8] sm:$0xff]
        %v4015 = vld [vmem:[#allocation13 + $0x7e0] sm:$0xff]
        %v4016 = vld [vmem:[#allocation13 + $0x7e8] sm:$0xff]
        %v4017 = vld [vmem:[#allocation13 + $0x7f0] sm:$0xff]
        %v4018 = vld [vmem:[#allocation13 + $0x7f8] sm:$0xff]
        %v4019 = vld [vmem:[#allocation2] sm:$0xff]
        %v4020 = vld [vmem:[#allocation2 + $0x8] sm:$0xff]
        %v4021 = vld [vmem:[#allocation2 + $0x10] sm:$0xff]
        %v4022 = vld [vmem:[#allocation2 + $0x18] sm:$0xff]
        %v4023 = vld [vmem:[#allocation2 + $0x20] sm:$0xff]
        %v4024 = vld [vmem:[#allocation2 + $0x28] sm:$0xff]
        %v4025 = vld [vmem:[#allocation2 + $0x30] sm:$0xff]
        %v4026 = vld [vmem:[#allocation2 + $0x38] sm:$0xff]
        %4027 = vmatprep.subr.mxu0 %v3628
        %4028 = vmatpush1.msra.mxu0 %v3627
        %4029 = vmatprep.subr.mxu0 %v3620
        %4030 = vmatpush1.msra.mxu0 %v3619
        %4031 = vmatprep.subr.mxu0 %v3612
        %4032 = vmatpush1.msra.mxu0 %v3611
        %4033 = vmatprep.subr.mxu0 %v3604
        %4034 = vmatpush1.msra.mxu0 %v3603
        %4035 = vmatprep.subr.mxu0 %v3596
        %4036 = vmatpush1.msra.mxu0 %v3595
        %4037 = vmatprep.subr.mxu0 %v3588
        %4038 = vmatpush1.msra.mxu0 %v3587
        %4039 = vmatprep.subr.mxu0 %v3580
        %4040 = vmatpush1.msra.mxu0 %v3579
        %4041 = vmatprep.subr.mxu0 %v3572
        %4042 = vmatpush1.msra.mxu0 %v3571
        %4043 = vmatprep.subr.mxu0 %v3564
        %4044 = vmatpush1.msra.mxu0 %v3563
        %4045 = vmatprep.subr.mxu0 %v3556
        %4046 = vmatpush1.msra.mxu0 %v3555
        %4047 = vmatprep.subr.mxu0 %v3548
        %4048 = vmatpush1.msra.mxu0 %v3547
        %4049 = vmatprep.subr.mxu0 %v3540
        %4050 = vmatpush1.msra.mxu0 %v3539
        %4051 = vmatprep.subr.mxu0 %v3532
        %4052 = vmatpush1.msra.mxu0 %v3531
        %4053 = vmatprep.subr.mxu0 %v3524
        %4054 = vmatpush1.msra.mxu0 %v3523
        %4055 = vmatprep.subr.mxu0 %v3516
        %4056 = vmatpush1.msra.mxu0 %v3515
        %4057 = vmatprep.subr.mxu0 %v3508
        %4058 = vmatpush1.msra.mxu0 %v3507
        %4059 = vmatprep.subr.mxu0 %v3756
        %4060 = vmatpush2.msra.mxu0 %v3755
        %4061 = vmatprep.subr.mxu0 %v3748
        %4062 = vmatpush2.msra.mxu0 %v3747
        %4063 = vmatprep.subr.mxu0 %v3740
        %4064 = vmatpush2.msra.mxu0 %v3739
        %4065 = vmatprep.subr.mxu0 %v3732
        %4066 = vmatpush2.msra.mxu0 %v3731
        %4067 = vmatprep.subr.mxu0 %v3724
        %4068 = vmatpush2.msra.mxu0 %v3723
        %4069 = vmatprep.subr.mxu0 %v3716
        %4070 = vmatpush2.msra.mxu0 %v3715
        %4071 = vmatprep.subr.mxu0 %v3708
        %4072 = vmatpush2.msra.mxu0 %v3707
        %4073 = vmatprep.subr.mxu0 %v3700
        %4074 = vmatpush2.msra.mxu0 %v3699
        %4075 = vmatprep.subr.mxu0 %v3692
        %4076 = vmatpush2.msra.mxu0 %v3691
        %4077 = vmatprep.subr.mxu0 %v3684
        %4078 = vmatpush2.msra.mxu0 %v3683
        %4079 = vmatprep.subr.mxu0 %v3676
        %4080 = vmatpush2.msra.mxu0 %v3675
        %4081 = vmatprep.subr.mxu0 %v3668
        %4082 = vmatpush2.msra.mxu0 %v3667
        %4083 = vmatprep.subr.mxu0 %v3660
        %4084 = vmatpush2.msra.mxu0 %v3659
        %4085 = vmatprep.subr.mxu0 %v3652
        %4086 = vmatpush2.msra.mxu0 %v3651
        %4087 = vmatprep.subr.mxu0 %v3644
        %4088 = vmatpush2.msra.mxu0 %v3643
        %4089 = vmatprep.subr.mxu0 %v3636
        %4090 = vmatpush2.msra.mxu0 %v3635
        %4091 = vmatprep.mubr.f32.mxu0 0.0
        %4092 = vmatmul.mubr.f32.gmra.mxu0 0.0
        %v4093 = vpop.f32.mrf.mxu0
        %v4094 = vadd.f32 0.0, %v4093
        %v4095 = vpop.f32.mrf.mxu0
        %v4096 = vadd.f32 0.0, %v4095
        %4097 = vdwg.mxu0
        %4098 = vmatprep.subr.mxu0 %v3630
        %4099 = vmatpush1.msra.mxu0 %v3629
        %4100 = vmatprep.subr.mxu0 %v3622
        %4101 = vmatpush1.msra.mxu0 %v3621
        %4102 = vmatprep.subr.mxu0 %v3614
        %4103 = vmatpush1.msra.mxu0 %v3613
        %4104 = vmatprep.subr.mxu0 %v3606
        %4105 = vmatpush1.msra.mxu0 %v3605
        %4106 = vmatprep.subr.mxu0 %v3598
        %4107 = vmatpush1.msra.mxu0 %v3597
        %4108 = vmatprep.subr.mxu0 %v3590
        %4109 = vmatpush1.msra.mxu0 %v3589
        %4110 = vmatprep.subr.mxu0 %v3582
        %4111 = vmatpush1.msra.mxu0 %v3581
        %4112 = vmatprep.subr.mxu0 %v3574
        %4113 = vmatpush1.msra.mxu0 %v3573
        %4114 = vmatprep.subr.mxu0 %v3566
        %4115 = vmatpush1.msra.mxu0 %v3565
        %4116 = vmatprep.subr.mxu0 %v3558
        %4117 = vmatpush1.msra.mxu0 %v3557
        %4118 = vmatprep.subr.mxu0 %v3550
        %4119 = vmatpush1.msra.mxu0 %v3549
        %4120 = vmatprep.subr.mxu0 %v3542
        %4121 = vmatpush1.msra.mxu0 %v3541
        %4122 = vmatprep.subr.mxu0 %v3534
        %4123 = vmatpush1.msra.mxu0 %v3533
        %4124 = vmatprep.subr.mxu0 %v3526
        %4125 = vmatpush1.msra.mxu0 %v3525
        %4126 = vmatprep.subr.mxu0 %v3518
        %4127 = vmatpush1.msra.mxu0 %v3517
        %4128 = vmatprep.subr.mxu0 %v3510
        %4129 = vmatpush1.msra.mxu0 %v3509
        %4130 = vmatprep.subr.mxu0 %v3758
        %4131 = vmatpush2.msra.mxu0 %v3757
        %4132 = vmatprep.subr.mxu0 %v3750
        %4133 = vmatpush2.msra.mxu0 %v3749
        %4134 = vmatprep.subr.mxu0 %v3742
        %4135 = vmatpush2.msra.mxu0 %v3741
        %4136 = vmatprep.subr.mxu0 %v3734
        %4137 = vmatpush2.msra.mxu0 %v3733
        %4138 = vmatprep.subr.mxu0 %v3726
        %4139 = vmatpush2.msra.mxu0 %v3725
        %4140 = vmatprep.subr.mxu0 %v3718
        %4141 = vmatpush2.msra.mxu0 %v3717
        %4142 = vmatprep.subr.mxu0 %v3710
        %4143 = vmatpush2.msra.mxu0 %v3709
        %4144 = vmatprep.subr.mxu0 %v3702
        %4145 = vmatpush2.msra.mxu0 %v3701
        %4146 = vmatprep.subr.mxu0 %v3694
        %4147 = vmatpush2.msra.mxu0 %v3693
        %4148 = vmatprep.subr.mxu0 %v3686
        %4149 = vmatpush2.msra.mxu0 %v3685
        %4150 = vmatprep.subr.mxu0 %v3678
        %4151 = vmatpush2.msra.mxu0 %v3677
        %4152 = vmatprep.subr.mxu0 %v3670
        %4153 = vmatpush2.msra.mxu0 %v3669
        %4154 = vmatprep.subr.mxu0 %v3662
        %4155 = vmatpush2.msra.mxu0 %v3661
        %4156 = vmatprep.subr.mxu0 %v3654
        %4157 = vmatpush2.msra.mxu0 %v3653
        %4158 = vmatprep.subr.mxu0 %v3646
        %4159 = vmatpush2.msra.mxu0 %v3645
        %4160 = vmatprep.subr.mxu0 %v3638
        %4161 = vmatpush2.msra.mxu0 %v3637
        %4162 = vmatprep.mubr.f32.mxu0 0.0
        %4163 = vmatmul.mubr.f32.gmra.mxu0 0.0
        %v4164 = vpop.f32.mrf.mxu0
        %v4165 = vadd.f32 0.0, %v4164
        %v4166 = vpop.f32.mrf.mxu0
        %v4167 = vadd.f32 0.0, %v4166
        %4168 = vdwg.mxu0
        %4169 = vmatprep.subr.mxu0 %v3632
        %4170 = vmatpush1.msra.mxu0 %v3631
        %4171 = vmatprep.subr.mxu0 %v3624
        %4172 = vmatpush1.msra.mxu0 %v3623
        %4173 = vmatprep.subr.mxu0 %v3616
        %4174 = vmatpush1.msra.mxu0 %v3615
        %4175 = vmatprep.subr.mxu0 %v3608
        %4176 = vmatpush1.msra.mxu0 %v3607
        %4177 = vmatprep.subr.mxu0 %v3600
        %4178 = vmatpush1.msra.mxu0 %v3599
        %4179 = vmatprep.subr.mxu0 %v3592
        %4180 = vmatpush1.msra.mxu0 %v3591
        %4181 = vmatprep.subr.mxu0 %v3584
        %4182 = vmatpush1.msra.mxu0 %v3583
        %4183 = vmatprep.subr.mxu0 %v3576
        %4184 = vmatpush1.msra.mxu0 %v3575
        %4185 = vmatprep.subr.mxu0 %v3568
        %4186 = vmatpush1.msra.mxu0 %v3567
        %4187 = vmatprep.subr.mxu0 %v3560
        %4188 = vmatpush1.msra.mxu0 %v3559
        %4189 = vmatprep.subr.mxu0 %v3552
        %4190 = vmatpush1.msra.mxu0 %v3551
        %4191 = vmatprep.subr.mxu0 %v3544
        %4192 = vmatpush1.msra.mxu0 %v3543
        %4193 = vmatprep.subr.mxu0 %v3536
        %4194 = vmatpush1.msra.mxu0 %v3535
        %4195 = vmatprep.subr.mxu0 %v3528
        %4196 = vmatpush1.msra.mxu0 %v3527
        %4197 = vmatprep.subr.mxu0 %v3520
        %4198 = vmatpush1.msra.mxu0 %v3519
        %4199 = vmatprep.subr.mxu0 %v3512
        %4200 = vmatpush1.msra.mxu0 %v3511
        %4201 = vmatprep.subr.mxu0 %v3760
        %4202 = vmatpush2.msra.mxu0 %v3759
        %4203 = vmatprep.subr.mxu0 %v3752
        %4204 = vmatpush2.msra.mxu0 %v3751
        %4205 = vmatprep.subr.mxu0 %v3744
        %4206 = vmatpush2.msra.mxu0 %v3743
        %4207 = vmatprep.subr.mxu0 %v3736
        %4208 = vmatpush2.msra.mxu0 %v3735
        %4209 = vmatprep.subr.mxu0 %v3728
        %4210 = vmatpush2.msra.mxu0 %v3727
        %4211 = vmatprep.subr.mxu0 %v3720
        %4212 = vmatpush2.msra.mxu0 %v3719
        %4213 = vmatprep.subr.mxu0 %v3712
        %4214 = vmatpush2.msra.mxu0 %v3711
        %4215 = vmatprep.subr.mxu0 %v3704
        %4216 = vmatpush2.msra.mxu0 %v3703
        %4217 = vmatprep.subr.mxu0 %v3696
        %4218 = vmatpush2.msra.mxu0 %v3695
        %4219 = vmatprep.subr.mxu0 %v3688
        %4220 = vmatpush2.msra.mxu0 %v3687
        %4221 = vmatprep.subr.mxu0 %v3680
        %4222 = vmatpush2.msra.mxu0 %v3679
        %4223 = vmatprep.subr.mxu0 %v3672
        %4224 = vmatpush2.msra.mxu0 %v3671
        %4225 = vmatprep.subr.mxu0 %v3664
        %4226 = vmatpush2.msra.mxu0 %v3663
        %4227 = vmatprep.subr.mxu0 %v3656
        %4228 = vmatpush2.msra.mxu0 %v3655
        %4229 = vmatprep.subr.mxu0 %v3648
        %4230 = vmatpush2.msra.mxu0 %v3647
        %4231 = vmatprep.subr.mxu0 %v3640
        %4232 = vmatpush2.msra.mxu0 %v3639
        %4233 = vmatprep.mubr.f32.mxu0 0.0
        %4234 = vmatmul.mubr.f32.gmra.mxu0 0.0
        %v4235 = vpop.f32.mrf.mxu0
        %v4236 = vadd.f32 0.0, %v4235
        %v4237 = vpop.f32.mrf.mxu0
        %v4238 = vadd.f32 0.0, %v4237
        %4239 = vdwg.mxu0
        %4240 = vmatprep.subr.mxu0 %v3634
        %4241 = vmatpush1.msra.mxu0 %v3633
        %4242 = vmatprep.subr.mxu0 %v3626
        %4243 = vmatpush1.msra.mxu0 %v3625
        %4244 = vmatprep.subr.mxu0 %v3618
        %4245 = vmatpush1.msra.mxu0 %v3617
        %4246 = vmatprep.subr.mxu0 %v3610
        %4247 = vmatpush1.msra.mxu0 %v3609
        %4248 = vmatprep.subr.mxu0 %v3602
        %4249 = vmatpush1.msra.mxu0 %v3601
        %4250 = vmatprep.subr.mxu0 %v3594
        %4251 = vmatpush1.msra.mxu0 %v3593
        %4252 = vmatprep.subr.mxu0 %v3586
        %4253 = vmatpush1.msra.mxu0 %v3585
        %4254 = vmatprep.subr.mxu0 %v3578
        %4255 = vmatpush1.msra.mxu0 %v3577
        %4256 = vmatprep.subr.mxu0 %v3570
        %4257 = vmatpush1.msra.mxu0 %v3569
        %4258 = vmatprep.subr.mxu0 %v3562
        %4259 = vmatpush1.msra.mxu0 %v3561
        %4260 = vmatprep.subr.mxu0 %v3554
        %4261 = vmatpush1.msra.mxu0 %v3553
        %4262 = vmatprep.subr.mxu0 %v3546
        %4263 = vmatpush1.msra.mxu0 %v3545
        %4264 = vmatprep.subr.mxu0 %v3538
        %4265 = vmatpush1.msra.mxu0 %v3537
        %4266 = vmatprep.subr.mxu0 %v3530
        %4267 = vmatpush1.msra.mxu0 %v3529
        %4268 = vmatprep.subr.mxu0 %v3522
        %4269 = vmatpush1.msra.mxu0 %v3521
        %4270 = vmatprep.subr.mxu0 %v3514
        %4271 = vmatpush1.msra.mxu0 %v3513
        %4272 = vmatprep.subr.mxu0 %v3762
        %4273 = vmatpush2.msra.mxu0 %v3761
        %4274 = vmatprep.subr.mxu0 %v3754
        %4275 = vmatpush2.msra.mxu0 %v3753
        %4276 = vmatprep.subr.mxu0 %v3746
        %4277 = vmatpush2.msra.mxu0 %v3745
        %4278 = vmatprep.subr.mxu0 %v3738
        %4279 = vmatpush2.msra.mxu0 %v3737
        %4280 = vmatprep.subr.mxu0 %v3730
        %4281 = vmatpush2.msra.mxu0 %v3729
        %4282 = vmatprep.subr.mxu0 %v3722
        %4283 = vmatpush2.msra.mxu0 %v3721
        %4284 = vmatprep.subr.mxu0 %v3714
        %4285 = vmatpush2.msra.mxu0 %v3713
        %4286 = vmatprep.subr.mxu0 %v3706
        %4287 = vmatpush2.msra.mxu0 %v3705
        %4288 = vmatprep.subr.mxu0 %v3698
        %4289 = vmatpush2.msra.mxu0 %v3697
        %4290 = vmatprep.subr.mxu0 %v3690
        %4291 = vmatpush2.msra.mxu0 %v3689
        %4292 = vmatprep.subr.mxu0 %v3682
        %4293 = vmatpush2.msra.mxu0 %v3681
        %4294 = vmatprep.subr.mxu0 %v3674
        %4295 = vmatpush2.msra.mxu0 %v3673
        %4296 = vmatprep.subr.mxu0 %v3666
        %4297 = vmatpush2.msra.mxu0 %v3665
        %4298 = vmatprep.subr.mxu0 %v3658
        %4299 = vmatpush2.msra.mxu0 %v3657
        %4300 = vmatprep.subr.mxu0 %v3650
        %4301 = vmatpush2.msra.mxu0 %v3649
        %4302 = vmatprep.subr.mxu0 %v3642
        %4303 = vmatpush2.msra.mxu0 %v3641
        %4304 = vmatprep.mubr.f32.mxu0 0.0
        %4305 = vmatmul.mubr.f32.gmra.mxu0 0.0
        %v4306 = vpop.f32.mrf.mxu0
        %v4307 = vadd.f32 0.0, %v4306
        %v4308 = vpop.f32.mrf.mxu0
        %v4309 = vadd.f32 0.0, %v4308
        %4310 = vdwg.mxu0
        %v4311 = vadd.f32 %v4019, %v4094
        %v4312 = vadd.f32 %v4020, %v4096
        %v4313 = vadd.f32 %v4021, %v4165
        %v4314 = vadd.f32 %v4022, %v4167
        %v4315 = vadd.f32 %v4023, %v4236
        %v4316 = vadd.f32 %v4024, %v4238
        %v4317 = vadd.f32 %v4025, %v4307
        %v4318 = vadd.f32 %v4026, %v4309
        %v4319 = vxor.u32 %v4313, 2147483648
        %v4320 = vxor.u32 %v4314, 2147483648
        %v4321 = vmul.f32 %v4319, 1.442695
        %v4322 = vpow.pop %v4321
        %v4323 = vmul.f32 %v4320, 1.442695
        %v4324 = vpow.pop %v4323
        %v4325 = vadd.f32 %v4322, 1.0
        %v4326 = vadd.f32 %v4324, 1.0
        %v4327 = vrcp.pop %v4325
        %v4328 = vmul.f32 1.0, %v4327
        %v4329 = vrcp.pop %v4326
        %v4330 = vmul.f32 1.0, %v4329
        %v4331 = vmul.f32 %v4328, 0.0
        %v4332 = vmul.f32 %v4330, 0.0
        %v4333 = vxor.u32 %v4311, 2147483648
        %v4334 = vxor.u32 %v4312, 2147483648
        %v4335 = vmul.f32 %v4333, 1.442695
        %v4336 = vpow.pop %v4335
        %v4337 = vmul.f32 %v4334, 1.442695
        %v4338 = vpow.pop %v4337
        %v4339 = vadd.f32 %v4336, 1.0
        %v4340 = vadd.f32 %v4338, 1.0
        %v4341 = vrcp.pop %v4339
        %v4342 = vmul.f32 1.0, %v4341
        %v4343 = vrcp.pop %v4340
        %v4344 = vmul.f32 1.0, %v4343
        %v4345 = vtanh.pop %v4315
        %v4346 = vtanh.pop %v4316
        %v4347 = vmul.f32 %v4342, %v4345
        %v4348 = vmul.f32 %v4344, %v4346
        %v4349 = vadd.f32 %v4331, %v4347
        %v4350 = vadd.f32 %v4332, %v4348
        %v4351 = vxor.u32 %v4317, 2147483648
        %v4352 = vxor.u32 %v4318, 2147483648
        %v4353 = vmul.f32 %v4351, 1.442695
        %v4354 = vpow.pop %v4353
        %v4355 = vmul.f32 %v4352, 1.442695
        %v4356 = vpow.pop %v4355
        %v4357 = vadd.f32 %v4354, 1.0
        %v4358 = vadd.f32 %v4356, 1.0
        %v4359 = vrcp.pop %v4357
        %v4360 = vmul.f32 1.0, %v4359
        %v4361 = vrcp.pop %v4358
        %v4362 = vmul.f32 1.0, %v4361
        %v4363 = vtanh.pop %v4349
        %v4364 = vtanh.pop %v4350
        %v4365 = vmul.f32 %v4360, %v4363
        %v4366 = vmul.f32 %v4362, %v4364
        %v4367 = vld [vmem:[#allocation3 + $0xc0] sm:$0xff]
        %v4368 = vld [vmem:[#allocation3 + $0xc8] sm:$0xff]
        %v4369 = vld [vmem:[#allocation3 + $0xd0] sm:$0xff]
        %v4370 = vld [vmem:[#allocation3 + $0xd8] sm:$0xff]
        %v4371 = vld [vmem:[#allocation3 + $0xe0] sm:$0xff]
        %v4372 = vld [vmem:[#allocation3 + $0xe8] sm:$0xff]
        %v4373 = vld [vmem:[#allocation3 + $0xf0] sm:$0xff]
        %v4374 = vld [vmem:[#allocation3 + $0xf8] sm:$0xff]
        %4375 = vmatprep.subr.mxu0 %v3884
        %4376 = vmatpush1.msra.mxu0 %v3883
        %4377 = vmatprep.subr.mxu0 %v3876
        %4378 = vmatpush1.msra.mxu0 %v3875
        %4379 = vmatprep.subr.mxu0 %v3868
        %4380 = vmatpush1.msra.mxu0 %v3867
        %4381 = vmatprep.subr.mxu0 %v3860
        %4382 = vmatpush1.msra.mxu0 %v3859
        %4383 = vmatprep.subr.mxu0 %v3852
        %4384 = vmatpush1.msra.mxu0 %v3851
        %4385 = vmatprep.subr.mxu0 %v3844
        %4386 = vmatpush1.msra.mxu0 %v3843
        %4387 = vmatprep.subr.mxu0 %v3836
        %4388 = vmatpush1.msra.mxu0 %v3835
        %4389 = vmatprep.subr.mxu0 %v3828
        %4390 = vmatpush1.msra.mxu0 %v3827
        %4391 = vmatprep.subr.mxu0 %v3820
        %4392 = vmatpush1.msra.mxu0 %v3819
        %4393 = vmatprep.subr.mxu0 %v3812
        %4394 = vmatpush1.msra.mxu0 %v3811
        %4395 = vmatprep.subr.mxu0 %v3804
        %4396 = vmatpush1.msra.mxu0 %v3803
        %4397 = vmatprep.subr.mxu0 %v3796
        %4398 = vmatpush1.msra.mxu0 %v3795
        %4399 = vmatprep.subr.mxu0 %v3788
        %4400 = vmatpush1.msra.mxu0 %v3787
        %4401 = vmatprep.subr.mxu0 %v3780
        %4402 = vmatpush1.msra.mxu0 %v3779
        %4403 = vmatprep.subr.mxu0 %v3772
        %4404 = vmatpush1.msra.mxu0 %v3771
        %4405 = vmatprep.subr.mxu0 %v3764
        %4406 = vmatpush1.msra.mxu0 %v3763
        %4407 = vmatprep.subr.mxu0 %v4012
        %4408 = vmatpush2.msra.mxu0 %v4011
        %4409 = vmatprep.subr.mxu0 %v4004
        %4410 = vmatpush2.msra.mxu0 %v4003
        %4411 = vmatprep.subr.mxu0 %v3996
        %4412 = vmatpush2.msra.mxu0 %v3995
        %4413 = vmatprep.subr.mxu0 %v3988
        %4414 = vmatpush2.msra.mxu0 %v3987
        %4415 = vmatprep.subr.mxu0 %v3980
        %4416 = vmatpush2.msra.mxu0 %v3979
        %4417 = vmatprep.subr.mxu0 %v3972
        %4418 = vmatpush2.msra.mxu0 %v3971
        %4419 = vmatprep.subr.mxu0 %v3964
        %4420 = vmatpush2.msra.mxu0 %v3963
        %4421 = vmatprep.subr.mxu0 %v3956
        %4422 = vmatpush2.msra.mxu0 %v3955
        %4423 = vmatprep.subr.mxu0 %v3948
        %4424 = vmatpush2.msra.mxu0 %v3947
        %4425 = vmatprep.subr.mxu0 %v3940
        %4426 = vmatpush2.msra.mxu0 %v3939
        %4427 = vmatprep.subr.mxu0 %v3932
        %4428 = vmatpush2.msra.mxu0 %v3931
        %4429 = vmatprep.subr.mxu0 %v3924
        %4430 = vmatpush2.msra.mxu0 %v3923
        %4431 = vmatprep.subr.mxu0 %v3916
        %4432 = vmatpush2.msra.mxu0 %v3915
        %4433 = vmatprep.subr.mxu0 %v3908
        %4434 = vmatpush2.msra.mxu0 %v3907
        %4435 = vmatprep.subr.mxu0 %v3900
        %4436 = vmatpush2.msra.mxu0 %v3899
        %4437 = vmatprep.subr.mxu0 %v3892
        %4438 = vmatpush2.msra.mxu0 %v3891
        %4439 = vmatprep.mubr.f32.mxu0 0.0
        %4440 = vmatmul.mubr.f32.gmra.mxu0 0.0
        %v4441 = vpop.f32.mrf.mxu0
        %v4442 = vadd.f32 0.0, %v4441
        %v4443 = vpop.f32.mrf.mxu0
        %v4444 = vadd.f32 0.0, %v4443
        %4445 = vdwg.mxu0
        %4446 = vmatprep.subr.mxu0 %v3886
        %4447 = vmatpush1.msra.mxu0 %v3885
        %4448 = vmatprep.subr.mxu0 %v3878
        %4449 = vmatpush1.msra.mxu0 %v3877
        %4450 = vmatprep.subr.mxu0 %v3870
        %4451 = vmatpush1.msra.mxu0 %v3869
        %4452 = vmatprep.subr.mxu0 %v3862
        %4453 = vmatpush1.msra.mxu0 %v3861
        %4454 = vmatprep.subr.mxu0 %v3854
        %4455 = vmatpush1.msra.mxu0 %v3853
        %4456 = vmatprep.subr.mxu0 %v3846
        %4457 = vmatpush1.msra.mxu0 %v3845
        %4458 = vmatprep.subr.mxu0 %v3838
        %4459 = vmatpush1.msra.mxu0 %v3837
        %4460 = vmatprep.subr.mxu0 %v3830
        %4461 = vmatpush1.msra.mxu0 %v3829
        %4462 = vmatprep.subr.mxu0 %v3822
        %4463 = vmatpush1.msra.mxu0 %v3821
        %4464 = vmatprep.subr.mxu0 %v3814
        %4465 = vmatpush1.msra.mxu0 %v3813
        %4466 = vmatprep.subr.mxu0 %v3806
        %4467 = vmatpush1.msra.mxu0 %v3805
        %4468 = vmatprep.subr.mxu0 %v3798
        %4469 = vmatpush1.msra.mxu0 %v3797
        %4470 = vmatprep.subr.mxu0 %v3790
        %4471 = vmatpush1.msra.mxu0 %v3789
        %4472 = vmatprep.subr.mxu0 %v3782
        %4473 = vmatpush1.msra.mxu0 %v3781
        %4474 = vmatprep.subr.mxu0 %v3774
        %4475 = vmatpush1.msra.mxu0 %v3773
        %4476 = vmatprep.subr.mxu0 %v3766
        %4477 = vmatpush1.msra.mxu0 %v3765
        %4478 = vmatprep.subr.mxu0 %v4014
        %4479 = vmatpush2.msra.mxu0 %v4013
        %4480 = vmatprep.subr.mxu0 %v4006
        %4481 = vmatpush2.msra.mxu0 %v4005
        %4482 = vmatprep.subr.mxu0 %v3998
        %4483 = vmatpush2.msra.mxu0 %v3997
        %4484 = vmatprep.subr.mxu0 %v3990
        %4485 = vmatpush2.msra.mxu0 %v3989
        %4486 = vmatprep.subr.mxu0 %v3982
        %4487 = vmatpush2.msra.mxu0 %v3981
        %4488 = vmatprep.subr.mxu0 %v3974
        %4489 = vmatpush2.msra.mxu0 %v3973
        %4490 = vmatprep.subr.mxu0 %v3966
        %4491 = vmatpush2.msra.mxu0 %v3965
        %4492 = vmatprep.subr.mxu0 %v3958
        %4493 = vmatpush2.msra.mxu0 %v3957
        %4494 = vmatprep.subr.mxu0 %v3950
        %4495 = vmatpush2.msra.mxu0 %v3949
        %4496 = vmatprep.subr.mxu0 %v3942
        %4497 = vmatpush2.msra.mxu0 %v3941
        %4498 = vmatprep.subr.mxu0 %v3934
        %4499 = vmatpush2.msra.mxu0 %v3933
        %4500 = vmatprep.subr.mxu0 %v3926
        %4501 = vmatpush2.msra.mxu0 %v3925
        %4502 = vmatprep.subr.mxu0 %v3918
        %4503 = vmatpush2.msra.mxu0 %v3917
        %4504 = vmatprep.subr.mxu0 %v3910
        %4505 = vmatpush2.msra.mxu0 %v3909
        %4506 = vmatprep.subr.mxu0 %v3902
        %4507 = vmatpush2.msra.mxu0 %v3901
        %4508 = vmatprep.subr.mxu0 %v3894
        %4509 = vmatpush2.msra.mxu0 %v3893
        %4510 = vmatprep.mubr.f32.mxu0 0.0
        %4511 = vmatmul.mubr.f32.gmra.mxu0 0.0
        %v4512 = vpop.f32.mrf.mxu0
        %v4513 = vadd.f32 0.0, %v4512
        %v4514 = vpop.f32.mrf.mxu0
        %v4515 = vadd.f32 0.0, %v4514
        %4516 = vdwg.mxu0
        %4517 = vmatprep.subr.mxu0 %v3888
        %4518 = vmatpush1.msra.mxu0 %v3887
        %4519 = vmatprep.subr.mxu0 %v3880
        %4520 = vmatpush1.msra.mxu0 %v3879
        %4521 = vmatprep.subr.mxu0 %v3872
        %4522 = vmatpush1.msra.mxu0 %v3871
        %4523 = vmatprep.subr.mxu0 %v3864
        %4524 = vmatpush1.msra.mxu0 %v3863
        %4525 = vmatprep.subr.mxu0 %v3856
        %4526 = vmatpush1.msra.mxu0 %v3855
        %4527 = vmatprep.subr.mxu0 %v3848
        %4528 = vmatpush1.msra.mxu0 %v3847
        %4529 = vmatprep.subr.mxu0 %v3840
        %4530 = vmatpush1.msra.mxu0 %v3839
        %4531 = vmatprep.subr.mxu0 %v3832
        %4532 = vmatpush1.msra.mxu0 %v3831
        %4533 = vmatprep.subr.mxu0 %v3824
        %4534 = vmatpush1.msra.mxu0 %v3823
        %4535 = vmatprep.subr.mxu0 %v3816
        %4536 = vmatpush1.msra.mxu0 %v3815
        %4537 = vmatprep.subr.mxu0 %v3808
        %4538 = vmatpush1.msra.mxu0 %v3807
        %4539 = vmatprep.subr.mxu0 %v3800
        %4540 = vmatpush1.msra.mxu0 %v3799
        %4541 = vmatprep.subr.mxu0 %v3792
        %4542 = vmatpush1.msra.mxu0 %v3791
        %4543 = vmatprep.subr.mxu0 %v3784
        %4544 = vmatpush1.msra.mxu0 %v3783
        %4545 = vmatprep.subr.mxu0 %v3776
        %4546 = vmatpush1.msra.mxu0 %v3775
        %4547 = vmatprep.subr.mxu0 %v3768
        %4548 = vmatpush1.msra.mxu0 %v3767
        %4549 = vmatprep.subr.mxu0 %v4016
        %4550 = vmatpush2.msra.mxu0 %v4015
        %4551 = vmatprep.subr.mxu0 %v4008
        %4552 = vmatpush2.msra.mxu0 %v4007
        %4553 = vmatprep.subr.mxu0 %v4000
        %4554 = vmatpush2.msra.mxu0 %v3999
        %4555 = vmatprep.subr.mxu0 %v3992
        %4556 = vmatpush2.msra.mxu0 %v3991
        %4557 = vmatprep.subr.mxu0 %v3984
        %4558 = vmatpush2.msra.mxu0 %v3983
        %4559 = vmatprep.subr.mxu0 %v3976
        %4560 = vmatpush2.msra.mxu0 %v3975
        %4561 = vmatprep.subr.mxu0 %v3968
        %4562 = vmatpush2.msra.mxu0 %v3967
        %4563 = vmatprep.subr.mxu0 %v3960
        %4564 = vmatpush2.msra.mxu0 %v3959
        %4565 = vmatprep.subr.mxu0 %v3952
        %4566 = vmatpush2.msra.mxu0 %v3951
        %4567 = vmatprep.subr.mxu0 %v3944
        %4568 = vmatpush2.msra.mxu0 %v3943
        %4569 = vmatprep.subr.mxu0 %v3936
        %4570 = vmatpush2.msra.mxu0 %v3935
        %4571 = vmatprep.subr.mxu0 %v3928
        %4572 = vmatpush2.msra.mxu0 %v3927
        %4573 = vmatprep.subr.mxu0 %v3920
        %4574 = vmatpush2.msra.mxu0 %v3919
        %4575 = vmatprep.subr.mxu0 %v3912
        %4576 = vmatpush2.msra.mxu0 %v3911
        %4577 = vmatprep.subr.mxu0 %v3904
        %4578 = vmatpush2.msra.mxu0 %v3903
        %4579 = vmatprep.subr.mxu0 %v3896
        %4580 = vmatpush2.msra.mxu0 %v3895
        %4581 = vmatprep.mubr.f32.mxu0 0.0
        %4582 = vmatmul.mubr.f32.gmra.mxu0 0.0
        %v4583 = vpop.f32.mrf.mxu0
        %v4584 = vadd.f32 0.0, %v4583
        %v4585 = vpop.f32.mrf.mxu0
        %v4586 = vadd.f32 0.0, %v4585
        %4587 = vdwg.mxu0
        %4588 = vmatprep.subr.mxu0 %v3890
        %4589 = vmatpush1.msra.mxu0 %v3889
        %4590 = vmatprep.subr.mxu0 %v3882
        %4591 = vmatpush1.msra.mxu0 %v3881
        %4592 = vmatprep.subr.mxu0 %v3874
        %4593 = vmatpush1.msra.mxu0 %v3873
        %4594 = vmatprep.subr.mxu0 %v3866
        %4595 = vmatpush1.msra.mxu0 %v3865
        %4596 = vmatprep.subr.mxu0 %v3858
        %4597 = vmatpush1.msra.mxu0 %v3857
        %4598 = vmatprep.subr.mxu0 %v3850
        %4599 = vmatpush1.msra.mxu0 %v3849
        %4600 = vmatprep.subr.mxu0 %v3842
        %4601 = vmatpush1.msra.mxu0 %v3841
        %4602 = vmatprep.subr.mxu0 %v3834
        %4603 = vmatpush1.msra.mxu0 %v3833
        %4604 = vmatprep.subr.mxu0 %v3826
        %4605 = vmatpush1.msra.mxu0 %v3825
        %4606 = vmatprep.subr.mxu0 %v3818
        %4607 = vmatpush1.msra.mxu0 %v3817
        %4608 = vmatprep.subr.mxu0 %v3810
        %4609 = vmatpush1.msra.mxu0 %v3809
        %4610 = vmatprep.subr.mxu0 %v3802
        %4611 = vmatpush1.msra.mxu0 %v3801
        %4612 = vmatprep.subr.mxu0 %v3794
        %4613 = vmatpush1.msra.mxu0 %v3793
        %4614 = vmatprep.subr.mxu0 %v3786
        %4615 = vmatpush1.msra.mxu0 %v3785
        %4616 = vmatprep.subr.mxu0 %v3778
        %4617 = vmatpush1.msra.mxu0 %v3777
        %4618 = vmatprep.subr.mxu0 %v3770
        %4619 = vmatpush1.msra.mxu0 %v3769
        %4620 = vmatprep.subr.mxu0 %v4018
        %4621 = vmatpush2.msra.mxu0 %v4017
        %4622 = vmatprep.subr.mxu0 %v4010
        %4623 = vmatpush2.msra.mxu0 %v4009
        %4624 = vmatprep.subr.mxu0 %v4002
        %4625 = vmatpush2.msra.mxu0 %v4001
        %4626 = vmatprep.subr.mxu0 %v3994
        %4627 = vmatpush2.msra.mxu0 %v3993
        %4628 = vmatprep.subr.mxu0 %v3986
        %4629 = vmatpush2.msra.mxu0 %v3985
        %4630 = vmatprep.subr.mxu0 %v3978
        %4631 = vmatpush2.msra.mxu0 %v3977
        %4632 = vmatprep.subr.mxu0 %v3970
        %4633 = vmatpush2.msra.mxu0 %v3969
        %4634 = vmatprep.subr.mxu0 %v3962
        %4635 = vmatpush2.msra.mxu0 %v3961
        %4636 = vmatprep.subr.mxu0 %v3954
        %4637 = vmatpush2.msra.mxu0 %v3953
        %4638 = vmatprep.subr.mxu0 %v3946
        %4639 = vmatpush2.msra.mxu0 %v3945
        %4640 = vmatprep.subr.mxu0 %v3938
        %4641 = vmatpush2.msra.mxu0 %v3937
        %4642 = vmatprep.subr.mxu0 %v3930
        %4643 = vmatpush2.msra.mxu0 %v3929
        %4644 = vmatprep.subr.mxu0 %v3922
        %4645 = vmatpush2.msra.mxu0 %v3921
        %4646 = vmatprep.subr.mxu0 %v3914
        %4647 = vmatpush2.msra.mxu0 %v3913
        %4648 = vmatprep.subr.mxu0 %v3906
        %4649 = vmatpush2.msra.mxu0 %v3905
        %4650 = vmatprep.subr.mxu0 %v3898
        %4651 = vmatpush2.msra.mxu0 %v3897
        %4652 = vmatprep.mubr.f32.mxu0 0.0
        %4653 = vmatmul.mubr.f32.gmra.mxu0 0.0
        %v4654 = vpop.f32.mrf.mxu0
        %v4655 = vadd.f32 0.0, %v4654
        %v4656 = vpop.f32.mrf.mxu0
        %v4657 = vadd.f32 0.0, %v4656
        %4658 = vdwg.mxu0
        %v4659 = vadd.f32 %v4367, %v4442
        %v4660 = vadd.f32 %v4368, %v4444
        %v4661 = vadd.f32 %v4369, %v4513
        %v4662 = vadd.f32 %v4370, %v4515
        %v4663 = vadd.f32 %v4371, %v4584
        %v4664 = vadd.f32 %v4372, %v4586
        %v4665 = vadd.f32 %v4373, %v4655
        %v4666 = vadd.f32 %v4374, %v4657
        %v4667 = vxor.u32 %v4661, 2147483648
        %v4668 = vxor.u32 %v4662, 2147483648
        %v4669 = vmul.f32 %v4667, 1.442695
        %v4670 = vpow.pop %v4669
        %v4671 = vmul.f32 %v4668, 1.442695
        %v4672 = vpow.pop %v4671
        %v4673 = vadd.f32 %v4670, 1.0
        %v4674 = vadd.f32 %v4672, 1.0
        %v4675 = vrcp.pop %v4673
        %v4676 = vmul.f32 1.0, %v4675
        %v4677 = vrcp.pop %v4674
        %v4678 = vmul.f32 1.0, %v4677
        %v4679 = vmul.f32 %v4676, 0.0
        %v4680 = vmul.f32 %v4678, 0.0
        %v4681 = vxor.u32 %v4659, 2147483648
        %v4682 = vxor.u32 %v4660, 2147483648
        %v4683 = vmul.f32 %v4681, 1.442695
        %v4684 = vpow.pop %v4683
        %v4685 = vmul.f32 %v4682, 1.442695
        %v4686 = vpow.pop %v4685
        %v4687 = vadd.f32 %v4684, 1.0
        %v4688 = vadd.f32 %v4686, 1.0
        %v4689 = vrcp.pop %v4687
        %v4690 = vmul.f32 1.0, %v4689
        %v4691 = vrcp.pop %v4688
        %v4692 = vmul.f32 1.0, %v4691
        %v4693 = vtanh.pop %v4663
        %v4694 = vtanh.pop %v4664
        %v4695 = vmul.f32 %v4690, %v4693
        %v4696 = vmul.f32 %v4692, %v4694
        %v4697 = vadd.f32 %v4679, %v4695
        %v4698 = vadd.f32 %v4680, %v4696
        %v4699 = vxor.u32 %v4665, 2147483648
        %v4700 = vxor.u32 %v4666, 2147483648
        %v4701 = vmul.f32 %v4699, 1.442695
        %v4702 = vpow.pop %v4701
        %v4703 = vmul.f32 %v4700, 1.442695
        %v4704 = vpow.pop %v4703
        %v4705 = vadd.f32 %v4702, 1.0
        %v4706 = vadd.f32 %v4704, 1.0
        %v4707 = vrcp.pop %v4705
        %v4708 = vmul.f32 1.0, %v4707
        %v4709 = vrcp.pop %v4706
        %v4710 = vmul.f32 1.0, %v4709
        %v4711 = vtanh.pop %v4697
        %v4712 = vtanh.pop %v4698
        %v4713 = vmul.f32 %v4708, %v4711
        %v4714 = vmul.f32 %v4710, %v4712
        %p4715 = scmp.gt.s32.totalorder %s533, 0
        %s4716 = scalar_select %p4715, 1, 0
        %s4717 = scvt.s32.f32 %s4716
        %v4718 = vstv %s4717
        %v4719 = vmul.f32 %v4365, %v4718
        %v4720 = vmul.f32 %v4366, %v4718
        %p4721 = scmp.gt.s32.totalorder %s533, 3
        %s4722 = scalar_select %p4721, 1, 0
        %s4723 = scvt.s32.f32 %s4722
        %v4724 = vstv %s4723
        %v4725 = vmul.f32 %v4713, %v4724
        %v4726 = vmul.f32 %v4714, %v4724
        %v4727 = vld [vmem:[#allocation2 + $0x40] sm:$0xff]
        %v4728 = vld [vmem:[#allocation2 + $0x48] sm:$0xff]
        %v4729 = vld [vmem:[#allocation2 + $0x50] sm:$0xff]
        %v4730 = vld [vmem:[#allocation2 + $0x58] sm:$0xff]
        %v4731 = vld [vmem:[#allocation2 + $0x60] sm:$0xff]
        %v4732 = vld [vmem:[#allocation2 + $0x68] sm:$0xff]
        %v4733 = vld [vmem:[#allocation2 + $0x70] sm:$0xff]
        %v4734 = vld [vmem:[#allocation2 + $0x78] sm:$0xff]
        %4735 = vmatprep.subr.mxu0 %v3628
        %4736 = vmatpush1.msra.mxu0 %v3627
        %4737 = vmatprep.subr.mxu0 %v3620
        %4738 = vmatpush1.msra.mxu0 %v3619
        %4739 = vmatprep.subr.mxu0 %v3612
        %4740 = vmatpush1.msra.mxu0 %v3611
        %4741 = vmatprep.subr.mxu0 %v3604
        %4742 = vmatpush1.msra.mxu0 %v3603
        %4743 = vmatprep.subr.mxu0 %v3596
        %4744 = vmatpush1.msra.mxu0 %v3595
        %4745 = vmatprep.subr.mxu0 %v3588
        %4746 = vmatpush1.msra.mxu0 %v3587
        %4747 = vmatprep.subr.mxu0 %v3580
        %4748 = vmatpush1.msra.mxu0 %v3579
        %4749 = vmatprep.subr.mxu0 %v3572
        %4750 = vmatpush1.msra.mxu0 %v3571
        %4751 = vmatprep.subr.mxu0 %v3564
        %4752 = vmatpush1.msra.mxu0 %v3563
        %4753 = vmatprep.subr.mxu0 %v3556
        %4754 = vmatpush1.msra.mxu0 %v3555
        %4755 = vmatprep.subr.mxu0 %v3548
        %4756 = vmatpush1.msra.mxu0 %v3547
        %4757 = vmatprep.subr.mxu0 %v3540
        %4758 = vmatpush1.msra.mxu0 %v3539
        %4759 = vmatprep.subr.mxu0 %v3532
        %4760 = vmatpush1.msra.mxu0 %v3531
        %4761 = vmatprep.subr.mxu0 %v3524
        %4762 = vmatpush1.msra.mxu0 %v3523
        %4763 = vmatprep.subr.mxu0 %v3516
        %4764 = vmatpush1.msra.mxu0 %v3515
        %4765 = vmatprep.subr.mxu0 %v3508
        %4766 = vmatpush1.msra.mxu0 %v3507
        %4767 = vmatprep.subr.mxu0 %v3756
        %4768 = vmatpush2.msra.mxu0 %v3755
        %4769 = vmatprep.subr.mxu0 %v3748
        %4770 = vmatpush2.msra.mxu0 %v3747
        %4771 = vmatprep.subr.mxu0 %v3740
        %4772 = vmatpush2.msra.mxu0 %v3739
        %4773 = vmatprep.subr.mxu0 %v3732
        %4774 = vmatpush2.msra.mxu0 %v3731
        %4775 = vmatprep.subr.mxu0 %v3724
        %4776 = vmatpush2.msra.mxu0 %v3723
        %4777 = vmatprep.subr.mxu0 %v3716
        %4778 = vmatpush2.msra.mxu0 %v3715
        %4779 = vmatprep.subr.mxu0 %v3708
        %4780 = vmatpush2.msra.mxu0 %v3707
        %4781 = vmatprep.subr.mxu0 %v3700
        %4782 = vmatpush2.msra.mxu0 %v3699
        %4783 = vmatprep.subr.mxu0 %v3692
        %4784 = vmatpush2.msra.mxu0 %v3691
        %4785 = vmatprep.subr.mxu0 %v3684
        %4786 = vmatpush2.msra.mxu0 %v3683
        %4787 = vmatprep.subr.mxu0 %v3676
        %4788 = vmatpush2.msra.mxu0 %v3675
        %4789 = vmatprep.subr.mxu0 %v3668
        %4790 = vmatpush2.msra.mxu0 %v3667
        %4791 = vmatprep.subr.mxu0 %v3660
        %4792 = vmatpush2.msra.mxu0 %v3659
        %4793 = vmatprep.subr.mxu0 %v3652
        %4794 = vmatpush2.msra.mxu0 %v3651
        %4795 = vmatprep.subr.mxu0 %v3644
        %4796 = vmatpush2.msra.mxu0 %v3643
        %4797 = vmatprep.subr.mxu0 %v3636
        %4798 = vmatpush2.msra.mxu0 %v3635
        %4799 = vmatprep.mubr.f32.mxu0 %v4366
        %4800 = vmatmul.mubr.f32.gmra.mxu0 %v4365
        %v4801 = vpop.f32.mrf.mxu0
        %v4802 = vadd.f32 0.0, %v4801
        %v4803 = vpop.f32.mrf.mxu0
        %v4804 = vadd.f32 0.0, %v4803
        %4805 = vdwg.mxu0
        %4806 = vmatprep.subr.mxu0 %v3630
        %4807 = vmatpush1.msra.mxu0 %v3629
        %4808 = vmatprep.subr.mxu0 %v3622
        %4809 = vmatpush1.msra.mxu0 %v3621
        %4810 = vmatprep.subr.mxu0 %v3614
        %4811 = vmatpush1.msra.mxu0 %v3613
        %4812 = vmatprep.subr.mxu0 %v3606
        %4813 = vmatpush1.msra.mxu0 %v3605
        %4814 = vmatprep.subr.mxu0 %v3598
        %4815 = vmatpush1.msra.mxu0 %v3597
        %4816 = vmatprep.subr.mxu0 %v3590
        %4817 = vmatpush1.msra.mxu0 %v3589
        %4818 = vmatprep.subr.mxu0 %v3582
        %4819 = vmatpush1.msra.mxu0 %v3581
        %4820 = vmatprep.subr.mxu0 %v3574
        %4821 = vmatpush1.msra.mxu0 %v3573
        %4822 = vmatprep.subr.mxu0 %v3566
        %4823 = vmatpush1.msra.mxu0 %v3565
        %4824 = vmatprep.subr.mxu0 %v3558
        %4825 = vmatpush1.msra.mxu0 %v3557
        %4826 = vmatprep.subr.mxu0 %v3550
        %4827 = vmatpush1.msra.mxu0 %v3549
        %4828 = vmatprep.subr.mxu0 %v3542
        %4829 = vmatpush1.msra.mxu0 %v3541
        %4830 = vmatprep.subr.mxu0 %v3534
        %4831 = vmatpush1.msra.mxu0 %v3533
        %4832 = vmatprep.subr.mxu0 %v3526
        %4833 = vmatpush1.msra.mxu0 %v3525
        %4834 = vmatprep.subr.mxu0 %v3518
        %4835 = vmatpush1.msra.mxu0 %v3517
        %4836 = vmatprep.subr.mxu0 %v3510
        %4837 = vmatpush1.msra.mxu0 %v3509
        %4838 = vmatprep.subr.mxu0 %v3758
        %4839 = vmatpush2.msra.mxu0 %v3757
        %4840 = vmatprep.subr.mxu0 %v3750
        %4841 = vmatpush2.msra.mxu0 %v3749
        %4842 = vmatprep.subr.mxu0 %v3742
        %4843 = vmatpush2.msra.mxu0 %v3741
        %4844 = vmatprep.subr.mxu0 %v3734
        %4845 = vmatpush2.msra.mxu0 %v3733
        %4846 = vmatprep.subr.mxu0 %v3726
        %4847 = vmatpush2.msra.mxu0 %v3725
        %4848 = vmatprep.subr.mxu0 %v3718
        %4849 = vmatpush2.msra.mxu0 %v3717
        %4850 = vmatprep.subr.mxu0 %v3710
        %4851 = vmatpush2.msra.mxu0 %v3709
        %4852 = vmatprep.subr.mxu0 %v3702
        %4853 = vmatpush2.msra.mxu0 %v3701
        %4854 = vmatprep.subr.mxu0 %v3694
        %4855 = vmatpush2.msra.mxu0 %v3693
        %4856 = vmatprep.subr.mxu0 %v3686
        %4857 = vmatpush2.msra.mxu0 %v3685
        %4858 = vmatprep.subr.mxu0 %v3678
        %4859 = vmatpush2.msra.mxu0 %v3677
        %4860 = vmatprep.subr.mxu0 %v3670
        %4861 = vmatpush2.msra.mxu0 %v3669
        %4862 = vmatprep.subr.mxu0 %v3662
        %4863 = vmatpush2.msra.mxu0 %v3661
        %4864 = vmatprep.subr.mxu0 %v3654
        %4865 = vmatpush2.msra.mxu0 %v3653
        %4866 = vmatprep.subr.mxu0 %v3646
        %4867 = vmatpush2.msra.mxu0 %v3645
        %4868 = vmatprep.subr.mxu0 %v3638
        %4869 = vmatpush2.msra.mxu0 %v3637
        %4870 = vmatprep.mubr.f32.mxu0 %v4366
        %4871 = vmatmul.mubr.f32.gmra.mxu0 %v4365
        %v4872 = vpop.f32.mrf.mxu0
        %v4873 = vadd.f32 0.0, %v4872
        %v4874 = vpop.f32.mrf.mxu0
        %v4875 = vadd.f32 0.0, %v4874
        %4876 = vdwg.mxu0
        %4877 = vmatprep.subr.mxu0 %v3632
        %4878 = vmatpush1.msra.mxu0 %v3631
        %4879 = vmatprep.subr.mxu0 %v3624
        %4880 = vmatpush1.msra.mxu0 %v3623
        %4881 = vmatprep.subr.mxu0 %v3616
        %4882 = vmatpush1.msra.mxu0 %v3615
        %4883 = vmatprep.subr.mxu0 %v3608
        %4884 = vmatpush1.msra.mxu0 %v3607
        %4885 = vmatprep.subr.mxu0 %v3600
        %4886 = vmatpush1.msra.mxu0 %v3599
        %4887 = vmatprep.subr.mxu0 %v3592
        %4888 = vmatpush1.msra.mxu0 %v3591
        %4889 = vmatprep.subr.mxu0 %v3584
        %4890 = vmatpush1.msra.mxu0 %v3583
        %4891 = vmatprep.subr.mxu0 %v3576
        %4892 = vmatpush1.msra.mxu0 %v3575
        %4893 = vmatprep.subr.mxu0 %v3568
        %4894 = vmatpush1.msra.mxu0 %v3567
        %4895 = vmatprep.subr.mxu0 %v3560
        %4896 = vmatpush1.msra.mxu0 %v3559
        %4897 = vmatprep.subr.mxu0 %v3552
        %4898 = vmatpush1.msra.mxu0 %v3551
        %4899 = vmatprep.subr.mxu0 %v3544
        %4900 = vmatpush1.msra.mxu0 %v3543
        %4901 = vmatprep.subr.mxu0 %v3536
        %4902 = vmatpush1.msra.mxu0 %v3535
        %4903 = vmatprep.subr.mxu0 %v3528
        %4904 = vmatpush1.msra.mxu0 %v3527
        %4905 = vmatprep.subr.mxu0 %v3520
        %4906 = vmatpush1.msra.mxu0 %v3519
        %4907 = vmatprep.subr.mxu0 %v3512
        %4908 = vmatpush1.msra.mxu0 %v3511
        %4909 = vmatprep.subr.mxu0 %v3760
        %4910 = vmatpush2.msra.mxu0 %v3759
        %4911 = vmatprep.subr.mxu0 %v3752
        %4912 = vmatpush2.msra.mxu0 %v3751
        %4913 = vmatprep.subr.mxu0 %v3744
        %4914 = vmatpush2.msra.mxu0 %v3743
        %4915 = vmatprep.subr.mxu0 %v3736
        %4916 = vmatpush2.msra.mxu0 %v3735
        %4917 = vmatprep.subr.mxu0 %v3728
        %4918 = vmatpush2.msra.mxu0 %v3727
        %4919 = vmatprep.subr.mxu0 %v3720
        %4920 = vmatpush2.msra.mxu0 %v3719
        %4921 = vmatprep.subr.mxu0 %v3712
        %4922 = vmatpush2.msra.mxu0 %v3711
        %4923 = vmatprep.subr.mxu0 %v3704
        %4924 = vmatpush2.msra.mxu0 %v3703
        %4925 = vmatprep.subr.mxu0 %v3696
        %4926 = vmatpush2.msra.mxu0 %v3695
        %4927 = vmatprep.subr.mxu0 %v3688
        %4928 = vmatpush2.msra.mxu0 %v3687
        %4929 = vmatprep.subr.mxu0 %v3680
        %4930 = vmatpush2.msra.mxu0 %v3679
        %4931 = vmatprep.subr.mxu0 %v3672
        %4932 = vmatpush2.msra.mxu0 %v3671
        %4933 = vmatprep.subr.mxu0 %v3664
        %4934 = vmatpush2.msra.mxu0 %v3663
        %4935 = vmatprep.subr.mxu0 %v3656
        %4936 = vmatpush2.msra.mxu0 %v3655
        %4937 = vmatprep.subr.mxu0 %v3648
        %4938 = vmatpush2.msra.mxu0 %v3647
        %4939 = vmatprep.subr.mxu0 %v3640
        %4940 = vmatpush2.msra.mxu0 %v3639
        %4941 = vmatprep.mubr.f32.mxu0 %v4366
        %4942 = vmatmul.mubr.f32.gmra.mxu0 %v4365
        %v4943 = vpop.f32.mrf.mxu0
        %v4944 = vadd.f32 0.0, %v4943
        %v4945 = vpop.f32.mrf.mxu0
        %v4946 = vadd.f32 0.0, %v4945
        %4947 = vdwg.mxu0
        %4948 = vmatprep.subr.mxu0 %v3634
        %4949 = vmatpush1.msra.mxu0 %v3633
        %4950 = vmatprep.subr.mxu0 %v3626
        %4951 = vmatpush1.msra.mxu0 %v3625
        %4952 = vmatprep.subr.mxu0 %v3618
        %4953 = vmatpush1.msra.mxu0 %v3617
        %4954 = vmatprep.subr.mxu0 %v3610
        %4955 = vmatpush1.msra.mxu0 %v3609
        %4956 = vmatprep.subr.mxu0 %v3602
        %4957 = vmatpush1.msra.mxu0 %v3601
        %4958 = vmatprep.subr.mxu0 %v3594
        %4959 = vmatpush1.msra.mxu0 %v3593
        %4960 = vmatprep.subr.mxu0 %v3586
        %4961 = vmatpush1.msra.mxu0 %v3585
        %4962 = vmatprep.subr.mxu0 %v3578
        %4963 = vmatpush1.msra.mxu0 %v3577
        %4964 = vmatprep.subr.mxu0 %v3570
        %4965 = vmatpush1.msra.mxu0 %v3569
        %4966 = vmatprep.subr.mxu0 %v3562
        %4967 = vmatpush1.msra.mxu0 %v3561
        %4968 = vmatprep.subr.mxu0 %v3554
        %4969 = vmatpush1.msra.mxu0 %v3553
        %4970 = vmatprep.subr.mxu0 %v3546
        %4971 = vmatpush1.msra.mxu0 %v3545
        %4972 = vmatprep.subr.mxu0 %v3538
        %4973 = vmatpush1.msra.mxu0 %v3537
        %4974 = vmatprep.subr.mxu0 %v3530
        %4975 = vmatpush1.msra.mxu0 %v3529
        %4976 = vmatprep.subr.mxu0 %v3522
        %4977 = vmatpush1.msra.mxu0 %v3521
        %4978 = vmatprep.subr.mxu0 %v3514
        %4979 = vmatpush1.msra.mxu0 %v3513
        %4980 = vmatprep.subr.mxu0 %v3762
        %4981 = vmatpush2.msra.mxu0 %v3761
        %4982 = vmatprep.subr.mxu0 %v3754
        %4983 = vmatpush2.msra.mxu0 %v3753
        %4984 = vmatprep.subr.mxu0 %v3746
        %4985 = vmatpush2.msra.mxu0 %v3745
        %4986 = vmatprep.subr.mxu0 %v3738
        %4987 = vmatpush2.msra.mxu0 %v3737
        %4988 = vmatprep.subr.mxu0 %v3730
        %4989 = vmatpush2.msra.mxu0 %v3729
        %4990 = vmatprep.subr.mxu0 %v3722
        %4991 = vmatpush2.msra.mxu0 %v3721
        %4992 = vmatprep.subr.mxu0 %v3714
        %4993 = vmatpush2.msra.mxu0 %v3713
        %4994 = vmatprep.subr.mxu0 %v3706
        %4995 = vmatpush2.msra.mxu0 %v3705
        %4996 = vmatprep.subr.mxu0 %v3698
        %4997 = vmatpush2.msra.mxu0 %v3697
        %4998 = vmatprep.subr.mxu0 %v3690
        %4999 = vmatpush2.msra.mxu0 %v3689
        %5000 = vmatprep.subr.mxu0 %v3682
        %5001 = vmatpush2.msra.mxu0 %v3681
        %5002 = vmatprep.subr.mxu0 %v3674
        %5003 = vmatpush2.msra.mxu0 %v3673
        %5004 = vmatprep.subr.mxu0 %v3666
        %5005 = vmatpush2.msra.mxu0 %v3665
        %5006 = vmatprep.subr.mxu0 %v3658
        %5007 = vmatpush2.msra.mxu0 %v3657
        %5008 = vmatprep.subr.mxu0 %v3650
        %5009 = vmatpush2.msra.mxu0 %v3649
        %5010 = vmatprep.subr.mxu0 %v3642
        %5011 = vmatpush2.msra.mxu0 %v3641
        %5012 = vmatprep.mubr.f32.mxu0 %v4366
        %5013 = vmatmul.mubr.f32.gmra.mxu0 %v4365
        %v5014 = vpop.f32.mrf.mxu0
        %v5015 = vadd.f32 0.0, %v5014
        %v5016 = vpop.f32.mrf.mxu0
        %v5017 = vadd.f32 0.0, %v5016
        %5018 = vdwg.mxu0
        %v5019 = vadd.f32 %v4727, %v4802
        %v5020 = vadd.f32 %v4728, %v4804
        %v5021 = vadd.f32 %v4729, %v4873
        %v5022 = vadd.f32 %v4730, %v4875
        %v5023 = vadd.f32 %v4731, %v4944
        %v5024 = vadd.f32 %v4732, %v4946
        %v5025 = vadd.f32 %v4733, %v5015
        %v5026 = vadd.f32 %v4734, %v5017
        %v5027 = vxor.u32 %v5021, 2147483648
        %v5028 = vxor.u32 %v5022, 2147483648
        %v5029 = vmul.f32 %v5027, 1.442695
        %v5030 = vpow.pop %v5029
        %v5031 = vmul.f32 %v5028, 1.442695
        %v5032 = vpow.pop %v5031
        %v5033 = vadd.f32 %v5030, 1.0
        %v5034 = vadd.f32 %v5032, 1.0
        %v5035 = vrcp.pop %v5033
        %v5036 = vmul.f32 1.0, %v5035
        %v5037 = vrcp.pop %v5034
        %v5038 = vmul.f32 1.0, %v5037
        %v5039 = vmul.f32 %v5036, %v4349
        %v5040 = vmul.f32 %v5038, %v4350
        %v5041 = vxor.u32 %v5019, 2147483648
        %v5042 = vxor.u32 %v5020, 2147483648
        %v5043 = vmul.f32 %v5041, 1.442695
        %v5044 = vpow.pop %v5043
        %v5045 = vmul.f32 %v5042, 1.442695
        %v5046 = vpow.pop %v5045
        %v5047 = vadd.f32 %v5044, 1.0
        %v5048 = vadd.f32 %v5046, 1.0
        %v5049 = vrcp.pop %v5047
        %v5050 = vmul.f32 1.0, %v5049
        %v5051 = vrcp.pop %v5048
        %v5052 = vmul.f32 1.0, %v5051
        %v5053 = vtanh.pop %v5023
        %v5054 = vtanh.pop %v5024
        %v5055 = vmul.f32 %v5050, %v5053
        %v5056 = vmul.f32 %v5052, %v5054
        %v5057 = vadd.f32 %v5039, %v5055
        %v5058 = vadd.f32 %v5040, %v5056
        %v5059 = vxor.u32 %v5025, 2147483648
        %v5060 = vxor.u32 %v5026, 2147483648
        %v5061 = vmul.f32 %v5059, 1.442695
        %v5062 = vpow.pop %v5061
        %v5063 = vmul.f32 %v5060, 1.442695
        %v5064 = vpow.pop %v5063
        %v5065 = vadd.f32 %v5062, 1.0
        %v5066 = vadd.f32 %v5064, 1.0
        %v5067 = vrcp.pop %v5065
        %v5068 = vmul.f32 1.0, %v5067
        %v5069 = vrcp.pop %v5066
        %v5070 = vmul.f32 1.0, %v5069
        %v5071 = vtanh.pop %v5057
        %v5072 = vtanh.pop %v5058
        %v5073 = vmul.f32 %v5068, %v5071
        %v5074 = vmul.f32 %v5070, %v5072
        %v5075 = vld [vmem:[#allocation3 + $0x80] sm:$0xff]
        %v5076 = vld [vmem:[#allocation3 + $0x88] sm:$0xff]
        %v5077 = vld [vmem:[#allocation3 + $0x90] sm:$0xff]
        %v5078 = vld [vmem:[#allocation3 + $0x98] sm:$0xff]
        %v5079 = vld [vmem:[#allocation3 + $0xa0] sm:$0xff]
        %v5080 = vld [vmem:[#allocation3 + $0xa8] sm:$0xff]
        %v5081 = vld [vmem:[#allocation3 + $0xb0] sm:$0xff]
        %v5082 = vld [vmem:[#allocation3 + $0xb8] sm:$0xff]
        %5083 = vmatprep.subr.mxu0 %v3884
        %5084 = vmatpush1.msra.mxu0 %v3883
        %5085 = vmatprep.subr.mxu0 %v3876
        %5086 = vmatpush1.msra.mxu0 %v3875
        %5087 = vmatprep.subr.mxu0 %v3868
        %5088 = vmatpush1.msra.mxu0 %v3867
        %5089 = vmatprep.subr.mxu0 %v3860
        %5090 = vmatpush1.msra.mxu0 %v3859
        %5091 = vmatprep.subr.mxu0 %v3852
        %5092 = vmatpush1.msra.mxu0 %v3851
        %5093 = vmatprep.subr.mxu0 %v3844
        %5094 = vmatpush1.msra.mxu0 %v3843
        %5095 = vmatprep.subr.mxu0 %v3836
        %5096 = vmatpush1.msra.mxu0 %v3835
        %5097 = vmatprep.subr.mxu0 %v3828
        %5098 = vmatpush1.msra.mxu0 %v3827
        %5099 = vmatprep.subr.mxu0 %v3820
        %5100 = vmatpush1.msra.mxu0 %v3819
        %5101 = vmatprep.subr.mxu0 %v3812
        %5102 = vmatpush1.msra.mxu0 %v3811
        %5103 = vmatprep.subr.mxu0 %v3804
        %5104 = vmatpush1.msra.mxu0 %v3803
        %5105 = vmatprep.subr.mxu0 %v3796
        %5106 = vmatpush1.msra.mxu0 %v3795
        %5107 = vmatprep.subr.mxu0 %v3788
        %5108 = vmatpush1.msra.mxu0 %v3787
        %5109 = vmatprep.subr.mxu0 %v3780
        %5110 = vmatpush1.msra.mxu0 %v3779
        %5111 = vmatprep.subr.mxu0 %v3772
        %5112 = vmatpush1.msra.mxu0 %v3771
        %5113 = vmatprep.subr.mxu0 %v3764
        %5114 = vmatpush1.msra.mxu0 %v3763
        %5115 = vmatprep.subr.mxu0 %v4012
        %5116 = vmatpush2.msra.mxu0 %v4011
        %5117 = vmatprep.subr.mxu0 %v4004
        %5118 = vmatpush2.msra.mxu0 %v4003
        %5119 = vmatprep.subr.mxu0 %v3996
        %5120 = vmatpush2.msra.mxu0 %v3995
        %5121 = vmatprep.subr.mxu0 %v3988
        %5122 = vmatpush2.msra.mxu0 %v3987
        %5123 = vmatprep.subr.mxu0 %v3980
        %5124 = vmatpush2.msra.mxu0 %v3979
        %5125 = vmatprep.subr.mxu0 %v3972
        %5126 = vmatpush2.msra.mxu0 %v3971
        %5127 = vmatprep.subr.mxu0 %v3964
        %5128 = vmatpush2.msra.mxu0 %v3963
        %5129 = vmatprep.subr.mxu0 %v3956
        %5130 = vmatpush2.msra.mxu0 %v3955
        %5131 = vmatprep.subr.mxu0 %v3948
        %5132 = vmatpush2.msra.mxu0 %v3947
        %5133 = vmatprep.subr.mxu0 %v3940
        %5134 = vmatpush2.msra.mxu0 %v3939
        %5135 = vmatprep.subr.mxu0 %v3932
        %5136 = vmatpush2.msra.mxu0 %v3931
        %5137 = vmatprep.subr.mxu0 %v3924
        %5138 = vmatpush2.msra.mxu0 %v3923
        %5139 = vmatprep.subr.mxu0 %v3916
        %5140 = vmatpush2.msra.mxu0 %v3915
        %5141 = vmatprep.subr.mxu0 %v3908
        %5142 = vmatpush2.msra.mxu0 %v3907
        %5143 = vmatprep.subr.mxu0 %v3900
        %5144 = vmatpush2.msra.mxu0 %v3899
        %5145 = vmatprep.subr.mxu0 %v3892
        %5146 = vmatpush2.msra.mxu0 %v3891
        %5147 = vmatprep.mubr.f32.mxu0 %v4714
        %5148 = vmatmul.mubr.f32.gmra.mxu0 %v4713
        %v5149 = vpop.f32.mrf.mxu0
        %v5150 = vadd.f32 0.0, %v5149
        %v5151 = vpop.f32.mrf.mxu0
        %v5152 = vadd.f32 0.0, %v5151
        %5153 = vdwg.mxu0
        %5154 = vmatprep.subr.mxu0 %v3886
        %5155 = vmatpush1.msra.mxu0 %v3885
        %5156 = vmatprep.subr.mxu0 %v3878
        %5157 = vmatpush1.msra.mxu0 %v3877
        %5158 = vmatprep.subr.mxu0 %v3870
        %5159 = vmatpush1.msra.mxu0 %v3869
        %5160 = vmatprep.subr.mxu0 %v3862
        %5161 = vmatpush1.msra.mxu0 %v3861
        %5162 = vmatprep.subr.mxu0 %v3854
        %5163 = vmatpush1.msra.mxu0 %v3853
        %5164 = vmatprep.subr.mxu0 %v3846
        %5165 = vmatpush1.msra.mxu0 %v3845
        %5166 = vmatprep.subr.mxu0 %v3838
        %5167 = vmatpush1.msra.mxu0 %v3837
        %5168 = vmatprep.subr.mxu0 %v3830
        %5169 = vmatpush1.msra.mxu0 %v3829
        %5170 = vmatprep.subr.mxu0 %v3822
        %5171 = vmatpush1.msra.mxu0 %v3821
        %5172 = vmatprep.subr.mxu0 %v3814
        %5173 = vmatpush1.msra.mxu0 %v3813
        %5174 = vmatprep.subr.mxu0 %v3806
        %5175 = vmatpush1.msra.mxu0 %v3805
        %5176 = vmatprep.subr.mxu0 %v3798
        %5177 = vmatpush1.msra.mxu0 %v3797
        %5178 = vmatprep.subr.mxu0 %v3790
        %5179 = vmatpush1.msra.mxu0 %v3789
        %5180 = vmatprep.subr.mxu0 %v3782
        %5181 = vmatpush1.msra.mxu0 %v3781
        %5182 = vmatprep.subr.mxu0 %v3774
        %5183 = vmatpush1.msra.mxu0 %v3773
        %5184 = vmatprep.subr.mxu0 %v3766
        %5185 = vmatpush1.msra.mxu0 %v3765
        %5186 = vmatprep.subr.mxu0 %v4014
        %5187 = vmatpush2.msra.mxu0 %v4013
        %5188 = vmatprep.subr.mxu0 %v4006
        %5189 = vmatpush2.msra.mxu0 %v4005
        %5190 = vmatprep.subr.mxu0 %v3998
        %5191 = vmatpush2.msra.mxu0 %v3997
        %5192 = vmatprep.subr.mxu0 %v3990
        %5193 = vmatpush2.msra.mxu0 %v3989
        %5194 = vmatprep.subr.mxu0 %v3982
        %5195 = vmatpush2.msra.mxu0 %v3981
        %5196 = vmatprep.subr.mxu0 %v3974
        %5197 = vmatpush2.msra.mxu0 %v3973
        %5198 = vmatprep.subr.mxu0 %v3966
        %5199 = vmatpush2.msra.mxu0 %v3965
        %5200 = vmatprep.subr.mxu0 %v3958
        %5201 = vmatpush2.msra.mxu0 %v3957
        %5202 = vmatprep.subr.mxu0 %v3950
        %5203 = vmatpush2.msra.mxu0 %v3949
        %5204 = vmatprep.subr.mxu0 %v3942
        %5205 = vmatpush2.msra.mxu0 %v3941
        %5206 = vmatprep.subr.mxu0 %v3934
        %5207 = vmatpush2.msra.mxu0 %v3933
        %5208 = vmatprep.subr.mxu0 %v3926
        %5209 = vmatpush2.msra.mxu0 %v3925
        %5210 = vmatprep.subr.mxu0 %v3918
        %5211 = vmatpush2.msra.mxu0 %v3917
        %5212 = vmatprep.subr.mxu0 %v3910
        %5213 = vmatpush2.msra.mxu0 %v3909
        %5214 = vmatprep.subr.mxu0 %v3902
        %5215 = vmatpush2.msra.mxu0 %v3901
        %5216 = vmatprep.subr.mxu0 %v3894
        %5217 = vmatpush2.msra.mxu0 %v3893
        %5218 = vmatprep.mubr.f32.mxu0 %v4714
        %5219 = vmatmul.mubr.f32.gmra.mxu0 %v4713
        %v5220 = vpop.f32.mrf.mxu0
        %v5221 = vadd.f32 0.0, %v5220
        %v5222 = vpop.f32.mrf.mxu0
        %v5223 = vadd.f32 0.0, %v5222
        %5224 = vdwg.mxu0
        %5225 = vmatprep.subr.mxu0 %v3888
        %5226 = vmatpush1.msra.mxu0 %v3887
        %5227 = vmatprep.subr.mxu0 %v3880
        %5228 = vmatpush1.msra.mxu0 %v3879
        %5229 = vmatprep.subr.mxu0 %v3872
        %5230 = vmatpush1.msra.mxu0 %v3871
        %5231 = vmatprep.subr.mxu0 %v3864
        %5232 = vmatpush1.msra.mxu0 %v3863
        %5233 = vmatprep.subr.mxu0 %v3856
        %5234 = vmatpush1.msra.mxu0 %v3855
        %5235 = vmatprep.subr.mxu0 %v3848
        %5236 = vmatpush1.msra.mxu0 %v3847
        %5237 = vmatprep.subr.mxu0 %v3840
        %5238 = vmatpush1.msra.mxu0 %v3839
        %5239 = vmatprep.subr.mxu0 %v3832
        %5240 = vmatpush1.msra.mxu0 %v3831
        %5241 = vmatprep.subr.mxu0 %v3824
        %5242 = vmatpush1.msra.mxu0 %v3823
        %5243 = vmatprep.subr.mxu0 %v3816
        %5244 = vmatpush1.msra.mxu0 %v3815
        %5245 = vmatprep.subr.mxu0 %v3808
        %5246 = vmatpush1.msra.mxu0 %v3807
        %5247 = vmatprep.subr.mxu0 %v3800
        %5248 = vmatpush1.msra.mxu0 %v3799
        %5249 = vmatprep.subr.mxu0 %v3792
        %5250 = vmatpush1.msra.mxu0 %v3791
        %5251 = vmatprep.subr.mxu0 %v3784
        %5252 = vmatpush1.msra.mxu0 %v3783
        %5253 = vmatprep.subr.mxu0 %v3776
        %5254 = vmatpush1.msra.mxu0 %v3775
        %5255 = vmatprep.subr.mxu0 %v3768
        %5256 = vmatpush1.msra.mxu0 %v3767
        %5257 = vmatprep.subr.mxu0 %v4016
        %5258 = vmatpush2.msra.mxu0 %v4015
        %5259 = vmatprep.subr.mxu0 %v4008
        %5260 = vmatpush2.msra.mxu0 %v4007
        %5261 = vmatprep.subr.mxu0 %v4000
        %5262 = vmatpush2.msra.mxu0 %v3999
        %5263 = vmatprep.subr.mxu0 %v3992
        %5264 = vmatpush2.msra.mxu0 %v3991
        %5265 = vmatprep.subr.mxu0 %v3984
        %5266 = vmatpush2.msra.mxu0 %v3983
        %5267 = vmatprep.subr.mxu0 %v3976
        %5268 = vmatpush2.msra.mxu0 %v3975
        %5269 = vmatprep.subr.mxu0 %v3968
        %5270 = vmatpush2.msra.mxu0 %v3967
        %5271 = vmatprep.subr.mxu0 %v3960
        %5272 = vmatpush2.msra.mxu0 %v3959
        %5273 = vmatprep.subr.mxu0 %v3952
        %5274 = vmatpush2.msra.mxu0 %v3951
        %5275 = vmatprep.subr.mxu0 %v3944
        %5276 = vmatpush2.msra.mxu0 %v3943
        %5277 = vmatprep.subr.mxu0 %v3936
        %5278 = vmatpush2.msra.mxu0 %v3935
        %5279 = vmatprep.subr.mxu0 %v3928
        %5280 = vmatpush2.msra.mxu0 %v3927
        %5281 = vmatprep.subr.mxu0 %v3920
        %5282 = vmatpush2.msra.mxu0 %v3919
        %5283 = vmatprep.subr.mxu0 %v3912
        %5284 = vmatpush2.msra.mxu0 %v3911
        %5285 = vmatprep.subr.mxu0 %v3904
        %5286 = vmatpush2.msra.mxu0 %v3903
        %5287 = vmatprep.subr.mxu0 %v3896
        %5288 = vmatpush2.msra.mxu0 %v3895
        %5289 = vmatprep.mubr.f32.mxu0 %v4714
        %5290 = vmatmul.mubr.f32.gmra.mxu0 %v4713
        %v5291 = vpop.f32.mrf.mxu0
        %v5292 = vadd.f32 0.0, %v5291
        %v5293 = vpop.f32.mrf.mxu0
        %v5294 = vadd.f32 0.0, %v5293
        %5295 = vdwg.mxu0
        %5296 = vmatprep.subr.mxu0 %v3890
        %5297 = vmatpush1.msra.mxu0 %v3889
        %5298 = vmatprep.subr.mxu0 %v3882
        %5299 = vmatpush1.msra.mxu0 %v3881
        %5300 = vmatprep.subr.mxu0 %v3874
        %5301 = vmatpush1.msra.mxu0 %v3873
        %5302 = vmatprep.subr.mxu0 %v3866
        %5303 = vmatpush1.msra.mxu0 %v3865
        %5304 = vmatprep.subr.mxu0 %v3858
        %5305 = vmatpush1.msra.mxu0 %v3857
        %5306 = vmatprep.subr.mxu0 %v3850
        %5307 = vmatpush1.msra.mxu0 %v3849
        %5308 = vmatprep.subr.mxu0 %v3842
        %5309 = vmatpush1.msra.mxu0 %v3841
        %5310 = vmatprep.subr.mxu0 %v3834
        %5311 = vmatpush1.msra.mxu0 %v3833
        %5312 = vmatprep.subr.mxu0 %v3826
        %5313 = vmatpush1.msra.mxu0 %v3825
        %5314 = vmatprep.subr.mxu0 %v3818
        %5315 = vmatpush1.msra.mxu0 %v3817
        %5316 = vmatprep.subr.mxu0 %v3810
        %5317 = vmatpush1.msra.mxu0 %v3809
        %5318 = vmatprep.subr.mxu0 %v3802
        %5319 = vmatpush1.msra.mxu0 %v3801
        %5320 = vmatprep.subr.mxu0 %v3794
        %5321 = vmatpush1.msra.mxu0 %v3793
        %5322 = vmatprep.subr.mxu0 %v3786
        %5323 = vmatpush1.msra.mxu0 %v3785
        %5324 = vmatprep.subr.mxu0 %v3778
        %5325 = vmatpush1.msra.mxu0 %v3777
        %5326 = vmatprep.subr.mxu0 %v3770
        %5327 = vmatpush1.msra.mxu0 %v3769
        %5328 = vmatprep.subr.mxu0 %v4018
        %5329 = vmatpush2.msra.mxu0 %v4017
        %5330 = vmatprep.subr.mxu0 %v4010
        %5331 = vmatpush2.msra.mxu0 %v4009
        %5332 = vmatprep.subr.mxu0 %v4002
        %5333 = vmatpush2.msra.mxu0 %v4001
        %5334 = vmatprep.subr.mxu0 %v3994
        %5335 = vmatpush2.msra.mxu0 %v3993
        %5336 = vmatprep.subr.mxu0 %v3986
        %5337 = vmatpush2.msra.mxu0 %v3985
        %5338 = vmatprep.subr.mxu0 %v3978
        %5339 = vmatpush2.msra.mxu0 %v3977
        %5340 = vmatprep.subr.mxu0 %v3970
        %5341 = vmatpush2.msra.mxu0 %v3969
        %5342 = vmatprep.subr.mxu0 %v3962
        %5343 = vmatpush2.msra.mxu0 %v3961
        %5344 = vmatprep.subr.mxu0 %v3954
        %5345 = vmatpush2.msra.mxu0 %v3953
        %5346 = vmatprep.subr.mxu0 %v3946
        %5347 = vmatpush2.msra.mxu0 %v3945
        %5348 = vmatprep.subr.mxu0 %v3938
        %5349 = vmatpush2.msra.mxu0 %v3937
        %5350 = vmatprep.subr.mxu0 %v3930
        %5351 = vmatpush2.msra.mxu0 %v3929
        %5352 = vmatprep.subr.mxu0 %v3922
        %5353 = vmatpush2.msra.mxu0 %v3921
        %5354 = vmatprep.subr.mxu0 %v3914
        %5355 = vmatpush2.msra.mxu0 %v3913
        %5356 = vmatprep.subr.mxu0 %v3906
        %5357 = vmatpush2.msra.mxu0 %v3905
        %5358 = vmatprep.subr.mxu0 %v3898
        %5359 = vmatpush2.msra.mxu0 %v3897
        %5360 = vmatprep.mubr.f32.mxu0 %v4714
        %5361 = vmatmul.mubr.f32.gmra.mxu0 %v4713
        %v5362 = vpop.f32.mrf.mxu0
        %v5363 = vadd.f32 0.0, %v5362
        %v5364 = vpop.f32.mrf.mxu0
        %v5365 = vadd.f32 0.0, %v5364
        %5366 = vdwg.mxu0
        %v5367 = vadd.f32 %v5075, %v5150
        %v5368 = vadd.f32 %v5076, %v5152
        %v5369 = vadd.f32 %v5077, %v5221
        %v5370 = vadd.f32 %v5078, %v5223
        %v5371 = vadd.f32 %v5079, %v5292
        %v5372 = vadd.f32 %v5080, %v5294
        %v5373 = vadd.f32 %v5081, %v5363
        %v5374 = vadd.f32 %v5082, %v5365
        %v5375 = vxor.u32 %v5369, 2147483648
        %v5376 = vxor.u32 %v5370, 2147483648
        %v5377 = vmul.f32 %v5375, 1.442695
        %v5378 = vpow.pop %v5377
        %v5379 = vmul.f32 %v5376, 1.442695
        %v5380 = vpow.pop %v5379
        %v5381 = vadd.f32 %v5378, 1.0
        %v5382 = vadd.f32 %v5380, 1.0
        %v5383 = vrcp.pop %v5381
        %v5384 = vmul.f32 1.0, %v5383
        %v5385 = vrcp.pop %v5382
        %v5386 = vmul.f32 1.0, %v5385
        %v5387 = vmul.f32 %v5384, %v4697
        %v5388 = vmul.f32 %v5386, %v4698
        %v5389 = vxor.u32 %v5367, 2147483648
        %v5390 = vxor.u32 %v5368, 2147483648
        %v5391 = vmul.f32 %v5389, 1.442695
        %v5392 = vpow.pop %v5391
        %v5393 = vmul.f32 %v5390, 1.442695
        %v5394 = vpow.pop %v5393
        %v5395 = vadd.f32 %v5392, 1.0
        %v5396 = vadd.f32 %v5394, 1.0
        %v5397 = vrcp.pop %v5395
        %v5398 = vmul.f32 1.0, %v5397
        %v5399 = vrcp.pop %v5396
        %v5400 = vmul.f32 1.0, %v5399
        %v5401 = vtanh.pop %v5371
        %v5402 = vtanh.pop %v5372
        %v5403 = vmul.f32 %v5398, %v5401
        %v5404 = vmul.f32 %v5400, %v5402
        %v5405 = vadd.f32 %v5387, %v5403
        %v5406 = vadd.f32 %v5388, %v5404
        %v5407 = vxor.u32 %v5373, 2147483648
        %v5408 = vxor.u32 %v5374, 2147483648
        %v5409 = vmul.f32 %v5407, 1.442695
        %v5410 = vpow.pop %v5409
        %v5411 = vmul.f32 %v5408, 1.442695
        %v5412 = vpow.pop %v5411
        %v5413 = vadd.f32 %v5410, 1.0
        %v5414 = vadd.f32 %v5412, 1.0
        %v5415 = vrcp.pop %v5413
        %v5416 = vmul.f32 1.0, %v5415
        %v5417 = vrcp.pop %v5414
        %v5418 = vmul.f32 1.0, %v5417
        %v5419 = vtanh.pop %v5405
        %v5420 = vtanh.pop %v5406
        %v5421 = vmul.f32 %v5416, %v5419
        %v5422 = vmul.f32 %v5418, %v5420
        %p5423 = scmp.gt.s32.totalorder %s533, 1
        %s5424 = scalar_select %p5423, 1, 0
        %s5425 = scvt.s32.f32 %s5424
        %v5426 = vstv %s5425
        %v5427 = vmul.f32 %v5073, %v5426
        %v5428 = vmul.f32 %v5074, %v5426
        %p5429 = scmp.gt.s32.totalorder %s533, 2
        %s5430 = scalar_select %p5429, 1, 0
        %s5431 = scvt.s32.f32 %s5430
        %v5432 = vstv %s5431
        %v5433 = vmul.f32 %v5421, %v5432
        %v5434 = vmul.f32 %v5422, %v5432
        %v5435 = vld [vmem:[#allocation2 + $0x80] sm:$0xff]
        %v5436 = vld [vmem:[#allocation2 + $0x88] sm:$0xff]
        %v5437 = vld [vmem:[#allocation2 + $0x90] sm:$0xff]
        %v5438 = vld [vmem:[#allocation2 + $0x98] sm:$0xff]
        %v5439 = vld [vmem:[#allocation2 + $0xa0] sm:$0xff]
        %v5440 = vld [vmem:[#allocation2 + $0xa8] sm:$0xff]
        %v5441 = vld [vmem:[#allocation2 + $0xb0] sm:$0xff]
        %v5442 = vld [vmem:[#allocation2 + $0xb8] sm:$0xff]
        %5443 = vmatprep.subr.mxu0 %v3628
        %5444 = vmatpush1.msra.mxu0 %v3627
        %5445 = vmatprep.subr.mxu0 %v3620
        %5446 = vmatpush1.msra.mxu0 %v3619
        %5447 = vmatprep.subr.mxu0 %v3612
        %5448 = vmatpush1.msra.mxu0 %v3611
        %5449 = vmatprep.subr.mxu0 %v3604
        %5450 = vmatpush1.msra.mxu0 %v3603
        %5451 = vmatprep.subr.mxu0 %v3596
        %5452 = vmatpush1.msra.mxu0 %v3595
        %5453 = vmatprep.subr.mxu0 %v3588
        %5454 = vmatpush1.msra.mxu0 %v3587
        %5455 = vmatprep.subr.mxu0 %v3580
        %5456 = vmatpush1.msra.mxu0 %v3579
        %5457 = vmatprep.subr.mxu0 %v3572
        %5458 = vmatpush1.msra.mxu0 %v3571
        %5459 = vmatprep.subr.mxu0 %v3564
        %5460 = vmatpush1.msra.mxu0 %v3563
        %5461 = vmatprep.subr.mxu0 %v3556
        %5462 = vmatpush1.msra.mxu0 %v3555
        %5463 = vmatprep.subr.mxu0 %v3548
        %5464 = vmatpush1.msra.mxu0 %v3547
        %5465 = vmatprep.subr.mxu0 %v3540
        %5466 = vmatpush1.msra.mxu0 %v3539
        %5467 = vmatprep.subr.mxu0 %v3532
        %5468 = vmatpush1.msra.mxu0 %v3531
        %5469 = vmatprep.subr.mxu0 %v3524
        %5470 = vmatpush1.msra.mxu0 %v3523
        %5471 = vmatprep.subr.mxu0 %v3516
        %5472 = vmatpush1.msra.mxu0 %v3515
        %5473 = vmatprep.subr.mxu0 %v3508
        %5474 = vmatpush1.msra.mxu0 %v3507
        %5475 = vmatprep.subr.mxu0 %v3756
        %5476 = vmatpush2.msra.mxu0 %v3755
        %5477 = vmatprep.subr.mxu0 %v3748
        %5478 = vmatpush2.msra.mxu0 %v3747
        %5479 = vmatprep.subr.mxu0 %v3740
        %5480 = vmatpush2.msra.mxu0 %v3739
        %5481 = vmatprep.subr.mxu0 %v3732
        %5482 = vmatpush2.msra.mxu0 %v3731
        %5483 = vmatprep.subr.mxu0 %v3724
        %5484 = vmatpush2.msra.mxu0 %v3723
        %5485 = vmatprep.subr.mxu0 %v3716
        %5486 = vmatpush2.msra.mxu0 %v3715
        %5487 = vmatprep.subr.mxu0 %v3708
        %5488 = vmatpush2.msra.mxu0 %v3707
        %5489 = vmatprep.subr.mxu0 %v3700
        %5490 = vmatpush2.msra.mxu0 %v3699
        %5491 = vmatprep.subr.mxu0 %v3692
        %5492 = vmatpush2.msra.mxu0 %v3691
        %5493 = vmatprep.subr.mxu0 %v3684
        %5494 = vmatpush2.msra.mxu0 %v3683
        %5495 = vmatprep.subr.mxu0 %v3676
        %5496 = vmatpush2.msra.mxu0 %v3675
        %5497 = vmatprep.subr.mxu0 %v3668
        %5498 = vmatpush2.msra.mxu0 %v3667
        %5499 = vmatprep.subr.mxu0 %v3660
        %5500 = vmatpush2.msra.mxu0 %v3659
        %5501 = vmatprep.subr.mxu0 %v3652
        %5502 = vmatpush2.msra.mxu0 %v3651
        %5503 = vmatprep.subr.mxu0 %v3644
        %5504 = vmatpush2.msra.mxu0 %v3643
        %5505 = vmatprep.subr.mxu0 %v3636
        %5506 = vmatpush2.msra.mxu0 %v3635
        %5507 = vmatprep.mubr.f32.mxu0 %v5074
        %5508 = vmatmul.mubr.f32.gmra.mxu0 %v5073
        %v5509 = vpop.f32.mrf.mxu0
        %v5510 = vadd.f32 0.0, %v5509
        %v5511 = vpop.f32.mrf.mxu0
        %v5512 = vadd.f32 0.0, %v5511
        %5513 = vdwg.mxu0
        %5514 = vmatprep.subr.mxu0 %v3630
        %5515 = vmatpush1.msra.mxu0 %v3629
        %5516 = vmatprep.subr.mxu0 %v3622
        %5517 = vmatpush1.msra.mxu0 %v3621
        %5518 = vmatprep.subr.mxu0 %v3614
        %5519 = vmatpush1.msra.mxu0 %v3613
        %5520 = vmatprep.subr.mxu0 %v3606
        %5521 = vmatpush1.msra.mxu0 %v3605
        %5522 = vmatprep.subr.mxu0 %v3598
        %5523 = vmatpush1.msra.mxu0 %v3597
        %5524 = vmatprep.subr.mxu0 %v3590
        %5525 = vmatpush1.msra.mxu0 %v3589
        %5526 = vmatprep.subr.mxu0 %v3582
        %5527 = vmatpush1.msra.mxu0 %v3581
        %5528 = vmatprep.subr.mxu0 %v3574
        %5529 = vmatpush1.msra.mxu0 %v3573
        %5530 = vmatprep.subr.mxu0 %v3566
        %5531 = vmatpush1.msra.mxu0 %v3565
        %5532 = vmatprep.subr.mxu0 %v3558
        %5533 = vmatpush1.msra.mxu0 %v3557
        %5534 = vmatprep.subr.mxu0 %v3550
        %5535 = vmatpush1.msra.mxu0 %v3549
        %5536 = vmatprep.subr.mxu0 %v3542
        %5537 = vmatpush1.msra.mxu0 %v3541
        %5538 = vmatprep.subr.mxu0 %v3534
        %5539 = vmatpush1.msra.mxu0 %v3533
        %5540 = vmatprep.subr.mxu0 %v3526
        %5541 = vmatpush1.msra.mxu0 %v3525
        %5542 = vmatprep.subr.mxu0 %v3518
        %5543 = vmatpush1.msra.mxu0 %v3517
        %5544 = vmatprep.subr.mxu0 %v3510
        %5545 = vmatpush1.msra.mxu0 %v3509
        %5546 = vmatprep.subr.mxu0 %v3758
        %5547 = vmatpush2.msra.mxu0 %v3757
        %5548 = vmatprep.subr.mxu0 %v3750
        %5549 = vmatpush2.msra.mxu0 %v3749
        %5550 = vmatprep.subr.mxu0 %v3742
        %5551 = vmatpush2.msra.mxu0 %v3741
        %5552 = vmatprep.subr.mxu0 %v3734
        %5553 = vmatpush2.msra.mxu0 %v3733
        %5554 = vmatprep.subr.mxu0 %v3726
        %5555 = vmatpush2.msra.mxu0 %v3725
        %5556 = vmatprep.subr.mxu0 %v3718
        %5557 = vmatpush2.msra.mxu0 %v3717
        %5558 = vmatprep.subr.mxu0 %v3710
        %5559 = vmatpush2.msra.mxu0 %v3709
        %5560 = vmatprep.subr.mxu0 %v3702
        %5561 = vmatpush2.msra.mxu0 %v3701
        %5562 = vmatprep.subr.mxu0 %v3694
        %5563 = vmatpush2.msra.mxu0 %v3693
        %5564 = vmatprep.subr.mxu0 %v3686
        %5565 = vmatpush2.msra.mxu0 %v3685
        %5566 = vmatprep.subr.mxu0 %v3678
        %5567 = vmatpush2.msra.mxu0 %v3677
        %5568 = vmatprep.subr.mxu0 %v3670
        %5569 = vmatpush2.msra.mxu0 %v3669
        %5570 = vmatprep.subr.mxu0 %v3662
        %5571 = vmatpush2.msra.mxu0 %v3661
        %5572 = vmatprep.subr.mxu0 %v3654
        %5573 = vmatpush2.msra.mxu0 %v3653
        %5574 = vmatprep.subr.mxu0 %v3646
        %5575 = vmatpush2.msra.mxu0 %v3645
        %5576 = vmatprep.subr.mxu0 %v3638
        %5577 = vmatpush2.msra.mxu0 %v3637
        %5578 = vmatprep.mubr.f32.mxu0 %v5074
        %5579 = vmatmul.mubr.f32.gmra.mxu0 %v5073
        %v5580 = vpop.f32.mrf.mxu0
        %v5581 = vadd.f32 0.0, %v5580
        %v5582 = vpop.f32.mrf.mxu0
        %v5583 = vadd.f32 0.0, %v5582
        %5584 = vdwg.mxu0
        %5585 = vmatprep.subr.mxu0 %v3632
        %5586 = vmatpush1.msra.mxu0 %v3631
        %5587 = vmatprep.subr.mxu0 %v3624
        %5588 = vmatpush1.msra.mxu0 %v3623
        %5589 = vmatprep.subr.mxu0 %v3616
        %5590 = vmatpush1.msra.mxu0 %v3615
        %5591 = vmatprep.subr.mxu0 %v3608
        %5592 = vmatpush1.msra.mxu0 %v3607
        %5593 = vmatprep.subr.mxu0 %v3600
        %5594 = vmatpush1.msra.mxu0 %v3599
        %5595 = vmatprep.subr.mxu0 %v3592
        %5596 = vmatpush1.msra.mxu0 %v3591
        %5597 = vmatprep.subr.mxu0 %v3584
        %5598 = vmatpush1.msra.mxu0 %v3583
        %5599 = vmatprep.subr.mxu0 %v3576
        %5600 = vmatpush1.msra.mxu0 %v3575
        %5601 = vmatprep.subr.mxu0 %v3568
        %5602 = vmatpush1.msra.mxu0 %v3567
        %5603 = vmatprep.subr.mxu0 %v3560
        %5604 = vmatpush1.msra.mxu0 %v3559
        %5605 = vmatprep.subr.mxu0 %v3552
        %5606 = vmatpush1.msra.mxu0 %v3551
        %5607 = vmatprep.subr.mxu0 %v3544
        %5608 = vmatpush1.msra.mxu0 %v3543
        %5609 = vmatprep.subr.mxu0 %v3536
        %5610 = vmatpush1.msra.mxu0 %v3535
        %5611 = vmatprep.subr.mxu0 %v3528
        %5612 = vmatpush1.msra.mxu0 %v3527
        %5613 = vmatprep.subr.mxu0 %v3520
        %5614 = vmatpush1.msra.mxu0 %v3519
        %5615 = vmatprep.subr.mxu0 %v3512
        %5616 = vmatpush1.msra.mxu0 %v3511
        %5617 = vmatprep.subr.mxu0 %v3760
        %5618 = vmatpush2.msra.mxu0 %v3759
        %5619 = vmatprep.subr.mxu0 %v3752
        %5620 = vmatpush2.msra.mxu0 %v3751
        %5621 = vmatprep.subr.mxu0 %v3744
        %5622 = vmatpush2.msra.mxu0 %v3743
        %5623 = vmatprep.subr.mxu0 %v3736
        %5624 = vmatpush2.msra.mxu0 %v3735
        %5625 = vmatprep.subr.mxu0 %v3728
        %5626 = vmatpush2.msra.mxu0 %v3727
        %5627 = vmatprep.subr.mxu0 %v3720
        %5628 = vmatpush2.msra.mxu0 %v3719
        %5629 = vmatprep.subr.mxu0 %v3712
        %5630 = vmatpush2.msra.mxu0 %v3711
        %5631 = vmatprep.subr.mxu0 %v3704
        %5632 = vmatpush2.msra.mxu0 %v3703
        %5633 = vmatprep.subr.mxu0 %v3696
        %5634 = vmatpush2.msra.mxu0 %v3695
        %5635 = vmatprep.subr.mxu0 %v3688
        %5636 = vmatpush2.msra.mxu0 %v3687
        %5637 = vmatprep.subr.mxu0 %v3680
        %5638 = vmatpush2.msra.mxu0 %v3679
        %5639 = vmatprep.subr.mxu0 %v3672
        %5640 = vmatpush2.msra.mxu0 %v3671
        %5641 = vmatprep.subr.mxu0 %v3664
        %5642 = vmatpush2.msra.mxu0 %v3663
        %5643 = vmatprep.subr.mxu0 %v3656
        %5644 = vmatpush2.msra.mxu0 %v3655
        %5645 = vmatprep.subr.mxu0 %v3648
        %5646 = vmatpush2.msra.mxu0 %v3647
        %5647 = vmatprep.subr.mxu0 %v3640
        %5648 = vmatpush2.msra.mxu0 %v3639
        %5649 = vmatprep.mubr.f32.mxu0 %v5074
        %5650 = vmatmul.mubr.f32.gmra.mxu0 %v5073
        %v5651 = vpop.f32.mrf.mxu0
        %v5652 = vadd.f32 0.0, %v5651
        %v5653 = vpop.f32.mrf.mxu0
        %v5654 = vadd.f32 0.0, %v5653
        %5655 = vdwg.mxu0
        %5656 = vmatprep.subr.mxu0 %v3634
        %5657 = vmatpush1.msra.mxu0 %v3633
        %5658 = vmatprep.subr.mxu0 %v3626
        %5659 = vmatpush1.msra.mxu0 %v3625
        %5660 = vmatprep.subr.mxu0 %v3618
        %5661 = vmatpush1.msra.mxu0 %v3617
        %5662 = vmatprep.subr.mxu0 %v3610
        %5663 = vmatpush1.msra.mxu0 %v3609
        %5664 = vmatprep.subr.mxu0 %v3602
        %5665 = vmatpush1.msra.mxu0 %v3601
        %5666 = vmatprep.subr.mxu0 %v3594
        %5667 = vmatpush1.msra.mxu0 %v3593
        %5668 = vmatprep.subr.mxu0 %v3586
        %5669 = vmatpush1.msra.mxu0 %v3585
        %5670 = vmatprep.subr.mxu0 %v3578
        %5671 = vmatpush1.msra.mxu0 %v3577
        %5672 = vmatprep.subr.mxu0 %v3570
        %5673 = vmatpush1.msra.mxu0 %v3569
        %5674 = vmatprep.subr.mxu0 %v3562
        %5675 = vmatpush1.msra.mxu0 %v3561
        %5676 = vmatprep.subr.mxu0 %v3554
        %5677 = vmatpush1.msra.mxu0 %v3553
        %5678 = vmatprep.subr.mxu0 %v3546
        %5679 = vmatpush1.msra.mxu0 %v3545
        %5680 = vmatprep.subr.mxu0 %v3538
        %5681 = vmatpush1.msra.mxu0 %v3537
        %5682 = vmatprep.subr.mxu0 %v3530
        %5683 = vmatpush1.msra.mxu0 %v3529
        %5684 = vmatprep.subr.mxu0 %v3522
        %5685 = vmatpush1.msra.mxu0 %v3521
        %5686 = vmatprep.subr.mxu0 %v3514
        %5687 = vmatpush1.msra.mxu0 %v3513
        %5688 = vmatprep.subr.mxu0 %v3762
        %5689 = vmatpush2.msra.mxu0 %v3761
        %5690 = vmatprep.subr.mxu0 %v3754
        %5691 = vmatpush2.msra.mxu0 %v3753
        %5692 = vmatprep.subr.mxu0 %v3746
        %5693 = vmatpush2.msra.mxu0 %v3745
        %5694 = vmatprep.subr.mxu0 %v3738
        %5695 = vmatpush2.msra.mxu0 %v3737
        %5696 = vmatprep.subr.mxu0 %v3730
        %5697 = vmatpush2.msra.mxu0 %v3729
        %5698 = vmatprep.subr.mxu0 %v3722
        %5699 = vmatpush2.msra.mxu0 %v3721
        %5700 = vmatprep.subr.mxu0 %v3714
        %5701 = vmatpush2.msra.mxu0 %v3713
        %5702 = vmatprep.subr.mxu0 %v3706
        %5703 = vmatpush2.msra.mxu0 %v3705
        %5704 = vmatprep.subr.mxu0 %v3698
        %5705 = vmatpush2.msra.mxu0 %v3697
        %5706 = vmatprep.subr.mxu0 %v3690
        %5707 = vmatpush2.msra.mxu0 %v3689
        %5708 = vmatprep.subr.mxu0 %v3682
        %5709 = vmatpush2.msra.mxu0 %v3681
        %5710 = vmatprep.subr.mxu0 %v3674
        %5711 = vmatpush2.msra.mxu0 %v3673
        %5712 = vmatprep.subr.mxu0 %v3666
        %5713 = vmatpush2.msra.mxu0 %v3665
        %5714 = vmatprep.subr.mxu0 %v3658
        %5715 = vmatpush2.msra.mxu0 %v3657
        %5716 = vmatprep.subr.mxu0 %v3650
        %5717 = vmatpush2.msra.mxu0 %v3649
        %5718 = vmatprep.subr.mxu0 %v3642
        %5719 = vmatpush2.msra.mxu0 %v3641
        %5720 = vmatprep.mubr.f32.mxu0 %v5074
        %5721 = vmatmul.mubr.f32.gmra.mxu0 %v5073
        %v5722 = vpop.f32.mrf.mxu0
        %v5723 = vadd.f32 0.0, %v5722
        %v5724 = vpop.f32.mrf.mxu0
        %v5725 = vadd.f32 0.0, %v5724
        %5726 = vdwg.mxu0
        %v5727 = vadd.f32 %v5435, %v5510
        %v5728 = vadd.f32 %v5436, %v5512
        %v5729 = vadd.f32 %v5437, %v5581
        %v5730 = vadd.f32 %v5438, %v5583
        %v5731 = vadd.f32 %v5439, %v5652
        %v5732 = vadd.f32 %v5440, %v5654
        %v5733 = vadd.f32 %v5441, %v5723
        %v5734 = vadd.f32 %v5442, %v5725
        %v5735 = vxor.u32 %v5729, 2147483648
        %v5736 = vxor.u32 %v5730, 2147483648
        %v5737 = vmul.f32 %v5735, 1.442695
        %v5738 = vpow.pop %v5737
        %v5739 = vmul.f32 %v5736, 1.442695
        %v5740 = vpow.pop %v5739
        %v5741 = vadd.f32 %v5738, 1.0
        %v5742 = vadd.f32 %v5740, 1.0
        %v5743 = vrcp.pop %v5741
        %v5744 = vmul.f32 1.0, %v5743
        %v5745 = vrcp.pop %v5742
        %v5746 = vmul.f32 1.0, %v5745
        %v5747 = vmul.f32 %v5744, %v5057
        %v5748 = vmul.f32 %v5746, %v5058
        %v5749 = vxor.u32 %v5727, 2147483648
        %v5750 = vxor.u32 %v5728, 2147483648
        %v5751 = vmul.f32 %v5749, 1.442695
        %v5752 = vpow.pop %v5751
        %v5753 = vmul.f32 %v5750, 1.442695
        %v5754 = vpow.pop %v5753
        %v5755 = vadd.f32 %v5752, 1.0
        %v5756 = vadd.f32 %v5754, 1.0
        %v5757 = vrcp.pop %v5755
        %v5758 = vmul.f32 1.0, %v5757
        %v5759 = vrcp.pop %v5756
        %v5760 = vmul.f32 1.0, %v5759
        %v5761 = vtanh.pop %v5731
        %v5762 = vtanh.pop %v5732
        %v5763 = vmul.f32 %v5758, %v5761
        %v5764 = vmul.f32 %v5760, %v5762
        %v5765 = vadd.f32 %v5747, %v5763
        %v5766 = vadd.f32 %v5748, %v5764
        %v5767 = vxor.u32 %v5733, 2147483648
        %v5768 = vxor.u32 %v5734, 2147483648
        %v5769 = vmul.f32 %v5767, 1.442695
        %v5770 = vpow.pop %v5769
        %v5771 = vmul.f32 %v5768, 1.442695
        %v5772 = vpow.pop %v5771
        %v5773 = vadd.f32 %v5770, 1.0
        %v5774 = vadd.f32 %v5772, 1.0
        %v5775 = vrcp.pop %v5773
        %v5776 = vmul.f32 1.0, %v5775
        %v5777 = vrcp.pop %v5774
        %v5778 = vmul.f32 1.0, %v5777
        %v5779 = vtanh.pop %v5765
        %v5780 = vtanh.pop %v5766
        %v5781 = vmul.f32 %v5776, %v5779
        %v5782 = vmul.f32 %v5778, %v5780
        %v5783 = vld [vmem:[#allocation3 + $0x40] sm:$0xff]
        %v5784 = vld [vmem:[#allocation3 + $0x48] sm:$0xff]
        %v5785 = vld [vmem:[#allocation3 + $0x50] sm:$0xff]
        %v5786 = vld [vmem:[#allocation3 + $0x58] sm:$0xff]
        %v5787 = vld [vmem:[#allocation3 + $0x60] sm:$0xff]
        %v5788 = vld [vmem:[#allocation3 + $0x68] sm:$0xff]
        %v5789 = vld [vmem:[#allocation3 + $0x70] sm:$0xff]
        %v5790 = vld [vmem:[#allocation3 + $0x78] sm:$0xff]
        %5791 = vmatprep.subr.mxu0 %v3884
        %5792 = vmatpush1.msra.mxu0 %v3883
        %5793 = vmatprep.subr.mxu0 %v3876
        %5794 = vmatpush1.msra.mxu0 %v3875
        %5795 = vmatprep.subr.mxu0 %v3868
        %5796 = vmatpush1.msra.mxu0 %v3867
        %5797 = vmatprep.subr.mxu0 %v3860
        %5798 = vmatpush1.msra.mxu0 %v3859
        %5799 = vmatprep.subr.mxu0 %v3852
        %5800 = vmatpush1.msra.mxu0 %v3851
        %5801 = vmatprep.subr.mxu0 %v3844
        %5802 = vmatpush1.msra.mxu0 %v3843
        %5803 = vmatprep.subr.mxu0 %v3836
        %5804 = vmatpush1.msra.mxu0 %v3835
        %5805 = vmatprep.subr.mxu0 %v3828
        %5806 = vmatpush1.msra.mxu0 %v3827
        %5807 = vmatprep.subr.mxu0 %v3820
        %5808 = vmatpush1.msra.mxu0 %v3819
        %5809 = vmatprep.subr.mxu0 %v3812
        %5810 = vmatpush1.msra.mxu0 %v3811
        %5811 = vmatprep.subr.mxu0 %v3804
        %5812 = vmatpush1.msra.mxu0 %v3803
        %5813 = vmatprep.subr.mxu0 %v3796
        %5814 = vmatpush1.msra.mxu0 %v3795
        %5815 = vmatprep.subr.mxu0 %v3788
        %5816 = vmatpush1.msra.mxu0 %v3787
        %5817 = vmatprep.subr.mxu0 %v3780
        %5818 = vmatpush1.msra.mxu0 %v3779
        %5819 = vmatprep.subr.mxu0 %v3772
        %5820 = vmatpush1.msra.mxu0 %v3771
        %5821 = vmatprep.subr.mxu0 %v3764
        %5822 = vmatpush1.msra.mxu0 %v3763
        %5823 = vmatprep.subr.mxu0 %v4012
        %5824 = vmatpush2.msra.mxu0 %v4011
        %5825 = vmatprep.subr.mxu0 %v4004
        %5826 = vmatpush2.msra.mxu0 %v4003
        %5827 = vmatprep.subr.mxu0 %v3996
        %5828 = vmatpush2.msra.mxu0 %v3995
        %5829 = vmatprep.subr.mxu0 %v3988
        %5830 = vmatpush2.msra.mxu0 %v3987
        %5831 = vmatprep.subr.mxu0 %v3980
        %5832 = vmatpush2.msra.mxu0 %v3979
        %5833 = vmatprep.subr.mxu0 %v3972
        %5834 = vmatpush2.msra.mxu0 %v3971
        %5835 = vmatprep.subr.mxu0 %v3964
        %5836 = vmatpush2.msra.mxu0 %v3963
        %5837 = vmatprep.subr.mxu0 %v3956
        %5838 = vmatpush2.msra.mxu0 %v3955
        %5839 = vmatprep.subr.mxu0 %v3948
        %5840 = vmatpush2.msra.mxu0 %v3947
        %5841 = vmatprep.subr.mxu0 %v3940
        %5842 = vmatpush2.msra.mxu0 %v3939
        %5843 = vmatprep.subr.mxu0 %v3932
        %5844 = vmatpush2.msra.mxu0 %v3931
        %5845 = vmatprep.subr.mxu0 %v3924
        %5846 = vmatpush2.msra.mxu0 %v3923
        %5847 = vmatprep.subr.mxu0 %v3916
        %5848 = vmatpush2.msra.mxu0 %v3915
        %5849 = vmatprep.subr.mxu0 %v3908
        %5850 = vmatpush2.msra.mxu0 %v3907
        %5851 = vmatprep.subr.mxu0 %v3900
        %5852 = vmatpush2.msra.mxu0 %v3899
        %5853 = vmatprep.subr.mxu0 %v3892
        %5854 = vmatpush2.msra.mxu0 %v3891
        %5855 = vmatprep.mubr.f32.mxu0 %v5422
        %5856 = vmatmul.mubr.f32.gmra.mxu0 %v5421
        %v5857 = vpop.f32.mrf.mxu0
        %v5858 = vadd.f32 0.0, %v5857
        %v5859 = vpop.f32.mrf.mxu0
        %v5860 = vadd.f32 0.0, %v5859
        %5861 = vdwg.mxu0
        %5862 = vmatprep.subr.mxu0 %v3886
        %5863 = vmatpush1.msra.mxu0 %v3885
        %5864 = vmatprep.subr.mxu0 %v3878
        %5865 = vmatpush1.msra.mxu0 %v3877
        %5866 = vmatprep.subr.mxu0 %v3870
        %5867 = vmatpush1.msra.mxu0 %v3869
        %5868 = vmatprep.subr.mxu0 %v3862
        %5869 = vmatpush1.msra.mxu0 %v3861
        %5870 = vmatprep.subr.mxu0 %v3854
        %5871 = vmatpush1.msra.mxu0 %v3853
        %5872 = vmatprep.subr.mxu0 %v3846
        %5873 = vmatpush1.msra.mxu0 %v3845
        %5874 = vmatprep.subr.mxu0 %v3838
        %5875 = vmatpush1.msra.mxu0 %v3837
        %5876 = vmatprep.subr.mxu0 %v3830
        %5877 = vmatpush1.msra.mxu0 %v3829
        %5878 = vmatprep.subr.mxu0 %v3822
        %5879 = vmatpush1.msra.mxu0 %v3821
        %5880 = vmatprep.subr.mxu0 %v3814
        %5881 = vmatpush1.msra.mxu0 %v3813
        %5882 = vmatprep.subr.mxu0 %v3806
        %5883 = vmatpush1.msra.mxu0 %v3805
        %5884 = vmatprep.subr.mxu0 %v3798
        %5885 = vmatpush1.msra.mxu0 %v3797
        %5886 = vmatprep.subr.mxu0 %v3790
        %5887 = vmatpush1.msra.mxu0 %v3789
        %5888 = vmatprep.subr.mxu0 %v3782
        %5889 = vmatpush1.msra.mxu0 %v3781
        %5890 = vmatprep.subr.mxu0 %v3774
        %5891 = vmatpush1.msra.mxu0 %v3773
        %5892 = vmatprep.subr.mxu0 %v3766
        %5893 = vmatpush1.msra.mxu0 %v3765
        %5894 = vmatprep.subr.mxu0 %v4014
        %5895 = vmatpush2.msra.mxu0 %v4013
        %5896 = vmatprep.subr.mxu0 %v4006
        %5897 = vmatpush2.msra.mxu0 %v4005
        %5898 = vmatprep.subr.mxu0 %v3998
        %5899 = vmatpush2.msra.mxu0 %v3997
        %5900 = vmatprep.subr.mxu0 %v3990
        %5901 = vmatpush2.msra.mxu0 %v3989
        %5902 = vmatprep.subr.mxu0 %v3982
        %5903 = vmatpush2.msra.mxu0 %v3981
        %5904 = vmatprep.subr.mxu0 %v3974
        %5905 = vmatpush2.msra.mxu0 %v3973
        %5906 = vmatprep.subr.mxu0 %v3966
        %5907 = vmatpush2.msra.mxu0 %v3965
        %5908 = vmatprep.subr.mxu0 %v3958
        %5909 = vmatpush2.msra.mxu0 %v3957
        %5910 = vmatprep.subr.mxu0 %v3950
        %5911 = vmatpush2.msra.mxu0 %v3949
        %5912 = vmatprep.subr.mxu0 %v3942
        %5913 = vmatpush2.msra.mxu0 %v3941
        %5914 = vmatprep.subr.mxu0 %v3934
        %5915 = vmatpush2.msra.mxu0 %v3933
        %5916 = vmatprep.subr.mxu0 %v3926
        %5917 = vmatpush2.msra.mxu0 %v3925
        %5918 = vmatprep.subr.mxu0 %v3918
        %5919 = vmatpush2.msra.mxu0 %v3917
        %5920 = vmatprep.subr.mxu0 %v3910
        %5921 = vmatpush2.msra.mxu0 %v3909
        %5922 = vmatprep.subr.mxu0 %v3902
        %5923 = vmatpush2.msra.mxu0 %v3901
        %5924 = vmatprep.subr.mxu0 %v3894
        %5925 = vmatpush2.msra.mxu0 %v3893
        %5926 = vmatprep.mubr.f32.mxu0 %v5422
        %5927 = vmatmul.mubr.f32.gmra.mxu0 %v5421
        %v5928 = vpop.f32.mrf.mxu0
        %v5929 = vadd.f32 0.0, %v5928
        %v5930 = vpop.f32.mrf.mxu0
        %v5931 = vadd.f32 0.0, %v5930
        %5932 = vdwg.mxu0
        %5933 = vmatprep.subr.mxu0 %v3888
        %5934 = vmatpush1.msra.mxu0 %v3887
        %5935 = vmatprep.subr.mxu0 %v3880
        %5936 = vmatpush1.msra.mxu0 %v3879
        %5937 = vmatprep.subr.mxu0 %v3872
        %5938 = vmatpush1.msra.mxu0 %v3871
        %5939 = vmatprep.subr.mxu0 %v3864
        %5940 = vmatpush1.msra.mxu0 %v3863
        %5941 = vmatprep.subr.mxu0 %v3856
        %5942 = vmatpush1.msra.mxu0 %v3855
        %5943 = vmatprep.subr.mxu0 %v3848
        %5944 = vmatpush1.msra.mxu0 %v3847
        %5945 = vmatprep.subr.mxu0 %v3840
        %5946 = vmatpush1.msra.mxu0 %v3839
        %5947 = vmatprep.subr.mxu0 %v3832
        %5948 = vmatpush1.msra.mxu0 %v3831
        %5949 = vmatprep.subr.mxu0 %v3824
        %5950 = vmatpush1.msra.mxu0 %v3823
        %5951 = vmatprep.subr.mxu0 %v3816
        %5952 = vmatpush1.msra.mxu0 %v3815
        %5953 = vmatprep.subr.mxu0 %v3808
        %5954 = vmatpush1.msra.mxu0 %v3807
        %5955 = vmatprep.subr.mxu0 %v3800
        %5956 = vmatpush1.msra.mxu0 %v3799
        %5957 = vmatprep.subr.mxu0 %v3792
        %5958 = vmatpush1.msra.mxu0 %v3791
        %5959 = vmatprep.subr.mxu0 %v3784
        %5960 = vmatpush1.msra.mxu0 %v3783
        %5961 = vmatprep.subr.mxu0 %v3776
        %5962 = vmatpush1.msra.mxu0 %v3775
        %5963 = vmatprep.subr.mxu0 %v3768
        %5964 = vmatpush1.msra.mxu0 %v3767
        %5965 = vmatprep.subr.mxu0 %v4016
        %5966 = vmatpush2.msra.mxu0 %v4015
        %5967 = vmatprep.subr.mxu0 %v4008
        %5968 = vmatpush2.msra.mxu0 %v4007
        %5969 = vmatprep.subr.mxu0 %v4000
        %5970 = vmatpush2.msra.mxu0 %v3999
        %5971 = vmatprep.subr.mxu0 %v3992
        %5972 = vmatpush2.msra.mxu0 %v3991
        %5973 = vmatprep.subr.mxu0 %v3984
        %5974 = vmatpush2.msra.mxu0 %v3983
        %5975 = vmatprep.subr.mxu0 %v3976
        %5976 = vmatpush2.msra.mxu0 %v3975
        %5977 = vmatprep.subr.mxu0 %v3968
        %5978 = vmatpush2.msra.mxu0 %v3967
        %5979 = vmatprep.subr.mxu0 %v3960
        %5980 = vmatpush2.msra.mxu0 %v3959
        %5981 = vmatprep.subr.mxu0 %v3952
        %5982 = vmatpush2.msra.mxu0 %v3951
        %5983 = vmatprep.subr.mxu0 %v3944
        %5984 = vmatpush2.msra.mxu0 %v3943
        %5985 = vmatprep.subr.mxu0 %v3936
        %5986 = vmatpush2.msra.mxu0 %v3935
        %5987 = vmatprep.subr.mxu0 %v3928
        %5988 = vmatpush2.msra.mxu0 %v3927
        %5989 = vmatprep.subr.mxu0 %v3920
        %5990 = vmatpush2.msra.mxu0 %v3919
        %5991 = vmatprep.subr.mxu0 %v3912
        %5992 = vmatpush2.msra.mxu0 %v3911
        %5993 = vmatprep.subr.mxu0 %v3904
        %5994 = vmatpush2.msra.mxu0 %v3903
        %5995 = vmatprep.subr.mxu0 %v3896
        %5996 = vmatpush2.msra.mxu0 %v3895
        %5997 = vmatprep.mubr.f32.mxu0 %v5422
        %5998 = vmatmul.mubr.f32.gmra.mxu0 %v5421
        %v5999 = vpop.f32.mrf.mxu0
        %v6000 = vadd.f32 0.0, %v5999
        %v6001 = vpop.f32.mrf.mxu0
        %v6002 = vadd.f32 0.0, %v6001
        %6003 = vdwg.mxu0
        %6004 = vmatprep.subr.mxu0 %v3890
        %6005 = vmatpush1.msra.mxu0 %v3889
        %6006 = vmatprep.subr.mxu0 %v3882
        %6007 = vmatpush1.msra.mxu0 %v3881
        %6008 = vmatprep.subr.mxu0 %v3874
        %6009 = vmatpush1.msra.mxu0 %v3873
        %6010 = vmatprep.subr.mxu0 %v3866
        %6011 = vmatpush1.msra.mxu0 %v3865
        %6012 = vmatprep.subr.mxu0 %v3858
        %6013 = vmatpush1.msra.mxu0 %v3857
        %6014 = vmatprep.subr.mxu0 %v3850
        %6015 = vmatpush1.msra.mxu0 %v3849
        %6016 = vmatprep.subr.mxu0 %v3842
        %6017 = vmatpush1.msra.mxu0 %v3841
        %6018 = vmatprep.subr.mxu0 %v3834
        %6019 = vmatpush1.msra.mxu0 %v3833
        %6020 = vmatprep.subr.mxu0 %v3826
        %6021 = vmatpush1.msra.mxu0 %v3825
        %6022 = vmatprep.subr.mxu0 %v3818
        %6023 = vmatpush1.msra.mxu0 %v3817
        %6024 = vmatprep.subr.mxu0 %v3810
        %6025 = vmatpush1.msra.mxu0 %v3809
        %6026 = vmatprep.subr.mxu0 %v3802
        %6027 = vmatpush1.msra.mxu0 %v3801
        %6028 = vmatprep.subr.mxu0 %v3794
        %6029 = vmatpush1.msra.mxu0 %v3793
        %6030 = vmatprep.subr.mxu0 %v3786
        %6031 = vmatpush1.msra.mxu0 %v3785
        %6032 = vmatprep.subr.mxu0 %v3778
        %6033 = vmatpush1.msra.mxu0 %v3777
        %6034 = vmatprep.subr.mxu0 %v3770
        %6035 = vmatpush1.msra.mxu0 %v3769
        %6036 = vmatprep.subr.mxu0 %v4018
        %6037 = vmatpush2.msra.mxu0 %v4017
        %6038 = vmatprep.subr.mxu0 %v4010
        %6039 = vmatpush2.msra.mxu0 %v4009
        %6040 = vmatprep.subr.mxu0 %v4002
        %6041 = vmatpush2.msra.mxu0 %v4001
        %6042 = vmatprep.subr.mxu0 %v3994
        %6043 = vmatpush2.msra.mxu0 %v3993
        %6044 = vmatprep.subr.mxu0 %v3986
        %6045 = vmatpush2.msra.mxu0 %v3985
        %6046 = vmatprep.subr.mxu0 %v3978
        %6047 = vmatpush2.msra.mxu0 %v3977
        %6048 = vmatprep.subr.mxu0 %v3970
        %6049 = vmatpush2.msra.mxu0 %v3969
        %6050 = vmatprep.subr.mxu0 %v3962
        %6051 = vmatpush2.msra.mxu0 %v3961
        %6052 = vmatprep.subr.mxu0 %v3954
        %6053 = vmatpush2.msra.mxu0 %v3953
        %6054 = vmatprep.subr.mxu0 %v3946
        %6055 = vmatpush2.msra.mxu0 %v3945
        %6056 = vmatprep.subr.mxu0 %v3938
        %6057 = vmatpush2.msra.mxu0 %v3937
        %6058 = vmatprep.subr.mxu0 %v3930
        %6059 = vmatpush2.msra.mxu0 %v3929
        %6060 = vmatprep.subr.mxu0 %v3922
        %6061 = vmatpush2.msra.mxu0 %v3921
        %6062 = vmatprep.subr.mxu0 %v3914
        %6063 = vmatpush2.msra.mxu0 %v3913
        %6064 = vmatprep.subr.mxu0 %v3906
        %6065 = vmatpush2.msra.mxu0 %v3905
        %6066 = vmatprep.subr.mxu0 %v3898
        %6067 = vmatpush2.msra.mxu0 %v3897
        %6068 = vmatprep.mubr.f32.mxu0 %v5422
        %6069 = vmatmul.mubr.f32.gmra.mxu0 %v5421
        %v6070 = vpop.f32.mrf.mxu0
        %v6071 = vadd.f32 0.0, %v6070
        %v6072 = vpop.f32.mrf.mxu0
        %v6073 = vadd.f32 0.0, %v6072
        %6074 = vdwg.mxu0
        %v6075 = vadd.f32 %v5783, %v5858
        %v6076 = vadd.f32 %v5784, %v5860
        %v6077 = vadd.f32 %v5785, %v5929
        %v6078 = vadd.f32 %v5786, %v5931
        %v6079 = vadd.f32 %v5787, %v6000
        %v6080 = vadd.f32 %v5788, %v6002
        %v6081 = vadd.f32 %v5789, %v6071
        %v6082 = vadd.f32 %v5790, %v6073
        %v6083 = vxor.u32 %v6077, 2147483648
        %v6084 = vxor.u32 %v6078, 2147483648
        %v6085 = vmul.f32 %v6083, 1.442695
        %v6086 = vpow.pop %v6085
        %v6087 = vmul.f32 %v6084, 1.442695
        %v6088 = vpow.pop %v6087
        %v6089 = vadd.f32 %v6086, 1.0
        %v6090 = vadd.f32 %v6088, 1.0
        %v6091 = vrcp.pop %v6089
        %v6092 = vmul.f32 1.0, %v6091
        %v6093 = vrcp.pop %v6090
        %v6094 = vmul.f32 1.0, %v6093
        %v6095 = vmul.f32 %v6092, %v5405
        %v6096 = vmul.f32 %v6094, %v5406
        %v6097 = vxor.u32 %v6075, 2147483648
        %v6098 = vxor.u32 %v6076, 2147483648
        %v6099 = vmul.f32 %v6097, 1.442695
        %v6100 = vpow.pop %v6099
        %v6101 = vmul.f32 %v6098, 1.442695
        %v6102 = vpow.pop %v6101
        %v6103 = vadd.f32 %v6100, 1.0
        %v6104 = vadd.f32 %v6102, 1.0
        %v6105 = vrcp.pop %v6103
        %v6106 = vmul.f32 1.0, %v6105
        %v6107 = vrcp.pop %v6104
        %v6108 = vmul.f32 1.0, %v6107
        %v6109 = vtanh.pop %v6079
        %v6110 = vtanh.pop %v6080
        %v6111 = vmul.f32 %v6106, %v6109
        %v6112 = vmul.f32 %v6108, %v6110
        %v6113 = vadd.f32 %v6095, %v6111
        %v6114 = vadd.f32 %v6096, %v6112
        %v6115 = vxor.u32 %v6081, 2147483648
        %v6116 = vxor.u32 %v6082, 2147483648
        %v6117 = vmul.f32 %v6115, 1.442695
        %v6118 = vpow.pop %v6117
        %v6119 = vmul.f32 %v6116, 1.442695
        %v6120 = vpow.pop %v6119
        %v6121 = vadd.f32 %v6118, 1.0
        %v6122 = vadd.f32 %v6120, 1.0
        %v6123 = vrcp.pop %v6121
        %v6124 = vmul.f32 1.0, %v6123
        %v6125 = vrcp.pop %v6122
        %v6126 = vmul.f32 1.0, %v6125
        %v6127 = vtanh.pop %v6113
        %v6128 = vtanh.pop %v6114
        %v6129 = vmul.f32 %v6124, %v6127
        %v6130 = vmul.f32 %v6126, %v6128
        %v6131 = vmul.f32 %v5781, %v5432
        %v6132 = vmul.f32 %v5782, %v5432
        %v6133 = vmul.f32 %v6129, %v5426
        %v6134 = vmul.f32 %v6130, %v5426
        %v6135 = vld [vmem:[#allocation2 + $0xc0] sm:$0xff]
        %v6136 = vld [vmem:[#allocation2 + $0xc8] sm:$0xff]
        %v6137 = vld [vmem:[#allocation2 + $0xd0] sm:$0xff]
        %v6138 = vld [vmem:[#allocation2 + $0xd8] sm:$0xff]
        %v6139 = vld [vmem:[#allocation2 + $0xe0] sm:$0xff]
        %v6140 = vld [vmem:[#allocation2 + $0xe8] sm:$0xff]
        %v6141 = vld [vmem:[#allocation2 + $0xf0] sm:$0xff]
        %v6142 = vld [vmem:[#allocation2 + $0xf8] sm:$0xff]
        %6143 = vmatprep.subr.mxu0 %v3628
        %6144 = vmatpush1.msra.mxu0 %v3627
        %6145 = vmatprep.subr.mxu0 %v3620
        %6146 = vmatpush1.msra.mxu0 %v3619
        %6147 = vmatprep.subr.mxu0 %v3612
        %6148 = vmatpush1.msra.mxu0 %v3611
        %6149 = vmatprep.subr.mxu0 %v3604
        %6150 = vmatpush1.msra.mxu0 %v3603
        %6151 = vmatprep.subr.mxu0 %v3596
        %6152 = vmatpush1.msra.mxu0 %v3595
        %6153 = vmatprep.subr.mxu0 %v3588
        %6154 = vmatpush1.msra.mxu0 %v3587
        %6155 = vmatprep.subr.mxu0 %v3580
        %6156 = vmatpush1.msra.mxu0 %v3579
        %6157 = vmatprep.subr.mxu0 %v3572
        %6158 = vmatpush1.msra.mxu0 %v3571
        %6159 = vmatprep.subr.mxu0 %v3564
        %6160 = vmatpush1.msra.mxu0 %v3563
        %6161 = vmatprep.subr.mxu0 %v3556
        %6162 = vmatpush1.msra.mxu0 %v3555
        %6163 = vmatprep.subr.mxu0 %v3548
        %6164 = vmatpush1.msra.mxu0 %v3547
        %6165 = vmatprep.subr.mxu0 %v3540
        %6166 = vmatpush1.msra.mxu0 %v3539
        %6167 = vmatprep.subr.mxu0 %v3532
        %6168 = vmatpush1.msra.mxu0 %v3531
        %6169 = vmatprep.subr.mxu0 %v3524
        %6170 = vmatpush1.msra.mxu0 %v3523
        %6171 = vmatprep.subr.mxu0 %v3516
        %6172 = vmatpush1.msra.mxu0 %v3515
        %6173 = vmatprep.subr.mxu0 %v3508
        %6174 = vmatpush1.msra.mxu0 %v3507
        %6175 = vmatprep.subr.mxu0 %v3756
        %6176 = vmatpush2.msra.mxu0 %v3755
        %6177 = vmatprep.subr.mxu0 %v3748
        %6178 = vmatpush2.msra.mxu0 %v3747
        %6179 = vmatprep.subr.mxu0 %v3740
        %6180 = vmatpush2.msra.mxu0 %v3739
        %6181 = vmatprep.subr.mxu0 %v3732
        %6182 = vmatpush2.msra.mxu0 %v3731
        %6183 = vmatprep.subr.mxu0 %v3724
        %6184 = vmatpush2.msra.mxu0 %v3723
        %6185 = vmatprep.subr.mxu0 %v3716
        %6186 = vmatpush2.msra.mxu0 %v3715
        %6187 = vmatprep.subr.mxu0 %v3708
        %6188 = vmatpush2.msra.mxu0 %v3707
        %6189 = vmatprep.subr.mxu0 %v3700
        %6190 = vmatpush2.msra.mxu0 %v3699
        %6191 = vmatprep.subr.mxu0 %v3692
        %6192 = vmatpush2.msra.mxu0 %v3691
        %6193 = vmatprep.subr.mxu0 %v3684
        %6194 = vmatpush2.msra.mxu0 %v3683
        %6195 = vmatprep.subr.mxu0 %v3676
        %6196 = vmatpush2.msra.mxu0 %v3675
        %6197 = vmatprep.subr.mxu0 %v3668
        %6198 = vmatpush2.msra.mxu0 %v3667
        %6199 = vmatprep.subr.mxu0 %v3660
        %6200 = vmatpush2.msra.mxu0 %v3659
        %6201 = vmatprep.subr.mxu0 %v3652
        %6202 = vmatpush2.msra.mxu0 %v3651
        %6203 = vmatprep.subr.mxu0 %v3644
        %6204 = vmatpush2.msra.mxu0 %v3643
        %6205 = vmatprep.subr.mxu0 %v3636
        %6206 = vmatpush2.msra.mxu0 %v3635
        %6207 = vmatprep.mubr.f32.mxu0 %v5782
        %6208 = vmatmul.mubr.f32.gmra.mxu0 %v5781
        %v6209 = vpop.f32.mrf.mxu0
        %v6210 = vadd.f32 0.0, %v6209
        %v6211 = vpop.f32.mrf.mxu0
        %v6212 = vadd.f32 0.0, %v6211
        %6213 = vdwg.mxu0
        %6214 = vmatprep.subr.mxu0 %v3630
        %6215 = vmatpush1.msra.mxu0 %v3629
        %6216 = vmatprep.subr.mxu0 %v3622
        %6217 = vmatpush1.msra.mxu0 %v3621
        %6218 = vmatprep.subr.mxu0 %v3614
        %6219 = vmatpush1.msra.mxu0 %v3613
        %6220 = vmatprep.subr.mxu0 %v3606
        %6221 = vmatpush1.msra.mxu0 %v3605
        %6222 = vmatprep.subr.mxu0 %v3598
        %6223 = vmatpush1.msra.mxu0 %v3597
        %6224 = vmatprep.subr.mxu0 %v3590
        %6225 = vmatpush1.msra.mxu0 %v3589
        %6226 = vmatprep.subr.mxu0 %v3582
        %6227 = vmatpush1.msra.mxu0 %v3581
        %6228 = vmatprep.subr.mxu0 %v3574
        %6229 = vmatpush1.msra.mxu0 %v3573
        %6230 = vmatprep.subr.mxu0 %v3566
        %6231 = vmatpush1.msra.mxu0 %v3565
        %6232 = vmatprep.subr.mxu0 %v3558
        %6233 = vmatpush1.msra.mxu0 %v3557
        %6234 = vmatprep.subr.mxu0 %v3550
        %6235 = vmatpush1.msra.mxu0 %v3549
        %6236 = vmatprep.subr.mxu0 %v3542
        %6237 = vmatpush1.msra.mxu0 %v3541
        %6238 = vmatprep.subr.mxu0 %v3534
        %6239 = vmatpush1.msra.mxu0 %v3533
        %6240 = vmatprep.subr.mxu0 %v3526
        %6241 = vmatpush1.msra.mxu0 %v3525
        %6242 = vmatprep.subr.mxu0 %v3518
        %6243 = vmatpush1.msra.mxu0 %v3517
        %6244 = vmatprep.subr.mxu0 %v3510
        %6245 = vmatpush1.msra.mxu0 %v3509
        %6246 = vmatprep.subr.mxu0 %v3758
        %6247 = vmatpush2.msra.mxu0 %v3757
        %6248 = vmatprep.subr.mxu0 %v3750
        %6249 = vmatpush2.msra.mxu0 %v3749
        %6250 = vmatprep.subr.mxu0 %v3742
        %6251 = vmatpush2.msra.mxu0 %v3741
        %6252 = vmatprep.subr.mxu0 %v3734
        %6253 = vmatpush2.msra.mxu0 %v3733
        %6254 = vmatprep.subr.mxu0 %v3726
        %6255 = vmatpush2.msra.mxu0 %v3725
        %6256 = vmatprep.subr.mxu0 %v3718
        %6257 = vmatpush2.msra.mxu0 %v3717
        %6258 = vmatprep.subr.mxu0 %v3710
        %6259 = vmatpush2.msra.mxu0 %v3709
        %6260 = vmatprep.subr.mxu0 %v3702
        %6261 = vmatpush2.msra.mxu0 %v3701
        %6262 = vmatprep.subr.mxu0 %v3694
        %6263 = vmatpush2.msra.mxu0 %v3693
        %6264 = vmatprep.subr.mxu0 %v3686
        %6265 = vmatpush2.msra.mxu0 %v3685
        %6266 = vmatprep.subr.mxu0 %v3678
        %6267 = vmatpush2.msra.mxu0 %v3677
        %6268 = vmatprep.subr.mxu0 %v3670
        %6269 = vmatpush2.msra.mxu0 %v3669
        %6270 = vmatprep.subr.mxu0 %v3662
        %6271 = vmatpush2.msra.mxu0 %v3661
        %6272 = vmatprep.subr.mxu0 %v3654
        %6273 = vmatpush2.msra.mxu0 %v3653
        %6274 = vmatprep.subr.mxu0 %v3646
        %6275 = vmatpush2.msra.mxu0 %v3645
        %6276 = vmatprep.subr.mxu0 %v3638
        %6277 = vmatpush2.msra.mxu0 %v3637
        %6278 = vmatprep.mubr.f32.mxu0 %v5782
        %6279 = vmatmul.mubr.f32.gmra.mxu0 %v5781
        %v6280 = vpop.f32.mrf.mxu0
        %v6281 = vadd.f32 0.0, %v6280
        %v6282 = vpop.f32.mrf.mxu0
        %v6283 = vadd.f32 0.0, %v6282
        %6284 = vdwg.mxu0
        %6285 = vmatprep.subr.mxu0 %v3632
        %6286 = vmatpush1.msra.mxu0 %v3631
        %6287 = vmatprep.subr.mxu0 %v3624
        %6288 = vmatpush1.msra.mxu0 %v3623
        %6289 = vmatprep.subr.mxu0 %v3616
        %6290 = vmatpush1.msra.mxu0 %v3615
        %6291 = vmatprep.subr.mxu0 %v3608
        %6292 = vmatpush1.msra.mxu0 %v3607
        %6293 = vmatprep.subr.mxu0 %v3600
        %6294 = vmatpush1.msra.mxu0 %v3599
        %6295 = vmatprep.subr.mxu0 %v3592
        %6296 = vmatpush1.msra.mxu0 %v3591
        %6297 = vmatprep.subr.mxu0 %v3584
        %6298 = vmatpush1.msra.mxu0 %v3583
        %6299 = vmatprep.subr.mxu0 %v3576
        %6300 = vmatpush1.msra.mxu0 %v3575
        %6301 = vmatprep.subr.mxu0 %v3568
        %6302 = vmatpush1.msra.mxu0 %v3567
        %6303 = vmatprep.subr.mxu0 %v3560
        %6304 = vmatpush1.msra.mxu0 %v3559
        %6305 = vmatprep.subr.mxu0 %v3552
        %6306 = vmatpush1.msra.mxu0 %v3551
        %6307 = vmatprep.subr.mxu0 %v3544
        %6308 = vmatpush1.msra.mxu0 %v3543
        %6309 = vmatprep.subr.mxu0 %v3536
        %6310 = vmatpush1.msra.mxu0 %v3535
        %6311 = vmatprep.subr.mxu0 %v3528
        %6312 = vmatpush1.msra.mxu0 %v3527
        %6313 = vmatprep.subr.mxu0 %v3520
        %6314 = vmatpush1.msra.mxu0 %v3519
        %6315 = vmatprep.subr.mxu0 %v3512
        %6316 = vmatpush1.msra.mxu0 %v3511
        %6317 = vmatprep.subr.mxu0 %v3760
        %6318 = vmatpush2.msra.mxu0 %v3759
        %6319 = vmatprep.subr.mxu0 %v3752
        %6320 = vmatpush2.msra.mxu0 %v3751
        %6321 = vmatprep.subr.mxu0 %v3744
        %6322 = vmatpush2.msra.mxu0 %v3743
        %6323 = vmatprep.subr.mxu0 %v3736
        %6324 = vmatpush2.msra.mxu0 %v3735
        %6325 = vmatprep.subr.mxu0 %v3728
        %6326 = vmatpush2.msra.mxu0 %v3727
        %6327 = vmatprep.subr.mxu0 %v3720
        %6328 = vmatpush2.msra.mxu0 %v3719
        %6329 = vmatprep.subr.mxu0 %v3712
        %6330 = vmatpush2.msra.mxu0 %v3711
        %6331 = vmatprep.subr.mxu0 %v3704
        %6332 = vmatpush2.msra.mxu0 %v3703
        %6333 = vmatprep.subr.mxu0 %v3696
        %6334 = vmatpush2.msra.mxu0 %v3695
        %6335 = vmatprep.subr.mxu0 %v3688
        %6336 = vmatpush2.msra.mxu0 %v3687
        %6337 = vmatprep.subr.mxu0 %v3680
        %6338 = vmatpush2.msra.mxu0 %v3679
        %6339 = vmatprep.subr.mxu0 %v3672
        %6340 = vmatpush2.msra.mxu0 %v3671
        %6341 = vmatprep.subr.mxu0 %v3664
        %6342 = vmatpush2.msra.mxu0 %v3663
        %6343 = vmatprep.subr.mxu0 %v3656
        %6344 = vmatpush2.msra.mxu0 %v3655
        %6345 = vmatprep.subr.mxu0 %v3648
        %6346 = vmatpush2.msra.mxu0 %v3647
        %6347 = vmatprep.subr.mxu0 %v3640
        %6348 = vmatpush2.msra.mxu0 %v3639
        %6349 = vmatprep.mubr.f32.mxu0 %v5782
        %6350 = vmatmul.mubr.f32.gmra.mxu0 %v5781
        %v6351 = vpop.f32.mrf.mxu0
        %v6352 = vadd.f32 0.0, %v6351
        %v6353 = vpop.f32.mrf.mxu0
        %v6354 = vadd.f32 0.0, %v6353
        %6355 = vdwg.mxu0
        %6356 = vmatprep.subr.mxu0 %v3634
        %6357 = vmatpush1.msra.mxu0 %v3633
        %6358 = vmatprep.subr.mxu0 %v3626
        %6359 = vmatpush1.msra.mxu0 %v3625
        %6360 = vmatprep.subr.mxu0 %v3618
        %6361 = vmatpush1.msra.mxu0 %v3617
        %6362 = vmatprep.subr.mxu0 %v3610
        %6363 = vmatpush1.msra.mxu0 %v3609
        %6364 = vmatprep.subr.mxu0 %v3602
        %6365 = vmatpush1.msra.mxu0 %v3601
        %6366 = vmatprep.subr.mxu0 %v3594
        %6367 = vmatpush1.msra.mxu0 %v3593
        %6368 = vmatprep.subr.mxu0 %v3586
        %6369 = vmatpush1.msra.mxu0 %v3585
        %6370 = vmatprep.subr.mxu0 %v3578
        %6371 = vmatpush1.msra.mxu0 %v3577
        %6372 = vmatprep.subr.mxu0 %v3570
        %6373 = vmatpush1.msra.mxu0 %v3569
        %6374 = vmatprep.subr.mxu0 %v3562
        %6375 = vmatpush1.msra.mxu0 %v3561
        %6376 = vmatprep.subr.mxu0 %v3554
        %6377 = vmatpush1.msra.mxu0 %v3553
        %6378 = vmatprep.subr.mxu0 %v3546
        %6379 = vmatpush1.msra.mxu0 %v3545
        %6380 = vmatprep.subr.mxu0 %v3538
        %6381 = vmatpush1.msra.mxu0 %v3537
        %6382 = vmatprep.subr.mxu0 %v3530
        %6383 = vmatpush1.msra.mxu0 %v3529
        %6384 = vmatprep.subr.mxu0 %v3522
        %6385 = vmatpush1.msra.mxu0 %v3521
        %6386 = vmatprep.subr.mxu0 %v3514
        %6387 = vmatpush1.msra.mxu0 %v3513
        %6388 = vmatprep.subr.mxu0 %v3762
        %6389 = vmatpush2.msra.mxu0 %v3761
        %6390 = vmatprep.subr.mxu0 %v3754
        %6391 = vmatpush2.msra.mxu0 %v3753
        %6392 = vmatprep.subr.mxu0 %v3746
        %6393 = vmatpush2.msra.mxu0 %v3745
        %6394 = vmatprep.subr.mxu0 %v3738
        %6395 = vmatpush2.msra.mxu0 %v3737
        %6396 = vmatprep.subr.mxu0 %v3730
        %6397 = vmatpush2.msra.mxu0 %v3729
        %6398 = vmatprep.subr.mxu0 %v3722
        %6399 = vmatpush2.msra.mxu0 %v3721
        %6400 = vmatprep.subr.mxu0 %v3714
        %6401 = vmatpush2.msra.mxu0 %v3713
        %6402 = vmatprep.subr.mxu0 %v3706
        %6403 = vmatpush2.msra.mxu0 %v3705
        %6404 = vmatprep.subr.mxu0 %v3698
        %6405 = vmatpush2.msra.mxu0 %v3697
        %6406 = vmatprep.subr.mxu0 %v3690
        %6407 = vmatpush2.msra.mxu0 %v3689
        %6408 = vmatprep.subr.mxu0 %v3682
        %6409 = vmatpush2.msra.mxu0 %v3681
        %6410 = vmatprep.subr.mxu0 %v3674
        %6411 = vmatpush2.msra.mxu0 %v3673
        %6412 = vmatprep.subr.mxu0 %v3666
        %6413 = vmatpush2.msra.mxu0 %v3665
        %6414 = vmatprep.subr.mxu0 %v3658
        %6415 = vmatpush2.msra.mxu0 %v3657
        %6416 = vmatprep.subr.mxu0 %v3650
        %6417 = vmatpush2.msra.mxu0 %v3649
        %6418 = vmatprep.subr.mxu0 %v3642
        %6419 = vmatpush2.msra.mxu0 %v3641
        %6420 = vmatprep.mubr.f32.mxu0 %v5782
        %6421 = vmatmul.mubr.f32.gmra.mxu0 %v5781
        %v6422 = vpop.f32.mrf.mxu0
        %v6423 = vadd.f32 0.0, %v6422
        %v6424 = vpop.f32.mrf.mxu0
        %v6425 = vadd.f32 0.0, %v6424
        %6426 = vdwg.mxu0
        %v6427 = vadd.f32 %v6135, %v6210
        %v6428 = vadd.f32 %v6136, %v6212
        %v6429 = vadd.f32 %v6137, %v6281
        %v6430 = vadd.f32 %v6138, %v6283
        %v6431 = vadd.f32 %v6139, %v6352
        %v6432 = vadd.f32 %v6140, %v6354
        %v6433 = vadd.f32 %v6141, %v6423
        %v6434 = vadd.f32 %v6142, %v6425
        %v6435 = vxor.u32 %v6429, 2147483648
        %v6436 = vxor.u32 %v6430, 2147483648
        %v6437 = vmul.f32 %v6435, 1.442695
        %v6438 = vpow.pop %v6437
        %v6439 = vmul.f32 %v6436, 1.442695
        %v6440 = vpow.pop %v6439
        %v6441 = vadd.f32 %v6438, 1.0
        %v6442 = vadd.f32 %v6440, 1.0
        %v6443 = vrcp.pop %v6441
        %v6444 = vmul.f32 1.0, %v6443
        %v6445 = vrcp.pop %v6442
        %v6446 = vmul.f32 1.0, %v6445
        %v6447 = vmul.f32 %v6444, %v5765
        %v6448 = vmul.f32 %v6446, %v5766
        %v6449 = vxor.u32 %v6427, 2147483648
        %v6450 = vxor.u32 %v6428, 2147483648
        %v6451 = vmul.f32 %v6449, 1.442695
        %v6452 = vpow.pop %v6451
        %v6453 = vmul.f32 %v6450, 1.442695
        %v6454 = vpow.pop %v6453
        %v6455 = vadd.f32 %v6452, 1.0
        %v6456 = vadd.f32 %v6454, 1.0
        %v6457 = vrcp.pop %v6455
        %v6458 = vmul.f32 1.0, %v6457
        %v6459 = vrcp.pop %v6456
        %v6460 = vmul.f32 1.0, %v6459
        %v6461 = vtanh.pop %v6431
        %v6462 = vtanh.pop %v6432
        %v6463 = vmul.f32 %v6458, %v6461
        %v6464 = vmul.f32 %v6460, %v6462
        %v6465 = vadd.f32 %v6447, %v6463
        %v6466 = vadd.f32 %v6448, %v6464
        %v6467 = vxor.u32 %v6433, 2147483648
        %v6468 = vxor.u32 %v6434, 2147483648
        %v6469 = vmul.f32 %v6467, 1.442695
        %v6470 = vpow.pop %v6469
        %v6471 = vmul.f32 %v6468, 1.442695
        %v6472 = vpow.pop %v6471
        %v6473 = vadd.f32 %v6470, 1.0
        %v6474 = vadd.f32 %v6472, 1.0
        %v6475 = vrcp.pop %v6473
        %v6476 = vmul.f32 1.0, %v6475
        %v6477 = vrcp.pop %v6474
        %v6478 = vmul.f32 1.0, %v6477
        %v6479 = vtanh.pop %v6465
        %v6480 = vtanh.pop %v6466
        %v6481 = vmul.f32 %v6476, %v6479
        %v6482 = vmul.f32 %v6478, %v6480
        %v6483 = vld [vmem:[#allocation3] sm:$0xff]
        %v6484 = vld [vmem:[#allocation3 + $0x8] sm:$0xff]
        %v6485 = vld [vmem:[#allocation3 + $0x10] sm:$0xff]
        %v6486 = vld [vmem:[#allocation3 + $0x18] sm:$0xff]
        %v6487 = vld [vmem:[#allocation3 + $0x20] sm:$0xff]
        %v6488 = vld [vmem:[#allocation3 + $0x28] sm:$0xff]
        %v6489 = vld [vmem:[#allocation3 + $0x30] sm:$0xff]
        %v6490 = vld [vmem:[#allocation3 + $0x38] sm:$0xff]
        %6491 = vmatprep.subr.mxu0 %v3884
        %6492 = vmatpush1.msra.mxu0 %v3883
        %6493 = vmatprep.subr.mxu0 %v3876
        %6494 = vmatpush1.msra.mxu0 %v3875
        %6495 = vmatprep.subr.mxu0 %v3868
        %6496 = vmatpush1.msra.mxu0 %v3867
        %6497 = vmatprep.subr.mxu0 %v3860
        %6498 = vmatpush1.msra.mxu0 %v3859
        %6499 = vmatprep.subr.mxu0 %v3852
        %6500 = vmatpush1.msra.mxu0 %v3851
        %6501 = vmatprep.subr.mxu0 %v3844
        %6502 = vmatpush1.msra.mxu0 %v3843
        %6503 = vmatprep.subr.mxu0 %v3836
        %6504 = vmatpush1.msra.mxu0 %v3835
        %6505 = vmatprep.subr.mxu0 %v3828
        %6506 = vmatpush1.msra.mxu0 %v3827
        %6507 = vmatprep.subr.mxu0 %v3820
        %6508 = vmatpush1.msra.mxu0 %v3819
        %6509 = vmatprep.subr.mxu0 %v3812
        %6510 = vmatpush1.msra.mxu0 %v3811
        %6511 = vmatprep.subr.mxu0 %v3804
        %6512 = vmatpush1.msra.mxu0 %v3803
        %6513 = vmatprep.subr.mxu0 %v3796
        %6514 = vmatpush1.msra.mxu0 %v3795
        %6515 = vmatprep.subr.mxu0 %v3788
        %6516 = vmatpush1.msra.mxu0 %v3787
        %6517 = vmatprep.subr.mxu0 %v3780
        %6518 = vmatpush1.msra.mxu0 %v3779
        %6519 = vmatprep.subr.mxu0 %v3772
        %6520 = vmatpush1.msra.mxu0 %v3771
        %6521 = vmatprep.subr.mxu0 %v3764
        %6522 = vmatpush1.msra.mxu0 %v3763
        %6523 = vmatprep.subr.mxu0 %v4012
        %6524 = vmatpush2.msra.mxu0 %v4011
        %6525 = vmatprep.subr.mxu0 %v4004
        %6526 = vmatpush2.msra.mxu0 %v4003
        %6527 = vmatprep.subr.mxu0 %v3996
        %6528 = vmatpush2.msra.mxu0 %v3995
        %6529 = vmatprep.subr.mxu0 %v3988
        %6530 = vmatpush2.msra.mxu0 %v3987
        %6531 = vmatprep.subr.mxu0 %v3980
        %6532 = vmatpush2.msra.mxu0 %v3979
        %6533 = vmatprep.subr.mxu0 %v3972
        %6534 = vmatpush2.msra.mxu0 %v3971
        %6535 = vmatprep.subr.mxu0 %v3964
        %6536 = vmatpush2.msra.mxu0 %v3963
        %6537 = vmatprep.subr.mxu0 %v3956
        %6538 = vmatpush2.msra.mxu0 %v3955
        %6539 = vmatprep.subr.mxu0 %v3948
        %6540 = vmatpush2.msra.mxu0 %v3947
        %6541 = vmatprep.subr.mxu0 %v3940
        %6542 = vmatpush2.msra.mxu0 %v3939
        %6543 = vmatprep.subr.mxu0 %v3932
        %6544 = vmatpush2.msra.mxu0 %v3931
        %6545 = vmatprep.subr.mxu0 %v3924
        %6546 = vmatpush2.msra.mxu0 %v3923
        %6547 = vmatprep.subr.mxu0 %v3916
        %6548 = vmatpush2.msra.mxu0 %v3915
        %6549 = vmatprep.subr.mxu0 %v3908
        %6550 = vmatpush2.msra.mxu0 %v3907
        %6551 = vmatprep.subr.mxu0 %v3900
        %6552 = vmatpush2.msra.mxu0 %v3899
        %6553 = vmatprep.subr.mxu0 %v3892
        %6554 = vmatpush2.msra.mxu0 %v3891
        %6555 = vmatprep.mubr.f32.mxu0 %v6130
        %6556 = vmatmul.mubr.f32.gmra.mxu0 %v6129
        %v6557 = vpop.f32.mrf.mxu0
        %v6558 = vadd.f32 0.0, %v6557
        %v6559 = vpop.f32.mrf.mxu0
        %v6560 = vadd.f32 0.0, %v6559
        %6561 = vdwg.mxu0
        %6562 = vmatprep.subr.mxu0 %v3886
        %6563 = vmatpush1.msra.mxu0 %v3885
        %6564 = vmatprep.subr.mxu0 %v3878
        %6565 = vmatpush1.msra.mxu0 %v3877
        %6566 = vmatprep.subr.mxu0 %v3870
        %6567 = vmatpush1.msra.mxu0 %v3869
        %6568 = vmatprep.subr.mxu0 %v3862
        %6569 = vmatpush1.msra.mxu0 %v3861
        %6570 = vmatprep.subr.mxu0 %v3854
        %6571 = vmatpush1.msra.mxu0 %v3853
        %6572 = vmatprep.subr.mxu0 %v3846
        %6573 = vmatpush1.msra.mxu0 %v3845
        %6574 = vmatprep.subr.mxu0 %v3838
        %6575 = vmatpush1.msra.mxu0 %v3837
        %6576 = vmatprep.subr.mxu0 %v3830
        %6577 = vmatpush1.msra.mxu0 %v3829
        %6578 = vmatprep.subr.mxu0 %v3822
        %6579 = vmatpush1.msra.mxu0 %v3821
        %6580 = vmatprep.subr.mxu0 %v3814
        %6581 = vmatpush1.msra.mxu0 %v3813
        %6582 = vmatprep.subr.mxu0 %v3806
        %6583 = vmatpush1.msra.mxu0 %v3805
        %6584 = vmatprep.subr.mxu0 %v3798
        %6585 = vmatpush1.msra.mxu0 %v3797
        %6586 = vmatprep.subr.mxu0 %v3790
        %6587 = vmatpush1.msra.mxu0 %v3789
        %6588 = vmatprep.subr.mxu0 %v3782
        %6589 = vmatpush1.msra.mxu0 %v3781
        %6590 = vmatprep.subr.mxu0 %v3774
        %6591 = vmatpush1.msra.mxu0 %v3773
        %6592 = vmatprep.subr.mxu0 %v3766
        %6593 = vmatpush1.msra.mxu0 %v3765
        %6594 = vmatprep.subr.mxu0 %v4014
        %6595 = vmatpush2.msra.mxu0 %v4013
        %6596 = vmatprep.subr.mxu0 %v4006
        %6597 = vmatpush2.msra.mxu0 %v4005
        %6598 = vmatprep.subr.mxu0 %v3998
        %6599 = vmatpush2.msra.mxu0 %v3997
        %6600 = vmatprep.subr.mxu0 %v3990
        %6601 = vmatpush2.msra.mxu0 %v3989
        %6602 = vmatprep.subr.mxu0 %v3982
        %6603 = vmatpush2.msra.mxu0 %v3981
        %6604 = vmatprep.subr.mxu0 %v3974
        %6605 = vmatpush2.msra.mxu0 %v3973
        %6606 = vmatprep.subr.mxu0 %v3966
        %6607 = vmatpush2.msra.mxu0 %v3965
        %6608 = vmatprep.subr.mxu0 %v3958
        %6609 = vmatpush2.msra.mxu0 %v3957
        %6610 = vmatprep.subr.mxu0 %v3950
        %6611 = vmatpush2.msra.mxu0 %v3949
        %6612 = vmatprep.subr.mxu0 %v3942
        %6613 = vmatpush2.msra.mxu0 %v3941
        %6614 = vmatprep.subr.mxu0 %v3934
        %6615 = vmatpush2.msra.mxu0 %v3933
        %6616 = vmatprep.subr.mxu0 %v3926
        %6617 = vmatpush2.msra.mxu0 %v3925
        %6618 = vmatprep.subr.mxu0 %v3918
        %6619 = vmatpush2.msra.mxu0 %v3917
        %6620 = vmatprep.subr.mxu0 %v3910
        %6621 = vmatpush2.msra.mxu0 %v3909
        %6622 = vmatprep.subr.mxu0 %v3902
        %6623 = vmatpush2.msra.mxu0 %v3901
        %6624 = vmatprep.subr.mxu0 %v3894
        %6625 = vmatpush2.msra.mxu0 %v3893
        %6626 = vmatprep.mubr.f32.mxu0 %v6130
        %6627 = vmatmul.mubr.f32.gmra.mxu0 %v6129
        %v6628 = vpop.f32.mrf.mxu0
        %v6629 = vadd.f32 0.0, %v6628
        %v6630 = vpop.f32.mrf.mxu0
        %v6631 = vadd.f32 0.0, %v6630
        %6632 = vdwg.mxu0
        %6633 = vmatprep.subr.mxu0 %v3888
        %6634 = vmatpush1.msra.mxu0 %v3887
        %6635 = vmatprep.subr.mxu0 %v3880
        %6636 = vmatpush1.msra.mxu0 %v3879
        %6637 = vmatprep.subr.mxu0 %v3872
        %6638 = vmatpush1.msra.mxu0 %v3871
        %6639 = vmatprep.subr.mxu0 %v3864
        %6640 = vmatpush1.msra.mxu0 %v3863
        %6641 = vmatprep.subr.mxu0 %v3856
        %6642 = vmatpush1.msra.mxu0 %v3855
        %6643 = vmatprep.subr.mxu0 %v3848
        %6644 = vmatpush1.msra.mxu0 %v3847
        %6645 = vmatprep.subr.mxu0 %v3840
        %6646 = vmatpush1.msra.mxu0 %v3839
        %6647 = vmatprep.subr.mxu0 %v3832
        %6648 = vmatpush1.msra.mxu0 %v3831
        %6649 = vmatprep.subr.mxu0 %v3824
        %6650 = vmatpush1.msra.mxu0 %v3823
        %6651 = vmatprep.subr.mxu0 %v3816
        %6652 = vmatpush1.msra.mxu0 %v3815
        %6653 = vmatprep.subr.mxu0 %v3808
        %6654 = vmatpush1.msra.mxu0 %v3807
        %6655 = vmatprep.subr.mxu0 %v3800
        %6656 = vmatpush1.msra.mxu0 %v3799
        %6657 = vmatprep.subr.mxu0 %v3792
        %6658 = vmatpush1.msra.mxu0 %v3791
        %6659 = vmatprep.subr.mxu0 %v3784
        %6660 = vmatpush1.msra.mxu0 %v3783
        %6661 = vmatprep.subr.mxu0 %v3776
        %6662 = vmatpush1.msra.mxu0 %v3775
        %6663 = vmatprep.subr.mxu0 %v3768
        %6664 = vmatpush1.msra.mxu0 %v3767
        %6665 = vmatprep.subr.mxu0 %v4016
        %6666 = vmatpush2.msra.mxu0 %v4015
        %6667 = vmatprep.subr.mxu0 %v4008
        %6668 = vmatpush2.msra.mxu0 %v4007
        %6669 = vmatprep.subr.mxu0 %v4000
        %6670 = vmatpush2.msra.mxu0 %v3999
        %6671 = vmatprep.subr.mxu0 %v3992
        %6672 = vmatpush2.msra.mxu0 %v3991
        %6673 = vmatprep.subr.mxu0 %v3984
        %6674 = vmatpush2.msra.mxu0 %v3983
        %6675 = vmatprep.subr.mxu0 %v3976
        %6676 = vmatpush2.msra.mxu0 %v3975
        %6677 = vmatprep.subr.mxu0 %v3968
        %6678 = vmatpush2.msra.mxu0 %v3967
        %6679 = vmatprep.subr.mxu0 %v3960
        %6680 = vmatpush2.msra.mxu0 %v3959
        %6681 = vmatprep.subr.mxu0 %v3952
        %6682 = vmatpush2.msra.mxu0 %v3951
        %6683 = vmatprep.subr.mxu0 %v3944
        %6684 = vmatpush2.msra.mxu0 %v3943
        %6685 = vmatprep.subr.mxu0 %v3936
        %6686 = vmatpush2.msra.mxu0 %v3935
        %6687 = vmatprep.subr.mxu0 %v3928
        %6688 = vmatpush2.msra.mxu0 %v3927
        %6689 = vmatprep.subr.mxu0 %v3920
        %6690 = vmatpush2.msra.mxu0 %v3919
        %6691 = vmatprep.subr.mxu0 %v3912
        %6692 = vmatpush2.msra.mxu0 %v3911
        %6693 = vmatprep.subr.mxu0 %v3904
        %6694 = vmatpush2.msra.mxu0 %v3903
        %6695 = vmatprep.subr.mxu0 %v3896
        %6696 = vmatpush2.msra.mxu0 %v3895
        %6697 = vmatprep.mubr.f32.mxu0 %v6130
        %6698 = vmatmul.mubr.f32.gmra.mxu0 %v6129
        %v6699 = vpop.f32.mrf.mxu0
        %v6700 = vadd.f32 0.0, %v6699
        %v6701 = vpop.f32.mrf.mxu0
        %v6702 = vadd.f32 0.0, %v6701
        %6703 = vdwg.mxu0
        %6704 = vmatprep.subr.mxu0 %v3890
        %6705 = vmatpush1.msra.mxu0 %v3889
        %6706 = vmatprep.subr.mxu0 %v3882
        %6707 = vmatpush1.msra.mxu0 %v3881
        %6708 = vmatprep.subr.mxu0 %v3874
        %6709 = vmatpush1.msra.mxu0 %v3873
        %6710 = vmatprep.subr.mxu0 %v3866
        %6711 = vmatpush1.msra.mxu0 %v3865
        %6712 = vmatprep.subr.mxu0 %v3858
        %6713 = vmatpush1.msra.mxu0 %v3857
        %6714 = vmatprep.subr.mxu0 %v3850
        %6715 = vmatpush1.msra.mxu0 %v3849
        %6716 = vmatprep.subr.mxu0 %v3842
        %6717 = vmatpush1.msra.mxu0 %v3841
        %6718 = vmatprep.subr.mxu0 %v3834
        %6719 = vmatpush1.msra.mxu0 %v3833
        %6720 = vmatprep.subr.mxu0 %v3826
        %6721 = vmatpush1.msra.mxu0 %v3825
        %6722 = vmatprep.subr.mxu0 %v3818
        %6723 = vmatpush1.msra.mxu0 %v3817
        %6724 = vmatprep.subr.mxu0 %v3810
        %6725 = vmatpush1.msra.mxu0 %v3809
        %6726 = vmatprep.subr.mxu0 %v3802
        %6727 = vmatpush1.msra.mxu0 %v3801
        %6728 = vmatprep.subr.mxu0 %v3794
        %6729 = vmatpush1.msra.mxu0 %v3793
        %6730 = vmatprep.subr.mxu0 %v3786
        %6731 = vmatpush1.msra.mxu0 %v3785
        %6732 = vmatprep.subr.mxu0 %v3778
        %6733 = vmatpush1.msra.mxu0 %v3777
        %6734 = vmatprep.subr.mxu0 %v3770
        %6735 = vmatpush1.msra.mxu0 %v3769
        %6736 = vmatprep.subr.mxu0 %v4018
        %6737 = vmatpush2.msra.mxu0 %v4017
        %6738 = vmatprep.subr.mxu0 %v4010
        %6739 = vmatpush2.msra.mxu0 %v4009
        %6740 = vmatprep.subr.mxu0 %v4002
        %6741 = vmatpush2.msra.mxu0 %v4001
        %6742 = vmatprep.subr.mxu0 %v3994
        %6743 = vmatpush2.msra.mxu0 %v3993
        %6744 = vmatprep.subr.mxu0 %v3986
        %6745 = vmatpush2.msra.mxu0 %v3985
        %6746 = vmatprep.subr.mxu0 %v3978
        %6747 = vmatpush2.msra.mxu0 %v3977
        %6748 = vmatprep.subr.mxu0 %v3970
        %6749 = vmatpush2.msra.mxu0 %v3969
        %6750 = vmatprep.subr.mxu0 %v3962
        %6751 = vmatpush2.msra.mxu0 %v3961
        %6752 = vmatprep.subr.mxu0 %v3954
        %6753 = vmatpush2.msra.mxu0 %v3953
        %6754 = vmatprep.subr.mxu0 %v3946
        %6755 = vmatpush2.msra.mxu0 %v3945
        %6756 = vmatprep.subr.mxu0 %v3938
        %6757 = vmatpush2.msra.mxu0 %v3937
        %6758 = vmatprep.subr.mxu0 %v3930
        %6759 = vmatpush2.msra.mxu0 %v3929
        %6760 = vmatprep.subr.mxu0 %v3922
        %6761 = vmatpush2.msra.mxu0 %v3921
        %6762 = vmatprep.subr.mxu0 %v3914
        %6763 = vmatpush2.msra.mxu0 %v3913
        %6764 = vmatprep.subr.mxu0 %v3906
        %6765 = vmatpush2.msra.mxu0 %v3905
        %6766 = vmatprep.subr.mxu0 %v3898
        %6767 = vmatpush2.msra.mxu0 %v3897
        %6768 = vmatprep.mubr.f32.mxu0 %v6130
        %6769 = vmatmul.mubr.f32.gmra.mxu0 %v6129
        %v6770 = vpop.f32.mrf.mxu0
        %v6771 = vadd.f32 0.0, %v6770
        %v6772 = vpop.f32.mrf.mxu0
        %v6773 = vadd.f32 0.0, %v6772
        %6774 = vdwg.mxu0
        %v6775 = vadd.f32 %v6483, %v6558
        %v6776 = vadd.f32 %v6484, %v6560
        %v6777 = vadd.f32 %v6485, %v6629
        %v6778 = vadd.f32 %v6486, %v6631
        %v6779 = vadd.f32 %v6487, %v6700
        %v6780 = vadd.f32 %v6488, %v6702
        %v6781 = vadd.f32 %v6489, %v6771
        %v6782 = vadd.f32 %v6490, %v6773
        %v6783 = vxor.u32 %v6777, 2147483648
        %v6784 = vxor.u32 %v6778, 2147483648
        %v6785 = vmul.f32 %v6783, 1.442695
        %v6786 = vpow.pop %v6785
        %v6787 = vmul.f32 %v6784, 1.442695
        %v6788 = vpow.pop %v6787
        %v6789 = vadd.f32 %v6786, 1.0
        %v6790 = vadd.f32 %v6788, 1.0
        %v6791 = vrcp.pop %v6789
        %v6792 = vmul.f32 1.0, %v6791
        %v6793 = vrcp.pop %v6790
        %v6794 = vmul.f32 1.0, %v6793
        %v6795 = vmul.f32 %v6792, %v6113
        %v6796 = vmul.f32 %v6794, %v6114
        %v6797 = vxor.u32 %v6775, 2147483648
        %v6798 = vxor.u32 %v6776, 2147483648
        %v6799 = vmul.f32 %v6797, 1.442695
        %v6800 = vpow.pop %v6799
        %v6801 = vmul.f32 %v6798, 1.442695
        %v6802 = vpow.pop %v6801
        %v6803 = vadd.f32 %v6800, 1.0
        %v6804 = vadd.f32 %v6802, 1.0
        %v6805 = vrcp.pop %v6803
        %v6806 = vmul.f32 1.0, %v6805
        %v6807 = vrcp.pop %v6804
        %v6808 = vmul.f32 1.0, %v6807
        %v6809 = vtanh.pop %v6779
        %v6810 = vtanh.pop %v6780
        %v6811 = vmul.f32 %v6806, %v6809
        %v6812 = vmul.f32 %v6808, %v6810
        %v6813 = vadd.f32 %v6795, %v6811
        %v6814 = vadd.f32 %v6796, %v6812
        %v6815 = vxor.u32 %v6781, 2147483648
        %v6816 = vxor.u32 %v6782, 2147483648
        %v6817 = vmul.f32 %v6815, 1.442695
        %v6818 = vpow.pop %v6817
        %v6819 = vmul.f32 %v6816, 1.442695
        %v6820 = vpow.pop %v6819
        %v6821 = vadd.f32 %v6818, 1.0
        %v6822 = vadd.f32 %v6820, 1.0
        %v6823 = vrcp.pop %v6821
        %v6824 = vmul.f32 1.0, %v6823
        %v6825 = vrcp.pop %v6822
        %v6826 = vmul.f32 1.0, %v6825
        %v6827 = vtanh.pop %v6813
        %v6828 = vtanh.pop %v6814
        %v6829 = vmul.f32 %v6824, %v6827
        %v6830 = vmul.f32 %v6826, %v6828
        %v6831 = vmul.f32 %v6481, %v4724
        %v6832 = vmul.f32 %v6482, %v4724
        %v6833 = vmul.f32 %v6829, %v4718
        %v6834 = vmul.f32 %v6830, %v4718
        %v6835 = vld [vmem:[%s524] sm:$0xff]
        %v6836 = vld [vmem:[%s524 + $0x8] sm:$0xff]
        %s6837 = scalar_lea.vmem %s524, 16
        %v6838 = vld [vmem:[%s6837] sm:$0xff]
        %v6839 = vld [vmem:[%s6837 + $0x8] sm:$0xff]
        %v6840 = vmul.f32 %v4719, %v6835
        %v6841 = vmul.f32 %v4720, %v6836
        %v6842 = vmul.f32 %v6833, %v6838
        %v6843 = vmul.f32 %v6834, %v6839
        %v6844 = vadd.f32 %v6840, %v6842
        %v6845 = vadd.f32 %v6841, %v6843
        %v6846 = vadd.f32 %v6844, %v6845
        %6847 = vadd.xlane.f32.xlu0 %v6846
        %v6848 = vpop.xlane.xlu0 %6847
        %v6849 = vmul.f32 %v5427, %v6835
        %v6850 = vmul.f32 %v5428, %v6836
        %v6851 = vmul.f32 %v6133, %v6838
        %v6852 = vmul.f32 %v6134, %v6839
        %v6853 = vadd.f32 %v6849, %v6851
        %v6854 = vadd.f32 %v6850, %v6852
        %v6855 = vadd.f32 %v6853, %v6854
        %6856 = vadd.xlane.f32.xlu0 %v6855
        %v6857 = vpop.xlane.xlu0 %6856
        %v6858 = vmul.f32 %v6131, %v6835
        %v6859 = vmul.f32 %v6132, %v6836
        %v6860 = vmul.f32 %v5433, %v6838
        %v6861 = vmul.f32 %v5434, %v6839
        %v6862 = vadd.f32 %v6858, %v6860
        %v6863 = vadd.f32 %v6859, %v6861
        %v6864 = vadd.f32 %v6862, %v6863
        %6865 = vadd.xlane.f32.xlu0 %v6864
        %v6866 = vpop.xlane.xlu0 %6865
        %v6867 = vmul.f32 %v6831, %v6835
        %v6868 = vmul.f32 %v6832, %v6836
        %v6869 = vmul.f32 %v4725, %v6838
        %v6870 = vmul.f32 %v4726, %v6839
        %v6871 = vadd.f32 %v6867, %v6869
        %v6872 = vadd.f32 %v6868, %v6870
        %v6873 = vadd.f32 %v6871, %v6872
        %6874 = vadd.xlane.f32.xlu0 %v6873
        %v6875 = vpop.xlane.xlu0 %6874
        %vm6876 = vcmask 7168
        %v6877 = vsel %vm6876, %v6848, %v6857
        %vm6878 = vcmask 15360
        %v6879 = vsel %vm6878, %v6877, %v6866
        %vm6880 = vcmask 23552
        %v6881 = vsel %vm6880, %v6879, %v6875
        %vm6882 = vcmask 31744
        %6883 = vst.msk [vmem:[%s528] sm:$0xff] %vm6882, %v6881
        %vm6884 = vcmp.lt.s32.totalorder %v736, %v742
        %vm6885 = vcmp.lt.s32.totalorder %v741, %v1037
        %vm6886 = vmand %vm6884, %vm6885
        %v6887 = vsel %vm6886, %v6881, -4.2949673e+09
        %v6888 = vsel %vm6882, %v6887, -inf
        %6889 = vmax.xlane.f32.xlu0 %v6888
        %v6890 = vpop.xlane.xlu0 %6889
        %v6891 = vsub.f32 %v6887, %v6890
        %v6892 = vmul.f32 %v6891, 1.442695
        %v6893 = vpow.pop %v6892
        %v6894 = vsel %vm6882, %v6893, 0.0
        %6895 = vadd.xlane.f32.xlu0 %v6894
        %v6896 = vpop.xlane.xlu0 %6895
        %v6897 = vrcp.pop %v6896
        %v6898 = vmul.f32 %v6893, %v6897
        %6900 = vset.pattern.permute.xlu0 0
        %6901 = vperm.xlu0 %6900, %v6898
        %v6902 = vpop.permute.xlu0 %6901
        %v6904 = vmul.f32 %v6902, %v4719
        %v6905 = vmul.f32 %v6902, %v4720
        %v6906 = vadd.f32 %v6904, 0.0
        %v6907 = vadd.f32 %v6905, 0.0
        %v6908 = vmul.f32 %v6902, %v6833
        %v6909 = vmul.f32 %v6902, %v6834
        %v6910 = vadd.f32 %v6908, 0.0
        %v6911 = vadd.f32 %v6909, 0.0
        %6912 = vset.pattern.permute.xlu0 1
        %6913 = vperm.xlu0 %6912, %v6898
        %v6914 = vpop.permute.xlu0 %6913
        %v6916 = vmul.f32 %v6914, %v5427
        %v6917 = vmul.f32 %v6914, %v5428
        %v6918 = vadd.f32 %v6906, %v6916
        %v6919 = vadd.f32 %v6907, %v6917
        %v6920 = vmul.f32 %v6914, %v6133
        %v6921 = vmul.f32 %v6914, %v6134
        %v6922 = vadd.f32 %v6910, %v6920
        %v6923 = vadd.f32 %v6911, %v6921
        %6924 = vset.pattern.permute.xlu0 2
        %6925 = vperm.xlu0 %6924, %v6898
        %v6926 = vpop.permute.xlu0 %6925
        %v6928 = vmul.f32 %v6926, %v6131
        %v6929 = vmul.f32 %v6926, %v6132
        %v6930 = vadd.f32 %v6918, %v6928
        %v6931 = vadd.f32 %v6919, %v6929
        %v6932 = vmul.f32 %v6926, %v5433
        %v6933 = vmul.f32 %v6926, %v5434
        %v6934 = vadd.f32 %v6922, %v6932
        %v6935 = vadd.f32 %v6923, %v6933
        %6936 = vset.pattern.permute.xlu0 3
        %6937 = vperm.xlu0 %6936, %v6898
        %v6938 = vpop.permute.xlu0 %6937
        %v6940 = vmul.f32 %v6938, %v6831
        %v6941 = vmul.f32 %v6938, %v6832
        %v6942 = vadd.f32 %v6930, %v6940
        %v6943 = vadd.f32 %v6931, %v6941
        %v6944 = vmul.f32 %v6938, %v4725
        %v6945 = vmul.f32 %v6938, %v4726
        %v6946 = vadd.f32 %v6934, %v6944
        %v6947 = vadd.f32 %v6935, %v6945
        %v6948 = vsub.f32 %v6942, %v6835
        %v6949 = vsub.f32 %v6943, %v6836
        %v6950 = vld [vmem:[%s12] sm:$0xff]
        %v6951 = vld [vmem:[%s12 + $0x8] sm:$0xff]
        %v6952 = vld [vmem:[%s12 + $0x10] sm:$0xff]
        %v6953 = vld [vmem:[%s12 + $0x18] sm:$0xff]
        %v6954 = vld [vmem:[%s12 + $0x20] sm:$0xff]
        %v6955 = vld [vmem:[%s12 + $0x28] sm:$0xff]
        %v6956 = vld [vmem:[%s12 + $0x30] sm:$0xff]
        %v6957 = vld [vmem:[%s12 + $0x38] sm:$0xff]
        %v6958 = vld [vmem:[%s12 + $0x40] sm:$0xff]
        %v6959 = vld [vmem:[%s12 + $0x48] sm:$0xff]
        %v6960 = vld [vmem:[%s12 + $0x50] sm:$0xff]
        %v6961 = vld [vmem:[%s12 + $0x58] sm:$0xff]
        %v6962 = vld [vmem:[%s12 + $0x60] sm:$0xff]
        %v6963 = vld [vmem:[%s12 + $0x68] sm:$0xff]
        %v6964 = vld [vmem:[%s12 + $0x70] sm:$0xff]
        %v6965 = vld [vmem:[%s12 + $0x78] sm:$0xff]
        %v6966 = vld [vmem:[%s12 + $0x80] sm:$0xff]
        %v6967 = vld [vmem:[%s12 + $0x88] sm:$0xff]
        %v6968 = vld [vmem:[%s12 + $0x90] sm:$0xff]
        %v6969 = vld [vmem:[%s12 + $0x98] sm:$0xff]
        %v6970 = vld [vmem:[%s12 + $0xa0] sm:$0xff]
        %v6971 = vld [vmem:[%s12 + $0xa8] sm:$0xff]
        %v6972 = vld [vmem:[%s12 + $0xb0] sm:$0xff]
        %v6973 = vld [vmem:[%s12 + $0xb8] sm:$0xff]
        %v6974 = vld [vmem:[%s12 + $0xc0] sm:$0xff]
        %v6975 = vld [vmem:[%s12 + $0xc8] sm:$0xff]
        %v6976 = vld [vmem:[%s12 + $0xd0] sm:$0xff]
        %v6977 = vld [vmem:[%s12 + $0xd8] sm:$0xff]
        %v6978 = vld [vmem:[%s12 + $0xe0] sm:$0xff]
        %v6979 = vld [vmem:[%s12 + $0xe8] sm:$0xff]
        %v6980 = vld [vmem:[%s12 + $0xf0] sm:$0xff]
        %v6981 = vld [vmem:[%s12 + $0xf8] sm:$0xff]
        %v6982 = vld [vmem:[%s12 + $0x100] sm:$0xff]
        %v6983 = vld [vmem:[%s12 + $0x108] sm:$0xff]
        %v6984 = vld [vmem:[%s12 + $0x110] sm:$0xff]
        %v6985 = vld [vmem:[%s12 + $0x118] sm:$0xff]
        %v6986 = vld [vmem:[%s12 + $0x120] sm:$0xff]
        %v6987 = vld [vmem:[%s12 + $0x128] sm:$0xff]
        %v6988 = vld [vmem:[%s12 + $0x130] sm:$0xff]
        %v6989 = vld [vmem:[%s12 + $0x138] sm:$0xff]
        %v6990 = vld [vmem:[%s12 + $0x140] sm:$0xff]
        %v6991 = vld [vmem:[%s12 + $0x148] sm:$0xff]
        %v6992 = vld [vmem:[%s12 + $0x150] sm:$0xff]
        %v6993 = vld [vmem:[%s12 + $0x158] sm:$0xff]
        %v6994 = vld [vmem:[%s12 + $0x160] sm:$0xff]
        %v6995 = vld [vmem:[%s12 + $0x168] sm:$0xff]
        %v6996 = vld [vmem:[%s12 + $0x170] sm:$0xff]
        %v6997 = vld [vmem:[%s12 + $0x178] sm:$0xff]
        %v6998 = vld [vmem:[%s12 + $0x180] sm:$0xff]
        %v6999 = vld [vmem:[%s12 + $0x188] sm:$0xff]
        %v7000 = vld [vmem:[%s12 + $0x190] sm:$0xff]
        %v7001 = vld [vmem:[%s12 + $0x198] sm:$0xff]
        %v7002 = vld [vmem:[%s12 + $0x1a0] sm:$0xff]
        %v7003 = vld [vmem:[%s12 + $0x1a8] sm:$0xff]
        %v7004 = vld [vmem:[%s12 + $0x1b0] sm:$0xff]
        %v7005 = vld [vmem:[%s12 + $0x1b8] sm:$0xff]
        %v7006 = vld [vmem:[%s12 + $0x1c0] sm:$0xff]
        %v7007 = vld [vmem:[%s12 + $0x1c8] sm:$0xff]
        %v7008 = vld [vmem:[%s12 + $0x1d0] sm:$0xff]
        %v7009 = vld [vmem:[%s12 + $0x1d8] sm:$0xff]
        %v7010 = vld [vmem:[%s12 + $0x1e0] sm:$0xff]
        %v7011 = vld [vmem:[%s12 + $0x1e8] sm:$0xff]
        %v7012 = vld [vmem:[%s12 + $0x1f0] sm:$0xff]
        %v7013 = vld [vmem:[%s12 + $0x1f8] sm:$0xff]
        %v7014 = vld [vmem:[%s12 + $0x200] sm:$0xff]
        %v7015 = vld [vmem:[%s12 + $0x208] sm:$0xff]
        %v7016 = vld [vmem:[%s12 + $0x210] sm:$0xff]
        %v7017 = vld [vmem:[%s12 + $0x218] sm:$0xff]
        %v7018 = vld [vmem:[%s12 + $0x220] sm:$0xff]
        %v7019 = vld [vmem:[%s12 + $0x228] sm:$0xff]
        %v7020 = vld [vmem:[%s12 + $0x230] sm:$0xff]
        %v7021 = vld [vmem:[%s12 + $0x238] sm:$0xff]
        %v7022 = vld [vmem:[%s12 + $0x240] sm:$0xff]
        %v7023 = vld [vmem:[%s12 + $0x248] sm:$0xff]
        %v7024 = vld [vmem:[%s12 + $0x250] sm:$0xff]
        %v7025 = vld [vmem:[%s12 + $0x258] sm:$0xff]
        %v7026 = vld [vmem:[%s12 + $0x260] sm:$0xff]
        %v7027 = vld [vmem:[%s12 + $0x268] sm:$0xff]
        %v7028 = vld [vmem:[%s12 + $0x270] sm:$0xff]
        %v7029 = vld [vmem:[%s12 + $0x278] sm:$0xff]
        %v7030 = vld [vmem:[%s12 + $0x280] sm:$0xff]
        %v7031 = vld [vmem:[%s12 + $0x288] sm:$0xff]
        %v7032 = vld [vmem:[%s12 + $0x290] sm:$0xff]
        %v7033 = vld [vmem:[%s12 + $0x298] sm:$0xff]
        %v7034 = vld [vmem:[%s12 + $0x2a0] sm:$0xff]
        %v7035 = vld [vmem:[%s12 + $0x2a8] sm:$0xff]
        %v7036 = vld [vmem:[%s12 + $0x2b0] sm:$0xff]
        %v7037 = vld [vmem:[%s12 + $0x2b8] sm:$0xff]
        %v7038 = vld [vmem:[%s12 + $0x2c0] sm:$0xff]
        %v7039 = vld [vmem:[%s12 + $0x2c8] sm:$0xff]
        %v7040 = vld [vmem:[%s12 + $0x2d0] sm:$0xff]
        %v7041 = vld [vmem:[%s12 + $0x2d8] sm:$0xff]
        %v7042 = vld [vmem:[%s12 + $0x2e0] sm:$0xff]
        %v7043 = vld [vmem:[%s12 + $0x2e8] sm:$0xff]
        %v7044 = vld [vmem:[%s12 + $0x2f0] sm:$0xff]
        %v7045 = vld [vmem:[%s12 + $0x2f8] sm:$0xff]
        %v7046 = vsub.f32 %v6946, %v6838
        %v7047 = vsub.f32 %v6947, %v6839
        %s7048 = scalar_lea.vmem %s12, 768
        %v7049 = vld [vmem:[%s7048] sm:$0xff]
        %v7050 = vld [vmem:[%s7048 + $0x8] sm:$0xff]
        %v7051 = vld [vmem:[%s7048 + $0x10] sm:$0xff]
        %v7052 = vld [vmem:[%s7048 + $0x18] sm:$0xff]
        %v7053 = vld [vmem:[%s7048 + $0x20] sm:$0xff]
        %v7054 = vld [vmem:[%s7048 + $0x28] sm:$0xff]
        %v7055 = vld [vmem:[%s7048 + $0x30] sm:$0xff]
        %v7056 = vld [vmem:[%s7048 + $0x38] sm:$0xff]
        %v7057 = vld [vmem:[%s7048 + $0x40] sm:$0xff]
        %v7058 = vld [vmem:[%s7048 + $0x48] sm:$0xff]
        %v7059 = vld [vmem:[%s7048 + $0x50] sm:$0xff]
        %v7060 = vld [vmem:[%s7048 + $0x58] sm:$0xff]
        %v7061 = vld [vmem:[%s7048 + $0x60] sm:$0xff]
        %v7062 = vld [vmem:[%s7048 + $0x68] sm:$0xff]
        %v7063 = vld [vmem:[%s7048 + $0x70] sm:$0xff]
        %v7064 = vld [vmem:[%s7048 + $0x78] sm:$0xff]
        %v7065 = vld [vmem:[%s7048 + $0x80] sm:$0xff]
        %v7066 = vld [vmem:[%s7048 + $0x88] sm:$0xff]
        %v7067 = vld [vmem:[%s7048 + $0x90] sm:$0xff]
        %v7068 = vld [vmem:[%s7048 + $0x98] sm:$0xff]
        %v7069 = vld [vmem:[%s7048 + $0xa0] sm:$0xff]
        %v7070 = vld [vmem:[%s7048 + $0xa8] sm:$0xff]
        %v7071 = vld [vmem:[%s7048 + $0xb0] sm:$0xff]
        %v7072 = vld [vmem:[%s7048 + $0xb8] sm:$0xff]
        %v7073 = vld [vmem:[%s7048 + $0xc0] sm:$0xff]
        %v7074 = vld [vmem:[%s7048 + $0xc8] sm:$0xff]
        %v7075 = vld [vmem:[%s7048 + $0xd0] sm:$0xff]
        %v7076 = vld [vmem:[%s7048 + $0xd8] sm:$0xff]
        %v7077 = vld [vmem:[%s7048 + $0xe0] sm:$0xff]
        %v7078 = vld [vmem:[%s7048 + $0xe8] sm:$0xff]
        %v7079 = vld [vmem:[%s7048 + $0xf0] sm:$0xff]
        %v7080 = vld [vmem:[%s7048 + $0xf8] sm:$0xff]
        %v7081 = vld [vmem:[%s7048 + $0x100] sm:$0xff]
        %v7082 = vld [vmem:[%s7048 + $0x108] sm:$0xff]
        %v7083 = vld [vmem:[%s7048 + $0x110] sm:$0xff]
        %v7084 = vld [vmem:[%s7048 + $0x118] sm:$0xff]
        %v7085 = vld [vmem:[%s7048 + $0x120] sm:$0xff]
        %v7086 = vld [vmem:[%s7048 + $0x128] sm:$0xff]
        %v7087 = vld [vmem:[%s7048 + $0x130] sm:$0xff]
        %v7088 = vld [vmem:[%s7048 + $0x138] sm:$0xff]
        %v7089 = vld [vmem:[%s7048 + $0x140] sm:$0xff]
        %v7090 = vld [vmem:[%s7048 + $0x148] sm:$0xff]
        %v7091 = vld [vmem:[%s7048 + $0x150] sm:$0xff]
        %v7092 = vld [vmem:[%s7048 + $0x158] sm:$0xff]
        %v7093 = vld [vmem:[%s7048 + $0x160] sm:$0xff]
        %v7094 = vld [vmem:[%s7048 + $0x168] sm:$0xff]
        %v7095 = vld [vmem:[%s7048 + $0x170] sm:$0xff]
        %v7096 = vld [vmem:[%s7048 + $0x178] sm:$0xff]
        %v7097 = vld [vmem:[%s7048 + $0x180] sm:$0xff]
        %v7098 = vld [vmem:[%s7048 + $0x188] sm:$0xff]
        %v7099 = vld [vmem:[%s7048 + $0x190] sm:$0xff]
        %v7100 = vld [vmem:[%s7048 + $0x198] sm:$0xff]
        %v7101 = vld [vmem:[%s7048 + $0x1a0] sm:$0xff]
        %v7102 = vld [vmem:[%s7048 + $0x1a8] sm:$0xff]
        %v7103 = vld [vmem:[%s7048 + $0x1b0] sm:$0xff]
        %v7104 = vld [vmem:[%s7048 + $0x1b8] sm:$0xff]
        %v7105 = vld [vmem:[%s7048 + $0x1c0] sm:$0xff]
        %v7106 = vld [vmem:[%s7048 + $0x1c8] sm:$0xff]
        %v7107 = vld [vmem:[%s7048 + $0x1d0] sm:$0xff]
        %v7108 = vld [vmem:[%s7048 + $0x1d8] sm:$0xff]
        %v7109 = vld [vmem:[%s7048 + $0x1e0] sm:$0xff]
        %v7110 = vld [vmem:[%s7048 + $0x1e8] sm:$0xff]
        %v7111 = vld [vmem:[%s7048 + $0x1f0] sm:$0xff]
        %v7112 = vld [vmem:[%s7048 + $0x1f8] sm:$0xff]
        %v7113 = vld [vmem:[%s7048 + $0x200] sm:$0xff]
        %v7114 = vld [vmem:[%s7048 + $0x208] sm:$0xff]
        %v7115 = vld [vmem:[%s7048 + $0x210] sm:$0xff]
        %v7116 = vld [vmem:[%s7048 + $0x218] sm:$0xff]
        %v7117 = vld [vmem:[%s7048 + $0x220] sm:$0xff]
        %v7118 = vld [vmem:[%s7048 + $0x228] sm:$0xff]
        %v7119 = vld [vmem:[%s7048 + $0x230] sm:$0xff]
        %v7120 = vld [vmem:[%s7048 + $0x238] sm:$0xff]
        %v7121 = vld [vmem:[%s7048 + $0x240] sm:$0xff]
        %v7122 = vld [vmem:[%s7048 + $0x248] sm:$0xff]
        %v7123 = vld [vmem:[%s7048 + $0x250] sm:$0xff]
        %v7124 = vld [vmem:[%s7048 + $0x258] sm:$0xff]
        %v7125 = vld [vmem:[%s7048 + $0x260] sm:$0xff]
        %v7126 = vld [vmem:[%s7048 + $0x268] sm:$0xff]
        %v7127 = vld [vmem:[%s7048 + $0x270] sm:$0xff]
        %v7128 = vld [vmem:[%s7048 + $0x278] sm:$0xff]
        %v7129 = vld [vmem:[%s7048 + $0x280] sm:$0xff]
        %v7130 = vld [vmem:[%s7048 + $0x288] sm:$0xff]
        %v7131 = vld [vmem:[%s7048 + $0x290] sm:$0xff]
        %v7132 = vld [vmem:[%s7048 + $0x298] sm:$0xff]
        %v7133 = vld [vmem:[%s7048 + $0x2a0] sm:$0xff]
        %v7134 = vld [vmem:[%s7048 + $0x2a8] sm:$0xff]
        %v7135 = vld [vmem:[%s7048 + $0x2b0] sm:$0xff]
        %v7136 = vld [vmem:[%s7048 + $0x2b8] sm:$0xff]
        %v7137 = vld [vmem:[%s7048 + $0x2c0] sm:$0xff]
        %v7138 = vld [vmem:[%s7048 + $0x2c8] sm:$0xff]
        %v7139 = vld [vmem:[%s7048 + $0x2d0] sm:$0xff]
        %v7140 = vld [vmem:[%s7048 + $0x2d8] sm:$0xff]
        %v7141 = vld [vmem:[%s7048 + $0x2e0] sm:$0xff]
        %v7142 = vld [vmem:[%s7048 + $0x2e8] sm:$0xff]
        %v7143 = vld [vmem:[%s7048 + $0x2f0] sm:$0xff]
        %v7144 = vld [vmem:[%s7048 + $0x2f8] sm:$0xff]
        %7145 = vmatprep.subr.mxu0 %v7095
        %7146 = vmatpush1.msra.mxu0 %v7094
        %7147 = vmatprep.subr.mxu0 %v7092
        %7148 = vmatpush1.msra.mxu0 %v7091
        %7149 = vmatprep.subr.mxu0 %v7089
        %7150 = vmatpush1.msra.mxu0 %v7088
        %7151 = vmatprep.subr.mxu0 %v7086
        %7152 = vmatpush1.msra.mxu0 %v7085
        %7153 = vmatprep.subr.mxu0 %v7083
        %7154 = vmatpush1.msra.mxu0 %v7082
        %7155 = vmatprep.subr.mxu0 %v7080
        %7156 = vmatpush1.msra.mxu0 %v7079
        %7157 = vmatprep.subr.mxu0 %v7077
        %7158 = vmatpush1.msra.mxu0 %v7076
        %7159 = vmatprep.subr.mxu0 %v7074
        %7160 = vmatpush1.msra.mxu0 %v7073
        %7161 = vmatprep.subr.mxu0 %v7071
        %7162 = vmatpush1.msra.mxu0 %v7070
        %7163 = vmatprep.subr.mxu0 %v7068
        %7164 = vmatpush1.msra.mxu0 %v7067
        %7165 = vmatprep.subr.mxu0 %v7065
        %7166 = vmatpush1.msra.mxu0 %v7064
        %7167 = vmatprep.subr.mxu0 %v7062
        %7168 = vmatpush1.msra.mxu0 %v7061
        %7169 = vmatprep.subr.mxu0 %v7059
        %7170 = vmatpush1.msra.mxu0 %v7058
        %7171 = vmatprep.subr.mxu0 %v7056
        %7172 = vmatpush1.msra.mxu0 %v7055
        %7173 = vmatprep.subr.mxu0 %v7053
        %7174 = vmatpush1.msra.mxu0 %v7052
        %7175 = vmatprep.subr.mxu0 %v7050
        %7176 = vmatpush1.msra.mxu0 %v7049
        %7177 = vmatprep.subr.mxu0 %v7143
        %7178 = vmatpush2.msra.mxu0 %v7142
        %7179 = vmatprep.subr.mxu0 %v7140
        %7180 = vmatpush2.msra.mxu0 %v7139
        %7181 = vmatprep.subr.mxu0 %v7137
        %7182 = vmatpush2.msra.mxu0 %v7136
        %7183 = vmatprep.subr.mxu0 %v7134
        %7184 = vmatpush2.msra.mxu0 %v7133
        %7185 = vmatprep.subr.mxu0 %v7131
        %7186 = vmatpush2.msra.mxu0 %v7130
        %7187 = vmatprep.subr.mxu0 %v7128
        %7188 = vmatpush2.msra.mxu0 %v7127
        %7189 = vmatprep.subr.mxu0 %v7125
        %7190 = vmatpush2.msra.mxu0 %v7124
        %7191 = vmatprep.subr.mxu0 %v7122
        %7192 = vmatpush2.msra.mxu0 %v7121
        %7193 = vmatprep.subr.mxu0 %v7119
        %7194 = vmatpush2.msra.mxu0 %v7118
        %7195 = vmatprep.subr.mxu0 %v7116
        %7196 = vmatpush2.msra.mxu0 %v7115
        %7197 = vmatprep.subr.mxu0 %v7113
        %7198 = vmatpush2.msra.mxu0 %v7112
        %7199 = vmatprep.subr.mxu0 %v7110
        %7200 = vmatpush2.msra.mxu0 %v7109
        %7201 = vmatprep.subr.mxu0 %v7107
        %7202 = vmatpush2.msra.mxu0 %v7106
        %7203 = vmatprep.subr.mxu0 %v7104
        %7204 = vmatpush2.msra.mxu0 %v7103
        %7205 = vmatprep.subr.mxu0 %v7101
        %7206 = vmatpush2.msra.mxu0 %v7100
        %7207 = vmatprep.subr.mxu0 %v7098
        %7208 = vmatpush2.msra.mxu0 %v7097
        %7209 = vmatprep.mubr.f32.mxu0 %v7047
        %7210 = vmatmul.mubr.f32.gmra.mxu0 %v7046
        %v7211 = vpop.f32.mrf.mxu0
        %v7212 = vadd.f32 0.0, %v7211
        %v7213 = vpop.f32.mrf.mxu0
        %v7214 = vadd.f32 0.0, %v7213
        %7215 = vdwg.mxu0
        %7216 = vmatprep.subr.mxu0 0.0
        %7217 = vmatpush1.msra.mxu0 %v7096
        %7218 = vmatprep.subr.mxu0 0.0
        %7219 = vmatpush1.msra.mxu0 %v7093
        %7220 = vmatprep.subr.mxu0 0.0
        %7221 = vmatpush1.msra.mxu0 %v7090
        %7222 = vmatprep.subr.mxu0 0.0
        %7223 = vmatpush1.msra.mxu0 %v7087
        %7224 = vmatprep.subr.mxu0 0.0
        %7225 = vmatpush1.msra.mxu0 %v7084
        %7226 = vmatprep.subr.mxu0 0.0
        %7227 = vmatpush1.msra.mxu0 %v7081
        %7228 = vmatprep.subr.mxu0 0.0
        %7229 = vmatpush1.msra.mxu0 %v7078
        %7230 = vmatprep.subr.mxu0 0.0
        %7231 = vmatpush1.msra.mxu0 %v7075
        %7232 = vmatprep.subr.mxu0 0.0
        %7233 = vmatpush1.msra.mxu0 %v7072
        %7234 = vmatprep.subr.mxu0 0.0
        %7235 = vmatpush1.msra.mxu0 %v7069
        %7236 = vmatprep.subr.mxu0 0.0
        %7237 = vmatpush1.msra.mxu0 %v7066
        %7238 = vmatprep.subr.mxu0 0.0
        %7239 = vmatpush1.msra.mxu0 %v7063
        %7240 = vmatprep.subr.mxu0 0.0
        %7241 = vmatpush1.msra.mxu0 %v7060
        %7242 = vmatprep.subr.mxu0 0.0
        %7243 = vmatpush1.msra.mxu0 %v7057
        %7244 = vmatprep.subr.mxu0 0.0
        %7245 = vmatpush1.msra.mxu0 %v7054
        %7246 = vmatprep.subr.mxu0 0.0
        %7247 = vmatpush1.msra.mxu0 %v7051
        %7248 = vmatprep.subr.mxu0 0.0
        %7249 = vmatpush2.msra.mxu0 %v7144
        %7250 = vmatprep.subr.mxu0 0.0
        %7251 = vmatpush2.msra.mxu0 %v7141
        %7252 = vmatprep.subr.mxu0 0.0
        %7253 = vmatpush2.msra.mxu0 %v7138
        %7254 = vmatprep.subr.mxu0 0.0
        %7255 = vmatpush2.msra.mxu0 %v7135
        %7256 = vmatprep.subr.mxu0 0.0
        %7257 = vmatpush2.msra.mxu0 %v7132
        %7258 = vmatprep.subr.mxu0 0.0
        %7259 = vmatpush2.msra.mxu0 %v7129
        %7260 = vmatprep.subr.mxu0 0.0
        %7261 = vmatpush2.msra.mxu0 %v7126
        %7262 = vmatprep.subr.mxu0 0.0
        %7263 = vmatpush2.msra.mxu0 %v7123
        %7264 = vmatprep.subr.mxu0 0.0
        %7265 = vmatpush2.msra.mxu0 %v7120
        %7266 = vmatprep.subr.mxu0 0.0
        %7267 = vmatpush2.msra.mxu0 %v7117
        %7268 = vmatprep.subr.mxu0 0.0
        %7269 = vmatpush2.msra.mxu0 %v7114
        %7270 = vmatprep.subr.mxu0 0.0
        %7271 = vmatpush2.msra.mxu0 %v7111
        %7272 = vmatprep.subr.mxu0 0.0
        %7273 = vmatpush2.msra.mxu0 %v7108
        %7274 = vmatprep.subr.mxu0 0.0
        %7275 = vmatpush2.msra.mxu0 %v7105
        %7276 = vmatprep.subr.mxu0 0.0
        %7277 = vmatpush2.msra.mxu0 %v7102
        %7278 = vmatprep.subr.mxu0 0.0
        %7279 = vmatpush2.msra.mxu0 %v7099
        %7280 = vmatprep.mubr.f32.mxu0 %v7047
        %7281 = vmatmul.mubr.f32.gmra.mxu0 %v7046
        %v7282 = vpop.f32.mrf.mxu0
        %v7283 = vadd.f32 0.0, %v7282
        %v7284 = vpop.f32.mrf.mxu0
        %7285 = vdwg.mxu0
        %7286 = vmatprep.subr.mxu0 %v6996
        %7287 = vmatpush1.msra.mxu0 %v6995
        %7288 = vmatprep.subr.mxu0 %v6993
        %7289 = vmatpush1.msra.mxu0 %v6992
        %7290 = vmatprep.subr.mxu0 %v6990
        %7291 = vmatpush1.msra.mxu0 %v6989
        %7292 = vmatprep.subr.mxu0 %v6987
        %7293 = vmatpush1.msra.mxu0 %v6986
        %7294 = vmatprep.subr.mxu0 %v6984
        %7295 = vmatpush1.msra.mxu0 %v6983
        %7296 = vmatprep.subr.mxu0 %v6981
        %7297 = vmatpush1.msra.mxu0 %v6980
        %7298 = vmatprep.subr.mxu0 %v6978
        %7299 = vmatpush1.msra.mxu0 %v6977
        %7300 = vmatprep.subr.mxu0 %v6975
        %7301 = vmatpush1.msra.mxu0 %v6974
        %7302 = vmatprep.subr.mxu0 %v6972
        %7303 = vmatpush1.msra.mxu0 %v6971
        %7304 = vmatprep.subr.mxu0 %v6969
        %7305 = vmatpush1.msra.mxu0 %v6968
        %7306 = vmatprep.subr.mxu0 %v6966
        %7307 = vmatpush1.msra.mxu0 %v6965
        %7308 = vmatprep.subr.mxu0 %v6963
        %7309 = vmatpush1.msra.mxu0 %v6962
        %7310 = vmatprep.subr.mxu0 %v6960
        %7311 = vmatpush1.msra.mxu0 %v6959
        %7312 = vmatprep.subr.mxu0 %v6957
        %7313 = vmatpush1.msra.mxu0 %v6956
        %7314 = vmatprep.subr.mxu0 %v6954
        %7315 = vmatpush1.msra.mxu0 %v6953
        %7316 = vmatprep.subr.mxu0 %v6951
        %7317 = vmatpush1.msra.mxu0 %v6950
        %7318 = vmatprep.subr.mxu0 %v7044
        %7319 = vmatpush2.msra.mxu0 %v7043
        %7320 = vmatprep.subr.mxu0 %v7041
        %7321 = vmatpush2.msra.mxu0 %v7040
        %7322 = vmatprep.subr.mxu0 %v7038
        %7323 = vmatpush2.msra.mxu0 %v7037
        %7324 = vmatprep.subr.mxu0 %v7035
        %7325 = vmatpush2.msra.mxu0 %v7034
        %7326 = vmatprep.subr.mxu0 %v7032
        %7327 = vmatpush2.msra.mxu0 %v7031
        %7328 = vmatprep.subr.mxu0 %v7029
        %7329 = vmatpush2.msra.mxu0 %v7028
        %7330 = vmatprep.subr.mxu0 %v7026
        %7331 = vmatpush2.msra.mxu0 %v7025
        %7332 = vmatprep.subr.mxu0 %v7023
        %7333 = vmatpush2.msra.mxu0 %v7022
        %7334 = vmatprep.subr.mxu0 %v7020
        %7335 = vmatpush2.msra.mxu0 %v7019
        %7336 = vmatprep.subr.mxu0 %v7017
        %7337 = vmatpush2.msra.mxu0 %v7016
        %7338 = vmatprep.subr.mxu0 %v7014
        %7339 = vmatpush2.msra.mxu0 %v7013
        %7340 = vmatprep.subr.mxu0 %v7011
        %7341 = vmatpush2.msra.mxu0 %v7010
        %7342 = vmatprep.subr.mxu0 %v7008
        %7343 = vmatpush2.msra.mxu0 %v7007
        %7344 = vmatprep.subr.mxu0 %v7005
        %7345 = vmatpush2.msra.mxu0 %v7004
        %7346 = vmatprep.subr.mxu0 %v7002
        %7347 = vmatpush2.msra.mxu0 %v7001
        %7348 = vmatprep.subr.mxu0 %v6999
        %7349 = vmatpush2.msra.mxu0 %v6998
        %7350 = vmatprep.mubr.f32.mxu0 %v6949
        %7351 = vmatmul.mubr.f32.gmra.mxu0 %v6948
        %v7352 = vpop.f32.mrf.mxu0
        %v7353 = vadd.f32 %v7212, %v7352
        %v7354 = vpop.f32.mrf.mxu0
        %v7355 = vadd.f32 %v7214, %v7354
        %7356 = vdwg.mxu0
        %7357 = vmatprep.subr.mxu0 0.0
        %7358 = vmatpush1.msra.mxu0 %v6997
        %7359 = vmatprep.subr.mxu0 0.0
        %7360 = vmatpush1.msra.mxu0 %v6994
        %7361 = vmatprep.subr.mxu0 0.0
        %7362 = vmatpush1.msra.mxu0 %v6991
        %7363 = vmatprep.subr.mxu0 0.0
        %7364 = vmatpush1.msra.mxu0 %v6988
        %7365 = vmatprep.subr.mxu0 0.0
        %7366 = vmatpush1.msra.mxu0 %v6985
        %7367 = vmatprep.subr.mxu0 0.0
        %7368 = vmatpush1.msra.mxu0 %v6982
        %7369 = vmatprep.subr.mxu0 0.0
        %7370 = vmatpush1.msra.mxu0 %v6979
        %7371 = vmatprep.subr.mxu0 0.0
        %7372 = vmatpush1.msra.mxu0 %v6976
        %7373 = vmatprep.subr.mxu0 0.0
        %7374 = vmatpush1.msra.mxu0 %v6973
        %7375 = vmatprep.subr.mxu0 0.0
        %7376 = vmatpush1.msra.mxu0 %v6970
        %7377 = vmatprep.subr.mxu0 0.0
        %7378 = vmatpush1.msra.mxu0 %v6967
        %7379 = vmatprep.subr.mxu0 0.0
        %7380 = vmatpush1.msra.mxu0 %v6964
        %7381 = vmatprep.subr.mxu0 0.0
        %7382 = vmatpush1.msra.mxu0 %v6961
        %7383 = vmatprep.subr.mxu0 0.0
        %7384 = vmatpush1.msra.mxu0 %v6958
        %7385 = vmatprep.subr.mxu0 0.0
        %7386 = vmatpush1.msra.mxu0 %v6955
        %7387 = vmatprep.subr.mxu0 0.0
        %7388 = vmatpush1.msra.mxu0 %v6952
        %7389 = vmatprep.subr.mxu0 0.0
        %7390 = vmatpush2.msra.mxu0 %v7045
        %7391 = vmatprep.subr.mxu0 0.0
        %7392 = vmatpush2.msra.mxu0 %v7042
        %7393 = vmatprep.subr.mxu0 0.0
        %7394 = vmatpush2.msra.mxu0 %v7039
        %7395 = vmatprep.subr.mxu0 0.0
        %7396 = vmatpush2.msra.mxu0 %v7036
        %7397 = vmatprep.subr.mxu0 0.0
        %7398 = vmatpush2.msra.mxu0 %v7033
        %7399 = vmatprep.subr.mxu0 0.0
        %7400 = vmatpush2.msra.mxu0 %v7030
        %7401 = vmatprep.subr.mxu0 0.0
        %7402 = vmatpush2.msra.mxu0 %v7027
        %7403 = vmatprep.subr.mxu0 0.0
        %7404 = vmatpush2.msra.mxu0 %v7024
        %7405 = vmatprep.subr.mxu0 0.0
        %7406 = vmatpush2.msra.mxu0 %v7021
        %7407 = vmatprep.subr.mxu0 0.0
        %7408 = vmatpush2.msra.mxu0 %v7018
        %7409 = vmatprep.subr.mxu0 0.0
        %7410 = vmatpush2.msra.mxu0 %v7015
        %7411 = vmatprep.subr.mxu0 0.0
        %7412 = vmatpush2.msra.mxu0 %v7012
        %7413 = vmatprep.subr.mxu0 0.0
        %7414 = vmatpush2.msra.mxu0 %v7009
        %7415 = vmatprep.subr.mxu0 0.0
        %7416 = vmatpush2.msra.mxu0 %v7006
        %7417 = vmatprep.subr.mxu0 0.0
        %7418 = vmatpush2.msra.mxu0 %v7003
        %7419 = vmatprep.subr.mxu0 0.0
        %7420 = vmatpush2.msra.mxu0 %v7000
        %7421 = vmatprep.mubr.f32.mxu0 %v6949
        %7422 = vmatmul.mubr.f32.gmra.mxu0 %v6948
        %v7423 = vpop.f32.mrf.mxu0
        %v7424 = vadd.f32 %v7283, %v7423
        %v7425 = vpop.f32.mrf.mxu0
        %7426 = vdwg.mxu0
        %v7427 = vmul.f32 %v7353, %v7353
        %v7428 = vmul.f32 %v7355, %v7355
        %v7429 = vmul.f32 %v7424, %v7424
        %v7430 = vadd.f32 %v7427, %v7428
        %v7431 = vsel %vm549, %v7429, 0.0
        %v7432 = vadd.f32 %v7430, %v7431
        %7433 = vadd.xlane.f32.xlu0 %v7432
        %v7434 = vpop.xlane.xlu0 %7433
        %v7435 = vrsqrt.pop %v7434
        %v7436 = vmul.f32 %v7434, %v7435
        %vm7437 = vcmp.eq.f32.partialorder %v7434, inf
        %v7438 = vsel %vm7437, %v7434, %v7436
        %vm7439 = vcmp.eq.f32.partialorder %v7434, 0.0
        %v7440 = vand.u32 %v7434, 2147483648
        %v7441 = vsel %vm7439, %v7440, %v7438
        %vm7442 = vcmp.lt.s32.totalorder %v736, 4
        %v7443 = vsel %vm7442, 1, 0
        %v7444 = vcvt.s32.f32 %v7443
        %v7445 = vmul.f32 %v7441, %v7444
        %v7446 = vrot.slane %v7445, 4
        %v7447 = vadd.f32 %v7445, %v7446
        %v7448 = vrot.slane %v7447, 2
        %v7449 = vadd.f32 %v7447, %v7448
        %v7450 = vrot.slane %v7449, 1
        %v7451 = vadd.f32 %v7449, %v7450
        %v7452 = vsub.f32 0.0, %v7451
        %vm7453 = vcmask 0
        %7454 = vst.msk [vmem:[%s531] sm:$0x1] %vm7453, %v7452
        %s7455 = sand.u32 %s279, 1
        %s7456 = scalar_lea.sflag [#allocation10], %s7455
        %s7457 = sand.u32 %s279, 1
        %s7458 = smul.addr %s7457, 32
        %s7459 = scalar_lea.vmem [#allocation14], %s7458
        %p7460 = scmp.lt.s32.totalorder %s46, 1
        %s7461 = scalar_select %p7460, %s46, 1
        %s7462 = smul.addr %s7461, 8
        %s7463 = scalar_lea.vmem %s14, %s7462
        %p7464 = scmp.lt.s32.totalorder %s46, 1
        %s7465 = scalar_select %p7464, %s46, 1
        %s7466 = scalar_lea.vmem %s15, %s7465
        // Predicated region
        $region73: #{tpu_custom_call.1} parent=59 // pred_check
          %p7467 = pneg %p289
        $region74: #{tpu_custom_call.1} parent=59 // pred_check_branch
          %7469 = sbr.rel (%p7467) target = $region76
        $region75: #{tpu_custom_call.1} parent=59 // pred_region
          %s7471 = ssub.s32 512, 512
          %7472 = vsyncadd %s7456, %s7471
          %s7473 = smul.addr %s46, 4
          %s7474 = smul.addr %s7473, 128
          %s7475 = scalar_lea.hbm %s13, %s7474
          %s7476 = sshll.u32 %s7459, 4
          %s7477 = int_to_ptr.vmem [resolvable:$true] %s7476
          %7482 = dma.vmem_to_hbm [thread:$0]  %s7477, 512, %s7475, %s7456, 128, 128, 8
        $region76: #{tpu_custom_call.1} parent=59 // pred_fallthru
          _
        // Predicated region
        $region77: #{tpu_custom_call.1} parent=59 // pred_check
          %p7483 = pneg %p315
        $region78: #{tpu_custom_call.1} parent=59 // pred_check_branch
          %7485 = sbr.rel (%p7483) target = $region80
        $region79: #{tpu_custom_call.1} parent=59 // pred_region
          _
        $region80: #{tpu_custom_call.1} parent=59 // pred_fallthru
          _
        // Predicated region
        $region81: #{tpu_custom_call.1} parent=59 // pred_check
          %p7486 = pneg %p341
        $region82: #{tpu_custom_call.1} parent=59 // pred_check_branch
          %7488 = sbr.rel (%p7486) target = $region84
        $region83: #{tpu_custom_call.1} parent=59 // pred_region
          _
        $region84: #{tpu_custom_call.1} parent=59 // pred_fallthru
          _
      $region60: #{tpu_custom_call.1} parent=5 // pred_fallthru
        _
      %p7489 = scmp.le.s32.totalorder 2, %s41
      // Predicated region
      $region85: #{tpu_custom_call.1} parent=5 // pred_check
        %p7490 = pneg %p7489
      $region86: #{tpu_custom_call.1} parent=5 // pred_check_branch
        %7492 = sbr.rel (%p7490) target = $region88
      $region87: #{tpu_custom_call.1} parent=5 // pred_region
        %s7493 = ssub.s32 %s41, 2
        // Predicated region
        $region89: #{tpu_custom_call.1} parent=87 // pred_check
          %p7494 = pneg %p295
        $region90: #{tpu_custom_call.1} parent=87 // pred_check_branch
          %7496 = sbr.rel (%p7494) target = $region92
        $region91: #{tpu_custom_call.1} parent=87 // pred_region
          %s7497 = sand.u32 %s280, 1
          %s7498 = scalar_lea.sflag [#allocation10], %s7497
          %s7499 = sand.u32 %s280, 1
          %s7500 = smul.addr %s7499, 32
          %s7501 = scalar_lea.vmem [#allocation14], %s7500
          %7502 = dma.done %s7498, 512
        $region92: #{tpu_custom_call.1} parent=87 // pred_fallthru
          _
        // Predicated region
        $region93: #{tpu_custom_call.1} parent=87 // pred_check
          %p7503 = pneg %p321
        $region94: #{tpu_custom_call.1} parent=87 // pred_check_branch
          %7505 = sbr.rel (%p7503) target = $region96
        $region95: #{tpu_custom_call.1} parent=87 // pred_region
          %p7506 = scmp.lt.s32.totalorder %s47, 1
          %s7507 = scalar_select %p7506, %s47, 1
          %s7508 = smul.addr %s7507, 8
          %s7509 = scalar_lea.vmem %s14, %s7508
        $region96: #{tpu_custom_call.1} parent=87 // pred_fallthru
          _
        // Predicated region
        $region97: #{tpu_custom_call.1} parent=87 // pred_check
          %p7510 = pneg %p347
        $region98: #{tpu_custom_call.1} parent=87 // pred_check_branch
          %7512 = sbr.rel (%p7510) target = $region100
        $region99: #{tpu_custom_call.1} parent=87 // pred_region
          %p7513 = scmp.lt.s32.totalorder %s47, 1
          %s7514 = scalar_select %p7513, %s47, 1
          %s7515 = scalar_lea.vmem %s15, %s7514
        $region100: #{tpu_custom_call.1} parent=87 // pred_fallthru
          _
      $region88: #{tpu_custom_call.1} parent=5 // pred_fallthru
        _
    $region6: #{tpu_custom_call.1} parent=1 // loop_footer
      %s45 = sadd.s32 1, %s41
    $region7: #{tpu_custom_call.1} parent=1 // loop_footer_branch
      %40 = sbr.rel target = $region3
    $region8: #{tpu_custom_call.1} parent=1 // loop_exit
      _
    %7516 = vsyncpa [#allocation9], 1
    %s7517 = scalar_lea.sflag [#allocation9], 1
    %7518 = vsyncpa %s7517, 1
    %7519 = vsyncpa [#allocation12], 1
    %7520 = vsyncpa [#allocation10], 1
    %s7521 = scalar_lea.sflag [#allocation10], 1
    %7522 = vsyncpa %s7521, 1

</llo_original>
